<compile_context>
chip_gen: v6e
topology: v6e:2x2x1
jax: 0.10.0
libtpu: 0.0.40
codegen_flags: <defaults>
</compile_context>

<pallas_src>
import jax
import jax.numpy as jnp
from jax.experimental import pallas as pl
from jax.experimental.pallas import tpu as pltpu

# --- module hyper-parameters (from SparseSqueezeNet.__init__) ----------------
NR_CLASSES = 2
NR_BOX = 2
SPARSE_OUT_CHANNELS = 256
CNN_SPATIAL = (5, 7)                                   # self.cnn_spatial_output_size
SPATIAL_PROD = CNN_SPATIAL[0] * CNN_SPATIAL[1]         # 35
LIN_IN = SPATIAL_PROD * SPARSE_OUT_CHANNELS            # 8960 = linear_input_features
HIDDEN = 1024
OUT_PER_CELL = NR_CLASSES + 5 * NR_BOX                 # 12
LIN_OUT = SPATIAL_PROD * OUT_PER_CELL                  # 420

# --- kernel tiling ------------------------------------------------------------
NH = 2                                 # HIDDEN slabs -> leading "parallel" grid axis
HID_BLK = HIDDEN // NH                 # 512
TK = 4480                              # K-tile for linear_1: 8960 / 4480 = 2 steps
LIN_OUT_PAD = 512                      # 420 padded to a multiple of 128


def _head_kernel(x_ref, w1_ref, b1_ref, w2_ref, out_ref, acc_ref):
    """Fused linear_1 + ReLU + partial linear_2 for one HIDDEN slab.

    Grid = (NH, K_steps); axis 0 is parallel (per-TensorCore HIDDEN slab),
    axis 1 is the K reduction of linear_1.  bf16 operands, f32 accumulation.
    """
    k = pl.program_id(1)

    @pl.when(k == 0)
    def _():
        acc_ref[...] = jnp.zeros_like(acc_ref)

    # Partial product of x[:, k-tile] @ W1_slab[k-tile, :]  (bf16 x bf16 -> f32)
    acc_ref[...] += jnp.dot(x_ref[...], w1_ref[0],
                            preferred_element_type=jnp.float32)

    @pl.when(k == pl.num_programs(1) - 1)
    def _():
        # Epilogue kept in f32 (bias + ReLU), h cast to bf16 for the 2nd matmul.
        h = jnp.maximum(acc_ref[...] + b1_ref[0], 0.0)
        y = jnp.dot(h.astype(jnp.bfloat16), w2_ref[0],
                    preferred_element_type=jnp.float32)
        out_ref[0] = y.astype(out_ref.dtype)


def prepare_params(w1, b1, w2, b2):
    """One-time weight packing (do NOT run per forward call).

    w1: [1024, 8960], b1: [1024], w2: [420, 1024], b2: [420]  (torch layouts)
    Returns:
      w1_p: [NH, LIN_IN, HID_BLK]      bf16   (transposed, HIDDEN-sliced)
      b1_p: [NH, 1, HID_BLK]           f32
      w2_p: [NH, HID_BLK, LIN_OUT_PAD] bf16   (transposed, padded, HIDDEN-sliced)
      b2_p: [LIN_OUT_PAD]              f32
    """
    w1_t = jnp.transpose(w1)                                    # [LIN_IN, HIDDEN]
    w1_p = (w1_t.reshape(LIN_IN, NH, HID_BLK)
                .transpose(1, 0, 2)
                .astype(jnp.bfloat16))                          # [NH, LIN_IN, HID_BLK]
    b1_p = b1.reshape(NH, 1, HID_BLK).astype(jnp.float32)

    w2_t = jnp.transpose(w2)                                    # [HIDDEN, LIN_OUT]
    w2_pad = jnp.pad(w2_t, ((0, 0), (0, LIN_OUT_PAD - LIN_OUT)))
    w2_p = w2_pad.reshape(NH, HID_BLK, LIN_OUT_PAD).astype(jnp.bfloat16)
    b2_p = jnp.pad(b2, (0, LIN_OUT_PAD - LIN_OUT)).astype(jnp.float32)
    return w1_p, b1_p, w2_p, b2_p


@jax.jit
def squeeze_head(x_dense, w1_p, b1_p, w2_p, b2_p):
    """x_dense: [B, 256, 5, 7] f32  ->  [B, 5, 7, nr_classes + 5*nr_box] f32."""
    B = x_dense.shape[0]
    # NCHW flatten == torch .view order; activations stream as bf16.
    x_flat = x_dense.reshape(B, LIN_IN).astype(jnp.bfloat16)

    cost = pl.CostEstimate(
        flops=2 * B * LIN_IN * HIDDEN + 2 * B * HIDDEN * LIN_OUT_PAD,
        transcendentals=0,
        bytes_accessed=(w1_p.size * 2 + w2_p.size * 2 + x_flat.size * 2
                        + b1_p.size * 4 + NH * B * LIN_OUT_PAD * 4),
    )

    parts = pl.pallas_call(
        _head_kernel,
        out_shape=jax.ShapeDtypeStruct((NH, B, LIN_OUT_PAD), jnp.float32),
        grid_spec=pltpu.PrefetchScalarGridSpec(
            num_scalar_prefetch=0,
            grid=(NH, LIN_IN // TK),
            in_specs=[
                pl.BlockSpec((B, TK), lambda h, k: (0, k)),                       # x tile
                pl.BlockSpec((1, TK, HID_BLK), lambda h, k: (h, k, 0)),           # W1 slab tile
                pl.BlockSpec((1, 1, HID_BLK), lambda h, k: (h, 0, 0)),            # b1 slab
                pl.BlockSpec((1, HID_BLK, LIN_OUT_PAD), lambda h, k: (h, 0, 0)),  # W2 slab
            ],
            out_specs=pl.BlockSpec((1, B, LIN_OUT_PAD), lambda h, k: (h, 0, 0)),
            scratch_shapes=[pltpu.VMEM((B, HID_BLK), jnp.float32)],
        ),
        compiler_params=pltpu.CompilerParams(
            dimension_semantics=("parallel", "arbitrary"),
            vmem_limit_bytes=32 * 1024 * 1024,
        ),
        cost_estimate=cost,
    )(x_flat, w1_p, b1_p, w2_p)

    # Sum the per-slab linear_2 partials, add bias once, strip lane padding.
    y = parts.sum(axis=0) + b2_p[None, :]
    y = y[:, :LIN_OUT]
    # torch: x.view([-1] + cnn_spatial_output_size + [nr_classes + 5*nr_box])
    return y.reshape(B, CNN_SPATIAL[0], CNN_SPATIAL[1], OUT_PER_CELL)


def _reference_head_quantized(x_dense, w1_p, b1_p, w2_p, b2_p):
    """Pure-JAX reference using the SAME bf16-quantized operands as the kernel."""
    B = x_dense.shape[0]
    hp = jax.lax.Precision.HIGHEST
    x = x_dense.reshape(B, LIN_IN).astype(jnp.bfloat16).astype(jnp.float32)
    w1 = w1_p.astype(jnp.float32).transpose(1, 0, 2).reshape(LIN_IN, HIDDEN)
    b1 = b1_p.astype(jnp.float32).reshape(HIDDEN)
    w2 = w2_p.astype(jnp.float32).reshape(HIDDEN, LIN_OUT_PAD)
    h = jnp.maximum(jnp.dot(x, w1, precision=hp) + b1, 0.0)
    h = h.astype(jnp.bfloat16).astype(jnp.float32)
    y = jnp.dot(h, w2, precision=hp) + b2_p
    y = y[:, :LIN_OUT]
    return y.reshape(B, CNN_SPATIAL[0], CNN_SPATIAL[1], OUT_PER_CELL)


def _reference_head_f32(x_dense, w1, b1, w2, b2):
    """Full-f32 reference matching the original torch module semantics."""
    B = x_dense.shape[0]
    hp = jax.lax.Precision.HIGHEST
    x = x_dense.reshape(B, LIN_IN)
    x = jnp.maximum(jnp.dot(x, w1.T, precision=hp) + b1, 0.0)
    x = jnp.dot(x, w2.T, precision=hp) + b2
    return x.reshape(B, CNN_SPATIAL[0], CNN_SPATIAL[1], OUT_PER_CELL)


if __name__ == "__main__":
    key = jax.random.PRNGKey(0)
    k_x, k_w1, k_b1, k_w2, k_b2 = jax.random.split(key, 5)

    B = 2
    # Dense feature map equivalent to scn.SparseToDense output (NCHW).
    x_dense = jax.random.normal(
        k_x, (B, SPARSE_OUT_CHANNELS, CNN_SPATIAL[0], CNN_SPATIAL[1]),
        dtype=jnp.float32)

    # Deterministic parameter init (torch nn.Linear shapes).
    w1 = jax.random.normal(k_w1, (HIDDEN, LIN_IN), dtype=jnp.float32) * 0.02
    b1 = jax.random.normal(k_b1, (HIDDEN,), dtype=jnp.float32) * 0.02
    w2 = jax.random.normal(k_w2, (LIN_OUT, HIDDEN), dtype=jnp.float32) * 0.02
    b2 = jax.random.normal(k_b2, (LIN_OUT,), dtype=jnp.float32) * 0.02

    # One-time pack (hoisted out of the per-call path).
    w1_p, b1_p, w2_p, b2_p = prepare_params(w1, b1, w2, b2)

    out = squeeze_head(x_dense, w1_p, b1_p, w2_p, b2_p)
    out = jax.block_until_ready(out)

    ref_q = _reference_head_quantized(x_dense, w1_p, b1_p, w2_p, b2_p)
    ref_f = _reference_head_f32(x_dense, w1, b1, w2, b2)

    assert out.shape == (B, CNN_SPATIAL[0], CNN_SPATIAL[1], OUT_PER_CELL), out.shape
    # Exactness of the kernel given its bf16-weight / f32-accumulate policy.
    assert jnp.allclose(out, ref_q, atol=1e-3, rtol=1e-3), "mismatch vs bf16 reference"
    # Fidelity to the original f32 module semantics (bf16 quantization noise only).
    assert jnp.allclose(out, ref_f, atol=5e-2, rtol=5e-2), "mismatch vs f32 reference"

    print("KERNEL_OK")
</pallas_src>

<mosaic_0001>
module attributes {stable_mosaic.version = 11 : i64} {
  func.func @_head_kernel(%arg0: i32, %arg1: i32, %arg2: memref<2x4480xbf16, #tpu.memory_space<vmem>>, %arg3: memref<1x4480x512xbf16, #tpu.memory_space<vmem>>, %arg4: memref<1x1x512xf32, #tpu.memory_space<vmem>>, %arg5: memref<1x512x512xbf16, #tpu.memory_space<vmem>>, %arg6: memref<1x2x512xf32, #tpu.memory_space<vmem>>, %arg7: memref<2x512xf32, #tpu.memory_space<vmem>>) attributes {dimension_semantics = [#tpu.dimension_semantics<parallel>, #tpu.dimension_semantics<arbitrary>], iteration_bounds = array<i64: 2, 2>, scalar_prefetch = 0 : i64, scratch_operands = 1 : i64, tpu.core_type = #tpu.core_type<tc>, window_params = [{transform_indices = @transform_0, window_bounds = array<i64: 2, 4480>}, {transform_indices = @transform_1, window_bounds = array<i64: 1, 4480, 512>}, {transform_indices = @transform_2, window_bounds = array<i64: 1, 1, 512>}, {transform_indices = @transform_3, window_bounds = array<i64: 1, 512, 512>}, {transform_indices = @transform_4, window_bounds = array<i64: 1, 2, 512>}]} {
    %c0_i32 = arith.constant 0 : i32
    %0 = arith.cmpi eq, %arg1, %c0_i32 : i32
    %1 = arith.extui %0 : i1 to i32
    %c0_i32_0 = arith.constant 0 : i32
    %2 = arith.cmpi ne, %1, %c0_i32_0 : i32
    scf.if %2 {
      %cst_10 = arith.constant 0.000000e+00 : f32
      %13 = vector.broadcast %cst_10 : f32 to vector<2x512xf32>
      %c0_11 = arith.constant 0 : index
      %c0_12 = arith.constant 0 : index
      %14 = vector.load %arg7[%c0_11, %c0_12] : memref<2x512xf32, #tpu.memory_space<vmem>>, vector<2x512xf32>
      tpu.vector_store %arg7[%c0_11, %c0_12], %13 {strides = array<i32>} : memref<2x512xf32, #tpu.memory_space<vmem>>, vector<2x512xf32>,
    } else {
    }
    %c0 = arith.constant 0 : index
    %c0_1 = arith.constant 0 : index
    %3 = vector.load %arg7[%c0, %c0_1] : memref<2x512xf32, #tpu.memory_space<vmem>>, vector<2x512xf32>
    %c0_2 = arith.constant 0 : index
    %c0_3 = arith.constant 0 : index
    %4 = vector.load %arg2[%c0_2, %c0_3] : memref<2x4480xbf16, #tpu.memory_space<vmem>>, vector<2x4480xbf16>
    %c0_4 = arith.constant 0 : index
    %c0_5 = arith.constant 0 : index
    %c0_6 = arith.constant 0 : index
    %5 = vector.load %arg3[%c0_4, %c0_5, %c0_6] : memref<1x4480x512xbf16, #tpu.memory_space<vmem>>, vector<1x4480x512xbf16>
    %6 = vector.shape_cast %5 : vector<1x4480x512xbf16> to vector<4480x512xbf16>
    %cst = arith.constant dense<0.000000e+00> : vector<2x512xf32>
    %7 = tpu.matmul %4, %6, %cst {dimension_numbers = #tpu.dot_dimension_numbers<[1], [0], [0], [1], [0, 0, 1, 1], [], []>} : vector<2x4480xbf16>, vector<4480x512xbf16>, vector<2x512xf32> -> vector<2x512xf32>
    %8 = arith.addf %3, %7 : vector<2x512xf32>
    %c0_7 = arith.constant 0 : index
    %c0_8 = arith.constant 0 : index
    %9 = vector.load %arg7[%c0_7, %c0_8] : memref<2x512xf32, #tpu.memory_space<vmem>>, vector<2x512xf32>
    tpu.vector_store %arg7[%c0_7, %c0_8], %8 {strides = array<i32>} : memref<2x512xf32, #tpu.memory_space<vmem>>, vector<2x512xf32>,
    %c1_i32 = arith.constant 1 : i32
    %10 = arith.cmpi eq, %arg1, %c1_i32 : i32
    %11 = arith.extui %10 : i1 to i32
    %c0_i32_9 = arith.constant 0 : i32
    %12 = arith.cmpi ne, %11, %c0_i32_9 : i32
    scf.if %12 {
      %c0_10 = arith.constant 0 : index
      %c0_11 = arith.constant 0 : index
      %13 = vector.load %arg7[%c0_10, %c0_11] : memref<2x512xf32, #tpu.memory_space<vmem>>, vector<2x512xf32>
      %c0_12 = arith.constant 0 : index
      %c0_13 = arith.constant 0 : index
      %c0_14 = arith.constant 0 : index
      %14 = vector.load %arg4[%c0_12, %c0_13, %c0_14] : memref<1x1x512xf32, #tpu.memory_space<vmem>>, vector<1x1x512xf32>
      %15 = vector.shape_cast %14 : vector<1x1x512xf32> to vector<1x512xf32>
      %16 = vector.broadcast %15 : vector<1x512xf32> to vector<2x512xf32>
      %17 = arith.addf %13, %16 : vector<2x512xf32>
      %cst_15 = arith.constant 0.000000e+00 : f32
      %18 = vector.broadcast %cst_15 : f32 to vector<2x512xf32>
      %19 = arith.maximumf %17, %18 : vector<2x512xf32>
      %20 = arith.truncf %19 : vector<2x512xf32> to vector<2x512xbf16>
      %c0_16 = arith.constant 0 : index
      %c0_17 = arith.constant 0 : index
      %c0_18 = arith.constant 0 : index
      %21 = vector.load %arg5[%c0_16, %c0_17, %c0_18] : memref<1x512x512xbf16, #tpu.memory_space<vmem>>, vector<1x512x512xbf16>
      %22 = vector.shape_cast %21 : vector<1x512x512xbf16> to vector<512x512xbf16>
      %cst_19 = arith.constant dense<0.000000e+00> : vector<2x512xf32>
      %23 = tpu.matmul %20, %22, %cst_19 {dimension_numbers = #tpu.dot_dimension_numbers<[1], [0], [0], [1], [0, 0, 1, 1], [], []>} : vector<2x512xbf16>, vector<512x512xbf16>, vector<2x512xf32> -> vector<2x512xf32>
      %c0_20 = arith.constant 0 : index
      %c0_21 = arith.constant 0 : index
      %c0_22 = arith.constant 0 : index
      %24 = vector.load %arg6[%c0_20, %c0_21, %c0_22] : memref<1x2x512xf32, #tpu.memory_space<vmem>>, vector<1x2x512xf32>
      %25 = vector.shape_cast %24 : vector<1x2x512xf32> to vector<2x512xf32>
      %26 = vector.shape_cast %23 : vector<2x512xf32> to vector<1x2x512xf32>
      tpu.vector_store %arg6[%c0_20, %c0_21, %c0_22], %26 {strides = array<i32>} : memref<1x2x512xf32, #tpu.memory_space<vmem>>, vector<1x2x512xf32>,
    } else {
    }
    return
  }
  func.func @transform_0(%arg0: i32, %arg1: i32) -> (i32, i32) {
    %c0_i32 = arith.constant 0 : i32
    %c0_i32_0 = arith.constant 0 : i32
    return %c0_i32, %arg1 : i32, i32
  }
  func.func @transform_1(%arg0: i32, %arg1: i32) -> (i32, i32, i32) {
    %c0_i32 = arith.constant 0 : i32
    %c0_i32_0 = arith.constant 0 : i32
    return %arg0, %arg1, %c0_i32 : i32, i32, i32
  }
  func.func @transform_2(%arg0: i32, %arg1: i32) -> (i32, i32, i32) {
    %c0_i32 = arith.constant 0 : i32
    %c0_i32_0 = arith.constant 0 : i32
    %c0_i32_1 = arith.constant 0 : i32
    return %arg0, %c0_i32, %c0_i32_0 : i32, i32, i32
  }
  func.func @transform_3(%arg0: i32, %arg1: i32) -> (i32, i32, i32) {
    %c0_i32 = arith.constant 0 : i32
    %c0_i32_0 = arith.constant 0 : i32
    %c0_i32_1 = arith.constant 0 : i32
    return %arg0, %c0_i32, %c0_i32_0 : i32, i32, i32
  }
  func.func @transform_4(%arg0: i32, %arg1: i32) -> (i32, i32, i32) {
    %c0_i32 = arith.constant 0 : i32
    %c0_i32_0 = arith.constant 0 : i32
    %c0_i32_1 = arith.constant 0 : i32
    return %arg0, %c0_i32, %c0_i32_0 : i32, i32, i32
  }
}

</mosaic_0001>

<llo_original>
// kernel: squeeze_head.1
$region0: #{squeeze_head.1}
  #allocation0 [shape = 'u32[]', space=smem, size = 0x4, offset = 0x4, fixed_abs, tag = 'smem constant byte address 0x4 - core index']
  #allocation1 [shape = 'u32[144,128]{1,0:T(1,128)}', space=vmem, size = 0x12000, scoped, tag = 'internal scratch']
  #allocation2 [shape = 'f32[2,512]{1,0:T(2,128)}', space=vmem, size = 0x1000, scoped, tag = 'scratch operand']
  %s0 = inlined_call_operand.vmem [shape: bf16[2,8960], index: 0, kind: input, shape index: {}]
  %s1 = inlined_call_operand.hbm [shape: bf16[2,8960,512], index: 1, kind: input, shape index: {}]
  %s2 = inlined_call_operand.hbm [shape: f32[2,1,512], index: 2, kind: input, shape index: {}]
  %s3 = inlined_call_operand.hbm [shape: bf16[2,512,512], index: 3, kind: input, shape index: {}]
  %s4 = inlined_call_operand.vmem [shape: f32[2,2,512], index: 4, kind: output, shape index: {}]
  %s5 = sld [smem:[#allocation0]]
  $region69: #{squeeze_head.1} parent=0
    _
  %s7 = ssub.s32 1, %s5
  %s8 = scalar_select 0, %s7, %s5
  $region1: #{squeeze_head.1} parent=0
    #allocation3 [shape = 'u8[9175040]{0}', space=vmem, size = 0x8c0000, scoped, tag = 'input window, operand 1']
    #allocation4 [shape = 's32[2]{0}', space=sflag, size = 0x8, scoped, tag = 'scoped memory for squeeze_head.1']
    #allocation5 [shape = 'u8[4096]{0}', space=vmem, size = 0x1000, scoped, tag = 'input window, operand 2']
    #allocation6 [shape = 's32[2]{0}', space=sflag, size = 0x8, scoped, tag = 'scoped memory for squeeze_head.1']
    #allocation7 [shape = 'u8[1048576]{0}', space=vmem, size = 0x100000, scoped, tag = 'input window, operand 3']
    %9 = vsyncpa [#allocation4], 0
    %s10 = scalar_lea.sflag [#allocation4], 1
    %11 = vsyncpa %s10, 0
    %12 = vsyncpa [#allocation6], 0
    %s13 = scalar_lea.sflag [#allocation6], 1
    %14 = vsyncpa %s13, 0
    loop: start=0, step=1, limit=6
    $region2: #{squeeze_head.1} parent=1 // loop_pre_header
      _
    $region3: #{squeeze_head.1} parent=1 // loop_header
      %s16 = sphi 0, %s20
      %p17 = scmp.ge.s32.totalorder %s16, 6
      %s23 = sphi 0, %s35
      %s24 = sphi 0, %s31
      %s25 = sphi 0, %s23
      %s26 = sphi 0, %s24
      %s27 = sphi 0, %s25
      %s28 = sphi 0, %s26
      %s38 = sphi 0, %s40
      %s41 = sphi 0, %s38
      %s42 = sphi 0, %s41
      %s58 = sphi 0, %s42
      %s66 = sphi 0, %s68
      %s69 = sphi 0, %s66
      %s70 = sphi 0, %s69
      %s86 = sphi 0, %s70
      %s92 = sphi 0, %s94
      %s95 = sphi 0, %s92
      %s96 = sphi 0, %s95
      %s112 = sphi 0, %s96
      %s118 = sphi 0, %s120
      %s121 = sphi 0, %s118
      %s122 = sphi 0, %s121
      %s138 = sphi 0, %s122
      %s144 = sphi 0, %s146
      %s147 = sphi 0, %s144
      %s148 = sphi 0, %s147
      %s164 = sphi 0, %s148
    $region4: #{squeeze_head.1} parent=1 // loop_header_branch
      %19 = sbr.rel (%p17) target = $region8
    $region5: #{squeeze_head.1} parent=1 // loop_body
      %s21 = ssub.s32 %s16, 1
      %s22 = ssub.s32 %s16, 2
      %s29 = sadd.s32 1, %s24
      %p30 = scmp.ge.s32.totalorder %s29, 2
      %s31 = scalar_select %p30, 0, %s29
      %s32 = sadd.s32 1, %s23
      %s33 = scalar_select %p30, %s32, %s23
      %p34 = scmp.ge.s32.totalorder %s33, 2
      %s35 = scalar_select %p34, 0, %s33
      %s36 = ssub.s32 %s24, %s31
      %p37 = scmp.eq.s32.totalorder %s36, 0
      %s39 = sadd.s32 %s38, 1
      %s40 = scalar_select %p37, %s38, %s39
      %p43 = pneg %p37
      %p44 = scmp.eq.s32.totalorder %s16, 3
      %p45 = por %p43, %p44
      %p46 = scmp.ne.s32.totalorder %s38, %s41
      %p47 = scmp.eq.s32.totalorder %s16, 0
      %p48 = por %p46, %p47
      %p49 = scmp.ne.s32.totalorder %s38, %s41
      %p50 = scmp.eq.s32.totalorder %s21, 3
      %p51 = por %p49, %p50
      %p52 = scmp.ne.s32.totalorder %s41, %s42
      %p53 = scmp.eq.s32.totalorder %s21, 0
      %p54 = por %p52, %p53
      %p55 = scmp.ne.s32.totalorder %s41, %s42
      %p56 = scmp.eq.s32.totalorder %s22, 3
      %p57 = por %p55, %p56
      %p59 = scmp.ne.s32.totalorder %s42, %s58
      %p60 = scmp.eq.s32.totalorder %s22, 0
      %p61 = por %p59, %p60
      %s62 = ssub.s32 %s23, %s35
      %s63 = ssub.s32 %s24, %s31
      %s64 = sor.u32 %s62, %s63
      %p65 = scmp.eq.s32.totalorder %s64, 0
      %s67 = sadd.s32 %s66, 1
      %s68 = scalar_select %p65, %s66, %s67
      %p71 = pneg %p65
      %p72 = scmp.eq.s32.totalorder %s16, 3
      %p73 = por %p71, %p72
      %p74 = scmp.ne.s32.totalorder %s66, %s69
      %p75 = scmp.eq.s32.totalorder %s16, 0
      %p76 = por %p74, %p75
      %p77 = scmp.ne.s32.totalorder %s66, %s69
      %p78 = scmp.eq.s32.totalorder %s21, 3
      %p79 = por %p77, %p78
      %p80 = scmp.ne.s32.totalorder %s69, %s70
      %p81 = scmp.eq.s32.totalorder %s21, 0
      %p82 = por %p80, %p81
      %p83 = scmp.ne.s32.totalorder %s69, %s70
      %p84 = scmp.eq.s32.totalorder %s22, 3
      %p85 = por %p83, %p84
      %p87 = scmp.ne.s32.totalorder %s70, %s86
      %p88 = scmp.eq.s32.totalorder %s22, 0
      %p89 = por %p87, %p88
      %s90 = ssub.s32 %s23, %s35
      %p91 = scmp.eq.s32.totalorder %s90, 0
      %s93 = sadd.s32 %s92, 1
      %s94 = scalar_select %p91, %s92, %s93
      %p97 = pneg %p91
      %p98 = scmp.eq.s32.totalorder %s16, 3
      %p99 = por %p97, %p98
      %p100 = scmp.ne.s32.totalorder %s92, %s95
      %p101 = scmp.eq.s32.totalorder %s16, 0
      %p102 = por %p100, %p101
      %p103 = scmp.ne.s32.totalorder %s92, %s95
      %p104 = scmp.eq.s32.totalorder %s21, 3
      %p105 = por %p103, %p104
      %p106 = scmp.ne.s32.totalorder %s95, %s96
      %p107 = scmp.eq.s32.totalorder %s21, 0
      %p108 = por %p106, %p107
      %p109 = scmp.ne.s32.totalorder %s95, %s96
      %p110 = scmp.eq.s32.totalorder %s22, 3
      %p111 = por %p109, %p110
      %p113 = scmp.ne.s32.totalorder %s96, %s112
      %p114 = scmp.eq.s32.totalorder %s22, 0
      %p115 = por %p113, %p114
      %s116 = ssub.s32 %s23, %s35
      %p117 = scmp.eq.s32.totalorder %s116, 0
      %s119 = sadd.s32 %s118, 1
      %s120 = scalar_select %p117, %s118, %s119
      %p123 = pneg %p117
      %p124 = scmp.eq.s32.totalorder %s16, 3
      %p125 = por %p123, %p124
      %p126 = scmp.ne.s32.totalorder %s118, %s121
      %p127 = scmp.eq.s32.totalorder %s16, 0
      %p128 = por %p126, %p127
      %p129 = scmp.ne.s32.totalorder %s118, %s121
      %p130 = scmp.eq.s32.totalorder %s21, 3
      %p131 = por %p129, %p130
      %p132 = scmp.ne.s32.totalorder %s121, %s122
      %p133 = scmp.eq.s32.totalorder %s21, 0
      %p134 = por %p132, %p133
      %p135 = scmp.ne.s32.totalorder %s121, %s122
      %p136 = scmp.eq.s32.totalorder %s22, 3
      %p137 = por %p135, %p136
      %p139 = scmp.ne.s32.totalorder %s122, %s138
      %p140 = scmp.eq.s32.totalorder %s22, 0
      %p141 = por %p139, %p140
      %s142 = ssub.s32 %s23, %s35
      %p143 = scmp.eq.s32.totalorder %s142, 0
      %s145 = sadd.s32 %s144, 1
      %s146 = scalar_select %p143, %s144, %s145
      %p149 = pneg %p143
      %p150 = scmp.eq.s32.totalorder %s16, 3
      %p151 = por %p149, %p150
      %p152 = scmp.ne.s32.totalorder %s144, %s147
      %p153 = scmp.eq.s32.totalorder %s16, 0
      %p154 = por %p152, %p153
      %p155 = scmp.ne.s32.totalorder %s144, %s147
      %p156 = scmp.eq.s32.totalorder %s21, 3
      %p157 = por %p155, %p156
      %p158 = scmp.ne.s32.totalorder %s147, %s148
      %p159 = scmp.eq.s32.totalorder %s21, 0
      %p160 = por %p158, %p159
      %p161 = scmp.ne.s32.totalorder %s147, %s148
      %p162 = scmp.eq.s32.totalorder %s22, 3
      %p163 = por %p161, %p162
      %p165 = scmp.ne.s32.totalorder %s148, %s164
      %p166 = scmp.eq.s32.totalorder %s22, 0
      %p167 = por %p165, %p166
      %p168 = scmp.le.s32.totalorder 1, %s16
      %p169 = scmp.lt.s32.totalorder %s16, 5
      %p170 = pnand %p168, %p169
      %p171 = pneg %p170
      // Predicated region
      $region9: #{squeeze_head.1} parent=5 // pred_check
        _
      $region10: #{squeeze_head.1} parent=5 // pred_check_branch
        %173 = sbr.rel (%p170) target = $region12
      $region11: #{squeeze_head.1} parent=5 // pred_region
        %s174 = ssub.s32 %s16, 1
      $region12: #{squeeze_head.1} parent=5 // pred_fallthru
        _
      %p175 = scmp.lt.s32.totalorder %s16, 4
      // Predicated region
      $region13: #{squeeze_head.1} parent=5 // pred_check
        %p176 = pneg %p175
      $region14: #{squeeze_head.1} parent=5 // pred_check_branch
        %178 = sbr.rel (%p176) target = $region16
      $region15: #{squeeze_head.1} parent=5 // pred_region
        // Predicated region
        $region17: #{squeeze_head.1} parent=15 // pred_check
          %p179 = pneg %p48
        $region18: #{squeeze_head.1} parent=15 // pred_check_branch
          %181 = sbr.rel (%p179) target = $region20
        $region19: #{squeeze_head.1} parent=15 // pred_region
          %s182 = smul.u32 35, %s24
          %p183 = scmp.lt.s32.totalorder %s182, 69
          %s184 = scalar_select %p183, %s182, 69
          %s185 = scalar_lea.vmem %s0, %s184
          %s186 = smul.u32 35, %s24
        $region20: #{squeeze_head.1} parent=15 // pred_fallthru
          _
        // Predicated region
        $region21: #{squeeze_head.1} parent=15 // pred_check
          %p187 = pneg %p76
        $region22: #{squeeze_head.1} parent=15 // pred_check_branch
          %189 = sbr.rel (%p187) target = $region24
        $region23: #{squeeze_head.1} parent=15 // pred_region
          %s190 = sand.u32 %s66, 1
          %s191 = scalar_lea.sflag [#allocation4], %s190
          %s192 = sand.u32 %s66, 1
          %s193 = smul.addr %s192, 8960
          %s194 = scalar_lea.vmem [#allocation3], %s193
          %s195 = smul.u32 560, %s24
          %s197 = ssub.s32 143360, 143360
          %198 = vsyncadd %s191, %s197
          %s199 = smul.addr %s195, 4
          %s200 = smul.addr %s23, 4480
          %s201 = sadd.s32 %s199, %s200
          %s202 = smul.addr %s201, 64
          %s203 = scalar_lea.hbm %s1, %s202
          %s204 = sshll.u32 %s194, 4
          %s205 = int_to_ptr.vmem [resolvable:$true] %s204
          %210 = dma.hbm_to_vmem [thread:$0]  %s203, 143360, %s205, %s191, 256, 256, 16
        $region24: #{squeeze_head.1} parent=15 // pred_fallthru
          _
        // Predicated region
        $region25: #{squeeze_head.1} parent=15 // pred_check
          %p211 = pneg %p102
        $region26: #{squeeze_head.1} parent=15 // pred_check_branch
          %213 = sbr.rel (%p211) target = $region28
        $region27: #{squeeze_head.1} parent=15 // pred_region
          %s214 = sand.u32 %s16, 1
          %s215 = scalar_lea.sflag [#allocation6], %s214
          %s216 = sand.u32 %s92, 1
          %s217 = smul.addr %s216, 4
          %s218 = scalar_lea.vmem [#allocation5], %s217
          %s220 = ssub.s32 64, 64
          %221 = vsyncadd %s215, %s220
          %s222 = smul.addr %s23, 4
          %s223 = smul.addr %s222, 16
          %s224 = scalar_lea.hbm %s2, %s223
          %s226 = sshll.u32 %s218, 4
          %s227 = int_to_ptr.vmem [resolvable:$true] %s226
          %229 = dma.hbm_to_vmem [thread:$0]  %s224, 64, %s227, %s215
        $region28: #{squeeze_head.1} parent=15 // pred_fallthru
          _
        // Predicated region
        $region29: #{squeeze_head.1} parent=15 // pred_check
          %p230 = pneg %p128
        $region30: #{squeeze_head.1} parent=15 // pred_check_branch
          %232 = sbr.rel (%p230) target = $region32
        $region31: #{squeeze_head.1} parent=15 // pred_region
          %s233 = sand.u32 %s16, 1
          %s234 = scalar_lea.sflag [#allocation6], %s233
          %s235 = sand.u32 %s118, 1
          %s236 = smul.addr %s235, 1024
          %s237 = scalar_lea.vmem [#allocation7], %s236
          %s239 = ssub.s32 16384, 16384
          %240 = vsyncadd %s234, %s239
          %s241 = smul.addr %s23, 256
          %s242 = smul.addr %s241, 64
          %s243 = scalar_lea.hbm %s3, %s242
          %s244 = sshll.u32 %s237, 4
          %s245 = int_to_ptr.vmem [resolvable:$true] %s244
          %250 = dma.hbm_to_vmem [thread:$0]  %s243, 16384, %s245, %s234, 256, 256, 16
        $region32: #{squeeze_head.1} parent=15 // pred_fallthru
          _
      $region16: #{squeeze_head.1} parent=5 // pred_fallthru
        _
      %p251 = scmp.le.s32.totalorder 1, %s16
      %p252 = scmp.lt.s32.totalorder %s16, 5
      %p253 = pnand %p251, %p252
      %p254 = pneg %p253
      // Predicated region
      $region33: #{squeeze_head.1} parent=5 // pred_check
        _
      $region34: #{squeeze_head.1} parent=5 // pred_check_branch
        %256 = sbr.rel (%p253) target = $region36
      $region35: #{squeeze_head.1} parent=5 // pred_region
        %s257 = ssub.s32 %s16, 1
        %s258 = sand.u32 %s69, 1
        %s259 = scalar_lea.sflag [#allocation4], %s258
        %s260 = sand.u32 %s69, 1
        %s261 = smul.addr %s260, 8960
        %s262 = scalar_lea.vmem [#allocation3], %s261
        // Predicated region
        $region37: #{squeeze_head.1} parent=35 // pred_check
          %p263 = pneg %p82
        $region38: #{squeeze_head.1} parent=35 // pred_check_branch
          %265 = sbr.rel (%p263) target = $region40
        $region39: #{squeeze_head.1} parent=35 // pred_region
          %266 = dma.done %s259, 143360
        $region40: #{squeeze_head.1} parent=35 // pred_fallthru
          _
        %s267 = sand.u32 %s21, 1
        %s268 = scalar_lea.sflag [#allocation6], %s267
        %s269 = sand.u32 %s95, 1
        %s270 = smul.addr %s269, 4
        %s271 = scalar_lea.vmem [#allocation5], %s270
        // Predicated region
        $region41: #{squeeze_head.1} parent=35 // pred_check
          %p272 = pneg %p108
        $region42: #{squeeze_head.1} parent=35 // pred_check_branch
          %274 = sbr.rel (%p272) target = $region44
        $region43: #{squeeze_head.1} parent=35 // pred_region
          %275 = dma.done %s268, 64
        $region44: #{squeeze_head.1} parent=35 // pred_fallthru
          _
        %s276 = sand.u32 %s21, 1
        %s277 = scalar_lea.sflag [#allocation6], %s276
        %s278 = sand.u32 %s121, 1
        %s279 = smul.addr %s278, 1024
        %s280 = scalar_lea.vmem [#allocation7], %s279
        // Predicated region
        $region45: #{squeeze_head.1} parent=35 // pred_check
          %p281 = pneg %p134
        $region46: #{squeeze_head.1} parent=35 // pred_check_branch
          %283 = sbr.rel (%p281) target = $region48
        $region47: #{squeeze_head.1} parent=35 // pred_region
          %284 = dma.done %s277, 16384
        $region48: #{squeeze_head.1} parent=35 // pred_fallthru
          _
        %s285 = smul.u32 35, %s26
        %p286 = scmp.lt.s32.totalorder %s285, 69
        %s287 = scalar_select %p286, %s285, 69
        %s288 = scalar_lea.vmem %s0, %s287
        %p289 = pneg %p54
        %p290 = pneg %p51
        %s291 = sand.u32 %s69, 1
        %s292 = scalar_lea.sflag [#allocation4], %s291
        %s293 = sand.u32 %s69, 1
        %s294 = smul.addr %s293, 8960
        %s295 = scalar_lea.vmem [#allocation3], %s294
        %p296 = pneg %p82
        %p297 = pneg %p79
        %s298 = sand.u32 %s21, 1
        %s299 = scalar_lea.sflag [#allocation6], %s298
        %s300 = sand.u32 %s95, 1
        %s301 = smul.addr %s300, 4
        %s302 = scalar_lea.vmem [#allocation5], %s301
        %p303 = pneg %p108
        %p304 = pneg %p105
        %s305 = sand.u32 %s21, 1
        %s306 = scalar_lea.sflag [#allocation6], %s305
        %s307 = sand.u32 %s121, 1
        %s308 = smul.addr %s307, 1024
        %s309 = scalar_lea.vmem [#allocation7], %s308
        %p310 = pneg %p134
        %p311 = pneg %p131
        %p312 = pneg %p160
        %p313 = pneg %p157
        %p314 = scmp.lt.s32.totalorder %s25, 1
        %s315 = scalar_select %p314, %s25, 1
        %s316 = smul.addr %s315, 4
        %s317 = smul.addr %s316, 2
        %s318 = scalar_lea.vmem %s4, %s317
        %s319 = smul.u32 35, %s26
        %p320 = scmp.lt.s32.totalorder %s319, 69
        %s321 = scalar_select %p320, %s319, 69
        %s322 = scalar_lea.vmem %s0, %s321
        %s323 = smul.u32 35, %s26
        %s324 = smul.u32 560, %s26
        %p325 = scmp.lt.s32.totalorder %s25, 1
        %s326 = scalar_select %p325, %s25, 1
        %s327 = smul.addr %s326, 4
        %s328 = smul.addr %s327, 2
        %s329 = scalar_lea.vmem %s4, %s328
        %p331 = scmp.eq.s32.totalorder %s26, 0
        // Predicated region
        $region49: #{squeeze_head.1} parent=35 // pred_check
          %p332 = pneg %p331
        $region50: #{squeeze_head.1} parent=35 // pred_check_branch
          %334 = sbr.rel (%p332) target = $region52
        $region51: #{squeeze_head.1} parent=35 // pred_region
          %335 = vst [vmem:[#allocation2] sm:$0xff] 0.0
        $region52: #{squeeze_head.1} parent=35 // pred_fallthru
          _
        %v336 = vld [vmem:[#allocation2] sm:$0xff]
        %v337 = vld [vmem:[%s322] sm:$0xff]
        %v338 = vld [vmem:[%s322 + $0x8] sm:$0xff]
        %v339 = vld [vmem:[%s322 + $0x10] sm:$0xff]
        %v340 = vld [vmem:[%s322 + $0x18] sm:$0xff]
        %v341 = vld [vmem:[%s322 + $0x20] sm:$0x7]
        %v342 = vld [vmem:[%s262] sm:$0xff]
        %v343 = vld [vmem:[%s262 + $0x8] sm:$0xff]
        %v344 = vld [vmem:[%s262 + $0x10] sm:$0xff]
        %v345 = vld [vmem:[%s262 + $0x18] sm:$0xff]
        %v346 = vld [vmem:[%s262 + $0x20] sm:$0xff]
        %v347 = vld [vmem:[%s262 + $0x28] sm:$0xff]
        %v348 = vld [vmem:[%s262 + $0x30] sm:$0xff]
        %v349 = vld [vmem:[%s262 + $0x38] sm:$0xff]
        %v350 = vld [vmem:[%s262 + $0x40] sm:$0xff]
        %v351 = vld [vmem:[%s262 + $0x48] sm:$0xff]
        %v352 = vld [vmem:[%s262 + $0x50] sm:$0xff]
        %v353 = vld [vmem:[%s262 + $0x58] sm:$0xff]
        %v354 = vld [vmem:[%s262 + $0x60] sm:$0xff]
        %v355 = vld [vmem:[%s262 + $0x68] sm:$0xff]
        %v356 = vld [vmem:[%s262 + $0x70] sm:$0xff]
        %v357 = vld [vmem:[%s262 + $0x78] sm:$0xff]
        %v358 = vld [vmem:[%s262 + $0x80] sm:$0xff]
        %v359 = vld [vmem:[%s262 + $0x88] sm:$0xff]
        %v360 = vld [vmem:[%s262 + $0x90] sm:$0xff]
        %v361 = vld [vmem:[%s262 + $0x98] sm:$0xff]
        %v362 = vld [vmem:[%s262 + $0xa0] sm:$0xff]
        %v363 = vld [vmem:[%s262 + $0xa8] sm:$0xff]
        %v364 = vld [vmem:[%s262 + $0xb0] sm:$0xff]
        %v365 = vld [vmem:[%s262 + $0xb8] sm:$0xff]
        %v366 = vld [vmem:[%s262 + $0xc0] sm:$0xff]
        %v367 = vld [vmem:[%s262 + $0xc8] sm:$0xff]
        %v368 = vld [vmem:[%s262 + $0xd0] sm:$0xff]
        %v369 = vld [vmem:[%s262 + $0xd8] sm:$0xff]
        %v370 = vld [vmem:[%s262 + $0xe0] sm:$0xff]
        %v371 = vld [vmem:[%s262 + $0xe8] sm:$0xff]
        %v372 = vld [vmem:[%s262 + $0xf0] sm:$0xff]
        %v373 = vld [vmem:[%s262 + $0xf8] sm:$0xff]
        %v374 = vld [vmem:[%s262 + $0x100] sm:$0xff]
        %v375 = vld [vmem:[%s262 + $0x108] sm:$0xff]
        %v376 = vld [vmem:[%s262 + $0x110] sm:$0xff]
        %v377 = vld [vmem:[%s262 + $0x118] sm:$0xff]
        %v378 = vld [vmem:[%s262 + $0x120] sm:$0xff]
        %v379 = vld [vmem:[%s262 + $0x128] sm:$0xff]
        %v380 = vld [vmem:[%s262 + $0x130] sm:$0xff]
        %v381 = vld [vmem:[%s262 + $0x138] sm:$0xff]
        %v382 = vld [vmem:[%s262 + $0x140] sm:$0xff]
        %v383 = vld [vmem:[%s262 + $0x148] sm:$0xff]
        %v384 = vld [vmem:[%s262 + $0x150] sm:$0xff]
        %v385 = vld [vmem:[%s262 + $0x158] sm:$0xff]
        %v386 = vld [vmem:[%s262 + $0x160] sm:$0xff]
        %v387 = vld [vmem:[%s262 + $0x168] sm:$0xff]
        %v388 = vld [vmem:[%s262 + $0x170] sm:$0xff]
        %v389 = vld [vmem:[%s262 + $0x178] sm:$0xff]
        %v390 = vld [vmem:[%s262 + $0x180] sm:$0xff]
        %v391 = vld [vmem:[%s262 + $0x188] sm:$0xff]
        %v392 = vld [vmem:[%s262 + $0x190] sm:$0xff]
        %v393 = vld [vmem:[%s262 + $0x198] sm:$0xff]
        %v394 = vld [vmem:[%s262 + $0x1a0] sm:$0xff]
        %v395 = vld [vmem:[%s262 + $0x1a8] sm:$0xff]
        %v396 = vld [vmem:[%s262 + $0x1b0] sm:$0xff]
        %v397 = vld [vmem:[%s262 + $0x1b8] sm:$0xff]
        %v398 = vld [vmem:[%s262 + $0x1c0] sm:$0xff]
        %v399 = vld [vmem:[%s262 + $0x1c8] sm:$0xff]
        %v400 = vld [vmem:[%s262 + $0x1d0] sm:$0xff]
        %v401 = vld [vmem:[%s262 + $0x1d8] sm:$0xff]
        %v402 = vld [vmem:[%s262 + $0x1e0] sm:$0xff]
        %v403 = vld [vmem:[%s262 + $0x1e8] sm:$0xff]
        %v404 = vld [vmem:[%s262 + $0x1f0] sm:$0xff]
        %v405 = vld [vmem:[%s262 + $0x1f8] sm:$0xff]
        %v406 = vld [vmem:[%s262 + $0x200] sm:$0xff]
        %v407 = vld [vmem:[%s262 + $0x208] sm:$0xff]
        %v408 = vld [vmem:[%s262 + $0x210] sm:$0xff]
        %v409 = vld [vmem:[%s262 + $0x218] sm:$0xff]
        %v410 = vld [vmem:[%s262 + $0x220] sm:$0xff]
        %v411 = vld [vmem:[%s262 + $0x228] sm:$0xff]
        %v412 = vld [vmem:[%s262 + $0x230] sm:$0xff]
        %v413 = vld [vmem:[%s262 + $0x238] sm:$0xff]
        %v414 = vld [vmem:[%s262 + $0x240] sm:$0xff]
        %v415 = vld [vmem:[%s262 + $0x248] sm:$0xff]
        %v416 = vld [vmem:[%s262 + $0x250] sm:$0xff]
        %v417 = vld [vmem:[%s262 + $0x258] sm:$0xff]
        %v418 = vld [vmem:[%s262 + $0x260] sm:$0xff]
        %v419 = vld [vmem:[%s262 + $0x268] sm:$0xff]
        %v420 = vld [vmem:[%s262 + $0x270] sm:$0xff]
        %v421 = vld [vmem:[%s262 + $0x278] sm:$0xff]
        %v422 = vld [vmem:[%s262 + $0x280] sm:$0xff]
        %v423 = vld [vmem:[%s262 + $0x288] sm:$0xff]
        %v424 = vld [vmem:[%s262 + $0x290] sm:$0xff]
        %v425 = vld [vmem:[%s262 + $0x298] sm:$0xff]
        %v426 = vld [vmem:[%s262 + $0x2a0] sm:$0xff]
        %v427 = vld [vmem:[%s262 + $0x2a8] sm:$0xff]
        %v428 = vld [vmem:[%s262 + $0x2b0] sm:$0xff]
        %v429 = vld [vmem:[%s262 + $0x2b8] sm:$0xff]
        %v430 = vld [vmem:[%s262 + $0x2c0] sm:$0xff]
        %v431 = vld [vmem:[%s262 + $0x2c8] sm:$0xff]
        %v432 = vld [vmem:[%s262 + $0x2d0] sm:$0xff]
        %v433 = vld [vmem:[%s262 + $0x2d8] sm:$0xff]
        %v434 = vld [vmem:[%s262 + $0x2e0] sm:$0xff]
        %v435 = vld [vmem:[%s262 + $0x2e8] sm:$0xff]
        %v436 = vld [vmem:[%s262 + $0x2f0] sm:$0xff]
        %v437 = vld [vmem:[%s262 + $0x2f8] sm:$0xff]
        %v438 = vld [vmem:[%s262 + $0x300] sm:$0xff]
        %v439 = vld [vmem:[%s262 + $0x308] sm:$0xff]
        %v440 = vld [vmem:[%s262 + $0x310] sm:$0xff]
        %v441 = vld [vmem:[%s262 + $0x318] sm:$0xff]
        %v442 = vld [vmem:[%s262 + $0x320] sm:$0xff]
        %v443 = vld [vmem:[%s262 + $0x328] sm:$0xff]
        %v444 = vld [vmem:[%s262 + $0x330] sm:$0xff]
        %v445 = vld [vmem:[%s262 + $0x338] sm:$0xff]
        %v446 = vld [vmem:[%s262 + $0x340] sm:$0xff]
        %v447 = vld [vmem:[%s262 + $0x348] sm:$0xff]
        %v448 = vld [vmem:[%s262 + $0x350] sm:$0xff]
        %v449 = vld [vmem:[%s262 + $0x358] sm:$0xff]
        %v450 = vld [vmem:[%s262 + $0x360] sm:$0xff]
        %v451 = vld [vmem:[%s262 + $0x368] sm:$0xff]
        %v452 = vld [vmem:[%s262 + $0x370] sm:$0xff]
        %v453 = vld [vmem:[%s262 + $0x378] sm:$0xff]
        %v454 = vld [vmem:[%s262 + $0x380] sm:$0xff]
        %v455 = vld [vmem:[%s262 + $0x388] sm:$0xff]
        %v456 = vld [vmem:[%s262 + $0x390] sm:$0xff]
        %v457 = vld [vmem:[%s262 + $0x398] sm:$0xff]
        %v458 = vld [vmem:[%s262 + $0x3a0] sm:$0xff]
        %v459 = vld [vmem:[%s262 + $0x3a8] sm:$0xff]
        %v460 = vld [vmem:[%s262 + $0x3b0] sm:$0xff]
        %v461 = vld [vmem:[%s262 + $0x3b8] sm:$0xff]
        %v462 = vld [vmem:[%s262 + $0x3c0] sm:$0xff]
        %v463 = vld [vmem:[%s262 + $0x3c8] sm:$0xff]
        %v464 = vld [vmem:[%s262 + $0x3d0] sm:$0xff]
        %v465 = vld [vmem:[%s262 + $0x3d8] sm:$0xff]
        %v466 = vld [vmem:[%s262 + $0x3e0] sm:$0xff]
        %v467 = vld [vmem:[%s262 + $0x3e8] sm:$0xff]
        %v468 = vld [vmem:[%s262 + $0x3f0] sm:$0xff]
        %v469 = vld [vmem:[%s262 + $0x3f8] sm:$0xff]
        %v470 = vld [vmem:[%s262 + $0x400] sm:$0xff]
        %v471 = vld [vmem:[%s262 + $0x408] sm:$0xff]
        %v472 = vld [vmem:[%s262 + $0x410] sm:$0xff]
        %v473 = vld [vmem:[%s262 + $0x418] sm:$0xff]
        %v474 = vld [vmem:[%s262 + $0x420] sm:$0xff]
        %v475 = vld [vmem:[%s262 + $0x428] sm:$0xff]
        %v476 = vld [vmem:[%s262 + $0x430] sm:$0xff]
        %v477 = vld [vmem:[%s262 + $0x438] sm:$0xff]
        %v478 = vld [vmem:[%s262 + $0x440] sm:$0xff]
        %v479 = vld [vmem:[%s262 + $0x448] sm:$0xff]
        %v480 = vld [vmem:[%s262 + $0x450] sm:$0xff]
        %v481 = vld [vmem:[%s262 + $0x458] sm:$0xff]
        %v482 = vld [vmem:[%s262 + $0x460] sm:$0xff]
        %v483 = vld [vmem:[%s262 + $0x468] sm:$0xff]
        %v484 = vld [vmem:[%s262 + $0x470] sm:$0xff]
        %v485 = vld [vmem:[%s262 + $0x478] sm:$0xff]
        %v486 = vld [vmem:[%s262 + $0x480] sm:$0xff]
        %v487 = vld [vmem:[%s262 + $0x488] sm:$0xff]
        %v488 = vld [vmem:[%s262 + $0x490] sm:$0xff]
        %v489 = vld [vmem:[%s262 + $0x498] sm:$0xff]
        %v490 = vld [vmem:[%s262 + $0x4a0] sm:$0xff]
        %v491 = vld [vmem:[%s262 + $0x4a8] sm:$0xff]
        %v492 = vld [vmem:[%s262 + $0x4b0] sm:$0xff]
        %v493 = vld [vmem:[%s262 + $0x4b8] sm:$0xff]
        %v494 = vld [vmem:[%s262 + $0x4c0] sm:$0xff]
        %v495 = vld [vmem:[%s262 + $0x4c8] sm:$0xff]
        %v496 = vld [vmem:[%s262 + $0x4d0] sm:$0xff]
        %v497 = vld [vmem:[%s262 + $0x4d8] sm:$0xff]
        %v498 = vld [vmem:[%s262 + $0x4e0] sm:$0xff]
        %v499 = vld [vmem:[%s262 + $0x4e8] sm:$0xff]
        %v500 = vld [vmem:[%s262 + $0x4f0] sm:$0xff]
        %v501 = vld [vmem:[%s262 + $0x4f8] sm:$0xff]
        %v502 = vld [vmem:[%s262 + $0x500] sm:$0xff]
        %v503 = vld [vmem:[%s262 + $0x508] sm:$0xff]
        %v504 = vld [vmem:[%s262 + $0x510] sm:$0xff]
        %v505 = vld [vmem:[%s262 + $0x518] sm:$0xff]
        %v506 = vld [vmem:[%s262 + $0x520] sm:$0xff]
        %v507 = vld [vmem:[%s262 + $0x528] sm:$0xff]
        %v508 = vld [vmem:[%s262 + $0x530] sm:$0xff]
        %v509 = vld [vmem:[%s262 + $0x538] sm:$0xff]
        %v510 = vld [vmem:[%s262 + $0x540] sm:$0xff]
        %v511 = vld [vmem:[%s262 + $0x548] sm:$0xff]
        %v512 = vld [vmem:[%s262 + $0x550] sm:$0xff]
        %v513 = vld [vmem:[%s262 + $0x558] sm:$0xff]
        %v514 = vld [vmem:[%s262 + $0x560] sm:$0xff]
        %v515 = vld [vmem:[%s262 + $0x568] sm:$0xff]
        %v516 = vld [vmem:[%s262 + $0x570] sm:$0xff]
        %v517 = vld [vmem:[%s262 + $0x578] sm:$0xff]
        %v518 = vld [vmem:[%s262 + $0x580] sm:$0xff]
        %v519 = vld [vmem:[%s262 + $0x588] sm:$0xff]
        %v520 = vld [vmem:[%s262 + $0x590] sm:$0xff]
        %v521 = vld [vmem:[%s262 + $0x598] sm:$0xff]
        %v522 = vld [vmem:[%s262 + $0x5a0] sm:$0xff]
        %v523 = vld [vmem:[%s262 + $0x5a8] sm:$0xff]
        %v524 = vld [vmem:[%s262 + $0x5b0] sm:$0xff]
        %v525 = vld [vmem:[%s262 + $0x5b8] sm:$0xff]
        %v526 = vld [vmem:[%s262 + $0x5c0] sm:$0xff]
        %v527 = vld [vmem:[%s262 + $0x5c8] sm:$0xff]
        %v528 = vld [vmem:[%s262 + $0x5d0] sm:$0xff]
        %v529 = vld [vmem:[%s262 + $0x5d8] sm:$0xff]
        %v530 = vld [vmem:[%s262 + $0x5e0] sm:$0xff]
        %v531 = vld [vmem:[%s262 + $0x5e8] sm:$0xff]
        %v532 = vld [vmem:[%s262 + $0x5f0] sm:$0xff]
        %v533 = vld [vmem:[%s262 + $0x5f8] sm:$0xff]
        %v534 = vld [vmem:[%s262 + $0x600] sm:$0xff]
        %v535 = vld [vmem:[%s262 + $0x608] sm:$0xff]
        %v536 = vld [vmem:[%s262 + $0x610] sm:$0xff]
        %v537 = vld [vmem:[%s262 + $0x618] sm:$0xff]
        %v538 = vld [vmem:[%s262 + $0x620] sm:$0xff]
        %v539 = vld [vmem:[%s262 + $0x628] sm:$0xff]
        %v540 = vld [vmem:[%s262 + $0x630] sm:$0xff]
        %v541 = vld [vmem:[%s262 + $0x638] sm:$0xff]
        %v542 = vld [vmem:[%s262 + $0x640] sm:$0xff]
        %v543 = vld [vmem:[%s262 + $0x648] sm:$0xff]
        %v544 = vld [vmem:[%s262 + $0x650] sm:$0xff]
        %v545 = vld [vmem:[%s262 + $0x658] sm:$0xff]
        %v546 = vld [vmem:[%s262 + $0x660] sm:$0xff]
        %v547 = vld [vmem:[%s262 + $0x668] sm:$0xff]
        %v548 = vld [vmem:[%s262 + $0x670] sm:$0xff]
        %v549 = vld [vmem:[%s262 + $0x678] sm:$0xff]
        %v550 = vld [vmem:[%s262 + $0x680] sm:$0xff]
        %v551 = vld [vmem:[%s262 + $0x688] sm:$0xff]
        %v552 = vld [vmem:[%s262 + $0x690] sm:$0xff]
        %v553 = vld [vmem:[%s262 + $0x698] sm:$0xff]
        %v554 = vld [vmem:[%s262 + $0x6a0] sm:$0xff]
        %v555 = vld [vmem:[%s262 + $0x6a8] sm:$0xff]
        %v556 = vld [vmem:[%s262 + $0x6b0] sm:$0xff]
        %v557 = vld [vmem:[%s262 + $0x6b8] sm:$0xff]
        %v558 = vld [vmem:[%s262 + $0x6c0] sm:$0xff]
        %v559 = vld [vmem:[%s262 + $0x6c8] sm:$0xff]
        %v560 = vld [vmem:[%s262 + $0x6d0] sm:$0xff]
        %v561 = vld [vmem:[%s262 + $0x6d8] sm:$0xff]
        %v562 = vld [vmem:[%s262 + $0x6e0] sm:$0xff]
        %v563 = vld [vmem:[%s262 + $0x6e8] sm:$0xff]
        %v564 = vld [vmem:[%s262 + $0x6f0] sm:$0xff]
        %v565 = vld [vmem:[%s262 + $0x6f8] sm:$0xff]
        %v566 = vld [vmem:[%s262 + $0x700] sm:$0xff]
        %v567 = vld [vmem:[%s262 + $0x708] sm:$0xff]
        %v568 = vld [vmem:[%s262 + $0x710] sm:$0xff]
        %v569 = vld [vmem:[%s262 + $0x718] sm:$0xff]
        %v570 = vld [vmem:[%s262 + $0x720] sm:$0xff]
        %v571 = vld [vmem:[%s262 + $0x728] sm:$0xff]
        %v572 = vld [vmem:[%s262 + $0x730] sm:$0xff]
        %v573 = vld [vmem:[%s262 + $0x738] sm:$0xff]
        %v574 = vld [vmem:[%s262 + $0x740] sm:$0xff]
        %v575 = vld [vmem:[%s262 + $0x748] sm:$0xff]
        %v576 = vld [vmem:[%s262 + $0x750] sm:$0xff]
        %v577 = vld [vmem:[%s262 + $0x758] sm:$0xff]
        %v578 = vld [vmem:[%s262 + $0x760] sm:$0xff]
        %v579 = vld [vmem:[%s262 + $0x768] sm:$0xff]
        %v580 = vld [vmem:[%s262 + $0x770] sm:$0xff]
        %v581 = vld [vmem:[%s262 + $0x778] sm:$0xff]
        %v582 = vld [vmem:[%s262 + $0x780] sm:$0xff]
        %v583 = vld [vmem:[%s262 + $0x788] sm:$0xff]
        %v584 = vld [vmem:[%s262 + $0x790] sm:$0xff]
        %v585 = vld [vmem:[%s262 + $0x798] sm:$0xff]
        %v586 = vld [vmem:[%s262 + $0x7a0] sm:$0xff]
        %v587 = vld [vmem:[%s262 + $0x7a8] sm:$0xff]
        %v588 = vld [vmem:[%s262 + $0x7b0] sm:$0xff]
        %v589 = vld [vmem:[%s262 + $0x7b8] sm:$0xff]
        %v590 = vld [vmem:[%s262 + $0x7c0] sm:$0xff]
        %v591 = vld [vmem:[%s262 + $0x7c8] sm:$0xff]
        %v592 = vld [vmem:[%s262 + $0x7d0] sm:$0xff]
        %v593 = vld [vmem:[%s262 + $0x7d8] sm:$0xff]
        %v594 = vld [vmem:[%s262 + $0x7e0] sm:$0xff]
        %v595 = vld [vmem:[%s262 + $0x7e8] sm:$0xff]
        %v596 = vld [vmem:[%s262 + $0x7f0] sm:$0xff]
        %v597 = vld [vmem:[%s262 + $0x7f8] sm:$0xff]
        %v598 = vld [vmem:[%s262 + $0x800] sm:$0xff]
        %v599 = vld [vmem:[%s262 + $0x808] sm:$0xff]
        %v600 = vld [vmem:[%s262 + $0x810] sm:$0xff]
        %v601 = vld [vmem:[%s262 + $0x818] sm:$0xff]
        %v602 = vld [vmem:[%s262 + $0x820] sm:$0xff]
        %v603 = vld [vmem:[%s262 + $0x828] sm:$0xff]
        %v604 = vld [vmem:[%s262 + $0x830] sm:$0xff]
        %v605 = vld [vmem:[%s262 + $0x838] sm:$0xff]
        %v606 = vld [vmem:[%s262 + $0x840] sm:$0xff]
        %v607 = vld [vmem:[%s262 + $0x848] sm:$0xff]
        %v608 = vld [vmem:[%s262 + $0x850] sm:$0xff]
        %v609 = vld [vmem:[%s262 + $0x858] sm:$0xff]
        %v610 = vld [vmem:[%s262 + $0x860] sm:$0xff]
        %v611 = vld [vmem:[%s262 + $0x868] sm:$0xff]
        %v612 = vld [vmem:[%s262 + $0x870] sm:$0xff]
        %v613 = vld [vmem:[%s262 + $0x878] sm:$0xff]
        %v614 = vld [vmem:[%s262 + $0x880] sm:$0xff]
        %v615 = vld [vmem:[%s262 + $0x888] sm:$0xff]
        %v616 = vld [vmem:[%s262 + $0x890] sm:$0xff]
        %v617 = vld [vmem:[%s262 + $0x898] sm:$0xff]
        %v618 = vld [vmem:[%s262 + $0x8a0] sm:$0xff]
        %v619 = vld [vmem:[%s262 + $0x8a8] sm:$0xff]
        %v620 = vld [vmem:[%s262 + $0x8b0] sm:$0xff]
        %v621 = vld [vmem:[%s262 + $0x8b8] sm:$0xff]
        %v622 = vld [vmem:[%s262 + $0x8c0] sm:$0xff]
        %v623 = vld [vmem:[%s262 + $0x8c8] sm:$0xff]
        %v624 = vld [vmem:[%s262 + $0x8d0] sm:$0xff]
        %v625 = vld [vmem:[%s262 + $0x8d8] sm:$0xff]
        %v626 = vld [vmem:[%s262 + $0x8e0] sm:$0xff]
        %v627 = vld [vmem:[%s262 + $0x8e8] sm:$0xff]
        %v628 = vld [vmem:[%s262 + $0x8f0] sm:$0xff]
        %v629 = vld [vmem:[%s262 + $0x8f8] sm:$0xff]
        %v630 = vld [vmem:[%s262 + $0x900] sm:$0xff]
        %v631 = vld [vmem:[%s262 + $0x908] sm:$0xff]
        %v632 = vld [vmem:[%s262 + $0x910] sm:$0xff]
        %v633 = vld [vmem:[%s262 + $0x918] sm:$0xff]
        %v634 = vld [vmem:[%s262 + $0x920] sm:$0xff]
        %v635 = vld [vmem:[%s262 + $0x928] sm:$0xff]
        %v636 = vld [vmem:[%s262 + $0x930] sm:$0xff]
        %v637 = vld [vmem:[%s262 + $0x938] sm:$0xff]
        %v638 = vld [vmem:[%s262 + $0x940] sm:$0xff]
        %v639 = vld [vmem:[%s262 + $0x948] sm:$0xff]
        %v640 = vld [vmem:[%s262 + $0x950] sm:$0xff]
        %v641 = vld [vmem:[%s262 + $0x958] sm:$0xff]
        %v642 = vld [vmem:[%s262 + $0x960] sm:$0xff]
        %v643 = vld [vmem:[%s262 + $0x968] sm:$0xff]
        %v644 = vld [vmem:[%s262 + $0x970] sm:$0xff]
        %v645 = vld [vmem:[%s262 + $0x978] sm:$0xff]
        %v646 = vld [vmem:[%s262 + $0x980] sm:$0xff]
        %v647 = vld [vmem:[%s262 + $0x988] sm:$0xff]
        %v648 = vld [vmem:[%s262 + $0x990] sm:$0xff]
        %v649 = vld [vmem:[%s262 + $0x998] sm:$0xff]
        %v650 = vld [vmem:[%s262 + $0x9a0] sm:$0xff]
        %v651 = vld [vmem:[%s262 + $0x9a8] sm:$0xff]
        %v652 = vld [vmem:[%s262 + $0x9b0] sm:$0xff]
        %v653 = vld [vmem:[%s262 + $0x9b8] sm:$0xff]
        %v654 = vld [vmem:[%s262 + $0x9c0] sm:$0xff]
        %v655 = vld [vmem:[%s262 + $0x9c8] sm:$0xff]
        %v656 = vld [vmem:[%s262 + $0x9d0] sm:$0xff]
        %v657 = vld [vmem:[%s262 + $0x9d8] sm:$0xff]
        %v658 = vld [vmem:[%s262 + $0x9e0] sm:$0xff]
        %v659 = vld [vmem:[%s262 + $0x9e8] sm:$0xff]
        %v660 = vld [vmem:[%s262 + $0x9f0] sm:$0xff]
        %v661 = vld [vmem:[%s262 + $0x9f8] sm:$0xff]
        %v662 = vld [vmem:[%s262 + $0xa00] sm:$0xff]
        %v663 = vld [vmem:[%s262 + $0xa08] sm:$0xff]
        %v664 = vld [vmem:[%s262 + $0xa10] sm:$0xff]
        %v665 = vld [vmem:[%s262 + $0xa18] sm:$0xff]
        %v666 = vld [vmem:[%s262 + $0xa20] sm:$0xff]
        %v667 = vld [vmem:[%s262 + $0xa28] sm:$0xff]
        %v668 = vld [vmem:[%s262 + $0xa30] sm:$0xff]
        %v669 = vld [vmem:[%s262 + $0xa38] sm:$0xff]
        %v670 = vld [vmem:[%s262 + $0xa40] sm:$0xff]
        %v671 = vld [vmem:[%s262 + $0xa48] sm:$0xff]
        %v672 = vld [vmem:[%s262 + $0xa50] sm:$0xff]
        %v673 = vld [vmem:[%s262 + $0xa58] sm:$0xff]
        %v674 = vld [vmem:[%s262 + $0xa60] sm:$0xff]
        %v675 = vld [vmem:[%s262 + $0xa68] sm:$0xff]
        %v676 = vld [vmem:[%s262 + $0xa70] sm:$0xff]
        %v677 = vld [vmem:[%s262 + $0xa78] sm:$0xff]
        %v678 = vld [vmem:[%s262 + $0xa80] sm:$0xff]
        %v679 = vld [vmem:[%s262 + $0xa88] sm:$0xff]
        %v680 = vld [vmem:[%s262 + $0xa90] sm:$0xff]
        %v681 = vld [vmem:[%s262 + $0xa98] sm:$0xff]
        %v682 = vld [vmem:[%s262 + $0xaa0] sm:$0xff]
        %v683 = vld [vmem:[%s262 + $0xaa8] sm:$0xff]
        %v684 = vld [vmem:[%s262 + $0xab0] sm:$0xff]
        %v685 = vld [vmem:[%s262 + $0xab8] sm:$0xff]
        %v686 = vld [vmem:[%s262 + $0xac0] sm:$0xff]
        %v687 = vld [vmem:[%s262 + $0xac8] sm:$0xff]
        %v688 = vld [vmem:[%s262 + $0xad0] sm:$0xff]
        %v689 = vld [vmem:[%s262 + $0xad8] sm:$0xff]
        %v690 = vld [vmem:[%s262 + $0xae0] sm:$0xff]
        %v691 = vld [vmem:[%s262 + $0xae8] sm:$0xff]
        %v692 = vld [vmem:[%s262 + $0xaf0] sm:$0xff]
        %v693 = vld [vmem:[%s262 + $0xaf8] sm:$0xff]
        %v694 = vld [vmem:[%s262 + $0xb00] sm:$0xff]
        %v695 = vld [vmem:[%s262 + $0xb08] sm:$0xff]
        %v696 = vld [vmem:[%s262 + $0xb10] sm:$0xff]
        %v697 = vld [vmem:[%s262 + $0xb18] sm:$0xff]
        %v698 = vld [vmem:[%s262 + $0xb20] sm:$0xff]
        %v699 = vld [vmem:[%s262 + $0xb28] sm:$0xff]
        %v700 = vld [vmem:[%s262 + $0xb30] sm:$0xff]
        %v701 = vld [vmem:[%s262 + $0xb38] sm:$0xff]
        %v702 = vld [vmem:[%s262 + $0xb40] sm:$0xff]
        %v703 = vld [vmem:[%s262 + $0xb48] sm:$0xff]
        %v704 = vld [vmem:[%s262 + $0xb50] sm:$0xff]
        %v705 = vld [vmem:[%s262 + $0xb58] sm:$0xff]
        %v706 = vld [vmem:[%s262 + $0xb60] sm:$0xff]
        %v707 = vld [vmem:[%s262 + $0xb68] sm:$0xff]
        %v708 = vld [vmem:[%s262 + $0xb70] sm:$0xff]
        %v709 = vld [vmem:[%s262 + $0xb78] sm:$0xff]
        %v710 = vld [vmem:[%s262 + $0xb80] sm:$0xff]
        %v711 = vld [vmem:[%s262 + $0xb88] sm:$0xff]
        %v712 = vld [vmem:[%s262 + $0xb90] sm:$0xff]
        %v713 = vld [vmem:[%s262 + $0xb98] sm:$0xff]
        %v714 = vld [vmem:[%s262 + $0xba0] sm:$0xff]
        %v715 = vld [vmem:[%s262 + $0xba8] sm:$0xff]
        %v716 = vld [vmem:[%s262 + $0xbb0] sm:$0xff]
        %v717 = vld [vmem:[%s262 + $0xbb8] sm:$0xff]
        %v718 = vld [vmem:[%s262 + $0xbc0] sm:$0xff]
        %v719 = vld [vmem:[%s262 + $0xbc8] sm:$0xff]
        %v720 = vld [vmem:[%s262 + $0xbd0] sm:$0xff]
        %v721 = vld [vmem:[%s262 + $0xbd8] sm:$0xff]
        %v722 = vld [vmem:[%s262 + $0xbe0] sm:$0xff]
        %v723 = vld [vmem:[%s262 + $0xbe8] sm:$0xff]
        %v724 = vld [vmem:[%s262 + $0xbf0] sm:$0xff]
        %v725 = vld [vmem:[%s262 + $0xbf8] sm:$0xff]
        %v726 = vld [vmem:[%s262 + $0xc00] sm:$0xff]
        %v727 = vld [vmem:[%s262 + $0xc08] sm:$0xff]
        %v728 = vld [vmem:[%s262 + $0xc10] sm:$0xff]
        %v729 = vld [vmem:[%s262 + $0xc18] sm:$0xff]
        %v730 = vld [vmem:[%s262 + $0xc20] sm:$0xff]
        %v731 = vld [vmem:[%s262 + $0xc28] sm:$0xff]
        %v732 = vld [vmem:[%s262 + $0xc30] sm:$0xff]
        %v733 = vld [vmem:[%s262 + $0xc38] sm:$0xff]
        %v734 = vld [vmem:[%s262 + $0xc40] sm:$0xff]
        %v735 = vld [vmem:[%s262 + $0xc48] sm:$0xff]
        %v736 = vld [vmem:[%s262 + $0xc50] sm:$0xff]
        %v737 = vld [vmem:[%s262 + $0xc58] sm:$0xff]
        %v738 = vld [vmem:[%s262 + $0xc60] sm:$0xff]
        %v739 = vld [vmem:[%s262 + $0xc68] sm:$0xff]
        %v740 = vld [vmem:[%s262 + $0xc70] sm:$0xff]
        %v741 = vld [vmem:[%s262 + $0xc78] sm:$0xff]
        %v742 = vld [vmem:[%s262 + $0xc80] sm:$0xff]
        %v743 = vld [vmem:[%s262 + $0xc88] sm:$0xff]
        %v744 = vld [vmem:[%s262 + $0xc90] sm:$0xff]
        %v745 = vld [vmem:[%s262 + $0xc98] sm:$0xff]
        %v746 = vld [vmem:[%s262 + $0xca0] sm:$0xff]
        %v747 = vld [vmem:[%s262 + $0xca8] sm:$0xff]
        %v748 = vld [vmem:[%s262 + $0xcb0] sm:$0xff]
        %v749 = vld [vmem:[%s262 + $0xcb8] sm:$0xff]
        %v750 = vld [vmem:[%s262 + $0xcc0] sm:$0xff]
        %v751 = vld [vmem:[%s262 + $0xcc8] sm:$0xff]
        %v752 = vld [vmem:[%s262 + $0xcd0] sm:$0xff]
        %v753 = vld [vmem:[%s262 + $0xcd8] sm:$0xff]
        %v754 = vld [vmem:[%s262 + $0xce0] sm:$0xff]
        %v755 = vld [vmem:[%s262 + $0xce8] sm:$0xff]
        %v756 = vld [vmem:[%s262 + $0xcf0] sm:$0xff]
        %v757 = vld [vmem:[%s262 + $0xcf8] sm:$0xff]
        %v758 = vld [vmem:[%s262 + $0xd00] sm:$0xff]
        %v759 = vld [vmem:[%s262 + $0xd08] sm:$0xff]
        %v760 = vld [vmem:[%s262 + $0xd10] sm:$0xff]
        %v761 = vld [vmem:[%s262 + $0xd18] sm:$0xff]
        %v762 = vld [vmem:[%s262 + $0xd20] sm:$0xff]
        %v763 = vld [vmem:[%s262 + $0xd28] sm:$0xff]
        %v764 = vld [vmem:[%s262 + $0xd30] sm:$0xff]
        %v765 = vld [vmem:[%s262 + $0xd38] sm:$0xff]
        %v766 = vld [vmem:[%s262 + $0xd40] sm:$0xff]
        %v767 = vld [vmem:[%s262 + $0xd48] sm:$0xff]
        %v768 = vld [vmem:[%s262 + $0xd50] sm:$0xff]
        %v769 = vld [vmem:[%s262 + $0xd58] sm:$0xff]
        %v770 = vld [vmem:[%s262 + $0xd60] sm:$0xff]
        %v771 = vld [vmem:[%s262 + $0xd68] sm:$0xff]
        %v772 = vld [vmem:[%s262 + $0xd70] sm:$0xff]
        %v773 = vld [vmem:[%s262 + $0xd78] sm:$0xff]
        %v774 = vld [vmem:[%s262 + $0xd80] sm:$0xff]
        %v775 = vld [vmem:[%s262 + $0xd88] sm:$0xff]
        %v776 = vld [vmem:[%s262 + $0xd90] sm:$0xff]
        %v777 = vld [vmem:[%s262 + $0xd98] sm:$0xff]
        %v778 = vld [vmem:[%s262 + $0xda0] sm:$0xff]
        %v779 = vld [vmem:[%s262 + $0xda8] sm:$0xff]
        %v780 = vld [vmem:[%s262 + $0xdb0] sm:$0xff]
        %v781 = vld [vmem:[%s262 + $0xdb8] sm:$0xff]
        %v782 = vld [vmem:[%s262 + $0xdc0] sm:$0xff]
        %v783 = vld [vmem:[%s262 + $0xdc8] sm:$0xff]
        %v784 = vld [vmem:[%s262 + $0xdd0] sm:$0xff]
        %v785 = vld [vmem:[%s262 + $0xdd8] sm:$0xff]
        %v786 = vld [vmem:[%s262 + $0xde0] sm:$0xff]
        %v787 = vld [vmem:[%s262 + $0xde8] sm:$0xff]
        %v788 = vld [vmem:[%s262 + $0xdf0] sm:$0xff]
        %v789 = vld [vmem:[%s262 + $0xdf8] sm:$0xff]
        %v790 = vld [vmem:[%s262 + $0xe00] sm:$0xff]
        %v791 = vld [vmem:[%s262 + $0xe08] sm:$0xff]
        %v792 = vld [vmem:[%s262 + $0xe10] sm:$0xff]
        %v793 = vld [vmem:[%s262 + $0xe18] sm:$0xff]
        %v794 = vld [vmem:[%s262 + $0xe20] sm:$0xff]
        %v795 = vld [vmem:[%s262 + $0xe28] sm:$0xff]
        %v796 = vld [vmem:[%s262 + $0xe30] sm:$0xff]
        %v797 = vld [vmem:[%s262 + $0xe38] sm:$0xff]
        %v798 = vld [vmem:[%s262 + $0xe40] sm:$0xff]
        %v799 = vld [vmem:[%s262 + $0xe48] sm:$0xff]
        %v800 = vld [vmem:[%s262 + $0xe50] sm:$0xff]
        %v801 = vld [vmem:[%s262 + $0xe58] sm:$0xff]
        %v802 = vld [vmem:[%s262 + $0xe60] sm:$0xff]
        %v803 = vld [vmem:[%s262 + $0xe68] sm:$0xff]
        %v804 = vld [vmem:[%s262 + $0xe70] sm:$0xff]
        %v805 = vld [vmem:[%s262 + $0xe78] sm:$0xff]
        %v806 = vld [vmem:[%s262 + $0xe80] sm:$0xff]
        %v807 = vld [vmem:[%s262 + $0xe88] sm:$0xff]
        %v808 = vld [vmem:[%s262 + $0xe90] sm:$0xff]
        %v809 = vld [vmem:[%s262 + $0xe98] sm:$0xff]
        %v810 = vld [vmem:[%s262 + $0xea0] sm:$0xff]
        %v811 = vld [vmem:[%s262 + $0xea8] sm:$0xff]
        %v812 = vld [vmem:[%s262 + $0xeb0] sm:$0xff]
        %v813 = vld [vmem:[%s262 + $0xeb8] sm:$0xff]
        %v814 = vld [vmem:[%s262 + $0xec0] sm:$0xff]
        %v815 = vld [vmem:[%s262 + $0xec8] sm:$0xff]
        %v816 = vld [vmem:[%s262 + $0xed0] sm:$0xff]
        %v817 = vld [vmem:[%s262 + $0xed8] sm:$0xff]
        %v818 = vld [vmem:[%s262 + $0xee0] sm:$0xff]
        %v819 = vld [vmem:[%s262 + $0xee8] sm:$0xff]
        %v820 = vld [vmem:[%s262 + $0xef0] sm:$0xff]
        %v821 = vld [vmem:[%s262 + $0xef8] sm:$0xff]
        %v822 = vld [vmem:[%s262 + $0xf00] sm:$0xff]
        %v823 = vld [vmem:[%s262 + $0xf08] sm:$0xff]
        %v824 = vld [vmem:[%s262 + $0xf10] sm:$0xff]
        %v825 = vld [vmem:[%s262 + $0xf18] sm:$0xff]
        %v826 = vld [vmem:[%s262 + $0xf20] sm:$0xff]
        %v827 = vld [vmem:[%s262 + $0xf28] sm:$0xff]
        %v828 = vld [vmem:[%s262 + $0xf30] sm:$0xff]
        %v829 = vld [vmem:[%s262 + $0xf38] sm:$0xff]
        %v830 = vld [vmem:[%s262 + $0xf40] sm:$0xff]
        %v831 = vld [vmem:[%s262 + $0xf48] sm:$0xff]
        %v832 = vld [vmem:[%s262 + $0xf50] sm:$0xff]
        %v833 = vld [vmem:[%s262 + $0xf58] sm:$0xff]
        %v834 = vld [vmem:[%s262 + $0xf60] sm:$0xff]
        %v835 = vld [vmem:[%s262 + $0xf68] sm:$0xff]
        %v836 = vld [vmem:[%s262 + $0xf70] sm:$0xff]
        %v837 = vld [vmem:[%s262 + $0xf78] sm:$0xff]
        %v838 = vld [vmem:[%s262 + $0xf80] sm:$0xff]
        %v839 = vld [vmem:[%s262 + $0xf88] sm:$0xff]
        %v840 = vld [vmem:[%s262 + $0xf90] sm:$0xff]
        %v841 = vld [vmem:[%s262 + $0xf98] sm:$0xff]
        %v842 = vld [vmem:[%s262 + $0xfa0] sm:$0xff]
        %v843 = vld [vmem:[%s262 + $0xfa8] sm:$0xff]
        %v844 = vld [vmem:[%s262 + $0xfb0] sm:$0xff]
        %v845 = vld [vmem:[%s262 + $0xfb8] sm:$0xff]
        %v846 = vld [vmem:[%s262 + $0xfc0] sm:$0xff]
        %v847 = vld [vmem:[%s262 + $0xfc8] sm:$0xff]
        %v848 = vld [vmem:[%s262 + $0xfd0] sm:$0xff]
        %v849 = vld [vmem:[%s262 + $0xfd8] sm:$0xff]
        %v850 = vld [vmem:[%s262 + $0xfe0] sm:$0xff]
        %v851 = vld [vmem:[%s262 + $0xfe8] sm:$0xff]
        %v852 = vld [vmem:[%s262 + $0xff0] sm:$0xff]
        %v853 = vld [vmem:[%s262 + $0xff8] sm:$0xff]
        %v854 = vld [vmem:[%s262 + $0x1000] sm:$0xff]
        %v855 = vld [vmem:[%s262 + $0x1008] sm:$0xff]
        %v856 = vld [vmem:[%s262 + $0x1010] sm:$0xff]
        %v857 = vld [vmem:[%s262 + $0x1018] sm:$0xff]
        %v858 = vld [vmem:[%s262 + $0x1020] sm:$0xff]
        %v859 = vld [vmem:[%s262 + $0x1028] sm:$0xff]
        %v860 = vld [vmem:[%s262 + $0x1030] sm:$0xff]
        %v861 = vld [vmem:[%s262 + $0x1038] sm:$0xff]
        %v862 = vld [vmem:[%s262 + $0x1040] sm:$0xff]
        %v863 = vld [vmem:[%s262 + $0x1048] sm:$0xff]
        %v864 = vld [vmem:[%s262 + $0x1050] sm:$0xff]
        %v865 = vld [vmem:[%s262 + $0x1058] sm:$0xff]
        %v866 = vld [vmem:[%s262 + $0x1060] sm:$0xff]
        %v867 = vld [vmem:[%s262 + $0x1068] sm:$0xff]
        %v868 = vld [vmem:[%s262 + $0x1070] sm:$0xff]
        %v869 = vld [vmem:[%s262 + $0x1078] sm:$0xff]
        %v870 = vld [vmem:[%s262 + $0x1080] sm:$0xff]
        %v871 = vld [vmem:[%s262 + $0x1088] sm:$0xff]
        %v872 = vld [vmem:[%s262 + $0x1090] sm:$0xff]
        %v873 = vld [vmem:[%s262 + $0x1098] sm:$0xff]
        %v874 = vld [vmem:[%s262 + $0x10a0] sm:$0xff]
        %v875 = vld [vmem:[%s262 + $0x10a8] sm:$0xff]
        %v876 = vld [vmem:[%s262 + $0x10b0] sm:$0xff]
        %v877 = vld [vmem:[%s262 + $0x10b8] sm:$0xff]
        %v878 = vld [vmem:[%s262 + $0x10c0] sm:$0xff]
        %v879 = vld [vmem:[%s262 + $0x10c8] sm:$0xff]
        %v880 = vld [vmem:[%s262 + $0x10d0] sm:$0xff]
        %v881 = vld [vmem:[%s262 + $0x10d8] sm:$0xff]
        %v882 = vld [vmem:[%s262 + $0x10e0] sm:$0xff]
        %v883 = vld [vmem:[%s262 + $0x10e8] sm:$0xff]
        %v884 = vld [vmem:[%s262 + $0x10f0] sm:$0xff]
        %v885 = vld [vmem:[%s262 + $0x10f8] sm:$0xff]
        %v886 = vld [vmem:[%s262 + $0x1100] sm:$0xff]
        %v887 = vld [vmem:[%s262 + $0x1108] sm:$0xff]
        %v888 = vld [vmem:[%s262 + $0x1110] sm:$0xff]
        %v889 = vld [vmem:[%s262 + $0x1118] sm:$0xff]
        %v890 = vld [vmem:[%s262 + $0x1120] sm:$0xff]
        %v891 = vld [vmem:[%s262 + $0x1128] sm:$0xff]
        %v892 = vld [vmem:[%s262 + $0x1130] sm:$0xff]
        %v893 = vld [vmem:[%s262 + $0x1138] sm:$0xff]
        %v894 = vld [vmem:[%s262 + $0x1140] sm:$0xff]
        %v895 = vld [vmem:[%s262 + $0x1148] sm:$0xff]
        %v896 = vld [vmem:[%s262 + $0x1150] sm:$0xff]
        %v897 = vld [vmem:[%s262 + $0x1158] sm:$0xff]
        %v898 = vld [vmem:[%s262 + $0x1160] sm:$0xff]
        %v899 = vld [vmem:[%s262 + $0x1168] sm:$0xff]
        %v900 = vld [vmem:[%s262 + $0x1170] sm:$0xff]
        %v901 = vld [vmem:[%s262 + $0x1178] sm:$0xff]
        %v902 = vld [vmem:[%s262 + $0x1180] sm:$0xff]
        %v903 = vld [vmem:[%s262 + $0x1188] sm:$0xff]
        %v904 = vld [vmem:[%s262 + $0x1190] sm:$0xff]
        %v905 = vld [vmem:[%s262 + $0x1198] sm:$0xff]
        %v906 = vld [vmem:[%s262 + $0x11a0] sm:$0xff]
        %v907 = vld [vmem:[%s262 + $0x11a8] sm:$0xff]
        %v908 = vld [vmem:[%s262 + $0x11b0] sm:$0xff]
        %v909 = vld [vmem:[%s262 + $0x11b8] sm:$0xff]
        %v910 = vld [vmem:[%s262 + $0x11c0] sm:$0xff]
        %v911 = vld [vmem:[%s262 + $0x11c8] sm:$0xff]
        %v912 = vld [vmem:[%s262 + $0x11d0] sm:$0xff]
        %v913 = vld [vmem:[%s262 + $0x11d8] sm:$0xff]
        %v914 = vld [vmem:[%s262 + $0x11e0] sm:$0xff]
        %v915 = vld [vmem:[%s262 + $0x11e8] sm:$0xff]
        %v916 = vld [vmem:[%s262 + $0x11f0] sm:$0xff]
        %v917 = vld [vmem:[%s262 + $0x11f8] sm:$0xff]
        %v918 = vld [vmem:[%s262 + $0x1200] sm:$0xff]
        %v919 = vld [vmem:[%s262 + $0x1208] sm:$0xff]
        %v920 = vld [vmem:[%s262 + $0x1210] sm:$0xff]
        %v921 = vld [vmem:[%s262 + $0x1218] sm:$0xff]
        %v922 = vld [vmem:[%s262 + $0x1220] sm:$0xff]
        %v923 = vld [vmem:[%s262 + $0x1228] sm:$0xff]
        %v924 = vld [vmem:[%s262 + $0x1230] sm:$0xff]
        %v925 = vld [vmem:[%s262 + $0x1238] sm:$0xff]
        %v926 = vld [vmem:[%s262 + $0x1240] sm:$0xff]
        %v927 = vld [vmem:[%s262 + $0x1248] sm:$0xff]
        %v928 = vld [vmem:[%s262 + $0x1250] sm:$0xff]
        %v929 = vld [vmem:[%s262 + $0x1258] sm:$0xff]
        %v930 = vld [vmem:[%s262 + $0x1260] sm:$0xff]
        %v931 = vld [vmem:[%s262 + $0x1268] sm:$0xff]
        %v932 = vld [vmem:[%s262 + $0x1270] sm:$0xff]
        %v933 = vld [vmem:[%s262 + $0x1278] sm:$0xff]
        %v934 = vld [vmem:[%s262 + $0x1280] sm:$0xff]
        %v935 = vld [vmem:[%s262 + $0x1288] sm:$0xff]
        %v936 = vld [vmem:[%s262 + $0x1290] sm:$0xff]
        %v937 = vld [vmem:[%s262 + $0x1298] sm:$0xff]
        %v938 = vld [vmem:[%s262 + $0x12a0] sm:$0xff]
        %v939 = vld [vmem:[%s262 + $0x12a8] sm:$0xff]
        %v940 = vld [vmem:[%s262 + $0x12b0] sm:$0xff]
        %v941 = vld [vmem:[%s262 + $0x12b8] sm:$0xff]
        %v942 = vld [vmem:[%s262 + $0x12c0] sm:$0xff]
        %v943 = vld [vmem:[%s262 + $0x12c8] sm:$0xff]
        %v944 = vld [vmem:[%s262 + $0x12d0] sm:$0xff]
        %v945 = vld [vmem:[%s262 + $0x12d8] sm:$0xff]
        %v946 = vld [vmem:[%s262 + $0x12e0] sm:$0xff]
        %v947 = vld [vmem:[%s262 + $0x12e8] sm:$0xff]
        %v948 = vld [vmem:[%s262 + $0x12f0] sm:$0xff]
        %v949 = vld [vmem:[%s262 + $0x12f8] sm:$0xff]
        %v950 = vld [vmem:[%s262 + $0x1300] sm:$0xff]
        %v951 = vld [vmem:[%s262 + $0x1308] sm:$0xff]
        %v952 = vld [vmem:[%s262 + $0x1310] sm:$0xff]
        %v953 = vld [vmem:[%s262 + $0x1318] sm:$0xff]
        %v954 = vld [vmem:[%s262 + $0x1320] sm:$0xff]
        %v955 = vld [vmem:[%s262 + $0x1328] sm:$0xff]
        %v956 = vld [vmem:[%s262 + $0x1330] sm:$0xff]
        %v957 = vld [vmem:[%s262 + $0x1338] sm:$0xff]
        %v958 = vld [vmem:[%s262 + $0x1340] sm:$0xff]
        %v959 = vld [vmem:[%s262 + $0x1348] sm:$0xff]
        %v960 = vld [vmem:[%s262 + $0x1350] sm:$0xff]
        %v961 = vld [vmem:[%s262 + $0x1358] sm:$0xff]
        %v962 = vld [vmem:[%s262 + $0x1360] sm:$0xff]
        %v963 = vld [vmem:[%s262 + $0x1368] sm:$0xff]
        %v964 = vld [vmem:[%s262 + $0x1370] sm:$0xff]
        %v965 = vld [vmem:[%s262 + $0x1378] sm:$0xff]
        %v966 = vld [vmem:[%s262 + $0x1380] sm:$0xff]
        %v967 = vld [vmem:[%s262 + $0x1388] sm:$0xff]
        %v968 = vld [vmem:[%s262 + $0x1390] sm:$0xff]
        %v969 = vld [vmem:[%s262 + $0x1398] sm:$0xff]
        %v970 = vld [vmem:[%s262 + $0x13a0] sm:$0xff]
        %v971 = vld [vmem:[%s262 + $0x13a8] sm:$0xff]
        %v972 = vld [vmem:[%s262 + $0x13b0] sm:$0xff]
        %v973 = vld [vmem:[%s262 + $0x13b8] sm:$0xff]
        %v974 = vld [vmem:[%s262 + $0x13c0] sm:$0xff]
        %v975 = vld [vmem:[%s262 + $0x13c8] sm:$0xff]
        %v976 = vld [vmem:[%s262 + $0x13d0] sm:$0xff]
        %v977 = vld [vmem:[%s262 + $0x13d8] sm:$0xff]
        %v978 = vld [vmem:[%s262 + $0x13e0] sm:$0xff]
        %v979 = vld [vmem:[%s262 + $0x13e8] sm:$0xff]
        %v980 = vld [vmem:[%s262 + $0x13f0] sm:$0xff]
        %v981 = vld [vmem:[%s262 + $0x13f8] sm:$0xff]
        %v982 = vld [vmem:[%s262 + $0x1400] sm:$0xff]
        %v983 = vld [vmem:[%s262 + $0x1408] sm:$0xff]
        %v984 = vld [vmem:[%s262 + $0x1410] sm:$0xff]
        %v985 = vld [vmem:[%s262 + $0x1418] sm:$0xff]
        %v986 = vld [vmem:[%s262 + $0x1420] sm:$0xff]
        %v987 = vld [vmem:[%s262 + $0x1428] sm:$0xff]
        %v988 = vld [vmem:[%s262 + $0x1430] sm:$0xff]
        %v989 = vld [vmem:[%s262 + $0x1438] sm:$0xff]
        %v990 = vld [vmem:[%s262 + $0x1440] sm:$0xff]
        %v991 = vld [vmem:[%s262 + $0x1448] sm:$0xff]
        %v992 = vld [vmem:[%s262 + $0x1450] sm:$0xff]
        %v993 = vld [vmem:[%s262 + $0x1458] sm:$0xff]
        %v994 = vld [vmem:[%s262 + $0x1460] sm:$0xff]
        %v995 = vld [vmem:[%s262 + $0x1468] sm:$0xff]
        %v996 = vld [vmem:[%s262 + $0x1470] sm:$0xff]
        %v997 = vld [vmem:[%s262 + $0x1478] sm:$0xff]
        %v998 = vld [vmem:[%s262 + $0x1480] sm:$0xff]
        %v999 = vld [vmem:[%s262 + $0x1488] sm:$0xff]
        %v1000 = vld [vmem:[%s262 + $0x1490] sm:$0xff]
        %v1001 = vld [vmem:[%s262 + $0x1498] sm:$0xff]
        %v1002 = vld [vmem:[%s262 + $0x14a0] sm:$0xff]
        %v1003 = vld [vmem:[%s262 + $0x14a8] sm:$0xff]
        %v1004 = vld [vmem:[%s262 + $0x14b0] sm:$0xff]
        %v1005 = vld [vmem:[%s262 + $0x14b8] sm:$0xff]
        %v1006 = vld [vmem:[%s262 + $0x14c0] sm:$0xff]
        %v1007 = vld [vmem:[%s262 + $0x14c8] sm:$0xff]
        %v1008 = vld [vmem:[%s262 + $0x14d0] sm:$0xff]
        %v1009 = vld [vmem:[%s262 + $0x14d8] sm:$0xff]
        %v1010 = vld [vmem:[%s262 + $0x14e0] sm:$0xff]
        %v1011 = vld [vmem:[%s262 + $0x14e8] sm:$0xff]
        %v1012 = vld [vmem:[%s262 + $0x14f0] sm:$0xff]
        %v1013 = vld [vmem:[%s262 + $0x14f8] sm:$0xff]
        %v1014 = vld [vmem:[%s262 + $0x1500] sm:$0xff]
        %v1015 = vld [vmem:[%s262 + $0x1508] sm:$0xff]
        %v1016 = vld [vmem:[%s262 + $0x1510] sm:$0xff]
        %v1017 = vld [vmem:[%s262 + $0x1518] sm:$0xff]
        %v1018 = vld [vmem:[%s262 + $0x1520] sm:$0xff]
        %v1019 = vld [vmem:[%s262 + $0x1528] sm:$0xff]
        %v1020 = vld [vmem:[%s262 + $0x1530] sm:$0xff]
        %v1021 = vld [vmem:[%s262 + $0x1538] sm:$0xff]
        %v1022 = vld [vmem:[%s262 + $0x1540] sm:$0xff]
        %v1023 = vld [vmem:[%s262 + $0x1548] sm:$0xff]
        %v1024 = vld [vmem:[%s262 + $0x1550] sm:$0xff]
        %v1025 = vld [vmem:[%s262 + $0x1558] sm:$0xff]
        %v1026 = vld [vmem:[%s262 + $0x1560] sm:$0xff]
        %v1027 = vld [vmem:[%s262 + $0x1568] sm:$0xff]
        %v1028 = vld [vmem:[%s262 + $0x1570] sm:$0xff]
        %v1029 = vld [vmem:[%s262 + $0x1578] sm:$0xff]
        %v1030 = vld [vmem:[%s262 + $0x1580] sm:$0xff]
        %v1031 = vld [vmem:[%s262 + $0x1588] sm:$0xff]
        %v1032 = vld [vmem:[%s262 + $0x1590] sm:$0xff]
        %v1033 = vld [vmem:[%s262 + $0x1598] sm:$0xff]
        %v1034 = vld [vmem:[%s262 + $0x15a0] sm:$0xff]
        %v1035 = vld [vmem:[%s262 + $0x15a8] sm:$0xff]
        %v1036 = vld [vmem:[%s262 + $0x15b0] sm:$0xff]
        %v1037 = vld [vmem:[%s262 + $0x15b8] sm:$0xff]
        %v1038 = vld [vmem:[%s262 + $0x15c0] sm:$0xff]
        %v1039 = vld [vmem:[%s262 + $0x15c8] sm:$0xff]
        %v1040 = vld [vmem:[%s262 + $0x15d0] sm:$0xff]
        %v1041 = vld [vmem:[%s262 + $0x15d8] sm:$0xff]
        %v1042 = vld [vmem:[%s262 + $0x15e0] sm:$0xff]
        %v1043 = vld [vmem:[%s262 + $0x15e8] sm:$0xff]
        %v1044 = vld [vmem:[%s262 + $0x15f0] sm:$0xff]
        %v1045 = vld [vmem:[%s262 + $0x15f8] sm:$0xff]
        %v1046 = vld [vmem:[%s262 + $0x1600] sm:$0xff]
        %v1047 = vld [vmem:[%s262 + $0x1608] sm:$0xff]
        %v1048 = vld [vmem:[%s262 + $0x1610] sm:$0xff]
        %v1049 = vld [vmem:[%s262 + $0x1618] sm:$0xff]
        %v1050 = vld [vmem:[%s262 + $0x1620] sm:$0xff]
        %v1051 = vld [vmem:[%s262 + $0x1628] sm:$0xff]
        %v1052 = vld [vmem:[%s262 + $0x1630] sm:$0xff]
        %v1053 = vld [vmem:[%s262 + $0x1638] sm:$0xff]
        %v1054 = vld [vmem:[%s262 + $0x1640] sm:$0xff]
        %v1055 = vld [vmem:[%s262 + $0x1648] sm:$0xff]
        %v1056 = vld [vmem:[%s262 + $0x1650] sm:$0xff]
        %v1057 = vld [vmem:[%s262 + $0x1658] sm:$0xff]
        %v1058 = vld [vmem:[%s262 + $0x1660] sm:$0xff]
        %v1059 = vld [vmem:[%s262 + $0x1668] sm:$0xff]
        %v1060 = vld [vmem:[%s262 + $0x1670] sm:$0xff]
        %v1061 = vld [vmem:[%s262 + $0x1678] sm:$0xff]
        %v1062 = vld [vmem:[%s262 + $0x1680] sm:$0xff]
        %v1063 = vld [vmem:[%s262 + $0x1688] sm:$0xff]
        %v1064 = vld [vmem:[%s262 + $0x1690] sm:$0xff]
        %v1065 = vld [vmem:[%s262 + $0x1698] sm:$0xff]
        %v1066 = vld [vmem:[%s262 + $0x16a0] sm:$0xff]
        %v1067 = vld [vmem:[%s262 + $0x16a8] sm:$0xff]
        %v1068 = vld [vmem:[%s262 + $0x16b0] sm:$0xff]
        %v1069 = vld [vmem:[%s262 + $0x16b8] sm:$0xff]
        %v1070 = vld [vmem:[%s262 + $0x16c0] sm:$0xff]
        %v1071 = vld [vmem:[%s262 + $0x16c8] sm:$0xff]
        %v1072 = vld [vmem:[%s262 + $0x16d0] sm:$0xff]
        %v1073 = vld [vmem:[%s262 + $0x16d8] sm:$0xff]
        %v1074 = vld [vmem:[%s262 + $0x16e0] sm:$0xff]
        %v1075 = vld [vmem:[%s262 + $0x16e8] sm:$0xff]
        %v1076 = vld [vmem:[%s262 + $0x16f0] sm:$0xff]
        %v1077 = vld [vmem:[%s262 + $0x16f8] sm:$0xff]
        %v1078 = vld [vmem:[%s262 + $0x1700] sm:$0xff]
        %v1079 = vld [vmem:[%s262 + $0x1708] sm:$0xff]
        %v1080 = vld [vmem:[%s262 + $0x1710] sm:$0xff]
        %v1081 = vld [vmem:[%s262 + $0x1718] sm:$0xff]
        %v1082 = vld [vmem:[%s262 + $0x1720] sm:$0xff]
        %v1083 = vld [vmem:[%s262 + $0x1728] sm:$0xff]
        %v1084 = vld [vmem:[%s262 + $0x1730] sm:$0xff]
        %v1085 = vld [vmem:[%s262 + $0x1738] sm:$0xff]
        %v1086 = vld [vmem:[%s262 + $0x1740] sm:$0xff]
        %v1087 = vld [vmem:[%s262 + $0x1748] sm:$0xff]
        %v1088 = vld [vmem:[%s262 + $0x1750] sm:$0xff]
        %v1089 = vld [vmem:[%s262 + $0x1758] sm:$0xff]
        %v1090 = vld [vmem:[%s262 + $0x1760] sm:$0xff]
        %v1091 = vld [vmem:[%s262 + $0x1768] sm:$0xff]
        %v1092 = vld [vmem:[%s262 + $0x1770] sm:$0xff]
        %v1093 = vld [vmem:[%s262 + $0x1778] sm:$0xff]
        %v1094 = vld [vmem:[%s262 + $0x1780] sm:$0xff]
        %v1095 = vld [vmem:[%s262 + $0x1788] sm:$0xff]
        %v1096 = vld [vmem:[%s262 + $0x1790] sm:$0xff]
        %v1097 = vld [vmem:[%s262 + $0x1798] sm:$0xff]
        %v1098 = vld [vmem:[%s262 + $0x17a0] sm:$0xff]
        %v1099 = vld [vmem:[%s262 + $0x17a8] sm:$0xff]
        %v1100 = vld [vmem:[%s262 + $0x17b0] sm:$0xff]
        %v1101 = vld [vmem:[%s262 + $0x17b8] sm:$0xff]
        %v1102 = vld [vmem:[%s262 + $0x17c0] sm:$0xff]
        %v1103 = vld [vmem:[%s262 + $0x17c8] sm:$0xff]
        %v1104 = vld [vmem:[%s262 + $0x17d0] sm:$0xff]
        %v1105 = vld [vmem:[%s262 + $0x17d8] sm:$0xff]
        %v1106 = vld [vmem:[%s262 + $0x17e0] sm:$0xff]
        %v1107 = vld [vmem:[%s262 + $0x17e8] sm:$0xff]
        %v1108 = vld [vmem:[%s262 + $0x17f0] sm:$0xff]
        %v1109 = vld [vmem:[%s262 + $0x17f8] sm:$0xff]
        %v1110 = vld [vmem:[%s262 + $0x1800] sm:$0xff]
        %v1111 = vld [vmem:[%s262 + $0x1808] sm:$0xff]
        %v1112 = vld [vmem:[%s262 + $0x1810] sm:$0xff]
        %v1113 = vld [vmem:[%s262 + $0x1818] sm:$0xff]
        %v1114 = vld [vmem:[%s262 + $0x1820] sm:$0xff]
        %v1115 = vld [vmem:[%s262 + $0x1828] sm:$0xff]
        %v1116 = vld [vmem:[%s262 + $0x1830] sm:$0xff]
        %v1117 = vld [vmem:[%s262 + $0x1838] sm:$0xff]
        %v1118 = vld [vmem:[%s262 + $0x1840] sm:$0xff]
        %v1119 = vld [vmem:[%s262 + $0x1848] sm:$0xff]
        %v1120 = vld [vmem:[%s262 + $0x1850] sm:$0xff]
        %v1121 = vld [vmem:[%s262 + $0x1858] sm:$0xff]
        %v1122 = vld [vmem:[%s262 + $0x1860] sm:$0xff]
        %v1123 = vld [vmem:[%s262 + $0x1868] sm:$0xff]
        %v1124 = vld [vmem:[%s262 + $0x1870] sm:$0xff]
        %v1125 = vld [vmem:[%s262 + $0x1878] sm:$0xff]
        %v1126 = vld [vmem:[%s262 + $0x1880] sm:$0xff]
        %v1127 = vld [vmem:[%s262 + $0x1888] sm:$0xff]
        %v1128 = vld [vmem:[%s262 + $0x1890] sm:$0xff]
        %v1129 = vld [vmem:[%s262 + $0x1898] sm:$0xff]
        %v1130 = vld [vmem:[%s262 + $0x18a0] sm:$0xff]
        %v1131 = vld [vmem:[%s262 + $0x18a8] sm:$0xff]
        %v1132 = vld [vmem:[%s262 + $0x18b0] sm:$0xff]
        %v1133 = vld [vmem:[%s262 + $0x18b8] sm:$0xff]
        %v1134 = vld [vmem:[%s262 + $0x18c0] sm:$0xff]
        %v1135 = vld [vmem:[%s262 + $0x18c8] sm:$0xff]
        %v1136 = vld [vmem:[%s262 + $0x18d0] sm:$0xff]
        %v1137 = vld [vmem:[%s262 + $0x18d8] sm:$0xff]
        %v1138 = vld [vmem:[%s262 + $0x18e0] sm:$0xff]
        %v1139 = vld [vmem:[%s262 + $0x18e8] sm:$0xff]
        %v1140 = vld [vmem:[%s262 + $0x18f0] sm:$0xff]
        %v1141 = vld [vmem:[%s262 + $0x18f8] sm:$0xff]
        %v1142 = vld [vmem:[%s262 + $0x1900] sm:$0xff]
        %v1143 = vld [vmem:[%s262 + $0x1908] sm:$0xff]
        %v1144 = vld [vmem:[%s262 + $0x1910] sm:$0xff]
        %v1145 = vld [vmem:[%s262 + $0x1918] sm:$0xff]
        %v1146 = vld [vmem:[%s262 + $0x1920] sm:$0xff]
        %v1147 = vld [vmem:[%s262 + $0x1928] sm:$0xff]
        %v1148 = vld [vmem:[%s262 + $0x1930] sm:$0xff]
        %v1149 = vld [vmem:[%s262 + $0x1938] sm:$0xff]
        %v1150 = vld [vmem:[%s262 + $0x1940] sm:$0xff]
        %v1151 = vld [vmem:[%s262 + $0x1948] sm:$0xff]
        %v1152 = vld [vmem:[%s262 + $0x1950] sm:$0xff]
        %v1153 = vld [vmem:[%s262 + $0x1958] sm:$0xff]
        %v1154 = vld [vmem:[%s262 + $0x1960] sm:$0xff]
        %v1155 = vld [vmem:[%s262 + $0x1968] sm:$0xff]
        %v1156 = vld [vmem:[%s262 + $0x1970] sm:$0xff]
        %v1157 = vld [vmem:[%s262 + $0x1978] sm:$0xff]
        %v1158 = vld [vmem:[%s262 + $0x1980] sm:$0xff]
        %v1159 = vld [vmem:[%s262 + $0x1988] sm:$0xff]
        %v1160 = vld [vmem:[%s262 + $0x1990] sm:$0xff]
        %v1161 = vld [vmem:[%s262 + $0x1998] sm:$0xff]
        %v1162 = vld [vmem:[%s262 + $0x19a0] sm:$0xff]
        %v1163 = vld [vmem:[%s262 + $0x19a8] sm:$0xff]
        %v1164 = vld [vmem:[%s262 + $0x19b0] sm:$0xff]
        %v1165 = vld [vmem:[%s262 + $0x19b8] sm:$0xff]
        %v1166 = vld [vmem:[%s262 + $0x19c0] sm:$0xff]
        %v1167 = vld [vmem:[%s262 + $0x19c8] sm:$0xff]
        %v1168 = vld [vmem:[%s262 + $0x19d0] sm:$0xff]
        %v1169 = vld [vmem:[%s262 + $0x19d8] sm:$0xff]
        %v1170 = vld [vmem:[%s262 + $0x19e0] sm:$0xff]
        %v1171 = vld [vmem:[%s262 + $0x19e8] sm:$0xff]
        %v1172 = vld [vmem:[%s262 + $0x19f0] sm:$0xff]
        %v1173 = vld [vmem:[%s262 + $0x19f8] sm:$0xff]
        %v1174 = vld [vmem:[%s262 + $0x1a00] sm:$0xff]
        %v1175 = vld [vmem:[%s262 + $0x1a08] sm:$0xff]
        %v1176 = vld [vmem:[%s262 + $0x1a10] sm:$0xff]
        %v1177 = vld [vmem:[%s262 + $0x1a18] sm:$0xff]
        %v1178 = vld [vmem:[%s262 + $0x1a20] sm:$0xff]
        %v1179 = vld [vmem:[%s262 + $0x1a28] sm:$0xff]
        %v1180 = vld [vmem:[%s262 + $0x1a30] sm:$0xff]
        %v1181 = vld [vmem:[%s262 + $0x1a38] sm:$0xff]
        %v1182 = vld [vmem:[%s262 + $0x1a40] sm:$0xff]
        %v1183 = vld [vmem:[%s262 + $0x1a48] sm:$0xff]
        %v1184 = vld [vmem:[%s262 + $0x1a50] sm:$0xff]
        %v1185 = vld [vmem:[%s262 + $0x1a58] sm:$0xff]
        %v1186 = vld [vmem:[%s262 + $0x1a60] sm:$0xff]
        %v1187 = vld [vmem:[%s262 + $0x1a68] sm:$0xff]
        %v1188 = vld [vmem:[%s262 + $0x1a70] sm:$0xff]
        %v1189 = vld [vmem:[%s262 + $0x1a78] sm:$0xff]
        %v1190 = vld [vmem:[%s262 + $0x1a80] sm:$0xff]
        %v1191 = vld [vmem:[%s262 + $0x1a88] sm:$0xff]
        %v1192 = vld [vmem:[%s262 + $0x1a90] sm:$0xff]
        %v1193 = vld [vmem:[%s262 + $0x1a98] sm:$0xff]
        %v1194 = vld [vmem:[%s262 + $0x1aa0] sm:$0xff]
        %v1195 = vld [vmem:[%s262 + $0x1aa8] sm:$0xff]
        %v1196 = vld [vmem:[%s262 + $0x1ab0] sm:$0xff]
        %v1197 = vld [vmem:[%s262 + $0x1ab8] sm:$0xff]
        %v1198 = vld [vmem:[%s262 + $0x1ac0] sm:$0xff]
        %v1199 = vld [vmem:[%s262 + $0x1ac8] sm:$0xff]
        %v1200 = vld [vmem:[%s262 + $0x1ad0] sm:$0xff]
        %v1201 = vld [vmem:[%s262 + $0x1ad8] sm:$0xff]
        %v1202 = vld [vmem:[%s262 + $0x1ae0] sm:$0xff]
        %v1203 = vld [vmem:[%s262 + $0x1ae8] sm:$0xff]
        %v1204 = vld [vmem:[%s262 + $0x1af0] sm:$0xff]
        %v1205 = vld [vmem:[%s262 + $0x1af8] sm:$0xff]
        %v1206 = vld [vmem:[%s262 + $0x1b00] sm:$0xff]
        %v1207 = vld [vmem:[%s262 + $0x1b08] sm:$0xff]
        %v1208 = vld [vmem:[%s262 + $0x1b10] sm:$0xff]
        %v1209 = vld [vmem:[%s262 + $0x1b18] sm:$0xff]
        %v1210 = vld [vmem:[%s262 + $0x1b20] sm:$0xff]
        %v1211 = vld [vmem:[%s262 + $0x1b28] sm:$0xff]
        %v1212 = vld [vmem:[%s262 + $0x1b30] sm:$0xff]
        %v1213 = vld [vmem:[%s262 + $0x1b38] sm:$0xff]
        %v1214 = vld [vmem:[%s262 + $0x1b40] sm:$0xff]
        %v1215 = vld [vmem:[%s262 + $0x1b48] sm:$0xff]
        %v1216 = vld [vmem:[%s262 + $0x1b50] sm:$0xff]
        %v1217 = vld [vmem:[%s262 + $0x1b58] sm:$0xff]
        %v1218 = vld [vmem:[%s262 + $0x1b60] sm:$0xff]
        %v1219 = vld [vmem:[%s262 + $0x1b68] sm:$0xff]
        %v1220 = vld [vmem:[%s262 + $0x1b70] sm:$0xff]
        %v1221 = vld [vmem:[%s262 + $0x1b78] sm:$0xff]
        %v1222 = vld [vmem:[%s262 + $0x1b80] sm:$0xff]
        %v1223 = vld [vmem:[%s262 + $0x1b88] sm:$0xff]
        %v1224 = vld [vmem:[%s262 + $0x1b90] sm:$0xff]
        %v1225 = vld [vmem:[%s262 + $0x1b98] sm:$0xff]
        %v1226 = vld [vmem:[%s262 + $0x1ba0] sm:$0xff]
        %v1227 = vld [vmem:[%s262 + $0x1ba8] sm:$0xff]
        %v1228 = vld [vmem:[%s262 + $0x1bb0] sm:$0xff]
        %v1229 = vld [vmem:[%s262 + $0x1bb8] sm:$0xff]
        %v1230 = vld [vmem:[%s262 + $0x1bc0] sm:$0xff]
        %v1231 = vld [vmem:[%s262 + $0x1bc8] sm:$0xff]
        %v1232 = vld [vmem:[%s262 + $0x1bd0] sm:$0xff]
        %v1233 = vld [vmem:[%s262 + $0x1bd8] sm:$0xff]
        %v1234 = vld [vmem:[%s262 + $0x1be0] sm:$0xff]
        %v1235 = vld [vmem:[%s262 + $0x1be8] sm:$0xff]
        %v1236 = vld [vmem:[%s262 + $0x1bf0] sm:$0xff]
        %v1237 = vld [vmem:[%s262 + $0x1bf8] sm:$0xff]
        %v1238 = vld [vmem:[%s262 + $0x1c00] sm:$0xff]
        %v1239 = vld [vmem:[%s262 + $0x1c08] sm:$0xff]
        %v1240 = vld [vmem:[%s262 + $0x1c10] sm:$0xff]
        %v1241 = vld [vmem:[%s262 + $0x1c18] sm:$0xff]
        %v1242 = vld [vmem:[%s262 + $0x1c20] sm:$0xff]
        %v1243 = vld [vmem:[%s262 + $0x1c28] sm:$0xff]
        %v1244 = vld [vmem:[%s262 + $0x1c30] sm:$0xff]
        %v1245 = vld [vmem:[%s262 + $0x1c38] sm:$0xff]
        %v1246 = vld [vmem:[%s262 + $0x1c40] sm:$0xff]
        %v1247 = vld [vmem:[%s262 + $0x1c48] sm:$0xff]
        %v1248 = vld [vmem:[%s262 + $0x1c50] sm:$0xff]
        %v1249 = vld [vmem:[%s262 + $0x1c58] sm:$0xff]
        %v1250 = vld [vmem:[%s262 + $0x1c60] sm:$0xff]
        %v1251 = vld [vmem:[%s262 + $0x1c68] sm:$0xff]
        %v1252 = vld [vmem:[%s262 + $0x1c70] sm:$0xff]
        %v1253 = vld [vmem:[%s262 + $0x1c78] sm:$0xff]
        %v1254 = vld [vmem:[%s262 + $0x1c80] sm:$0xff]
        %v1255 = vld [vmem:[%s262 + $0x1c88] sm:$0xff]
        %v1256 = vld [vmem:[%s262 + $0x1c90] sm:$0xff]
        %v1257 = vld [vmem:[%s262 + $0x1c98] sm:$0xff]
        %v1258 = vld [vmem:[%s262 + $0x1ca0] sm:$0xff]
        %v1259 = vld [vmem:[%s262 + $0x1ca8] sm:$0xff]
        %v1260 = vld [vmem:[%s262 + $0x1cb0] sm:$0xff]
        %v1261 = vld [vmem:[%s262 + $0x1cb8] sm:$0xff]
        %v1262 = vld [vmem:[%s262 + $0x1cc0] sm:$0xff]
        %v1263 = vld [vmem:[%s262 + $0x1cc8] sm:$0xff]
        %v1264 = vld [vmem:[%s262 + $0x1cd0] sm:$0xff]
        %v1265 = vld [vmem:[%s262 + $0x1cd8] sm:$0xff]
        %v1266 = vld [vmem:[%s262 + $0x1ce0] sm:$0xff]
        %v1267 = vld [vmem:[%s262 + $0x1ce8] sm:$0xff]
        %v1268 = vld [vmem:[%s262 + $0x1cf0] sm:$0xff]
        %v1269 = vld [vmem:[%s262 + $0x1cf8] sm:$0xff]
        %v1270 = vld [vmem:[%s262 + $0x1d00] sm:$0xff]
        %v1271 = vld [vmem:[%s262 + $0x1d08] sm:$0xff]
        %v1272 = vld [vmem:[%s262 + $0x1d10] sm:$0xff]
        %v1273 = vld [vmem:[%s262 + $0x1d18] sm:$0xff]
        %v1274 = vld [vmem:[%s262 + $0x1d20] sm:$0xff]
        %v1275 = vld [vmem:[%s262 + $0x1d28] sm:$0xff]
        %v1276 = vld [vmem:[%s262 + $0x1d30] sm:$0xff]
        %v1277 = vld [vmem:[%s262 + $0x1d38] sm:$0xff]
        %v1278 = vld [vmem:[%s262 + $0x1d40] sm:$0xff]
        %v1279 = vld [vmem:[%s262 + $0x1d48] sm:$0xff]
        %v1280 = vld [vmem:[%s262 + $0x1d50] sm:$0xff]
        %v1281 = vld [vmem:[%s262 + $0x1d58] sm:$0xff]
        %v1282 = vld [vmem:[%s262 + $0x1d60] sm:$0xff]
        %v1283 = vld [vmem:[%s262 + $0x1d68] sm:$0xff]
        %v1284 = vld [vmem:[%s262 + $0x1d70] sm:$0xff]
        %v1285 = vld [vmem:[%s262 + $0x1d78] sm:$0xff]
        %v1286 = vld [vmem:[%s262 + $0x1d80] sm:$0xff]
        %v1287 = vld [vmem:[%s262 + $0x1d88] sm:$0xff]
        %v1288 = vld [vmem:[%s262 + $0x1d90] sm:$0xff]
        %v1289 = vld [vmem:[%s262 + $0x1d98] sm:$0xff]
        %v1290 = vld [vmem:[%s262 + $0x1da0] sm:$0xff]
        %v1291 = vld [vmem:[%s262 + $0x1da8] sm:$0xff]
        %v1292 = vld [vmem:[%s262 + $0x1db0] sm:$0xff]
        %v1293 = vld [vmem:[%s262 + $0x1db8] sm:$0xff]
        %v1294 = vld [vmem:[%s262 + $0x1dc0] sm:$0xff]
        %v1295 = vld [vmem:[%s262 + $0x1dc8] sm:$0xff]
        %v1296 = vld [vmem:[%s262 + $0x1dd0] sm:$0xff]
        %v1297 = vld [vmem:[%s262 + $0x1dd8] sm:$0xff]
        %v1298 = vld [vmem:[%s262 + $0x1de0] sm:$0xff]
        %v1299 = vld [vmem:[%s262 + $0x1de8] sm:$0xff]
        %v1300 = vld [vmem:[%s262 + $0x1df0] sm:$0xff]
        %v1301 = vld [vmem:[%s262 + $0x1df8] sm:$0xff]
        %v1302 = vld [vmem:[%s262 + $0x1e00] sm:$0xff]
        %v1303 = vld [vmem:[%s262 + $0x1e08] sm:$0xff]
        %v1304 = vld [vmem:[%s262 + $0x1e10] sm:$0xff]
        %v1305 = vld [vmem:[%s262 + $0x1e18] sm:$0xff]
        %v1306 = vld [vmem:[%s262 + $0x1e20] sm:$0xff]
        %v1307 = vld [vmem:[%s262 + $0x1e28] sm:$0xff]
        %v1308 = vld [vmem:[%s262 + $0x1e30] sm:$0xff]
        %v1309 = vld [vmem:[%s262 + $0x1e38] sm:$0xff]
        %v1310 = vld [vmem:[%s262 + $0x1e40] sm:$0xff]
        %v1311 = vld [vmem:[%s262 + $0x1e48] sm:$0xff]
        %v1312 = vld [vmem:[%s262 + $0x1e50] sm:$0xff]
        %v1313 = vld [vmem:[%s262 + $0x1e58] sm:$0xff]
        %v1314 = vld [vmem:[%s262 + $0x1e60] sm:$0xff]
        %v1315 = vld [vmem:[%s262 + $0x1e68] sm:$0xff]
        %v1316 = vld [vmem:[%s262 + $0x1e70] sm:$0xff]
        %v1317 = vld [vmem:[%s262 + $0x1e78] sm:$0xff]
        %v1318 = vld [vmem:[%s262 + $0x1e80] sm:$0xff]
        %v1319 = vld [vmem:[%s262 + $0x1e88] sm:$0xff]
        %v1320 = vld [vmem:[%s262 + $0x1e90] sm:$0xff]
        %v1321 = vld [vmem:[%s262 + $0x1e98] sm:$0xff]
        %v1322 = vld [vmem:[%s262 + $0x1ea0] sm:$0xff]
        %v1323 = vld [vmem:[%s262 + $0x1ea8] sm:$0xff]
        %v1324 = vld [vmem:[%s262 + $0x1eb0] sm:$0xff]
        %v1325 = vld [vmem:[%s262 + $0x1eb8] sm:$0xff]
        %v1326 = vld [vmem:[%s262 + $0x1ec0] sm:$0xff]
        %v1327 = vld [vmem:[%s262 + $0x1ec8] sm:$0xff]
        %v1328 = vld [vmem:[%s262 + $0x1ed0] sm:$0xff]
        %v1329 = vld [vmem:[%s262 + $0x1ed8] sm:$0xff]
        %v1330 = vld [vmem:[%s262 + $0x1ee0] sm:$0xff]
        %v1331 = vld [vmem:[%s262 + $0x1ee8] sm:$0xff]
        %v1332 = vld [vmem:[%s262 + $0x1ef0] sm:$0xff]
        %v1333 = vld [vmem:[%s262 + $0x1ef8] sm:$0xff]
        %v1334 = vld [vmem:[%s262 + $0x1f00] sm:$0xff]
        %v1335 = vld [vmem:[%s262 + $0x1f08] sm:$0xff]
        %v1336 = vld [vmem:[%s262 + $0x1f10] sm:$0xff]
        %v1337 = vld [vmem:[%s262 + $0x1f18] sm:$0xff]
        %v1338 = vld [vmem:[%s262 + $0x1f20] sm:$0xff]
        %v1339 = vld [vmem:[%s262 + $0x1f28] sm:$0xff]
        %v1340 = vld [vmem:[%s262 + $0x1f30] sm:$0xff]
        %v1341 = vld [vmem:[%s262 + $0x1f38] sm:$0xff]
        %v1342 = vld [vmem:[%s262 + $0x1f40] sm:$0xff]
        %v1343 = vld [vmem:[%s262 + $0x1f48] sm:$0xff]
        %v1344 = vld [vmem:[%s262 + $0x1f50] sm:$0xff]
        %v1345 = vld [vmem:[%s262 + $0x1f58] sm:$0xff]
        %v1346 = vld [vmem:[%s262 + $0x1f60] sm:$0xff]
        %v1347 = vld [vmem:[%s262 + $0x1f68] sm:$0xff]
        %v1348 = vld [vmem:[%s262 + $0x1f70] sm:$0xff]
        %v1349 = vld [vmem:[%s262 + $0x1f78] sm:$0xff]
        %v1350 = vld [vmem:[%s262 + $0x1f80] sm:$0xff]
        %v1351 = vld [vmem:[%s262 + $0x1f88] sm:$0xff]
        %v1352 = vld [vmem:[%s262 + $0x1f90] sm:$0xff]
        %v1353 = vld [vmem:[%s262 + $0x1f98] sm:$0xff]
        %v1354 = vld [vmem:[%s262 + $0x1fa0] sm:$0xff]
        %v1355 = vld [vmem:[%s262 + $0x1fa8] sm:$0xff]
        %v1356 = vld [vmem:[%s262 + $0x1fb0] sm:$0xff]
        %v1357 = vld [vmem:[%s262 + $0x1fb8] sm:$0xff]
        %v1358 = vld [vmem:[%s262 + $0x1fc0] sm:$0xff]
        %v1359 = vld [vmem:[%s262 + $0x1fc8] sm:$0xff]
        %v1360 = vld [vmem:[%s262 + $0x1fd0] sm:$0xff]
        %v1361 = vld [vmem:[%s262 + $0x1fd8] sm:$0xff]
        %v1362 = vld [vmem:[%s262 + $0x1fe0] sm:$0xff]
        %v1363 = vld [vmem:[%s262 + $0x1fe8] sm:$0xff]
        %v1364 = vld [vmem:[%s262 + $0x1ff0] sm:$0xff]
        %v1365 = vld [vmem:[%s262 + $0x1ff8] sm:$0xff]
        %v1366 = vld [vmem:[%s262 + $0x2000] sm:$0xff]
        %v1367 = vld [vmem:[%s262 + $0x2008] sm:$0xff]
        %v1368 = vld [vmem:[%s262 + $0x2010] sm:$0xff]
        %v1369 = vld [vmem:[%s262 + $0x2018] sm:$0xff]
        %v1370 = vld [vmem:[%s262 + $0x2020] sm:$0xff]
        %v1371 = vld [vmem:[%s262 + $0x2028] sm:$0xff]
        %v1372 = vld [vmem:[%s262 + $0x2030] sm:$0xff]
        %v1373 = vld [vmem:[%s262 + $0x2038] sm:$0xff]
        %v1374 = vld [vmem:[%s262 + $0x2040] sm:$0xff]
        %v1375 = vld [vmem:[%s262 + $0x2048] sm:$0xff]
        %v1376 = vld [vmem:[%s262 + $0x2050] sm:$0xff]
        %v1377 = vld [vmem:[%s262 + $0x2058] sm:$0xff]
        %v1378 = vld [vmem:[%s262 + $0x2060] sm:$0xff]
        %v1379 = vld [vmem:[%s262 + $0x2068] sm:$0xff]
        %v1380 = vld [vmem:[%s262 + $0x2070] sm:$0xff]
        %v1381 = vld [vmem:[%s262 + $0x2078] sm:$0xff]
        %v1382 = vld [vmem:[%s262 + $0x2080] sm:$0xff]
        %v1383 = vld [vmem:[%s262 + $0x2088] sm:$0xff]
        %v1384 = vld [vmem:[%s262 + $0x2090] sm:$0xff]
        %v1385 = vld [vmem:[%s262 + $0x2098] sm:$0xff]
        %v1386 = vld [vmem:[%s262 + $0x20a0] sm:$0xff]
        %v1387 = vld [vmem:[%s262 + $0x20a8] sm:$0xff]
        %v1388 = vld [vmem:[%s262 + $0x20b0] sm:$0xff]
        %v1389 = vld [vmem:[%s262 + $0x20b8] sm:$0xff]
        %v1390 = vld [vmem:[%s262 + $0x20c0] sm:$0xff]
        %v1391 = vld [vmem:[%s262 + $0x20c8] sm:$0xff]
        %v1392 = vld [vmem:[%s262 + $0x20d0] sm:$0xff]
        %v1393 = vld [vmem:[%s262 + $0x20d8] sm:$0xff]
        %v1394 = vld [vmem:[%s262 + $0x20e0] sm:$0xff]
        %v1395 = vld [vmem:[%s262 + $0x20e8] sm:$0xff]
        %v1396 = vld [vmem:[%s262 + $0x20f0] sm:$0xff]
        %v1397 = vld [vmem:[%s262 + $0x20f8] sm:$0xff]
        %v1398 = vld [vmem:[%s262 + $0x2100] sm:$0xff]
        %v1399 = vld [vmem:[%s262 + $0x2108] sm:$0xff]
        %v1400 = vld [vmem:[%s262 + $0x2110] sm:$0xff]
        %v1401 = vld [vmem:[%s262 + $0x2118] sm:$0xff]
        %v1402 = vld [vmem:[%s262 + $0x2120] sm:$0xff]
        %v1403 = vld [vmem:[%s262 + $0x2128] sm:$0xff]
        %v1404 = vld [vmem:[%s262 + $0x2130] sm:$0xff]
        %v1405 = vld [vmem:[%s262 + $0x2138] sm:$0xff]
        %v1406 = vld [vmem:[%s262 + $0x2140] sm:$0xff]
        %v1407 = vld [vmem:[%s262 + $0x2148] sm:$0xff]
        %v1408 = vld [vmem:[%s262 + $0x2150] sm:$0xff]
        %v1409 = vld [vmem:[%s262 + $0x2158] sm:$0xff]
        %v1410 = vld [vmem:[%s262 + $0x2160] sm:$0xff]
        %v1411 = vld [vmem:[%s262 + $0x2168] sm:$0xff]
        %v1412 = vld [vmem:[%s262 + $0x2170] sm:$0xff]
        %v1413 = vld [vmem:[%s262 + $0x2178] sm:$0xff]
        %v1414 = vld [vmem:[%s262 + $0x2180] sm:$0xff]
        %v1415 = vld [vmem:[%s262 + $0x2188] sm:$0xff]
        %v1416 = vld [vmem:[%s262 + $0x2190] sm:$0xff]
        %v1417 = vld [vmem:[%s262 + $0x2198] sm:$0xff]
        %v1418 = vld [vmem:[%s262 + $0x21a0] sm:$0xff]
        %v1419 = vld [vmem:[%s262 + $0x21a8] sm:$0xff]
        %v1420 = vld [vmem:[%s262 + $0x21b0] sm:$0xff]
        %v1421 = vld [vmem:[%s262 + $0x21b8] sm:$0xff]
        %v1422 = vld [vmem:[%s262 + $0x21c0] sm:$0xff]
        %v1423 = vld [vmem:[%s262 + $0x21c8] sm:$0xff]
        %v1424 = vld [vmem:[%s262 + $0x21d0] sm:$0xff]
        %v1425 = vld [vmem:[%s262 + $0x21d8] sm:$0xff]
        %v1426 = vld [vmem:[%s262 + $0x21e0] sm:$0xff]
        %v1427 = vld [vmem:[%s262 + $0x21e8] sm:$0xff]
        %v1428 = vld [vmem:[%s262 + $0x21f0] sm:$0xff]
        %v1429 = vld [vmem:[%s262 + $0x21f8] sm:$0xff]
        %v1430 = vld [vmem:[%s262 + $0x2200] sm:$0xff]
        %v1431 = vld [vmem:[%s262 + $0x2208] sm:$0xff]
        %v1432 = vld [vmem:[%s262 + $0x2210] sm:$0xff]
        %v1433 = vld [vmem:[%s262 + $0x2218] sm:$0xff]
        %v1434 = vld [vmem:[%s262 + $0x2220] sm:$0xff]
        %v1435 = vld [vmem:[%s262 + $0x2228] sm:$0xff]
        %v1436 = vld [vmem:[%s262 + $0x2230] sm:$0xff]
        %v1437 = vld [vmem:[%s262 + $0x2238] sm:$0xff]
        %v1438 = vld [vmem:[%s262 + $0x2240] sm:$0xff]
        %v1439 = vld [vmem:[%s262 + $0x2248] sm:$0xff]
        %v1440 = vld [vmem:[%s262 + $0x2250] sm:$0xff]
        %v1441 = vld [vmem:[%s262 + $0x2258] sm:$0xff]
        %v1442 = vld [vmem:[%s262 + $0x2260] sm:$0xff]
        %v1443 = vld [vmem:[%s262 + $0x2268] sm:$0xff]
        %v1444 = vld [vmem:[%s262 + $0x2270] sm:$0xff]
        %v1445 = vld [vmem:[%s262 + $0x2278] sm:$0xff]
        %v1446 = vld [vmem:[%s262 + $0x2280] sm:$0xff]
        %v1447 = vld [vmem:[%s262 + $0x2288] sm:$0xff]
        %v1448 = vld [vmem:[%s262 + $0x2290] sm:$0xff]
        %v1449 = vld [vmem:[%s262 + $0x2298] sm:$0xff]
        %v1450 = vld [vmem:[%s262 + $0x22a0] sm:$0xff]
        %v1451 = vld [vmem:[%s262 + $0x22a8] sm:$0xff]
        %v1452 = vld [vmem:[%s262 + $0x22b0] sm:$0xff]
        %v1453 = vld [vmem:[%s262 + $0x22b8] sm:$0xff]
        %v1454 = vld [vmem:[%s262 + $0x22c0] sm:$0xff]
        %v1455 = vld [vmem:[%s262 + $0x22c8] sm:$0xff]
        %v1456 = vld [vmem:[%s262 + $0x22d0] sm:$0xff]
        %v1457 = vld [vmem:[%s262 + $0x22d8] sm:$0xff]
        %v1458 = vld [vmem:[%s262 + $0x22e0] sm:$0xff]
        %v1459 = vld [vmem:[%s262 + $0x22e8] sm:$0xff]
        %v1460 = vld [vmem:[%s262 + $0x22f0] sm:$0xff]
        %v1461 = vld [vmem:[%s262 + $0x22f8] sm:$0xff]
        %v1467 = vcombine.high %v337, %v337
        %v1469 = vunpack.c.l.s4 1966171168
        %v1470 = vunpack.c.0.s8 %v1469
        %v1471 = vlaneseq
        %v1472 = vshrl.u32 %v1471, 7
        %v1473 = vsub.s32 %v1470, %v1472
        %v1474 = vrot.slane %v337, %v1473
        %v1476 = vunpack.c.l.s4 1966171168
        %v1477 = vunpack.c.0.s8 %v1476
        %v1478 = vlaneseq
        %v1479 = vshrl.u32 %v1478, 7
        %v1480 = vsub.s32 %v1477, %v1479
        %v1481 = vrot.slane %v1467, %v1480
        %v1482 = vcombine.high %v1474, %v1474
        %v1483 = vcombine.high %v1481, %v1481
        %v1485 = vunpack.c.l.s4 1966171168
        %v1486 = vunpack.c.0.s8 %v1485
        %v1487 = vlaneseq
        %v1488 = vshrl.u32 %v1487, 7
        %v1489 = vsub.s32 %v1486, %v1488
        %v1490 = vrot.slane %v1474, %v1489
        %v1492 = vunpack.c.l.s4 1966171168
        %v1493 = vunpack.c.0.s8 %v1492
        %v1494 = vlaneseq
        %v1495 = vshrl.u32 %v1494, 7
        %v1496 = vsub.s32 %v1493, %v1495
        %v1497 = vrot.slane %v1481, %v1496
        %v1499 = vunpack.c.l.s4 1966171168
        %v1500 = vunpack.c.0.s8 %v1499
        %v1501 = vlaneseq
        %v1502 = vshrl.u32 %v1501, 7
        %v1503 = vsub.s32 %v1500, %v1502
        %v1504 = vrot.slane %v1482, %v1503
        %v1506 = vunpack.c.l.s4 1966171168
        %v1507 = vunpack.c.0.s8 %v1506
        %v1508 = vlaneseq
        %v1509 = vshrl.u32 %v1508, 7
        %v1510 = vsub.s32 %v1507, %v1509
        %v1511 = vrot.slane %v1483, %v1510
        %v1512 = vcombine.high %v1490, %v1490
        %v1513 = vcombine.high %v1497, %v1497
        %v1514 = vcombine.high %v1504, %v1504
        %v1515 = vcombine.high %v1511, %v1511
        %v1516 = vcombine.high %v338, %v338
        %v1518 = vunpack.c.l.s4 1966171168
        %v1519 = vunpack.c.0.s8 %v1518
        %v1520 = vlaneseq
        %v1521 = vshrl.u32 %v1520, 7
        %v1522 = vsub.s32 %v1519, %v1521
        %v1523 = vrot.slane %v338, %v1522
        %v1525 = vunpack.c.l.s4 1966171168
        %v1526 = vunpack.c.0.s8 %v1525
        %v1527 = vlaneseq
        %v1528 = vshrl.u32 %v1527, 7
        %v1529 = vsub.s32 %v1526, %v1528
        %v1530 = vrot.slane %v1516, %v1529
        %v1531 = vcombine.high %v1523, %v1523
        %v1532 = vcombine.high %v1530, %v1530
        %v1534 = vunpack.c.l.s4 1966171168
        %v1535 = vunpack.c.0.s8 %v1534
        %v1536 = vlaneseq
        %v1537 = vshrl.u32 %v1536, 7
        %v1538 = vsub.s32 %v1535, %v1537
        %v1539 = vrot.slane %v1523, %v1538
        %v1541 = vunpack.c.l.s4 1966171168
        %v1542 = vunpack.c.0.s8 %v1541
        %v1543 = vlaneseq
        %v1544 = vshrl.u32 %v1543, 7
        %v1545 = vsub.s32 %v1542, %v1544
        %v1546 = vrot.slane %v1530, %v1545
        %v1548 = vunpack.c.l.s4 1966171168
        %v1549 = vunpack.c.0.s8 %v1548
        %v1550 = vlaneseq
        %v1551 = vshrl.u32 %v1550, 7
        %v1552 = vsub.s32 %v1549, %v1551
        %v1553 = vrot.slane %v1531, %v1552
        %v1555 = vunpack.c.l.s4 1966171168
        %v1556 = vunpack.c.0.s8 %v1555
        %v1557 = vlaneseq
        %v1558 = vshrl.u32 %v1557, 7
        %v1559 = vsub.s32 %v1556, %v1558
        %v1560 = vrot.slane %v1532, %v1559
        %v1561 = vcombine.high %v1539, %v1539
        %v1562 = vcombine.high %v1546, %v1546
        %v1563 = vcombine.high %v1553, %v1553
        %v1564 = vcombine.high %v1560, %v1560
        %v1565 = vcombine.high %v339, %v339
        %v1567 = vunpack.c.l.s4 1966171168
        %v1568 = vunpack.c.0.s8 %v1567
        %v1569 = vlaneseq
        %v1570 = vshrl.u32 %v1569, 7
        %v1571 = vsub.s32 %v1568, %v1570
        %v1572 = vrot.slane %v339, %v1571
        %v1574 = vunpack.c.l.s4 1966171168
        %v1575 = vunpack.c.0.s8 %v1574
        %v1576 = vlaneseq
        %v1577 = vshrl.u32 %v1576, 7
        %v1578 = vsub.s32 %v1575, %v1577
        %v1579 = vrot.slane %v1565, %v1578
        %v1580 = vcombine.high %v1572, %v1572
        %v1581 = vcombine.high %v1579, %v1579
        %v1583 = vunpack.c.l.s4 1966171168
        %v1584 = vunpack.c.0.s8 %v1583
        %v1585 = vlaneseq
        %v1586 = vshrl.u32 %v1585, 7
        %v1587 = vsub.s32 %v1584, %v1586
        %v1588 = vrot.slane %v1572, %v1587
        %v1590 = vunpack.c.l.s4 1966171168
        %v1591 = vunpack.c.0.s8 %v1590
        %v1592 = vlaneseq
        %v1593 = vshrl.u32 %v1592, 7
        %v1594 = vsub.s32 %v1591, %v1593
        %v1595 = vrot.slane %v1579, %v1594
        %v1597 = vunpack.c.l.s4 1966171168
        %v1598 = vunpack.c.0.s8 %v1597
        %v1599 = vlaneseq
        %v1600 = vshrl.u32 %v1599, 7
        %v1601 = vsub.s32 %v1598, %v1600
        %v1602 = vrot.slane %v1580, %v1601
        %v1604 = vunpack.c.l.s4 1966171168
        %v1605 = vunpack.c.0.s8 %v1604
        %v1606 = vlaneseq
        %v1607 = vshrl.u32 %v1606, 7
        %v1608 = vsub.s32 %v1605, %v1607
        %v1609 = vrot.slane %v1581, %v1608
        %v1610 = vcombine.high %v1588, %v1588
        %v1611 = vcombine.high %v1595, %v1595
        %v1612 = vcombine.high %v1602, %v1602
        %v1613 = vcombine.high %v1609, %v1609
        %v1614 = vcombine.high %v340, %v340
        %v1616 = vunpack.c.l.s4 1966171168
        %v1617 = vunpack.c.0.s8 %v1616
        %v1618 = vlaneseq
        %v1619 = vshrl.u32 %v1618, 7
        %v1620 = vsub.s32 %v1617, %v1619
        %v1621 = vrot.slane %v340, %v1620
        %v1623 = vunpack.c.l.s4 1966171168
        %v1624 = vunpack.c.0.s8 %v1623
        %v1625 = vlaneseq
        %v1626 = vshrl.u32 %v1625, 7
        %v1627 = vsub.s32 %v1624, %v1626
        %v1628 = vrot.slane %v1614, %v1627
        %v1629 = vcombine.high %v1621, %v1621
        %v1630 = vcombine.high %v1628, %v1628
        %v1632 = vunpack.c.l.s4 1966171168
        %v1633 = vunpack.c.0.s8 %v1632
        %v1634 = vlaneseq
        %v1635 = vshrl.u32 %v1634, 7
        %v1636 = vsub.s32 %v1633, %v1635
        %v1637 = vrot.slane %v1621, %v1636
        %v1639 = vunpack.c.l.s4 1966171168
        %v1640 = vunpack.c.0.s8 %v1639
        %v1641 = vlaneseq
        %v1642 = vshrl.u32 %v1641, 7
        %v1643 = vsub.s32 %v1640, %v1642
        %v1644 = vrot.slane %v1628, %v1643
        %v1646 = vunpack.c.l.s4 1966171168
        %v1647 = vunpack.c.0.s8 %v1646
        %v1648 = vlaneseq
        %v1649 = vshrl.u32 %v1648, 7
        %v1650 = vsub.s32 %v1647, %v1649
        %v1651 = vrot.slane %v1629, %v1650
        %v1653 = vunpack.c.l.s4 1966171168
        %v1654 = vunpack.c.0.s8 %v1653
        %v1655 = vlaneseq
        %v1656 = vshrl.u32 %v1655, 7
        %v1657 = vsub.s32 %v1654, %v1656
        %v1658 = vrot.slane %v1630, %v1657
        %v1659 = vcombine.high %v1637, %v1637
        %v1660 = vcombine.high %v1644, %v1644
        %v1661 = vcombine.high %v1651, %v1651
        %v1662 = vcombine.high %v1658, %v1658
        %v1664 = vunpack.c.l.s4 1966171168
        %v1665 = vunpack.c.0.s8 %v1664
        %v1666 = vlaneseq
        %v1667 = vshrl.u32 %v1666, 7
        %v1668 = vsub.s32 %v1665, %v1667
        %v1669 = vrot.slane %v341, %v1668
        %v1670 = vcombine.high %v1669, %v1669
        %v1672 = vunpack.c.l.s4 1966171168
        %v1673 = vunpack.c.0.s8 %v1672
        %v1674 = vlaneseq
        %v1675 = vshrl.u32 %v1674, 7
        %v1676 = vsub.s32 %v1673, %v1675
        %v1677 = vrot.slane %v1669, %v1676
        %v1679 = vunpack.c.l.s4 1966171168
        %v1680 = vunpack.c.0.s8 %v1679
        %v1681 = vlaneseq
        %v1682 = vshrl.u32 %v1681, 7
        %v1683 = vsub.s32 %v1680, %v1682
        %v1684 = vrot.slane %v1670, %v1683
        %v1685 = vcombine.high %v1677, %v1677
        %v2841 = vunpack.c.l.b16 %v342
        %v2842 = vunpack.c.h.b16 %v342
        %v2843 = vunpack.c.l.b16 %v343
        %v2844 = vunpack.c.h.b16 %v343
        %v2845 = vunpack.c.l.b16 %v344
        %v2846 = vunpack.c.h.b16 %v344
        %v2847 = vunpack.c.l.b16 %v345
        %v2848 = vunpack.c.h.b16 %v345
        %v2849 = vunpack.c.l.b16 %v346
        %v2850 = vunpack.c.h.b16 %v346
        %v2851 = vunpack.c.l.b16 %v347
        %v2852 = vunpack.c.h.b16 %v347
        %v2853 = vunpack.c.l.b16 %v348
        %v2854 = vunpack.c.h.b16 %v348
        %v2855 = vunpack.c.l.b16 %v349
        %v2856 = vunpack.c.h.b16 %v349
        %v2857 = vunpack.c.l.b16 %v350
        %v2858 = vunpack.c.h.b16 %v350
        %v2859 = vunpack.c.l.b16 %v351
        %v2860 = vunpack.c.h.b16 %v351
        %v2861 = vunpack.c.l.b16 %v352
        %v2862 = vunpack.c.h.b16 %v352
        %v2863 = vunpack.c.l.b16 %v353
        %v2864 = vunpack.c.h.b16 %v353
        %v2865 = vunpack.c.l.b16 %v354
        %v2866 = vunpack.c.h.b16 %v354
        %v2867 = vunpack.c.l.b16 %v355
        %v2868 = vunpack.c.h.b16 %v355
        %v2869 = vunpack.c.l.b16 %v356
        %v2870 = vunpack.c.h.b16 %v356
        %v2871 = vunpack.c.l.b16 %v357
        %v2872 = vunpack.c.h.b16 %v357
        %v2873 = vunpack.c.l.b16 %v358
        %v2874 = vunpack.c.h.b16 %v358
        %v2875 = vunpack.c.l.b16 %v359
        %v2876 = vunpack.c.h.b16 %v359
        %v2877 = vunpack.c.l.b16 %v360
        %v2878 = vunpack.c.h.b16 %v360
        %v2879 = vunpack.c.l.b16 %v361
        %v2880 = vunpack.c.h.b16 %v361
        %v2881 = vunpack.c.l.b16 %v362
        %v2882 = vunpack.c.h.b16 %v362
        %v2883 = vunpack.c.l.b16 %v363
        %v2884 = vunpack.c.h.b16 %v363
        %v2885 = vunpack.c.l.b16 %v364
        %v2886 = vunpack.c.h.b16 %v364
        %v2887 = vunpack.c.l.b16 %v365
        %v2888 = vunpack.c.h.b16 %v365
        %v2889 = vunpack.c.l.b16 %v366
        %v2890 = vunpack.c.h.b16 %v366
        %v2891 = vunpack.c.l.b16 %v367
        %v2892 = vunpack.c.h.b16 %v367
        %v2893 = vunpack.c.l.b16 %v368
        %v2894 = vunpack.c.h.b16 %v368
        %v2895 = vunpack.c.l.b16 %v369
        %v2896 = vunpack.c.h.b16 %v369
        %v2897 = vunpack.c.l.b16 %v370
        %v2898 = vunpack.c.h.b16 %v370
        %v2899 = vunpack.c.l.b16 %v371
        %v2900 = vunpack.c.h.b16 %v371
        %v2901 = vunpack.c.l.b16 %v372
        %v2902 = vunpack.c.h.b16 %v372
        %v2903 = vunpack.c.l.b16 %v373
        %v2904 = vunpack.c.h.b16 %v373
        %v2905 = vunpack.c.l.b16 %v374
        %v2906 = vunpack.c.h.b16 %v374
        %v2907 = vunpack.c.l.b16 %v375
        %v2908 = vunpack.c.h.b16 %v375
        %v2909 = vunpack.c.l.b16 %v376
        %v2910 = vunpack.c.h.b16 %v376
        %v2911 = vunpack.c.l.b16 %v377
        %v2912 = vunpack.c.h.b16 %v377
        %v2913 = vunpack.c.l.b16 %v378
        %v2914 = vunpack.c.h.b16 %v378
        %v2915 = vunpack.c.l.b16 %v379
        %v2916 = vunpack.c.h.b16 %v379
        %v2917 = vunpack.c.l.b16 %v380
        %v2918 = vunpack.c.h.b16 %v380
        %v2919 = vunpack.c.l.b16 %v381
        %v2920 = vunpack.c.h.b16 %v381
        %v2921 = vunpack.c.l.b16 %v382
        %v2922 = vunpack.c.h.b16 %v382
        %v2923 = vunpack.c.l.b16 %v383
        %v2924 = vunpack.c.h.b16 %v383
        %v2925 = vunpack.c.l.b16 %v384
        %v2926 = vunpack.c.h.b16 %v384
        %v2927 = vunpack.c.l.b16 %v385
        %v2928 = vunpack.c.h.b16 %v385
        %v2929 = vunpack.c.l.b16 %v386
        %v2930 = vunpack.c.h.b16 %v386
        %v2931 = vunpack.c.l.b16 %v387
        %v2932 = vunpack.c.h.b16 %v387
        %v2933 = vunpack.c.l.b16 %v388
        %v2934 = vunpack.c.h.b16 %v388
        %v2935 = vunpack.c.l.b16 %v389
        %v2936 = vunpack.c.h.b16 %v389
        %v2937 = vunpack.c.l.b16 %v390
        %v2938 = vunpack.c.h.b16 %v390
        %v2939 = vunpack.c.l.b16 %v391
        %v2940 = vunpack.c.h.b16 %v391
        %v2941 = vunpack.c.l.b16 %v392
        %v2942 = vunpack.c.h.b16 %v392
        %v2943 = vunpack.c.l.b16 %v393
        %v2944 = vunpack.c.h.b16 %v393
        %v2945 = vunpack.c.l.b16 %v394
        %v2946 = vunpack.c.h.b16 %v394
        %v2947 = vunpack.c.l.b16 %v395
        %v2948 = vunpack.c.h.b16 %v395
        %v2949 = vunpack.c.l.b16 %v396
        %v2950 = vunpack.c.h.b16 %v396
        %v2951 = vunpack.c.l.b16 %v397
        %v2952 = vunpack.c.h.b16 %v397
        %v2953 = vunpack.c.l.b16 %v398
        %v2954 = vunpack.c.h.b16 %v398
        %v2955 = vunpack.c.l.b16 %v399
        %v2956 = vunpack.c.h.b16 %v399
        %v2957 = vunpack.c.l.b16 %v400
        %v2958 = vunpack.c.h.b16 %v400
        %v2959 = vunpack.c.l.b16 %v401
        %v2960 = vunpack.c.h.b16 %v401
        %v2961 = vunpack.c.l.b16 %v402
        %v2962 = vunpack.c.h.b16 %v402
        %v2963 = vunpack.c.l.b16 %v403
        %v2964 = vunpack.c.h.b16 %v403
        %v2965 = vunpack.c.l.b16 %v404
        %v2966 = vunpack.c.h.b16 %v404
        %v2967 = vunpack.c.l.b16 %v405
        %v2968 = vunpack.c.h.b16 %v405
        %v2969 = vunpack.c.l.b16 %v406
        %v2970 = vunpack.c.h.b16 %v406
        %v2971 = vunpack.c.l.b16 %v407
        %v2972 = vunpack.c.h.b16 %v407
        %v2973 = vunpack.c.l.b16 %v408
        %v2974 = vunpack.c.h.b16 %v408
        %v2975 = vunpack.c.l.b16 %v409
        %v2976 = vunpack.c.h.b16 %v409
        %v2977 = vunpack.c.l.b16 %v410
        %v2978 = vunpack.c.h.b16 %v410
        %v2979 = vunpack.c.l.b16 %v411
        %v2980 = vunpack.c.h.b16 %v411
        %v2981 = vunpack.c.l.b16 %v412
        %v2982 = vunpack.c.h.b16 %v412
        %v2983 = vunpack.c.l.b16 %v413
        %v2984 = vunpack.c.h.b16 %v413
        %v2985 = vunpack.c.l.b16 %v414
        %v2986 = vunpack.c.h.b16 %v414
        %v2987 = vunpack.c.l.b16 %v415
        %v2988 = vunpack.c.h.b16 %v415
        %v2989 = vunpack.c.l.b16 %v416
        %v2990 = vunpack.c.h.b16 %v416
        %v2991 = vunpack.c.l.b16 %v417
        %v2992 = vunpack.c.h.b16 %v417
        %v2993 = vunpack.c.l.b16 %v418
        %v2994 = vunpack.c.h.b16 %v418
        %v2995 = vunpack.c.l.b16 %v419
        %v2996 = vunpack.c.h.b16 %v419
        %v2997 = vunpack.c.l.b16 %v420
        %v2998 = vunpack.c.h.b16 %v420
        %v2999 = vunpack.c.l.b16 %v421
        %v3000 = vunpack.c.h.b16 %v421
        %v3001 = vunpack.c.l.b16 %v422
        %v3002 = vunpack.c.h.b16 %v422
        %v3003 = vunpack.c.l.b16 %v423
        %v3004 = vunpack.c.h.b16 %v423
        %v3005 = vunpack.c.l.b16 %v424
        %v3006 = vunpack.c.h.b16 %v424
        %v3007 = vunpack.c.l.b16 %v425
        %v3008 = vunpack.c.h.b16 %v425
        %v3009 = vunpack.c.l.b16 %v426
        %v3010 = vunpack.c.h.b16 %v426
        %v3011 = vunpack.c.l.b16 %v427
        %v3012 = vunpack.c.h.b16 %v427
        %v3013 = vunpack.c.l.b16 %v428
        %v3014 = vunpack.c.h.b16 %v428
        %v3015 = vunpack.c.l.b16 %v429
        %v3016 = vunpack.c.h.b16 %v429
        %v3017 = vunpack.c.l.b16 %v430
        %v3018 = vunpack.c.h.b16 %v430
        %v3019 = vunpack.c.l.b16 %v431
        %v3020 = vunpack.c.h.b16 %v431
        %v3021 = vunpack.c.l.b16 %v432
        %v3022 = vunpack.c.h.b16 %v432
        %v3023 = vunpack.c.l.b16 %v433
        %v3024 = vunpack.c.h.b16 %v433
        %v3025 = vunpack.c.l.b16 %v434
        %v3026 = vunpack.c.h.b16 %v434
        %v3027 = vunpack.c.l.b16 %v435
        %v3028 = vunpack.c.h.b16 %v435
        %v3029 = vunpack.c.l.b16 %v436
        %v3030 = vunpack.c.h.b16 %v436
        %v3031 = vunpack.c.l.b16 %v437
        %v3032 = vunpack.c.h.b16 %v437
        %v3033 = vunpack.c.l.b16 %v438
        %v3034 = vunpack.c.h.b16 %v438
        %v3035 = vunpack.c.l.b16 %v439
        %v3036 = vunpack.c.h.b16 %v439
        %v3037 = vunpack.c.l.b16 %v440
        %v3038 = vunpack.c.h.b16 %v440
        %v3039 = vunpack.c.l.b16 %v441
        %v3040 = vunpack.c.h.b16 %v441
        %v3041 = vunpack.c.l.b16 %v442
        %v3042 = vunpack.c.h.b16 %v442
        %v3043 = vunpack.c.l.b16 %v443
        %v3044 = vunpack.c.h.b16 %v443
        %v3045 = vunpack.c.l.b16 %v444
        %v3046 = vunpack.c.h.b16 %v444
        %v3047 = vunpack.c.l.b16 %v445
        %v3048 = vunpack.c.h.b16 %v445
        %v3049 = vunpack.c.l.b16 %v446
        %v3050 = vunpack.c.h.b16 %v446
        %v3051 = vunpack.c.l.b16 %v447
        %v3052 = vunpack.c.h.b16 %v447
        %v3053 = vunpack.c.l.b16 %v448
        %v3054 = vunpack.c.h.b16 %v448
        %v3055 = vunpack.c.l.b16 %v449
        %v3056 = vunpack.c.h.b16 %v449
        %v3057 = vunpack.c.l.b16 %v450
        %v3058 = vunpack.c.h.b16 %v450
        %v3059 = vunpack.c.l.b16 %v451
        %v3060 = vunpack.c.h.b16 %v451
        %v3061 = vunpack.c.l.b16 %v452
        %v3062 = vunpack.c.h.b16 %v452
        %v3063 = vunpack.c.l.b16 %v453
        %v3064 = vunpack.c.h.b16 %v453
        %v3065 = vunpack.c.l.b16 %v454
        %v3066 = vunpack.c.h.b16 %v454
        %v3067 = vunpack.c.l.b16 %v455
        %v3068 = vunpack.c.h.b16 %v455
        %v3069 = vunpack.c.l.b16 %v456
        %v3070 = vunpack.c.h.b16 %v456
        %v3071 = vunpack.c.l.b16 %v457
        %v3072 = vunpack.c.h.b16 %v457
        %v3073 = vunpack.c.l.b16 %v458
        %v3074 = vunpack.c.h.b16 %v458
        %v3075 = vunpack.c.l.b16 %v459
        %v3076 = vunpack.c.h.b16 %v459
        %v3077 = vunpack.c.l.b16 %v460
        %v3078 = vunpack.c.h.b16 %v460
        %v3079 = vunpack.c.l.b16 %v461
        %v3080 = vunpack.c.h.b16 %v461
        %v3081 = vunpack.c.l.b16 %v462
        %v3082 = vunpack.c.h.b16 %v462
        %v3083 = vunpack.c.l.b16 %v463
        %v3084 = vunpack.c.h.b16 %v463
        %v3085 = vunpack.c.l.b16 %v464
        %v3086 = vunpack.c.h.b16 %v464
        %v3087 = vunpack.c.l.b16 %v465
        %v3088 = vunpack.c.h.b16 %v465
        %v3089 = vunpack.c.l.b16 %v466
        %v3090 = vunpack.c.h.b16 %v466
        %v3091 = vunpack.c.l.b16 %v467
        %v3092 = vunpack.c.h.b16 %v467
        %v3093 = vunpack.c.l.b16 %v468
        %v3094 = vunpack.c.h.b16 %v468
        %v3095 = vunpack.c.l.b16 %v469
        %v3096 = vunpack.c.h.b16 %v469
        %v3097 = vunpack.c.l.b16 %v470
        %v3098 = vunpack.c.h.b16 %v470
        %v3099 = vunpack.c.l.b16 %v471
        %v3100 = vunpack.c.h.b16 %v471
        %v3101 = vunpack.c.l.b16 %v472
        %v3102 = vunpack.c.h.b16 %v472
        %v3103 = vunpack.c.l.b16 %v473
        %v3104 = vunpack.c.h.b16 %v473
        %v3105 = vunpack.c.l.b16 %v474
        %v3106 = vunpack.c.h.b16 %v474
        %v3107 = vunpack.c.l.b16 %v475
        %v3108 = vunpack.c.h.b16 %v475
        %v3109 = vunpack.c.l.b16 %v476
        %v3110 = vunpack.c.h.b16 %v476
        %v3111 = vunpack.c.l.b16 %v477
        %v3112 = vunpack.c.h.b16 %v477
        %v3113 = vunpack.c.l.b16 %v478
        %v3114 = vunpack.c.h.b16 %v478
        %v3115 = vunpack.c.l.b16 %v479
        %v3116 = vunpack.c.h.b16 %v479
        %v3117 = vunpack.c.l.b16 %v480
        %v3118 = vunpack.c.h.b16 %v480
        %v3119 = vunpack.c.l.b16 %v481
        %v3120 = vunpack.c.h.b16 %v481
        %v3121 = vunpack.c.l.b16 %v482
        %v3122 = vunpack.c.h.b16 %v482
        %v3123 = vunpack.c.l.b16 %v483
        %v3124 = vunpack.c.h.b16 %v483
        %v3125 = vunpack.c.l.b16 %v484
        %v3126 = vunpack.c.h.b16 %v484
        %v3127 = vunpack.c.l.b16 %v485
        %v3128 = vunpack.c.h.b16 %v485
        %v3129 = vunpack.c.l.b16 %v486
        %v3130 = vunpack.c.h.b16 %v486
        %v3131 = vunpack.c.l.b16 %v487
        %v3132 = vunpack.c.h.b16 %v487
        %v3133 = vunpack.c.l.b16 %v488
        %v3134 = vunpack.c.h.b16 %v488
        %v3135 = vunpack.c.l.b16 %v489
        %v3136 = vunpack.c.h.b16 %v489
        %v3137 = vunpack.c.l.b16 %v490
        %v3138 = vunpack.c.h.b16 %v490
        %v3139 = vunpack.c.l.b16 %v491
        %v3140 = vunpack.c.h.b16 %v491
        %v3141 = vunpack.c.l.b16 %v492
        %v3142 = vunpack.c.h.b16 %v492
        %v3143 = vunpack.c.l.b16 %v493
        %v3144 = vunpack.c.h.b16 %v493
        %v3145 = vunpack.c.l.b16 %v494
        %v3146 = vunpack.c.h.b16 %v494
        %v3147 = vunpack.c.l.b16 %v495
        %v3148 = vunpack.c.h.b16 %v495
        %v3149 = vunpack.c.l.b16 %v496
        %v3150 = vunpack.c.h.b16 %v496
        %v3151 = vunpack.c.l.b16 %v497
        %v3152 = vunpack.c.h.b16 %v497
        %v3153 = vunpack.c.l.b16 %v498
        %v3154 = vunpack.c.h.b16 %v498
        %v3155 = vunpack.c.l.b16 %v499
        %v3156 = vunpack.c.h.b16 %v499
        %v3157 = vunpack.c.l.b16 %v500
        %v3158 = vunpack.c.h.b16 %v500
        %v3159 = vunpack.c.l.b16 %v501
        %v3160 = vunpack.c.h.b16 %v501
        %v3161 = vunpack.c.l.b16 %v502
        %v3162 = vunpack.c.h.b16 %v502
        %v3163 = vunpack.c.l.b16 %v503
        %v3164 = vunpack.c.h.b16 %v503
        %v3165 = vunpack.c.l.b16 %v504
        %v3166 = vunpack.c.h.b16 %v504
        %v3167 = vunpack.c.l.b16 %v505
        %v3168 = vunpack.c.h.b16 %v505
        %v3169 = vunpack.c.l.b16 %v506
        %v3170 = vunpack.c.h.b16 %v506
        %v3171 = vunpack.c.l.b16 %v507
        %v3172 = vunpack.c.h.b16 %v507
        %v3173 = vunpack.c.l.b16 %v508
        %v3174 = vunpack.c.h.b16 %v508
        %v3175 = vunpack.c.l.b16 %v509
        %v3176 = vunpack.c.h.b16 %v509
        %v3177 = vunpack.c.l.b16 %v510
        %v3178 = vunpack.c.h.b16 %v510
        %v3179 = vunpack.c.l.b16 %v511
        %v3180 = vunpack.c.h.b16 %v511
        %v3181 = vunpack.c.l.b16 %v512
        %v3182 = vunpack.c.h.b16 %v512
        %v3183 = vunpack.c.l.b16 %v513
        %v3184 = vunpack.c.h.b16 %v513
        %v3185 = vunpack.c.l.b16 %v514
        %v3186 = vunpack.c.h.b16 %v514
        %v3187 = vunpack.c.l.b16 %v515
        %v3188 = vunpack.c.h.b16 %v515
        %v3189 = vunpack.c.l.b16 %v516
        %v3190 = vunpack.c.h.b16 %v516
        %v3191 = vunpack.c.l.b16 %v517
        %v3192 = vunpack.c.h.b16 %v517
        %v3193 = vunpack.c.l.b16 %v518
        %v3194 = vunpack.c.h.b16 %v518
        %v3195 = vunpack.c.l.b16 %v519
        %v3196 = vunpack.c.h.b16 %v519
        %v3197 = vunpack.c.l.b16 %v520
        %v3198 = vunpack.c.h.b16 %v520
        %v3199 = vunpack.c.l.b16 %v521
        %v3200 = vunpack.c.h.b16 %v521
        %v3201 = vunpack.c.l.b16 %v522
        %v3202 = vunpack.c.h.b16 %v522
        %v3203 = vunpack.c.l.b16 %v523
        %v3204 = vunpack.c.h.b16 %v523
        %v3205 = vunpack.c.l.b16 %v524
        %v3206 = vunpack.c.h.b16 %v524
        %v3207 = vunpack.c.l.b16 %v525
        %v3208 = vunpack.c.h.b16 %v525
        %v3209 = vunpack.c.l.b16 %v526
        %v3210 = vunpack.c.h.b16 %v526
        %v3211 = vunpack.c.l.b16 %v527
        %v3212 = vunpack.c.h.b16 %v527
        %v3213 = vunpack.c.l.b16 %v528
        %v3214 = vunpack.c.h.b16 %v528
        %v3215 = vunpack.c.l.b16 %v529
        %v3216 = vunpack.c.h.b16 %v529
        %v3217 = vunpack.c.l.b16 %v530
        %v3218 = vunpack.c.h.b16 %v530
        %v3219 = vunpack.c.l.b16 %v531
        %v3220 = vunpack.c.h.b16 %v531
        %v3221 = vunpack.c.l.b16 %v532
        %v3222 = vunpack.c.h.b16 %v532
        %v3223 = vunpack.c.l.b16 %v533
        %v3224 = vunpack.c.h.b16 %v533
        %v3225 = vunpack.c.l.b16 %v534
        %v3226 = vunpack.c.h.b16 %v534
        %v3227 = vunpack.c.l.b16 %v535
        %v3228 = vunpack.c.h.b16 %v535
        %v3229 = vunpack.c.l.b16 %v536
        %v3230 = vunpack.c.h.b16 %v536
        %v3231 = vunpack.c.l.b16 %v537
        %v3232 = vunpack.c.h.b16 %v537
        %v3233 = vunpack.c.l.b16 %v538
        %v3234 = vunpack.c.h.b16 %v538
        %v3235 = vunpack.c.l.b16 %v539
        %v3236 = vunpack.c.h.b16 %v539
        %v3237 = vunpack.c.l.b16 %v540
        %v3238 = vunpack.c.h.b16 %v540
        %v3239 = vunpack.c.l.b16 %v541
        %v3240 = vunpack.c.h.b16 %v541
        %v3241 = vunpack.c.l.b16 %v542
        %v3242 = vunpack.c.h.b16 %v542
        %v3243 = vunpack.c.l.b16 %v543
        %v3244 = vunpack.c.h.b16 %v543
        %v3245 = vunpack.c.l.b16 %v544
        %v3246 = vunpack.c.h.b16 %v544
        %v3247 = vunpack.c.l.b16 %v545
        %v3248 = vunpack.c.h.b16 %v545
        %v3249 = vunpack.c.l.b16 %v546
        %v3250 = vunpack.c.h.b16 %v546
        %v3251 = vunpack.c.l.b16 %v547
        %v3252 = vunpack.c.h.b16 %v547
        %v3253 = vunpack.c.l.b16 %v548
        %v3254 = vunpack.c.h.b16 %v548
        %v3255 = vunpack.c.l.b16 %v549
        %v3256 = vunpack.c.h.b16 %v549
        %v3257 = vunpack.c.l.b16 %v550
        %v3258 = vunpack.c.h.b16 %v550
        %v3259 = vunpack.c.l.b16 %v551
        %v3260 = vunpack.c.h.b16 %v551
        %v3261 = vunpack.c.l.b16 %v552
        %v3262 = vunpack.c.h.b16 %v552
        %v3263 = vunpack.c.l.b16 %v553
        %v3264 = vunpack.c.h.b16 %v553
        %v3265 = vunpack.c.l.b16 %v554
        %v3266 = vunpack.c.h.b16 %v554
        %v3267 = vunpack.c.l.b16 %v555
        %v3268 = vunpack.c.h.b16 %v555
        %v3269 = vunpack.c.l.b16 %v556
        %v3270 = vunpack.c.h.b16 %v556
        %v3271 = vunpack.c.l.b16 %v557
        %v3272 = vunpack.c.h.b16 %v557
        %v3273 = vunpack.c.l.b16 %v558
        %v3274 = vunpack.c.h.b16 %v558
        %v3275 = vunpack.c.l.b16 %v559
        %v3276 = vunpack.c.h.b16 %v559
        %v3277 = vunpack.c.l.b16 %v560
        %v3278 = vunpack.c.h.b16 %v560
        %v3279 = vunpack.c.l.b16 %v561
        %v3280 = vunpack.c.h.b16 %v561
        %v3281 = vunpack.c.l.b16 %v562
        %v3282 = vunpack.c.h.b16 %v562
        %v3283 = vunpack.c.l.b16 %v563
        %v3284 = vunpack.c.h.b16 %v563
        %v3285 = vunpack.c.l.b16 %v564
        %v3286 = vunpack.c.h.b16 %v564
        %v3287 = vunpack.c.l.b16 %v565
        %v3288 = vunpack.c.h.b16 %v565
        %v3289 = vunpack.c.l.b16 %v566
        %v3290 = vunpack.c.h.b16 %v566
        %v3291 = vunpack.c.l.b16 %v567
        %v3292 = vunpack.c.h.b16 %v567
        %v3293 = vunpack.c.l.b16 %v568
        %v3294 = vunpack.c.h.b16 %v568
        %v3295 = vunpack.c.l.b16 %v569
        %v3296 = vunpack.c.h.b16 %v569
        %v3297 = vunpack.c.l.b16 %v570
        %v3298 = vunpack.c.h.b16 %v570
        %v3299 = vunpack.c.l.b16 %v571
        %v3300 = vunpack.c.h.b16 %v571
        %v3301 = vunpack.c.l.b16 %v572
        %v3302 = vunpack.c.h.b16 %v572
        %v3303 = vunpack.c.l.b16 %v573
        %v3304 = vunpack.c.h.b16 %v573
        %v3305 = vunpack.c.l.b16 %v574
        %v3306 = vunpack.c.h.b16 %v574
        %v3307 = vunpack.c.l.b16 %v575
        %v3308 = vunpack.c.h.b16 %v575
        %v3309 = vunpack.c.l.b16 %v576
        %v3310 = vunpack.c.h.b16 %v576
        %v3311 = vunpack.c.l.b16 %v577
        %v3312 = vunpack.c.h.b16 %v577
        %v3313 = vunpack.c.l.b16 %v578
        %v3314 = vunpack.c.h.b16 %v578
        %v3315 = vunpack.c.l.b16 %v579
        %v3316 = vunpack.c.h.b16 %v579
        %v3317 = vunpack.c.l.b16 %v580
        %v3318 = vunpack.c.h.b16 %v580
        %v3319 = vunpack.c.l.b16 %v581
        %v3320 = vunpack.c.h.b16 %v581
        %v3321 = vunpack.c.l.b16 %v582
        %v3322 = vunpack.c.h.b16 %v582
        %v3323 = vunpack.c.l.b16 %v583
        %v3324 = vunpack.c.h.b16 %v583
        %v3325 = vunpack.c.l.b16 %v584
        %v3326 = vunpack.c.h.b16 %v584
        %v3327 = vunpack.c.l.b16 %v585
        %v3328 = vunpack.c.h.b16 %v585
        %v3329 = vunpack.c.l.b16 %v586
        %v3330 = vunpack.c.h.b16 %v586
        %v3331 = vunpack.c.l.b16 %v587
        %v3332 = vunpack.c.h.b16 %v587
        %v3333 = vunpack.c.l.b16 %v588
        %v3334 = vunpack.c.h.b16 %v588
        %v3335 = vunpack.c.l.b16 %v589
        %v3336 = vunpack.c.h.b16 %v589
        %v3337 = vunpack.c.l.b16 %v590
        %v3338 = vunpack.c.h.b16 %v590
        %v3339 = vunpack.c.l.b16 %v591
        %v3340 = vunpack.c.h.b16 %v591
        %v3341 = vunpack.c.l.b16 %v592
        %v3342 = vunpack.c.h.b16 %v592
        %v3343 = vunpack.c.l.b16 %v593
        %v3344 = vunpack.c.h.b16 %v593
        %v3345 = vunpack.c.l.b16 %v594
        %v3346 = vunpack.c.h.b16 %v594
        %v3347 = vunpack.c.l.b16 %v595
        %v3348 = vunpack.c.h.b16 %v595
        %v3349 = vunpack.c.l.b16 %v596
        %v3350 = vunpack.c.h.b16 %v596
        %v3351 = vunpack.c.l.b16 %v597
        %v3352 = vunpack.c.h.b16 %v597
        %v3353 = vunpack.c.l.b16 %v598
        %v3354 = vunpack.c.h.b16 %v598
        %v3355 = vunpack.c.l.b16 %v599
        %v3356 = vunpack.c.h.b16 %v599
        %v3357 = vunpack.c.l.b16 %v600
        %v3358 = vunpack.c.h.b16 %v600
        %v3359 = vunpack.c.l.b16 %v601
        %v3360 = vunpack.c.h.b16 %v601
        %v3361 = vunpack.c.l.b16 %v602
        %v3362 = vunpack.c.h.b16 %v602
        %v3363 = vunpack.c.l.b16 %v603
        %v3364 = vunpack.c.h.b16 %v603
        %v3365 = vunpack.c.l.b16 %v604
        %v3366 = vunpack.c.h.b16 %v604
        %v3367 = vunpack.c.l.b16 %v605
        %v3368 = vunpack.c.h.b16 %v605
        %v3369 = vunpack.c.l.b16 %v606
        %v3370 = vunpack.c.h.b16 %v606
        %v3371 = vunpack.c.l.b16 %v607
        %v3372 = vunpack.c.h.b16 %v607
        %v3373 = vunpack.c.l.b16 %v608
        %v3374 = vunpack.c.h.b16 %v608
        %v3375 = vunpack.c.l.b16 %v609
        %v3376 = vunpack.c.h.b16 %v609
        %v3377 = vunpack.c.l.b16 %v610
        %v3378 = vunpack.c.h.b16 %v610
        %v3379 = vunpack.c.l.b16 %v611
        %v3380 = vunpack.c.h.b16 %v611
        %v3381 = vunpack.c.l.b16 %v612
        %v3382 = vunpack.c.h.b16 %v612
        %v3383 = vunpack.c.l.b16 %v613
        %v3384 = vunpack.c.h.b16 %v613
        %v3385 = vunpack.c.l.b16 %v614
        %v3386 = vunpack.c.h.b16 %v614
        %v3387 = vunpack.c.l.b16 %v615
        %v3388 = vunpack.c.h.b16 %v615
        %v3389 = vunpack.c.l.b16 %v616
        %v3390 = vunpack.c.h.b16 %v616
        %v3391 = vunpack.c.l.b16 %v617
        %v3392 = vunpack.c.h.b16 %v617
        %v3393 = vunpack.c.l.b16 %v618
        %v3394 = vunpack.c.h.b16 %v618
        %v3395 = vunpack.c.l.b16 %v619
        %v3396 = vunpack.c.h.b16 %v619
        %v3397 = vunpack.c.l.b16 %v620
        %v3398 = vunpack.c.h.b16 %v620
        %v3399 = vunpack.c.l.b16 %v621
        %v3400 = vunpack.c.h.b16 %v621
        %v3401 = vunpack.c.l.b16 %v622
        %v3402 = vunpack.c.h.b16 %v622
        %v3403 = vunpack.c.l.b16 %v623
        %v3404 = vunpack.c.h.b16 %v623
        %v3405 = vunpack.c.l.b16 %v624
        %v3406 = vunpack.c.h.b16 %v624
        %v3407 = vunpack.c.l.b16 %v625
        %v3408 = vunpack.c.h.b16 %v625
        %v3409 = vunpack.c.l.b16 %v626
        %v3410 = vunpack.c.h.b16 %v626
        %v3411 = vunpack.c.l.b16 %v627
        %v3412 = vunpack.c.h.b16 %v627
        %v3413 = vunpack.c.l.b16 %v628
        %v3414 = vunpack.c.h.b16 %v628
        %v3415 = vunpack.c.l.b16 %v629
        %v3416 = vunpack.c.h.b16 %v629
        %v3417 = vunpack.c.l.b16 %v630
        %v3418 = vunpack.c.h.b16 %v630
        %v3419 = vunpack.c.l.b16 %v631
        %v3420 = vunpack.c.h.b16 %v631
        %v3421 = vunpack.c.l.b16 %v632
        %v3422 = vunpack.c.h.b16 %v632
        %v3423 = vunpack.c.l.b16 %v633
        %v3424 = vunpack.c.h.b16 %v633
        %v3425 = vunpack.c.l.b16 %v634
        %v3426 = vunpack.c.h.b16 %v634
        %v3427 = vunpack.c.l.b16 %v635
        %v3428 = vunpack.c.h.b16 %v635
        %v3429 = vunpack.c.l.b16 %v636
        %v3430 = vunpack.c.h.b16 %v636
        %v3431 = vunpack.c.l.b16 %v637
        %v3432 = vunpack.c.h.b16 %v637
        %v3433 = vunpack.c.l.b16 %v638
        %v3434 = vunpack.c.h.b16 %v638
        %v3435 = vunpack.c.l.b16 %v639
        %v3436 = vunpack.c.h.b16 %v639
        %v3437 = vunpack.c.l.b16 %v640
        %v3438 = vunpack.c.h.b16 %v640
        %v3439 = vunpack.c.l.b16 %v641
        %v3440 = vunpack.c.h.b16 %v641
        %v3441 = vunpack.c.l.b16 %v642
        %v3442 = vunpack.c.h.b16 %v642
        %v3443 = vunpack.c.l.b16 %v643
        %v3444 = vunpack.c.h.b16 %v643
        %v3445 = vunpack.c.l.b16 %v644
        %v3446 = vunpack.c.h.b16 %v644
        %v3447 = vunpack.c.l.b16 %v645
        %v3448 = vunpack.c.h.b16 %v645
        %v3449 = vunpack.c.l.b16 %v646
        %v3450 = vunpack.c.h.b16 %v646
        %v3451 = vunpack.c.l.b16 %v647
        %v3452 = vunpack.c.h.b16 %v647
        %v3453 = vunpack.c.l.b16 %v648
        %v3454 = vunpack.c.h.b16 %v648
        %v3455 = vunpack.c.l.b16 %v649
        %v3456 = vunpack.c.h.b16 %v649
        %v3457 = vunpack.c.l.b16 %v650
        %v3458 = vunpack.c.h.b16 %v650
        %v3459 = vunpack.c.l.b16 %v651
        %v3460 = vunpack.c.h.b16 %v651
        %v3461 = vunpack.c.l.b16 %v652
        %v3462 = vunpack.c.h.b16 %v652
        %v3463 = vunpack.c.l.b16 %v653
        %v3464 = vunpack.c.h.b16 %v653
        %v3465 = vunpack.c.l.b16 %v654
        %v3466 = vunpack.c.h.b16 %v654
        %v3467 = vunpack.c.l.b16 %v655
        %v3468 = vunpack.c.h.b16 %v655
        %v3469 = vunpack.c.l.b16 %v656
        %v3470 = vunpack.c.h.b16 %v656
        %v3471 = vunpack.c.l.b16 %v657
        %v3472 = vunpack.c.h.b16 %v657
        %v3473 = vunpack.c.l.b16 %v658
        %v3474 = vunpack.c.h.b16 %v658
        %v3475 = vunpack.c.l.b16 %v659
        %v3476 = vunpack.c.h.b16 %v659
        %v3477 = vunpack.c.l.b16 %v660
        %v3478 = vunpack.c.h.b16 %v660
        %v3479 = vunpack.c.l.b16 %v661
        %v3480 = vunpack.c.h.b16 %v661
        %v3481 = vunpack.c.l.b16 %v662
        %v3482 = vunpack.c.h.b16 %v662
        %v3483 = vunpack.c.l.b16 %v663
        %v3484 = vunpack.c.h.b16 %v663
        %v3485 = vunpack.c.l.b16 %v664
        %v3486 = vunpack.c.h.b16 %v664
        %v3487 = vunpack.c.l.b16 %v665
        %v3488 = vunpack.c.h.b16 %v665
        %v3489 = vunpack.c.l.b16 %v666
        %v3490 = vunpack.c.h.b16 %v666
        %v3491 = vunpack.c.l.b16 %v667
        %v3492 = vunpack.c.h.b16 %v667
        %v3493 = vunpack.c.l.b16 %v668
        %v3494 = vunpack.c.h.b16 %v668
        %v3495 = vunpack.c.l.b16 %v669
        %v3496 = vunpack.c.h.b16 %v669
        %v3497 = vunpack.c.l.b16 %v670
        %v3498 = vunpack.c.h.b16 %v670
        %v3499 = vunpack.c.l.b16 %v671
        %v3500 = vunpack.c.h.b16 %v671
        %v3501 = vunpack.c.l.b16 %v672
        %v3502 = vunpack.c.h.b16 %v672
        %v3503 = vunpack.c.l.b16 %v673
        %v3504 = vunpack.c.h.b16 %v673
        %v3505 = vunpack.c.l.b16 %v674
        %v3506 = vunpack.c.h.b16 %v674
        %v3507 = vunpack.c.l.b16 %v675
        %v3508 = vunpack.c.h.b16 %v675
        %v3509 = vunpack.c.l.b16 %v676
        %v3510 = vunpack.c.h.b16 %v676
        %v3511 = vunpack.c.l.b16 %v677
        %v3512 = vunpack.c.h.b16 %v677
        %v3513 = vunpack.c.l.b16 %v678
        %v3514 = vunpack.c.h.b16 %v678
        %v3515 = vunpack.c.l.b16 %v679
        %v3516 = vunpack.c.h.b16 %v679
        %v3517 = vunpack.c.l.b16 %v680
        %v3518 = vunpack.c.h.b16 %v680
        %v3519 = vunpack.c.l.b16 %v681
        %v3520 = vunpack.c.h.b16 %v681
        %v3521 = vunpack.c.l.b16 %v682
        %v3522 = vunpack.c.h.b16 %v682
        %v3523 = vunpack.c.l.b16 %v683
        %v3524 = vunpack.c.h.b16 %v683
        %v3525 = vunpack.c.l.b16 %v684
        %v3526 = vunpack.c.h.b16 %v684
        %v3527 = vunpack.c.l.b16 %v685
        %v3528 = vunpack.c.h.b16 %v685
        %v3529 = vunpack.c.l.b16 %v686
        %v3530 = vunpack.c.h.b16 %v686
        %v3531 = vunpack.c.l.b16 %v687
        %v3532 = vunpack.c.h.b16 %v687
        %v3533 = vunpack.c.l.b16 %v688
        %v3534 = vunpack.c.h.b16 %v688
        %v3535 = vunpack.c.l.b16 %v689
        %v3536 = vunpack.c.h.b16 %v689
        %v3537 = vunpack.c.l.b16 %v690
        %v3538 = vunpack.c.h.b16 %v690
        %v3539 = vunpack.c.l.b16 %v691
        %v3540 = vunpack.c.h.b16 %v691
        %v3541 = vunpack.c.l.b16 %v692
        %v3542 = vunpack.c.h.b16 %v692
        %v3543 = vunpack.c.l.b16 %v693
        %v3544 = vunpack.c.h.b16 %v693
        %v3545 = vunpack.c.l.b16 %v694
        %v3546 = vunpack.c.h.b16 %v694
        %v3547 = vunpack.c.l.b16 %v695
        %v3548 = vunpack.c.h.b16 %v695
        %v3549 = vunpack.c.l.b16 %v696
        %v3550 = vunpack.c.h.b16 %v696
        %v3551 = vunpack.c.l.b16 %v697
        %v3552 = vunpack.c.h.b16 %v697
        %v3553 = vunpack.c.l.b16 %v698
        %v3554 = vunpack.c.h.b16 %v698
        %v3555 = vunpack.c.l.b16 %v699
        %v3556 = vunpack.c.h.b16 %v699
        %v3557 = vunpack.c.l.b16 %v700
        %v3558 = vunpack.c.h.b16 %v700
        %v3559 = vunpack.c.l.b16 %v701
        %v3560 = vunpack.c.h.b16 %v701
        %v3561 = vunpack.c.l.b16 %v702
        %v3562 = vunpack.c.h.b16 %v702
        %v3563 = vunpack.c.l.b16 %v703
        %v3564 = vunpack.c.h.b16 %v703
        %v3565 = vunpack.c.l.b16 %v704
        %v3566 = vunpack.c.h.b16 %v704
        %v3567 = vunpack.c.l.b16 %v705
        %v3568 = vunpack.c.h.b16 %v705
        %v3569 = vunpack.c.l.b16 %v706
        %v3570 = vunpack.c.h.b16 %v706
        %v3571 = vunpack.c.l.b16 %v707
        %v3572 = vunpack.c.h.b16 %v707
        %v3573 = vunpack.c.l.b16 %v708
        %v3574 = vunpack.c.h.b16 %v708
        %v3575 = vunpack.c.l.b16 %v709
        %v3576 = vunpack.c.h.b16 %v709
        %v3577 = vunpack.c.l.b16 %v710
        %v3578 = vunpack.c.h.b16 %v710
        %v3579 = vunpack.c.l.b16 %v711
        %v3580 = vunpack.c.h.b16 %v711
        %v3581 = vunpack.c.l.b16 %v712
        %v3582 = vunpack.c.h.b16 %v712
        %v3583 = vunpack.c.l.b16 %v713
        %v3584 = vunpack.c.h.b16 %v713
        %v3585 = vunpack.c.l.b16 %v714
        %v3586 = vunpack.c.h.b16 %v714
        %v3587 = vunpack.c.l.b16 %v715
        %v3588 = vunpack.c.h.b16 %v715
        %v3589 = vunpack.c.l.b16 %v716
        %v3590 = vunpack.c.h.b16 %v716
        %v3591 = vunpack.c.l.b16 %v717
        %v3592 = vunpack.c.h.b16 %v717
        %v3593 = vunpack.c.l.b16 %v718
        %v3594 = vunpack.c.h.b16 %v718
        %v3595 = vunpack.c.l.b16 %v719
        %v3596 = vunpack.c.h.b16 %v719
        %v3597 = vunpack.c.l.b16 %v720
        %v3598 = vunpack.c.h.b16 %v720
        %v3599 = vunpack.c.l.b16 %v721
        %v3600 = vunpack.c.h.b16 %v721
        %v3601 = vunpack.c.l.b16 %v722
        %v3602 = vunpack.c.h.b16 %v722
        %v3603 = vunpack.c.l.b16 %v723
        %v3604 = vunpack.c.h.b16 %v723
        %v3605 = vunpack.c.l.b16 %v724
        %v3606 = vunpack.c.h.b16 %v724
        %v3607 = vunpack.c.l.b16 %v725
        %v3608 = vunpack.c.h.b16 %v725
        %v3609 = vunpack.c.l.b16 %v726
        %v3610 = vunpack.c.h.b16 %v726
        %v3611 = vunpack.c.l.b16 %v727
        %v3612 = vunpack.c.h.b16 %v727
        %v3613 = vunpack.c.l.b16 %v728
        %v3614 = vunpack.c.h.b16 %v728
        %v3615 = vunpack.c.l.b16 %v729
        %v3616 = vunpack.c.h.b16 %v729
        %v3617 = vunpack.c.l.b16 %v730
        %v3618 = vunpack.c.h.b16 %v730
        %v3619 = vunpack.c.l.b16 %v731
        %v3620 = vunpack.c.h.b16 %v731
        %v3621 = vunpack.c.l.b16 %v732
        %v3622 = vunpack.c.h.b16 %v732
        %v3623 = vunpack.c.l.b16 %v733
        %v3624 = vunpack.c.h.b16 %v733
        %v3625 = vunpack.c.l.b16 %v734
        %v3626 = vunpack.c.h.b16 %v734
        %v3627 = vunpack.c.l.b16 %v735
        %v3628 = vunpack.c.h.b16 %v735
        %v3629 = vunpack.c.l.b16 %v736
        %v3630 = vunpack.c.h.b16 %v736
        %v3631 = vunpack.c.l.b16 %v737
        %v3632 = vunpack.c.h.b16 %v737
        %v3633 = vunpack.c.l.b16 %v738
        %v3634 = vunpack.c.h.b16 %v738
        %v3635 = vunpack.c.l.b16 %v739
        %v3636 = vunpack.c.h.b16 %v739
        %v3637 = vunpack.c.l.b16 %v740
        %v3638 = vunpack.c.h.b16 %v740
        %v3639 = vunpack.c.l.b16 %v741
        %v3640 = vunpack.c.h.b16 %v741
        %v3641 = vunpack.c.l.b16 %v742
        %v3642 = vunpack.c.h.b16 %v742
        %v3643 = vunpack.c.l.b16 %v743
        %v3644 = vunpack.c.h.b16 %v743
        %v3645 = vunpack.c.l.b16 %v744
        %v3646 = vunpack.c.h.b16 %v744
        %v3647 = vunpack.c.l.b16 %v745
        %v3648 = vunpack.c.h.b16 %v745
        %v3649 = vunpack.c.l.b16 %v746
        %v3650 = vunpack.c.h.b16 %v746
        %v3651 = vunpack.c.l.b16 %v747
        %v3652 = vunpack.c.h.b16 %v747
        %v3653 = vunpack.c.l.b16 %v748
        %v3654 = vunpack.c.h.b16 %v748
        %v3655 = vunpack.c.l.b16 %v749
        %v3656 = vunpack.c.h.b16 %v749
        %v3657 = vunpack.c.l.b16 %v750
        %v3658 = vunpack.c.h.b16 %v750
        %v3659 = vunpack.c.l.b16 %v751
        %v3660 = vunpack.c.h.b16 %v751
        %v3661 = vunpack.c.l.b16 %v752
        %v3662 = vunpack.c.h.b16 %v752
        %v3663 = vunpack.c.l.b16 %v753
        %v3664 = vunpack.c.h.b16 %v753
        %v3665 = vunpack.c.l.b16 %v754
        %v3666 = vunpack.c.h.b16 %v754
        %v3667 = vunpack.c.l.b16 %v755
        %v3668 = vunpack.c.h.b16 %v755
        %v3669 = vunpack.c.l.b16 %v756
        %v3670 = vunpack.c.h.b16 %v756
        %v3671 = vunpack.c.l.b16 %v757
        %v3672 = vunpack.c.h.b16 %v757
        %v3673 = vunpack.c.l.b16 %v758
        %v3674 = vunpack.c.h.b16 %v758
        %v3675 = vunpack.c.l.b16 %v759
        %v3676 = vunpack.c.h.b16 %v759
        %v3677 = vunpack.c.l.b16 %v760
        %v3678 = vunpack.c.h.b16 %v760
        %v3679 = vunpack.c.l.b16 %v761
        %v3680 = vunpack.c.h.b16 %v761
        %v3681 = vunpack.c.l.b16 %v762
        %v3682 = vunpack.c.h.b16 %v762
        %v3683 = vunpack.c.l.b16 %v763
        %v3684 = vunpack.c.h.b16 %v763
        %v3685 = vunpack.c.l.b16 %v764
        %v3686 = vunpack.c.h.b16 %v764
        %v3687 = vunpack.c.l.b16 %v765
        %v3688 = vunpack.c.h.b16 %v765
        %v3689 = vunpack.c.l.b16 %v766
        %v3690 = vunpack.c.h.b16 %v766
        %v3691 = vunpack.c.l.b16 %v767
        %v3692 = vunpack.c.h.b16 %v767
        %v3693 = vunpack.c.l.b16 %v768
        %v3694 = vunpack.c.h.b16 %v768
        %v3695 = vunpack.c.l.b16 %v769
        %v3696 = vunpack.c.h.b16 %v769
        %v3697 = vunpack.c.l.b16 %v770
        %v3698 = vunpack.c.h.b16 %v770
        %v3699 = vunpack.c.l.b16 %v771
        %v3700 = vunpack.c.h.b16 %v771
        %v3701 = vunpack.c.l.b16 %v772
        %v3702 = vunpack.c.h.b16 %v772
        %v3703 = vunpack.c.l.b16 %v773
        %v3704 = vunpack.c.h.b16 %v773
        %v3705 = vunpack.c.l.b16 %v774
        %v3706 = vunpack.c.h.b16 %v774
        %v3707 = vunpack.c.l.b16 %v775
        %v3708 = vunpack.c.h.b16 %v775
        %v3709 = vunpack.c.l.b16 %v776
        %v3710 = vunpack.c.h.b16 %v776
        %v3711 = vunpack.c.l.b16 %v777
        %v3712 = vunpack.c.h.b16 %v777
        %v3713 = vunpack.c.l.b16 %v778
        %v3714 = vunpack.c.h.b16 %v778
        %v3715 = vunpack.c.l.b16 %v779
        %v3716 = vunpack.c.h.b16 %v779
        %v3717 = vunpack.c.l.b16 %v780
        %v3718 = vunpack.c.h.b16 %v780
        %v3719 = vunpack.c.l.b16 %v781
        %v3720 = vunpack.c.h.b16 %v781
        %v3721 = vunpack.c.l.b16 %v782
        %v3722 = vunpack.c.h.b16 %v782
        %v3723 = vunpack.c.l.b16 %v783
        %v3724 = vunpack.c.h.b16 %v783
        %v3725 = vunpack.c.l.b16 %v784
        %v3726 = vunpack.c.h.b16 %v784
        %v3727 = vunpack.c.l.b16 %v785
        %v3728 = vunpack.c.h.b16 %v785
        %v3729 = vunpack.c.l.b16 %v786
        %v3730 = vunpack.c.h.b16 %v786
        %v3731 = vunpack.c.l.b16 %v787
        %v3732 = vunpack.c.h.b16 %v787
        %v3733 = vunpack.c.l.b16 %v788
        %v3734 = vunpack.c.h.b16 %v788
        %v3735 = vunpack.c.l.b16 %v789
        %v3736 = vunpack.c.h.b16 %v789
        %v3737 = vunpack.c.l.b16 %v790
        %v3738 = vunpack.c.h.b16 %v790
        %v3739 = vunpack.c.l.b16 %v791
        %v3740 = vunpack.c.h.b16 %v791
        %v3741 = vunpack.c.l.b16 %v792
        %v3742 = vunpack.c.h.b16 %v792
        %v3743 = vunpack.c.l.b16 %v793
        %v3744 = vunpack.c.h.b16 %v793
        %v3745 = vunpack.c.l.b16 %v794
        %v3746 = vunpack.c.h.b16 %v794
        %v3747 = vunpack.c.l.b16 %v795
        %v3748 = vunpack.c.h.b16 %v795
        %v3749 = vunpack.c.l.b16 %v796
        %v3750 = vunpack.c.h.b16 %v796
        %v3751 = vunpack.c.l.b16 %v797
        %v3752 = vunpack.c.h.b16 %v797
        %v3753 = vunpack.c.l.b16 %v798
        %v3754 = vunpack.c.h.b16 %v798
        %v3755 = vunpack.c.l.b16 %v799
        %v3756 = vunpack.c.h.b16 %v799
        %v3757 = vunpack.c.l.b16 %v800
        %v3758 = vunpack.c.h.b16 %v800
        %v3759 = vunpack.c.l.b16 %v801
        %v3760 = vunpack.c.h.b16 %v801
        %v3761 = vunpack.c.l.b16 %v802
        %v3762 = vunpack.c.h.b16 %v802
        %v3763 = vunpack.c.l.b16 %v803
        %v3764 = vunpack.c.h.b16 %v803
        %v3765 = vunpack.c.l.b16 %v804
        %v3766 = vunpack.c.h.b16 %v804
        %v3767 = vunpack.c.l.b16 %v805
        %v3768 = vunpack.c.h.b16 %v805
        %v3769 = vunpack.c.l.b16 %v806
        %v3770 = vunpack.c.h.b16 %v806
        %v3771 = vunpack.c.l.b16 %v807
        %v3772 = vunpack.c.h.b16 %v807
        %v3773 = vunpack.c.l.b16 %v808
        %v3774 = vunpack.c.h.b16 %v808
        %v3775 = vunpack.c.l.b16 %v809
        %v3776 = vunpack.c.h.b16 %v809
        %v3777 = vunpack.c.l.b16 %v810
        %v3778 = vunpack.c.h.b16 %v810
        %v3779 = vunpack.c.l.b16 %v811
        %v3780 = vunpack.c.h.b16 %v811
        %v3781 = vunpack.c.l.b16 %v812
        %v3782 = vunpack.c.h.b16 %v812
        %v3783 = vunpack.c.l.b16 %v813
        %v3784 = vunpack.c.h.b16 %v813
        %v3785 = vunpack.c.l.b16 %v814
        %v3786 = vunpack.c.h.b16 %v814
        %v3787 = vunpack.c.l.b16 %v815
        %v3788 = vunpack.c.h.b16 %v815
        %v3789 = vunpack.c.l.b16 %v816
        %v3790 = vunpack.c.h.b16 %v816
        %v3791 = vunpack.c.l.b16 %v817
        %v3792 = vunpack.c.h.b16 %v817
        %v3793 = vunpack.c.l.b16 %v818
        %v3794 = vunpack.c.h.b16 %v818
        %v3795 = vunpack.c.l.b16 %v819
        %v3796 = vunpack.c.h.b16 %v819
        %v3797 = vunpack.c.l.b16 %v820
        %v3798 = vunpack.c.h.b16 %v820
        %v3799 = vunpack.c.l.b16 %v821
        %v3800 = vunpack.c.h.b16 %v821
        %v3801 = vunpack.c.l.b16 %v822
        %v3802 = vunpack.c.h.b16 %v822
        %v3803 = vunpack.c.l.b16 %v823
        %v3804 = vunpack.c.h.b16 %v823
        %v3805 = vunpack.c.l.b16 %v824
        %v3806 = vunpack.c.h.b16 %v824
        %v3807 = vunpack.c.l.b16 %v825
        %v3808 = vunpack.c.h.b16 %v825
        %v3809 = vunpack.c.l.b16 %v826
        %v3810 = vunpack.c.h.b16 %v826
        %v3811 = vunpack.c.l.b16 %v827
        %v3812 = vunpack.c.h.b16 %v827
        %v3813 = vunpack.c.l.b16 %v828
        %v3814 = vunpack.c.h.b16 %v828
        %v3815 = vunpack.c.l.b16 %v829
        %v3816 = vunpack.c.h.b16 %v829
        %v3817 = vunpack.c.l.b16 %v830
        %v3818 = vunpack.c.h.b16 %v830
        %v3819 = vunpack.c.l.b16 %v831
        %v3820 = vunpack.c.h.b16 %v831
        %v3821 = vunpack.c.l.b16 %v832
        %v3822 = vunpack.c.h.b16 %v832
        %v3823 = vunpack.c.l.b16 %v833
        %v3824 = vunpack.c.h.b16 %v833
        %v3825 = vunpack.c.l.b16 %v834
        %v3826 = vunpack.c.h.b16 %v834
        %v3827 = vunpack.c.l.b16 %v835
        %v3828 = vunpack.c.h.b16 %v835
        %v3829 = vunpack.c.l.b16 %v836
        %v3830 = vunpack.c.h.b16 %v836
        %v3831 = vunpack.c.l.b16 %v837
        %v3832 = vunpack.c.h.b16 %v837
        %v3833 = vunpack.c.l.b16 %v838
        %v3834 = vunpack.c.h.b16 %v838
        %v3835 = vunpack.c.l.b16 %v839
        %v3836 = vunpack.c.h.b16 %v839
        %v3837 = vunpack.c.l.b16 %v840
        %v3838 = vunpack.c.h.b16 %v840
        %v3839 = vunpack.c.l.b16 %v841
        %v3840 = vunpack.c.h.b16 %v841
        %v3841 = vunpack.c.l.b16 %v842
        %v3842 = vunpack.c.h.b16 %v842
        %v3843 = vunpack.c.l.b16 %v843
        %v3844 = vunpack.c.h.b16 %v843
        %v3845 = vunpack.c.l.b16 %v844
        %v3846 = vunpack.c.h.b16 %v844
        %v3847 = vunpack.c.l.b16 %v845
        %v3848 = vunpack.c.h.b16 %v845
        %v3849 = vunpack.c.l.b16 %v846
        %v3850 = vunpack.c.h.b16 %v846
        %v3851 = vunpack.c.l.b16 %v847
        %v3852 = vunpack.c.h.b16 %v847
        %v3853 = vunpack.c.l.b16 %v848
        %v3854 = vunpack.c.h.b16 %v848
        %v3855 = vunpack.c.l.b16 %v849
        %v3856 = vunpack.c.h.b16 %v849
        %v3857 = vunpack.c.l.b16 %v850
        %v3858 = vunpack.c.h.b16 %v850
        %v3859 = vunpack.c.l.b16 %v851
        %v3860 = vunpack.c.h.b16 %v851
        %v3861 = vunpack.c.l.b16 %v852
        %v3862 = vunpack.c.h.b16 %v852
        %v3863 = vunpack.c.l.b16 %v853
        %v3864 = vunpack.c.h.b16 %v853
        %v3865 = vunpack.c.l.b16 %v854
        %v3866 = vunpack.c.h.b16 %v854
        %v3867 = vunpack.c.l.b16 %v855
        %v3868 = vunpack.c.h.b16 %v855
        %v3869 = vunpack.c.l.b16 %v856
        %v3870 = vunpack.c.h.b16 %v856
        %v3871 = vunpack.c.l.b16 %v857
        %v3872 = vunpack.c.h.b16 %v857
        %v3873 = vunpack.c.l.b16 %v858
        %v3874 = vunpack.c.h.b16 %v858
        %v3875 = vunpack.c.l.b16 %v859
        %v3876 = vunpack.c.h.b16 %v859
        %v3877 = vunpack.c.l.b16 %v860
        %v3878 = vunpack.c.h.b16 %v860
        %v3879 = vunpack.c.l.b16 %v861
        %v3880 = vunpack.c.h.b16 %v861
        %v3881 = vunpack.c.l.b16 %v862
        %v3882 = vunpack.c.h.b16 %v862
        %v3883 = vunpack.c.l.b16 %v863
        %v3884 = vunpack.c.h.b16 %v863
        %v3885 = vunpack.c.l.b16 %v864
        %v3886 = vunpack.c.h.b16 %v864
        %v3887 = vunpack.c.l.b16 %v865
        %v3888 = vunpack.c.h.b16 %v865
        %v3889 = vunpack.c.l.b16 %v866
        %v3890 = vunpack.c.h.b16 %v866
        %v3891 = vunpack.c.l.b16 %v867
        %v3892 = vunpack.c.h.b16 %v867
        %v3893 = vunpack.c.l.b16 %v868
        %v3894 = vunpack.c.h.b16 %v868
        %v3895 = vunpack.c.l.b16 %v869
        %v3896 = vunpack.c.h.b16 %v869
        %v3897 = vunpack.c.l.b16 %v870
        %v3898 = vunpack.c.h.b16 %v870
        %v3899 = vunpack.c.l.b16 %v871
        %v3900 = vunpack.c.h.b16 %v871
        %v3901 = vunpack.c.l.b16 %v872
        %v3902 = vunpack.c.h.b16 %v872
        %v3903 = vunpack.c.l.b16 %v873
        %v3904 = vunpack.c.h.b16 %v873
        %v3905 = vunpack.c.l.b16 %v874
        %v3906 = vunpack.c.h.b16 %v874
        %v3907 = vunpack.c.l.b16 %v875
        %v3908 = vunpack.c.h.b16 %v875
        %v3909 = vunpack.c.l.b16 %v876
        %v3910 = vunpack.c.h.b16 %v876
        %v3911 = vunpack.c.l.b16 %v877
        %v3912 = vunpack.c.h.b16 %v877
        %v3913 = vunpack.c.l.b16 %v878
        %v3914 = vunpack.c.h.b16 %v878
        %v3915 = vunpack.c.l.b16 %v879
        %v3916 = vunpack.c.h.b16 %v879
        %v3917 = vunpack.c.l.b16 %v880
        %v3918 = vunpack.c.h.b16 %v880
        %v3919 = vunpack.c.l.b16 %v881
        %v3920 = vunpack.c.h.b16 %v881
        %v3921 = vunpack.c.l.b16 %v882
        %v3922 = vunpack.c.h.b16 %v882
        %v3923 = vunpack.c.l.b16 %v883
        %v3924 = vunpack.c.h.b16 %v883
        %v3925 = vunpack.c.l.b16 %v884
        %v3926 = vunpack.c.h.b16 %v884
        %v3927 = vunpack.c.l.b16 %v885
        %v3928 = vunpack.c.h.b16 %v885
        %v3929 = vunpack.c.l.b16 %v886
        %v3930 = vunpack.c.h.b16 %v886
        %v3931 = vunpack.c.l.b16 %v887
        %v3932 = vunpack.c.h.b16 %v887
        %v3933 = vunpack.c.l.b16 %v888
        %v3934 = vunpack.c.h.b16 %v888
        %v3935 = vunpack.c.l.b16 %v889
        %v3936 = vunpack.c.h.b16 %v889
        %v3937 = vunpack.c.l.b16 %v890
        %v3938 = vunpack.c.h.b16 %v890
        %v3939 = vunpack.c.l.b16 %v891
        %v3940 = vunpack.c.h.b16 %v891
        %v3941 = vunpack.c.l.b16 %v892
        %v3942 = vunpack.c.h.b16 %v892
        %v3943 = vunpack.c.l.b16 %v893
        %v3944 = vunpack.c.h.b16 %v893
        %v3945 = vunpack.c.l.b16 %v894
        %v3946 = vunpack.c.h.b16 %v894
        %v3947 = vunpack.c.l.b16 %v895
        %v3948 = vunpack.c.h.b16 %v895
        %v3949 = vunpack.c.l.b16 %v896
        %v3950 = vunpack.c.h.b16 %v896
        %v3951 = vunpack.c.l.b16 %v897
        %v3952 = vunpack.c.h.b16 %v897
        %v3953 = vunpack.c.l.b16 %v898
        %v3954 = vunpack.c.h.b16 %v898
        %v3955 = vunpack.c.l.b16 %v899
        %v3956 = vunpack.c.h.b16 %v899
        %v3957 = vunpack.c.l.b16 %v900
        %v3958 = vunpack.c.h.b16 %v900
        %v3959 = vunpack.c.l.b16 %v901
        %v3960 = vunpack.c.h.b16 %v901
        %v3961 = vunpack.c.l.b16 %v902
        %v3962 = vunpack.c.h.b16 %v902
        %v3963 = vunpack.c.l.b16 %v903
        %v3964 = vunpack.c.h.b16 %v903
        %v3965 = vunpack.c.l.b16 %v904
        %v3966 = vunpack.c.h.b16 %v904
        %v3967 = vunpack.c.l.b16 %v905
        %v3968 = vunpack.c.h.b16 %v905
        %v3969 = vunpack.c.l.b16 %v906
        %v3970 = vunpack.c.h.b16 %v906
        %v3971 = vunpack.c.l.b16 %v907
        %v3972 = vunpack.c.h.b16 %v907
        %v3973 = vunpack.c.l.b16 %v908
        %v3974 = vunpack.c.h.b16 %v908
        %v3975 = vunpack.c.l.b16 %v909
        %v3976 = vunpack.c.h.b16 %v909
        %v3977 = vunpack.c.l.b16 %v910
        %v3978 = vunpack.c.h.b16 %v910
        %v3979 = vunpack.c.l.b16 %v911
        %v3980 = vunpack.c.h.b16 %v911
        %v3981 = vunpack.c.l.b16 %v912
        %v3982 = vunpack.c.h.b16 %v912
        %v3983 = vunpack.c.l.b16 %v913
        %v3984 = vunpack.c.h.b16 %v913
        %v3985 = vunpack.c.l.b16 %v914
        %v3986 = vunpack.c.h.b16 %v914
        %v3987 = vunpack.c.l.b16 %v915
        %v3988 = vunpack.c.h.b16 %v915
        %v3989 = vunpack.c.l.b16 %v916
        %v3990 = vunpack.c.h.b16 %v916
        %v3991 = vunpack.c.l.b16 %v917
        %v3992 = vunpack.c.h.b16 %v917
        %v3993 = vunpack.c.l.b16 %v918
        %v3994 = vunpack.c.h.b16 %v918
        %v3995 = vunpack.c.l.b16 %v919
        %v3996 = vunpack.c.h.b16 %v919
        %v3997 = vunpack.c.l.b16 %v920
        %v3998 = vunpack.c.h.b16 %v920
        %v3999 = vunpack.c.l.b16 %v921
        %v4000 = vunpack.c.h.b16 %v921
        %v4001 = vunpack.c.l.b16 %v922
        %v4002 = vunpack.c.h.b16 %v922
        %v4003 = vunpack.c.l.b16 %v923
        %v4004 = vunpack.c.h.b16 %v923
        %v4005 = vunpack.c.l.b16 %v924
        %v4006 = vunpack.c.h.b16 %v924
        %v4007 = vunpack.c.l.b16 %v925
        %v4008 = vunpack.c.h.b16 %v925
        %v4009 = vunpack.c.l.b16 %v926
        %v4010 = vunpack.c.h.b16 %v926
        %v4011 = vunpack.c.l.b16 %v927
        %v4012 = vunpack.c.h.b16 %v927
        %v4013 = vunpack.c.l.b16 %v928
        %v4014 = vunpack.c.h.b16 %v928
        %v4015 = vunpack.c.l.b16 %v929
        %v4016 = vunpack.c.h.b16 %v929
        %v4017 = vunpack.c.l.b16 %v930
        %v4018 = vunpack.c.h.b16 %v930
        %v4019 = vunpack.c.l.b16 %v931
        %v4020 = vunpack.c.h.b16 %v931
        %v4021 = vunpack.c.l.b16 %v932
        %v4022 = vunpack.c.h.b16 %v932
        %v4023 = vunpack.c.l.b16 %v933
        %v4024 = vunpack.c.h.b16 %v933
        %v4025 = vunpack.c.l.b16 %v934
        %v4026 = vunpack.c.h.b16 %v934
        %v4027 = vunpack.c.l.b16 %v935
        %v4028 = vunpack.c.h.b16 %v935
        %v4029 = vunpack.c.l.b16 %v936
        %v4030 = vunpack.c.h.b16 %v936
        %v4031 = vunpack.c.l.b16 %v937
        %v4032 = vunpack.c.h.b16 %v937
        %v4033 = vunpack.c.l.b16 %v938
        %v4034 = vunpack.c.h.b16 %v938
        %v4035 = vunpack.c.l.b16 %v939
        %v4036 = vunpack.c.h.b16 %v939
        %v4037 = vunpack.c.l.b16 %v940
        %v4038 = vunpack.c.h.b16 %v940
        %v4039 = vunpack.c.l.b16 %v941
        %v4040 = vunpack.c.h.b16 %v941
        %v4041 = vunpack.c.l.b16 %v942
        %v4042 = vunpack.c.h.b16 %v942
        %v4043 = vunpack.c.l.b16 %v943
        %v4044 = vunpack.c.h.b16 %v943
        %v4045 = vunpack.c.l.b16 %v944
        %v4046 = vunpack.c.h.b16 %v944
        %v4047 = vunpack.c.l.b16 %v945
        %v4048 = vunpack.c.h.b16 %v945
        %v4049 = vunpack.c.l.b16 %v946
        %v4050 = vunpack.c.h.b16 %v946
        %v4051 = vunpack.c.l.b16 %v947
        %v4052 = vunpack.c.h.b16 %v947
        %v4053 = vunpack.c.l.b16 %v948
        %v4054 = vunpack.c.h.b16 %v948
        %v4055 = vunpack.c.l.b16 %v949
        %v4056 = vunpack.c.h.b16 %v949
        %v4057 = vunpack.c.l.b16 %v950
        %v4058 = vunpack.c.h.b16 %v950
        %v4059 = vunpack.c.l.b16 %v951
        %v4060 = vunpack.c.h.b16 %v951
        %v4061 = vunpack.c.l.b16 %v952
        %v4062 = vunpack.c.h.b16 %v952
        %v4063 = vunpack.c.l.b16 %v953
        %v4064 = vunpack.c.h.b16 %v953
        %v4065 = vunpack.c.l.b16 %v954
        %v4066 = vunpack.c.h.b16 %v954
        %v4067 = vunpack.c.l.b16 %v955
        %v4068 = vunpack.c.h.b16 %v955
        %v4069 = vunpack.c.l.b16 %v956
        %v4070 = vunpack.c.h.b16 %v956
        %v4071 = vunpack.c.l.b16 %v957
        %v4072 = vunpack.c.h.b16 %v957
        %v4073 = vunpack.c.l.b16 %v958
        %v4074 = vunpack.c.h.b16 %v958
        %v4075 = vunpack.c.l.b16 %v959
        %v4076 = vunpack.c.h.b16 %v959
        %v4077 = vunpack.c.l.b16 %v960
        %v4078 = vunpack.c.h.b16 %v960
        %v4079 = vunpack.c.l.b16 %v961
        %v4080 = vunpack.c.h.b16 %v961
        %v4081 = vunpack.c.l.b16 %v962
        %v4082 = vunpack.c.h.b16 %v962
        %v4083 = vunpack.c.l.b16 %v963
        %v4084 = vunpack.c.h.b16 %v963
        %v4085 = vunpack.c.l.b16 %v964
        %v4086 = vunpack.c.h.b16 %v964
        %v4087 = vunpack.c.l.b16 %v965
        %v4088 = vunpack.c.h.b16 %v965
        %v4089 = vunpack.c.l.b16 %v966
        %v4090 = vunpack.c.h.b16 %v966
        %v4091 = vunpack.c.l.b16 %v967
        %v4092 = vunpack.c.h.b16 %v967
        %v4093 = vunpack.c.l.b16 %v968
        %v4094 = vunpack.c.h.b16 %v968
        %v4095 = vunpack.c.l.b16 %v969
        %v4096 = vunpack.c.h.b16 %v969
        %v4097 = vunpack.c.l.b16 %v970
        %v4098 = vunpack.c.h.b16 %v970
        %v4099 = vunpack.c.l.b16 %v971
        %v4100 = vunpack.c.h.b16 %v971
        %v4101 = vunpack.c.l.b16 %v972
        %v4102 = vunpack.c.h.b16 %v972
        %v4103 = vunpack.c.l.b16 %v973
        %v4104 = vunpack.c.h.b16 %v973
        %v4105 = vunpack.c.l.b16 %v974
        %v4106 = vunpack.c.h.b16 %v974
        %v4107 = vunpack.c.l.b16 %v975
        %v4108 = vunpack.c.h.b16 %v975
        %v4109 = vunpack.c.l.b16 %v976
        %v4110 = vunpack.c.h.b16 %v976
        %v4111 = vunpack.c.l.b16 %v977
        %v4112 = vunpack.c.h.b16 %v977
        %v4113 = vunpack.c.l.b16 %v978
        %v4114 = vunpack.c.h.b16 %v978
        %v4115 = vunpack.c.l.b16 %v979
        %v4116 = vunpack.c.h.b16 %v979
        %v4117 = vunpack.c.l.b16 %v980
        %v4118 = vunpack.c.h.b16 %v980
        %v4119 = vunpack.c.l.b16 %v981
        %v4120 = vunpack.c.h.b16 %v981
        %v4121 = vunpack.c.l.b16 %v982
        %v4122 = vunpack.c.h.b16 %v982
        %v4123 = vunpack.c.l.b16 %v983
        %v4124 = vunpack.c.h.b16 %v983
        %v4125 = vunpack.c.l.b16 %v984
        %v4126 = vunpack.c.h.b16 %v984
        %v4127 = vunpack.c.l.b16 %v985
        %v4128 = vunpack.c.h.b16 %v985
        %v4129 = vunpack.c.l.b16 %v986
        %v4130 = vunpack.c.h.b16 %v986
        %v4131 = vunpack.c.l.b16 %v987
        %v4132 = vunpack.c.h.b16 %v987
        %v4133 = vunpack.c.l.b16 %v988
        %v4134 = vunpack.c.h.b16 %v988
        %v4135 = vunpack.c.l.b16 %v989
        %v4136 = vunpack.c.h.b16 %v989
        %v4137 = vunpack.c.l.b16 %v990
        %v4138 = vunpack.c.h.b16 %v990
        %v4139 = vunpack.c.l.b16 %v991
        %v4140 = vunpack.c.h.b16 %v991
        %v4141 = vunpack.c.l.b16 %v992
        %v4142 = vunpack.c.h.b16 %v992
        %v4143 = vunpack.c.l.b16 %v993
        %v4144 = vunpack.c.h.b16 %v993
        %v4145 = vunpack.c.l.b16 %v994
        %v4146 = vunpack.c.h.b16 %v994
        %v4147 = vunpack.c.l.b16 %v995
        %v4148 = vunpack.c.h.b16 %v995
        %v4149 = vunpack.c.l.b16 %v996
        %v4150 = vunpack.c.h.b16 %v996
        %v4151 = vunpack.c.l.b16 %v997
        %v4152 = vunpack.c.h.b16 %v997
        %v4153 = vunpack.c.l.b16 %v998
        %v4154 = vunpack.c.h.b16 %v998
        %v4155 = vunpack.c.l.b16 %v999
        %v4156 = vunpack.c.h.b16 %v999
        %v4157 = vunpack.c.l.b16 %v1000
        %v4158 = vunpack.c.h.b16 %v1000
        %v4159 = vunpack.c.l.b16 %v1001
        %v4160 = vunpack.c.h.b16 %v1001
        %v4161 = vunpack.c.l.b16 %v1002
        %v4162 = vunpack.c.h.b16 %v1002
        %v4163 = vunpack.c.l.b16 %v1003
        %v4164 = vunpack.c.h.b16 %v1003
        %v4165 = vunpack.c.l.b16 %v1004
        %v4166 = vunpack.c.h.b16 %v1004
        %v4167 = vunpack.c.l.b16 %v1005
        %v4168 = vunpack.c.h.b16 %v1005
        %v4169 = vunpack.c.l.b16 %v1006
        %v4170 = vunpack.c.h.b16 %v1006
        %v4171 = vunpack.c.l.b16 %v1007
        %v4172 = vunpack.c.h.b16 %v1007
        %v4173 = vunpack.c.l.b16 %v1008
        %v4174 = vunpack.c.h.b16 %v1008
        %v4175 = vunpack.c.l.b16 %v1009
        %v4176 = vunpack.c.h.b16 %v1009
        %v4177 = vunpack.c.l.b16 %v1010
        %v4178 = vunpack.c.h.b16 %v1010
        %v4179 = vunpack.c.l.b16 %v1011
        %v4180 = vunpack.c.h.b16 %v1011
        %v4181 = vunpack.c.l.b16 %v1012
        %v4182 = vunpack.c.h.b16 %v1012
        %v4183 = vunpack.c.l.b16 %v1013
        %v4184 = vunpack.c.h.b16 %v1013
        %v4185 = vunpack.c.l.b16 %v1014
        %v4186 = vunpack.c.h.b16 %v1014
        %v4187 = vunpack.c.l.b16 %v1015
        %v4188 = vunpack.c.h.b16 %v1015
        %v4189 = vunpack.c.l.b16 %v1016
        %v4190 = vunpack.c.h.b16 %v1016
        %v4191 = vunpack.c.l.b16 %v1017
        %v4192 = vunpack.c.h.b16 %v1017
        %v4193 = vunpack.c.l.b16 %v1018
        %v4194 = vunpack.c.h.b16 %v1018
        %v4195 = vunpack.c.l.b16 %v1019
        %v4196 = vunpack.c.h.b16 %v1019
        %v4197 = vunpack.c.l.b16 %v1020
        %v4198 = vunpack.c.h.b16 %v1020
        %v4199 = vunpack.c.l.b16 %v1021
        %v4200 = vunpack.c.h.b16 %v1021
        %v4201 = vunpack.c.l.b16 %v1022
        %v4202 = vunpack.c.h.b16 %v1022
        %v4203 = vunpack.c.l.b16 %v1023
        %v4204 = vunpack.c.h.b16 %v1023
        %v4205 = vunpack.c.l.b16 %v1024
        %v4206 = vunpack.c.h.b16 %v1024
        %v4207 = vunpack.c.l.b16 %v1025
        %v4208 = vunpack.c.h.b16 %v1025
        %v4209 = vunpack.c.l.b16 %v1026
        %v4210 = vunpack.c.h.b16 %v1026
        %v4211 = vunpack.c.l.b16 %v1027
        %v4212 = vunpack.c.h.b16 %v1027
        %v4213 = vunpack.c.l.b16 %v1028
        %v4214 = vunpack.c.h.b16 %v1028
        %v4215 = vunpack.c.l.b16 %v1029
        %v4216 = vunpack.c.h.b16 %v1029
        %v4217 = vunpack.c.l.b16 %v1030
        %v4218 = vunpack.c.h.b16 %v1030
        %v4219 = vunpack.c.l.b16 %v1031
        %v4220 = vunpack.c.h.b16 %v1031
        %v4221 = vunpack.c.l.b16 %v1032
        %v4222 = vunpack.c.h.b16 %v1032
        %v4223 = vunpack.c.l.b16 %v1033
        %v4224 = vunpack.c.h.b16 %v1033
        %v4225 = vunpack.c.l.b16 %v1034
        %v4226 = vunpack.c.h.b16 %v1034
        %v4227 = vunpack.c.l.b16 %v1035
        %v4228 = vunpack.c.h.b16 %v1035
        %v4229 = vunpack.c.l.b16 %v1036
        %v4230 = vunpack.c.h.b16 %v1036
        %v4231 = vunpack.c.l.b16 %v1037
        %v4232 = vunpack.c.h.b16 %v1037
        %v4233 = vunpack.c.l.b16 %v1038
        %v4234 = vunpack.c.h.b16 %v1038
        %v4235 = vunpack.c.l.b16 %v1039
        %v4236 = vunpack.c.h.b16 %v1039
        %v4237 = vunpack.c.l.b16 %v1040
        %v4238 = vunpack.c.h.b16 %v1040
        %v4239 = vunpack.c.l.b16 %v1041
        %v4240 = vunpack.c.h.b16 %v1041
        %v4241 = vunpack.c.l.b16 %v1042
        %v4242 = vunpack.c.h.b16 %v1042
        %v4243 = vunpack.c.l.b16 %v1043
        %v4244 = vunpack.c.h.b16 %v1043
        %v4245 = vunpack.c.l.b16 %v1044
        %v4246 = vunpack.c.h.b16 %v1044
        %v4247 = vunpack.c.l.b16 %v1045
        %v4248 = vunpack.c.h.b16 %v1045
        %v4249 = vunpack.c.l.b16 %v1046
        %v4250 = vunpack.c.h.b16 %v1046
        %v4251 = vunpack.c.l.b16 %v1047
        %v4252 = vunpack.c.h.b16 %v1047
        %v4253 = vunpack.c.l.b16 %v1048
        %v4254 = vunpack.c.h.b16 %v1048
        %v4255 = vunpack.c.l.b16 %v1049
        %v4256 = vunpack.c.h.b16 %v1049
        %v4257 = vunpack.c.l.b16 %v1050
        %v4258 = vunpack.c.h.b16 %v1050
        %v4259 = vunpack.c.l.b16 %v1051
        %v4260 = vunpack.c.h.b16 %v1051
        %v4261 = vunpack.c.l.b16 %v1052
        %v4262 = vunpack.c.h.b16 %v1052
        %v4263 = vunpack.c.l.b16 %v1053
        %v4264 = vunpack.c.h.b16 %v1053
        %v4265 = vunpack.c.l.b16 %v1054
        %v4266 = vunpack.c.h.b16 %v1054
        %v4267 = vunpack.c.l.b16 %v1055
        %v4268 = vunpack.c.h.b16 %v1055
        %v4269 = vunpack.c.l.b16 %v1056
        %v4270 = vunpack.c.h.b16 %v1056
        %v4271 = vunpack.c.l.b16 %v1057
        %v4272 = vunpack.c.h.b16 %v1057
        %v4273 = vunpack.c.l.b16 %v1058
        %v4274 = vunpack.c.h.b16 %v1058
        %v4275 = vunpack.c.l.b16 %v1059
        %v4276 = vunpack.c.h.b16 %v1059
        %v4277 = vunpack.c.l.b16 %v1060
        %v4278 = vunpack.c.h.b16 %v1060
        %v4279 = vunpack.c.l.b16 %v1061
        %v4280 = vunpack.c.h.b16 %v1061
        %v4281 = vunpack.c.l.b16 %v1062
        %v4282 = vunpack.c.h.b16 %v1062
        %v4283 = vunpack.c.l.b16 %v1063
        %v4284 = vunpack.c.h.b16 %v1063
        %v4285 = vunpack.c.l.b16 %v1064
        %v4286 = vunpack.c.h.b16 %v1064
        %v4287 = vunpack.c.l.b16 %v1065
        %v4288 = vunpack.c.h.b16 %v1065
        %v4289 = vunpack.c.l.b16 %v1066
        %v4290 = vunpack.c.h.b16 %v1066
        %v4291 = vunpack.c.l.b16 %v1067
        %v4292 = vunpack.c.h.b16 %v1067
        %v4293 = vunpack.c.l.b16 %v1068
        %v4294 = vunpack.c.h.b16 %v1068
        %v4295 = vunpack.c.l.b16 %v1069
        %v4296 = vunpack.c.h.b16 %v1069
        %v4297 = vunpack.c.l.b16 %v1070
        %v4298 = vunpack.c.h.b16 %v1070
        %v4299 = vunpack.c.l.b16 %v1071
        %v4300 = vunpack.c.h.b16 %v1071
        %v4301 = vunpack.c.l.b16 %v1072
        %v4302 = vunpack.c.h.b16 %v1072
        %v4303 = vunpack.c.l.b16 %v1073
        %v4304 = vunpack.c.h.b16 %v1073
        %v4305 = vunpack.c.l.b16 %v1074
        %v4306 = vunpack.c.h.b16 %v1074
        %v4307 = vunpack.c.l.b16 %v1075
        %v4308 = vunpack.c.h.b16 %v1075
        %v4309 = vunpack.c.l.b16 %v1076
        %v4310 = vunpack.c.h.b16 %v1076
        %v4311 = vunpack.c.l.b16 %v1077
        %v4312 = vunpack.c.h.b16 %v1077
        %v4313 = vunpack.c.l.b16 %v1078
        %v4314 = vunpack.c.h.b16 %v1078
        %v4315 = vunpack.c.l.b16 %v1079
        %v4316 = vunpack.c.h.b16 %v1079
        %v4317 = vunpack.c.l.b16 %v1080
        %v4318 = vunpack.c.h.b16 %v1080
        %v4319 = vunpack.c.l.b16 %v1081
        %v4320 = vunpack.c.h.b16 %v1081
        %v4321 = vunpack.c.l.b16 %v1082
        %v4322 = vunpack.c.h.b16 %v1082
        %v4323 = vunpack.c.l.b16 %v1083
        %v4324 = vunpack.c.h.b16 %v1083
        %v4325 = vunpack.c.l.b16 %v1084
        %v4326 = vunpack.c.h.b16 %v1084
        %v4327 = vunpack.c.l.b16 %v1085
        %v4328 = vunpack.c.h.b16 %v1085
        %v4329 = vunpack.c.l.b16 %v1086
        %v4330 = vunpack.c.h.b16 %v1086
        %v4331 = vunpack.c.l.b16 %v1087
        %v4332 = vunpack.c.h.b16 %v1087
        %v4333 = vunpack.c.l.b16 %v1088
        %v4334 = vunpack.c.h.b16 %v1088
        %v4335 = vunpack.c.l.b16 %v1089
        %v4336 = vunpack.c.h.b16 %v1089
        %v4337 = vunpack.c.l.b16 %v1090
        %v4338 = vunpack.c.h.b16 %v1090
        %v4339 = vunpack.c.l.b16 %v1091
        %v4340 = vunpack.c.h.b16 %v1091
        %v4341 = vunpack.c.l.b16 %v1092
        %v4342 = vunpack.c.h.b16 %v1092
        %v4343 = vunpack.c.l.b16 %v1093
        %v4344 = vunpack.c.h.b16 %v1093
        %v4345 = vunpack.c.l.b16 %v1094
        %v4346 = vunpack.c.h.b16 %v1094
        %v4347 = vunpack.c.l.b16 %v1095
        %v4348 = vunpack.c.h.b16 %v1095
        %v4349 = vunpack.c.l.b16 %v1096
        %v4350 = vunpack.c.h.b16 %v1096
        %v4351 = vunpack.c.l.b16 %v1097
        %v4352 = vunpack.c.h.b16 %v1097
        %v4353 = vunpack.c.l.b16 %v1098
        %v4354 = vunpack.c.h.b16 %v1098
        %v4355 = vunpack.c.l.b16 %v1099
        %v4356 = vunpack.c.h.b16 %v1099
        %v4357 = vunpack.c.l.b16 %v1100
        %v4358 = vunpack.c.h.b16 %v1100
        %v4359 = vunpack.c.l.b16 %v1101
        %v4360 = vunpack.c.h.b16 %v1101
        %v4361 = vunpack.c.l.b16 %v1102
        %v4362 = vunpack.c.h.b16 %v1102
        %v4363 = vunpack.c.l.b16 %v1103
        %v4364 = vunpack.c.h.b16 %v1103
        %v4365 = vunpack.c.l.b16 %v1104
        %v4366 = vunpack.c.h.b16 %v1104
        %v4367 = vunpack.c.l.b16 %v1105
        %v4368 = vunpack.c.h.b16 %v1105
        %v4369 = vunpack.c.l.b16 %v1106
        %v4370 = vunpack.c.h.b16 %v1106
        %v4371 = vunpack.c.l.b16 %v1107
        %v4372 = vunpack.c.h.b16 %v1107
        %v4373 = vunpack.c.l.b16 %v1108
        %v4374 = vunpack.c.h.b16 %v1108
        %v4375 = vunpack.c.l.b16 %v1109
        %v4376 = vunpack.c.h.b16 %v1109
        %v4377 = vunpack.c.l.b16 %v1110
        %v4378 = vunpack.c.h.b16 %v1110
        %v4379 = vunpack.c.l.b16 %v1111
        %v4380 = vunpack.c.h.b16 %v1111
        %v4381 = vunpack.c.l.b16 %v1112
        %v4382 = vunpack.c.h.b16 %v1112
        %v4383 = vunpack.c.l.b16 %v1113
        %v4384 = vunpack.c.h.b16 %v1113
        %v4385 = vunpack.c.l.b16 %v1114
        %v4386 = vunpack.c.h.b16 %v1114
        %v4387 = vunpack.c.l.b16 %v1115
        %v4388 = vunpack.c.h.b16 %v1115
        %v4389 = vunpack.c.l.b16 %v1116
        %v4390 = vunpack.c.h.b16 %v1116
        %v4391 = vunpack.c.l.b16 %v1117
        %v4392 = vunpack.c.h.b16 %v1117
        %v4393 = vunpack.c.l.b16 %v1118
        %v4394 = vunpack.c.h.b16 %v1118
        %v4395 = vunpack.c.l.b16 %v1119
        %v4396 = vunpack.c.h.b16 %v1119
        %v4397 = vunpack.c.l.b16 %v1120
        %v4398 = vunpack.c.h.b16 %v1120
        %v4399 = vunpack.c.l.b16 %v1121
        %v4400 = vunpack.c.h.b16 %v1121
        %v4401 = vunpack.c.l.b16 %v1122
        %v4402 = vunpack.c.h.b16 %v1122
        %v4403 = vunpack.c.l.b16 %v1123
        %v4404 = vunpack.c.h.b16 %v1123
        %v4405 = vunpack.c.l.b16 %v1124
        %v4406 = vunpack.c.h.b16 %v1124
        %v4407 = vunpack.c.l.b16 %v1125
        %v4408 = vunpack.c.h.b16 %v1125
        %v4409 = vunpack.c.l.b16 %v1126
        %v4410 = vunpack.c.h.b16 %v1126
        %v4411 = vunpack.c.l.b16 %v1127
        %v4412 = vunpack.c.h.b16 %v1127
        %v4413 = vunpack.c.l.b16 %v1128
        %v4414 = vunpack.c.h.b16 %v1128
        %v4415 = vunpack.c.l.b16 %v1129
        %v4416 = vunpack.c.h.b16 %v1129
        %v4417 = vunpack.c.l.b16 %v1130
        %v4418 = vunpack.c.h.b16 %v1130
        %v4419 = vunpack.c.l.b16 %v1131
        %v4420 = vunpack.c.h.b16 %v1131
        %v4421 = vunpack.c.l.b16 %v1132
        %v4422 = vunpack.c.h.b16 %v1132
        %v4423 = vunpack.c.l.b16 %v1133
        %v4424 = vunpack.c.h.b16 %v1133
        %v4425 = vunpack.c.l.b16 %v1134
        %v4426 = vunpack.c.h.b16 %v1134
        %v4427 = vunpack.c.l.b16 %v1135
        %v4428 = vunpack.c.h.b16 %v1135
        %v4429 = vunpack.c.l.b16 %v1136
        %v4430 = vunpack.c.h.b16 %v1136
        %v4431 = vunpack.c.l.b16 %v1137
        %v4432 = vunpack.c.h.b16 %v1137
        %v4433 = vunpack.c.l.b16 %v1138
        %v4434 = vunpack.c.h.b16 %v1138
        %v4435 = vunpack.c.l.b16 %v1139
        %v4436 = vunpack.c.h.b16 %v1139
        %v4437 = vunpack.c.l.b16 %v1140
        %v4438 = vunpack.c.h.b16 %v1140
        %v4439 = vunpack.c.l.b16 %v1141
        %v4440 = vunpack.c.h.b16 %v1141
        %v4441 = vunpack.c.l.b16 %v1142
        %v4442 = vunpack.c.h.b16 %v1142
        %v4443 = vunpack.c.l.b16 %v1143
        %v4444 = vunpack.c.h.b16 %v1143
        %v4445 = vunpack.c.l.b16 %v1144
        %v4446 = vunpack.c.h.b16 %v1144
        %v4447 = vunpack.c.l.b16 %v1145
        %v4448 = vunpack.c.h.b16 %v1145
        %v4449 = vunpack.c.l.b16 %v1146
        %v4450 = vunpack.c.h.b16 %v1146
        %v4451 = vunpack.c.l.b16 %v1147
        %v4452 = vunpack.c.h.b16 %v1147
        %v4453 = vunpack.c.l.b16 %v1148
        %v4454 = vunpack.c.h.b16 %v1148
        %v4455 = vunpack.c.l.b16 %v1149
        %v4456 = vunpack.c.h.b16 %v1149
        %v4457 = vunpack.c.l.b16 %v1150
        %v4458 = vunpack.c.h.b16 %v1150
        %v4459 = vunpack.c.l.b16 %v1151
        %v4460 = vunpack.c.h.b16 %v1151
        %v4461 = vunpack.c.l.b16 %v1152
        %v4462 = vunpack.c.h.b16 %v1152
        %v4463 = vunpack.c.l.b16 %v1153
        %v4464 = vunpack.c.h.b16 %v1153
        %v4465 = vunpack.c.l.b16 %v1154
        %v4466 = vunpack.c.h.b16 %v1154
        %v4467 = vunpack.c.l.b16 %v1155
        %v4468 = vunpack.c.h.b16 %v1155
        %v4469 = vunpack.c.l.b16 %v1156
        %v4470 = vunpack.c.h.b16 %v1156
        %v4471 = vunpack.c.l.b16 %v1157
        %v4472 = vunpack.c.h.b16 %v1157
        %v4473 = vunpack.c.l.b16 %v1158
        %v4474 = vunpack.c.h.b16 %v1158
        %v4475 = vunpack.c.l.b16 %v1159
        %v4476 = vunpack.c.h.b16 %v1159
        %v4477 = vunpack.c.l.b16 %v1160
        %v4478 = vunpack.c.h.b16 %v1160
        %v4479 = vunpack.c.l.b16 %v1161
        %v4480 = vunpack.c.h.b16 %v1161
        %v4481 = vunpack.c.l.b16 %v1162
        %v4482 = vunpack.c.h.b16 %v1162
        %v4483 = vunpack.c.l.b16 %v1163
        %v4484 = vunpack.c.h.b16 %v1163
        %v4485 = vunpack.c.l.b16 %v1164
        %v4486 = vunpack.c.h.b16 %v1164
        %v4487 = vunpack.c.l.b16 %v1165
        %v4488 = vunpack.c.h.b16 %v1165
        %v4489 = vunpack.c.l.b16 %v1166
        %v4490 = vunpack.c.h.b16 %v1166
        %v4491 = vunpack.c.l.b16 %v1167
        %v4492 = vunpack.c.h.b16 %v1167
        %v4493 = vunpack.c.l.b16 %v1168
        %v4494 = vunpack.c.h.b16 %v1168
        %v4495 = vunpack.c.l.b16 %v1169
        %v4496 = vunpack.c.h.b16 %v1169
        %v4497 = vunpack.c.l.b16 %v1170
        %v4498 = vunpack.c.h.b16 %v1170
        %v4499 = vunpack.c.l.b16 %v1171
        %v4500 = vunpack.c.h.b16 %v1171
        %v4501 = vunpack.c.l.b16 %v1172
        %v4502 = vunpack.c.h.b16 %v1172
        %v4503 = vunpack.c.l.b16 %v1173
        %v4504 = vunpack.c.h.b16 %v1173
        %v4505 = vunpack.c.l.b16 %v1174
        %v4506 = vunpack.c.h.b16 %v1174
        %v4507 = vunpack.c.l.b16 %v1175
        %v4508 = vunpack.c.h.b16 %v1175
        %v4509 = vunpack.c.l.b16 %v1176
        %v4510 = vunpack.c.h.b16 %v1176
        %v4511 = vunpack.c.l.b16 %v1177
        %v4512 = vunpack.c.h.b16 %v1177
        %v4513 = vunpack.c.l.b16 %v1178
        %v4514 = vunpack.c.h.b16 %v1178
        %v4515 = vunpack.c.l.b16 %v1179
        %v4516 = vunpack.c.h.b16 %v1179
        %v4517 = vunpack.c.l.b16 %v1180
        %v4518 = vunpack.c.h.b16 %v1180
        %v4519 = vunpack.c.l.b16 %v1181
        %v4520 = vunpack.c.h.b16 %v1181
        %v4521 = vunpack.c.l.b16 %v1182
        %v4522 = vunpack.c.h.b16 %v1182
        %v4523 = vunpack.c.l.b16 %v1183
        %v4524 = vunpack.c.h.b16 %v1183
        %v4525 = vunpack.c.l.b16 %v1184
        %v4526 = vunpack.c.h.b16 %v1184
        %v4527 = vunpack.c.l.b16 %v1185
        %v4528 = vunpack.c.h.b16 %v1185
        %v4529 = vunpack.c.l.b16 %v1186
        %v4530 = vunpack.c.h.b16 %v1186
        %v4531 = vunpack.c.l.b16 %v1187
        %v4532 = vunpack.c.h.b16 %v1187
        %v4533 = vunpack.c.l.b16 %v1188
        %v4534 = vunpack.c.h.b16 %v1188
        %v4535 = vunpack.c.l.b16 %v1189
        %v4536 = vunpack.c.h.b16 %v1189
        %v4537 = vunpack.c.l.b16 %v1190
        %v4538 = vunpack.c.h.b16 %v1190
        %v4539 = vunpack.c.l.b16 %v1191
        %v4540 = vunpack.c.h.b16 %v1191
        %v4541 = vunpack.c.l.b16 %v1192
        %v4542 = vunpack.c.h.b16 %v1192
        %v4543 = vunpack.c.l.b16 %v1193
        %v4544 = vunpack.c.h.b16 %v1193
        %v4545 = vunpack.c.l.b16 %v1194
        %v4546 = vunpack.c.h.b16 %v1194
        %v4547 = vunpack.c.l.b16 %v1195
        %v4548 = vunpack.c.h.b16 %v1195
        %v4549 = vunpack.c.l.b16 %v1196
        %v4550 = vunpack.c.h.b16 %v1196
        %v4551 = vunpack.c.l.b16 %v1197
        %v4552 = vunpack.c.h.b16 %v1197
        %v4553 = vunpack.c.l.b16 %v1198
        %v4554 = vunpack.c.h.b16 %v1198
        %v4555 = vunpack.c.l.b16 %v1199
        %v4556 = vunpack.c.h.b16 %v1199
        %v4557 = vunpack.c.l.b16 %v1200
        %v4558 = vunpack.c.h.b16 %v1200
        %v4559 = vunpack.c.l.b16 %v1201
        %v4560 = vunpack.c.h.b16 %v1201
        %v4561 = vunpack.c.l.b16 %v1202
        %v4562 = vunpack.c.h.b16 %v1202
        %v4563 = vunpack.c.l.b16 %v1203
        %v4564 = vunpack.c.h.b16 %v1203
        %v4565 = vunpack.c.l.b16 %v1204
        %v4566 = vunpack.c.h.b16 %v1204
        %v4567 = vunpack.c.l.b16 %v1205
        %v4568 = vunpack.c.h.b16 %v1205
        %v4569 = vunpack.c.l.b16 %v1206
        %v4570 = vunpack.c.h.b16 %v1206
        %v4571 = vunpack.c.l.b16 %v1207
        %v4572 = vunpack.c.h.b16 %v1207
        %v4573 = vunpack.c.l.b16 %v1208
        %v4574 = vunpack.c.h.b16 %v1208
        %v4575 = vunpack.c.l.b16 %v1209
        %v4576 = vunpack.c.h.b16 %v1209
        %v4577 = vunpack.c.l.b16 %v1210
        %v4578 = vunpack.c.h.b16 %v1210
        %v4579 = vunpack.c.l.b16 %v1211
        %v4580 = vunpack.c.h.b16 %v1211
        %v4581 = vunpack.c.l.b16 %v1212
        %v4582 = vunpack.c.h.b16 %v1212
        %v4583 = vunpack.c.l.b16 %v1213
        %v4584 = vunpack.c.h.b16 %v1213
        %v4585 = vunpack.c.l.b16 %v1214
        %v4586 = vunpack.c.h.b16 %v1214
        %v4587 = vunpack.c.l.b16 %v1215
        %v4588 = vunpack.c.h.b16 %v1215
        %v4589 = vunpack.c.l.b16 %v1216
        %v4590 = vunpack.c.h.b16 %v1216
        %v4591 = vunpack.c.l.b16 %v1217
        %v4592 = vunpack.c.h.b16 %v1217
        %v4593 = vunpack.c.l.b16 %v1218
        %v4594 = vunpack.c.h.b16 %v1218
        %v4595 = vunpack.c.l.b16 %v1219
        %v4596 = vunpack.c.h.b16 %v1219
        %v4597 = vunpack.c.l.b16 %v1220
        %v4598 = vunpack.c.h.b16 %v1220
        %v4599 = vunpack.c.l.b16 %v1221
        %v4600 = vunpack.c.h.b16 %v1221
        %v4601 = vunpack.c.l.b16 %v1222
        %v4602 = vunpack.c.h.b16 %v1222
        %v4603 = vunpack.c.l.b16 %v1223
        %v4604 = vunpack.c.h.b16 %v1223
        %v4605 = vunpack.c.l.b16 %v1224
        %v4606 = vunpack.c.h.b16 %v1224
        %v4607 = vunpack.c.l.b16 %v1225
        %v4608 = vunpack.c.h.b16 %v1225
        %v4609 = vunpack.c.l.b16 %v1226
        %v4610 = vunpack.c.h.b16 %v1226
        %v4611 = vunpack.c.l.b16 %v1227
        %v4612 = vunpack.c.h.b16 %v1227
        %v4613 = vunpack.c.l.b16 %v1228
        %v4614 = vunpack.c.h.b16 %v1228
        %v4615 = vunpack.c.l.b16 %v1229
        %v4616 = vunpack.c.h.b16 %v1229
        %v4617 = vunpack.c.l.b16 %v1230
        %v4618 = vunpack.c.h.b16 %v1230
        %v4619 = vunpack.c.l.b16 %v1231
        %v4620 = vunpack.c.h.b16 %v1231
        %v4621 = vunpack.c.l.b16 %v1232
        %v4622 = vunpack.c.h.b16 %v1232
        %v4623 = vunpack.c.l.b16 %v1233
        %v4624 = vunpack.c.h.b16 %v1233
        %v4625 = vunpack.c.l.b16 %v1234
        %v4626 = vunpack.c.h.b16 %v1234
        %v4627 = vunpack.c.l.b16 %v1235
        %v4628 = vunpack.c.h.b16 %v1235
        %v4629 = vunpack.c.l.b16 %v1236
        %v4630 = vunpack.c.h.b16 %v1236
        %v4631 = vunpack.c.l.b16 %v1237
        %v4632 = vunpack.c.h.b16 %v1237
        %v4633 = vunpack.c.l.b16 %v1238
        %v4634 = vunpack.c.h.b16 %v1238
        %v4635 = vunpack.c.l.b16 %v1239
        %v4636 = vunpack.c.h.b16 %v1239
        %v4637 = vunpack.c.l.b16 %v1240
        %v4638 = vunpack.c.h.b16 %v1240
        %v4639 = vunpack.c.l.b16 %v1241
        %v4640 = vunpack.c.h.b16 %v1241
        %v4641 = vunpack.c.l.b16 %v1242
        %v4642 = vunpack.c.h.b16 %v1242
        %v4643 = vunpack.c.l.b16 %v1243
        %v4644 = vunpack.c.h.b16 %v1243
        %v4645 = vunpack.c.l.b16 %v1244
        %v4646 = vunpack.c.h.b16 %v1244
        %v4647 = vunpack.c.l.b16 %v1245
        %v4648 = vunpack.c.h.b16 %v1245
        %v4649 = vunpack.c.l.b16 %v1246
        %v4650 = vunpack.c.h.b16 %v1246
        %v4651 = vunpack.c.l.b16 %v1247
        %v4652 = vunpack.c.h.b16 %v1247
        %v4653 = vunpack.c.l.b16 %v1248
        %v4654 = vunpack.c.h.b16 %v1248
        %v4655 = vunpack.c.l.b16 %v1249
        %v4656 = vunpack.c.h.b16 %v1249
        %v4657 = vunpack.c.l.b16 %v1250
        %v4658 = vunpack.c.h.b16 %v1250
        %v4659 = vunpack.c.l.b16 %v1251
        %v4660 = vunpack.c.h.b16 %v1251
        %v4661 = vunpack.c.l.b16 %v1252
        %v4662 = vunpack.c.h.b16 %v1252
        %v4663 = vunpack.c.l.b16 %v1253
        %v4664 = vunpack.c.h.b16 %v1253
        %v4665 = vunpack.c.l.b16 %v1254
        %v4666 = vunpack.c.h.b16 %v1254
        %v4667 = vunpack.c.l.b16 %v1255
        %v4668 = vunpack.c.h.b16 %v1255
        %v4669 = vunpack.c.l.b16 %v1256
        %v4670 = vunpack.c.h.b16 %v1256
        %v4671 = vunpack.c.l.b16 %v1257
        %v4672 = vunpack.c.h.b16 %v1257
        %v4673 = vunpack.c.l.b16 %v1258
        %v4674 = vunpack.c.h.b16 %v1258
        %v4675 = vunpack.c.l.b16 %v1259
        %v4676 = vunpack.c.h.b16 %v1259
        %v4677 = vunpack.c.l.b16 %v1260
        %v4678 = vunpack.c.h.b16 %v1260
        %v4679 = vunpack.c.l.b16 %v1261
        %v4680 = vunpack.c.h.b16 %v1261
        %v4681 = vunpack.c.l.b16 %v1262
        %v4682 = vunpack.c.h.b16 %v1262
        %v4683 = vunpack.c.l.b16 %v1263
        %v4684 = vunpack.c.h.b16 %v1263
        %v4685 = vunpack.c.l.b16 %v1264
        %v4686 = vunpack.c.h.b16 %v1264
        %v4687 = vunpack.c.l.b16 %v1265
        %v4688 = vunpack.c.h.b16 %v1265
        %v4689 = vunpack.c.l.b16 %v1266
        %v4690 = vunpack.c.h.b16 %v1266
        %v4691 = vunpack.c.l.b16 %v1267
        %v4692 = vunpack.c.h.b16 %v1267
        %v4693 = vunpack.c.l.b16 %v1268
        %v4694 = vunpack.c.h.b16 %v1268
        %v4695 = vunpack.c.l.b16 %v1269
        %v4696 = vunpack.c.h.b16 %v1269
        %v4697 = vunpack.c.l.b16 %v1270
        %v4698 = vunpack.c.h.b16 %v1270
        %v4699 = vunpack.c.l.b16 %v1271
        %v4700 = vunpack.c.h.b16 %v1271
        %v4701 = vunpack.c.l.b16 %v1272
        %v4702 = vunpack.c.h.b16 %v1272
        %v4703 = vunpack.c.l.b16 %v1273
        %v4704 = vunpack.c.h.b16 %v1273
        %v4705 = vunpack.c.l.b16 %v1274
        %v4706 = vunpack.c.h.b16 %v1274
        %v4707 = vunpack.c.l.b16 %v1275
        %v4708 = vunpack.c.h.b16 %v1275
        %v4709 = vunpack.c.l.b16 %v1276
        %v4710 = vunpack.c.h.b16 %v1276
        %v4711 = vunpack.c.l.b16 %v1277
        %v4712 = vunpack.c.h.b16 %v1277
        %v4713 = vunpack.c.l.b16 %v1278
        %v4714 = vunpack.c.h.b16 %v1278
        %v4715 = vunpack.c.l.b16 %v1279
        %v4716 = vunpack.c.h.b16 %v1279
        %v4717 = vunpack.c.l.b16 %v1280
        %v4718 = vunpack.c.h.b16 %v1280
        %v4719 = vunpack.c.l.b16 %v1281
        %v4720 = vunpack.c.h.b16 %v1281
        %v4721 = vunpack.c.l.b16 %v1282
        %v4722 = vunpack.c.h.b16 %v1282
        %v4723 = vunpack.c.l.b16 %v1283
        %v4724 = vunpack.c.h.b16 %v1283
        %v4725 = vunpack.c.l.b16 %v1284
        %v4726 = vunpack.c.h.b16 %v1284
        %v4727 = vunpack.c.l.b16 %v1285
        %v4728 = vunpack.c.h.b16 %v1285
        %v4729 = vunpack.c.l.b16 %v1286
        %v4730 = vunpack.c.h.b16 %v1286
        %v4731 = vunpack.c.l.b16 %v1287
        %v4732 = vunpack.c.h.b16 %v1287
        %v4733 = vunpack.c.l.b16 %v1288
        %v4734 = vunpack.c.h.b16 %v1288
        %v4735 = vunpack.c.l.b16 %v1289
        %v4736 = vunpack.c.h.b16 %v1289
        %v4737 = vunpack.c.l.b16 %v1290
        %v4738 = vunpack.c.h.b16 %v1290
        %v4739 = vunpack.c.l.b16 %v1291
        %v4740 = vunpack.c.h.b16 %v1291
        %v4741 = vunpack.c.l.b16 %v1292
        %v4742 = vunpack.c.h.b16 %v1292
        %v4743 = vunpack.c.l.b16 %v1293
        %v4744 = vunpack.c.h.b16 %v1293
        %v4745 = vunpack.c.l.b16 %v1294
        %v4746 = vunpack.c.h.b16 %v1294
        %v4747 = vunpack.c.l.b16 %v1295
        %v4748 = vunpack.c.h.b16 %v1295
        %v4749 = vunpack.c.l.b16 %v1296
        %v4750 = vunpack.c.h.b16 %v1296
        %v4751 = vunpack.c.l.b16 %v1297
        %v4752 = vunpack.c.h.b16 %v1297
        %v4753 = vunpack.c.l.b16 %v1298
        %v4754 = vunpack.c.h.b16 %v1298
        %v4755 = vunpack.c.l.b16 %v1299
        %v4756 = vunpack.c.h.b16 %v1299
        %v4757 = vunpack.c.l.b16 %v1300
        %v4758 = vunpack.c.h.b16 %v1300
        %v4759 = vunpack.c.l.b16 %v1301
        %v4760 = vunpack.c.h.b16 %v1301
        %v4761 = vunpack.c.l.b16 %v1302
        %v4762 = vunpack.c.h.b16 %v1302
        %v4763 = vunpack.c.l.b16 %v1303
        %v4764 = vunpack.c.h.b16 %v1303
        %v4765 = vunpack.c.l.b16 %v1304
        %v4766 = vunpack.c.h.b16 %v1304
        %v4767 = vunpack.c.l.b16 %v1305
        %v4768 = vunpack.c.h.b16 %v1305
        %v4769 = vunpack.c.l.b16 %v1306
        %v4770 = vunpack.c.h.b16 %v1306
        %v4771 = vunpack.c.l.b16 %v1307
        %v4772 = vunpack.c.h.b16 %v1307
        %v4773 = vunpack.c.l.b16 %v1308
        %v4774 = vunpack.c.h.b16 %v1308
        %v4775 = vunpack.c.l.b16 %v1309
        %v4776 = vunpack.c.h.b16 %v1309
        %v4777 = vunpack.c.l.b16 %v1310
        %v4778 = vunpack.c.h.b16 %v1310
        %v4779 = vunpack.c.l.b16 %v1311
        %v4780 = vunpack.c.h.b16 %v1311
        %v4781 = vunpack.c.l.b16 %v1312
        %v4782 = vunpack.c.h.b16 %v1312
        %v4783 = vunpack.c.l.b16 %v1313
        %v4784 = vunpack.c.h.b16 %v1313
        %v4785 = vunpack.c.l.b16 %v1314
        %v4786 = vunpack.c.h.b16 %v1314
        %v4787 = vunpack.c.l.b16 %v1315
        %v4788 = vunpack.c.h.b16 %v1315
        %v4789 = vunpack.c.l.b16 %v1316
        %v4790 = vunpack.c.h.b16 %v1316
        %v4791 = vunpack.c.l.b16 %v1317
        %v4792 = vunpack.c.h.b16 %v1317
        %v4793 = vunpack.c.l.b16 %v1318
        %v4794 = vunpack.c.h.b16 %v1318
        %v4795 = vunpack.c.l.b16 %v1319
        %v4796 = vunpack.c.h.b16 %v1319
        %v4797 = vunpack.c.l.b16 %v1320
        %v4798 = vunpack.c.h.b16 %v1320
        %v4799 = vunpack.c.l.b16 %v1321
        %v4800 = vunpack.c.h.b16 %v1321
        %v4801 = vunpack.c.l.b16 %v1322
        %v4802 = vunpack.c.h.b16 %v1322
        %v4803 = vunpack.c.l.b16 %v1323
        %v4804 = vunpack.c.h.b16 %v1323
        %v4805 = vunpack.c.l.b16 %v1324
        %v4806 = vunpack.c.h.b16 %v1324
        %v4807 = vunpack.c.l.b16 %v1325
        %v4808 = vunpack.c.h.b16 %v1325
        %v4809 = vunpack.c.l.b16 %v1326
        %v4810 = vunpack.c.h.b16 %v1326
        %v4811 = vunpack.c.l.b16 %v1327
        %v4812 = vunpack.c.h.b16 %v1327
        %v4813 = vunpack.c.l.b16 %v1328
        %v4814 = vunpack.c.h.b16 %v1328
        %v4815 = vunpack.c.l.b16 %v1329
        %v4816 = vunpack.c.h.b16 %v1329
        %v4817 = vunpack.c.l.b16 %v1330
        %v4818 = vunpack.c.h.b16 %v1330
        %v4819 = vunpack.c.l.b16 %v1331
        %v4820 = vunpack.c.h.b16 %v1331
        %v4821 = vunpack.c.l.b16 %v1332
        %v4822 = vunpack.c.h.b16 %v1332
        %v4823 = vunpack.c.l.b16 %v1333
        %v4824 = vunpack.c.h.b16 %v1333
        %v4825 = vunpack.c.l.b16 %v1334
        %v4826 = vunpack.c.h.b16 %v1334
        %v4827 = vunpack.c.l.b16 %v1335
        %v4828 = vunpack.c.h.b16 %v1335
        %v4829 = vunpack.c.l.b16 %v1336
        %v4830 = vunpack.c.h.b16 %v1336
        %v4831 = vunpack.c.l.b16 %v1337
        %v4832 = vunpack.c.h.b16 %v1337
        %v4833 = vunpack.c.l.b16 %v1338
        %v4834 = vunpack.c.h.b16 %v1338
        %v4835 = vunpack.c.l.b16 %v1339
        %v4836 = vunpack.c.h.b16 %v1339
        %v4837 = vunpack.c.l.b16 %v1340
        %v4838 = vunpack.c.h.b16 %v1340
        %v4839 = vunpack.c.l.b16 %v1341
        %v4840 = vunpack.c.h.b16 %v1341
        %v4841 = vunpack.c.l.b16 %v1342
        %v4842 = vunpack.c.h.b16 %v1342
        %v4843 = vunpack.c.l.b16 %v1343
        %v4844 = vunpack.c.h.b16 %v1343
        %v4845 = vunpack.c.l.b16 %v1344
        %v4846 = vunpack.c.h.b16 %v1344
        %v4847 = vunpack.c.l.b16 %v1345
        %v4848 = vunpack.c.h.b16 %v1345
        %v4849 = vunpack.c.l.b16 %v1346
        %v4850 = vunpack.c.h.b16 %v1346
        %v4851 = vunpack.c.l.b16 %v1347
        %v4852 = vunpack.c.h.b16 %v1347
        %v4853 = vunpack.c.l.b16 %v1348
        %v4854 = vunpack.c.h.b16 %v1348
        %v4855 = vunpack.c.l.b16 %v1349
        %v4856 = vunpack.c.h.b16 %v1349
        %v4857 = vunpack.c.l.b16 %v1350
        %v4858 = vunpack.c.h.b16 %v1350
        %v4859 = vunpack.c.l.b16 %v1351
        %v4860 = vunpack.c.h.b16 %v1351
        %v4861 = vunpack.c.l.b16 %v1352
        %v4862 = vunpack.c.h.b16 %v1352
        %v4863 = vunpack.c.l.b16 %v1353
        %v4864 = vunpack.c.h.b16 %v1353
        %v4865 = vunpack.c.l.b16 %v1354
        %v4866 = vunpack.c.h.b16 %v1354
        %v4867 = vunpack.c.l.b16 %v1355
        %v4868 = vunpack.c.h.b16 %v1355
        %v4869 = vunpack.c.l.b16 %v1356
        %v4870 = vunpack.c.h.b16 %v1356
        %v4871 = vunpack.c.l.b16 %v1357
        %v4872 = vunpack.c.h.b16 %v1357
        %v4873 = vunpack.c.l.b16 %v1358
        %v4874 = vunpack.c.h.b16 %v1358
        %v4875 = vunpack.c.l.b16 %v1359
        %v4876 = vunpack.c.h.b16 %v1359
        %v4877 = vunpack.c.l.b16 %v1360
        %v4878 = vunpack.c.h.b16 %v1360
        %v4879 = vunpack.c.l.b16 %v1361
        %v4880 = vunpack.c.h.b16 %v1361
        %v4881 = vunpack.c.l.b16 %v1362
        %v4882 = vunpack.c.h.b16 %v1362
        %v4883 = vunpack.c.l.b16 %v1363
        %v4884 = vunpack.c.h.b16 %v1363
        %v4885 = vunpack.c.l.b16 %v1364
        %v4886 = vunpack.c.h.b16 %v1364
        %v4887 = vunpack.c.l.b16 %v1365
        %v4888 = vunpack.c.h.b16 %v1365
        %v4889 = vunpack.c.l.b16 %v1366
        %v4890 = vunpack.c.h.b16 %v1366
        %v4891 = vunpack.c.l.b16 %v1367
        %v4892 = vunpack.c.h.b16 %v1367
        %v4893 = vunpack.c.l.b16 %v1368
        %v4894 = vunpack.c.h.b16 %v1368
        %v4895 = vunpack.c.l.b16 %v1369
        %v4896 = vunpack.c.h.b16 %v1369
        %v4897 = vunpack.c.l.b16 %v1370
        %v4898 = vunpack.c.h.b16 %v1370
        %v4899 = vunpack.c.l.b16 %v1371
        %v4900 = vunpack.c.h.b16 %v1371
        %v4901 = vunpack.c.l.b16 %v1372
        %v4902 = vunpack.c.h.b16 %v1372
        %v4903 = vunpack.c.l.b16 %v1373
        %v4904 = vunpack.c.h.b16 %v1373
        %v4905 = vunpack.c.l.b16 %v1374
        %v4906 = vunpack.c.h.b16 %v1374
        %v4907 = vunpack.c.l.b16 %v1375
        %v4908 = vunpack.c.h.b16 %v1375
        %v4909 = vunpack.c.l.b16 %v1376
        %v4910 = vunpack.c.h.b16 %v1376
        %v4911 = vunpack.c.l.b16 %v1377
        %v4912 = vunpack.c.h.b16 %v1377
        %v4913 = vunpack.c.l.b16 %v1378
        %v4914 = vunpack.c.h.b16 %v1378
        %v4915 = vunpack.c.l.b16 %v1379
        %v4916 = vunpack.c.h.b16 %v1379
        %v4917 = vunpack.c.l.b16 %v1380
        %v4918 = vunpack.c.h.b16 %v1380
        %v4919 = vunpack.c.l.b16 %v1381
        %v4920 = vunpack.c.h.b16 %v1381
        %v4921 = vunpack.c.l.b16 %v1382
        %v4922 = vunpack.c.h.b16 %v1382
        %v4923 = vunpack.c.l.b16 %v1383
        %v4924 = vunpack.c.h.b16 %v1383
        %v4925 = vunpack.c.l.b16 %v1384
        %v4926 = vunpack.c.h.b16 %v1384
        %v4927 = vunpack.c.l.b16 %v1385
        %v4928 = vunpack.c.h.b16 %v1385
        %v4929 = vunpack.c.l.b16 %v1386
        %v4930 = vunpack.c.h.b16 %v1386
        %v4931 = vunpack.c.l.b16 %v1387
        %v4932 = vunpack.c.h.b16 %v1387
        %v4933 = vunpack.c.l.b16 %v1388
        %v4934 = vunpack.c.h.b16 %v1388
        %v4935 = vunpack.c.l.b16 %v1389
        %v4936 = vunpack.c.h.b16 %v1389
        %v4937 = vunpack.c.l.b16 %v1390
        %v4938 = vunpack.c.h.b16 %v1390
        %v4939 = vunpack.c.l.b16 %v1391
        %v4940 = vunpack.c.h.b16 %v1391
        %v4941 = vunpack.c.l.b16 %v1392
        %v4942 = vunpack.c.h.b16 %v1392
        %v4943 = vunpack.c.l.b16 %v1393
        %v4944 = vunpack.c.h.b16 %v1393
        %v4945 = vunpack.c.l.b16 %v1394
        %v4946 = vunpack.c.h.b16 %v1394
        %v4947 = vunpack.c.l.b16 %v1395
        %v4948 = vunpack.c.h.b16 %v1395
        %v4949 = vunpack.c.l.b16 %v1396
        %v4950 = vunpack.c.h.b16 %v1396
        %v4951 = vunpack.c.l.b16 %v1397
        %v4952 = vunpack.c.h.b16 %v1397
        %v4953 = vunpack.c.l.b16 %v1398
        %v4954 = vunpack.c.h.b16 %v1398
        %v4955 = vunpack.c.l.b16 %v1399
        %v4956 = vunpack.c.h.b16 %v1399
        %v4957 = vunpack.c.l.b16 %v1400
        %v4958 = vunpack.c.h.b16 %v1400
        %v4959 = vunpack.c.l.b16 %v1401
        %v4960 = vunpack.c.h.b16 %v1401
        %v4961 = vunpack.c.l.b16 %v1402
        %v4962 = vunpack.c.h.b16 %v1402
        %v4963 = vunpack.c.l.b16 %v1403
        %v4964 = vunpack.c.h.b16 %v1403
        %v4965 = vunpack.c.l.b16 %v1404
        %v4966 = vunpack.c.h.b16 %v1404
        %v4967 = vunpack.c.l.b16 %v1405
        %v4968 = vunpack.c.h.b16 %v1405
        %v4969 = vunpack.c.l.b16 %v1406
        %v4970 = vunpack.c.h.b16 %v1406
        %v4971 = vunpack.c.l.b16 %v1407
        %v4972 = vunpack.c.h.b16 %v1407
        %v4973 = vunpack.c.l.b16 %v1408
        %v4974 = vunpack.c.h.b16 %v1408
        %v4975 = vunpack.c.l.b16 %v1409
        %v4976 = vunpack.c.h.b16 %v1409
        %v4977 = vunpack.c.l.b16 %v1410
        %v4978 = vunpack.c.h.b16 %v1410
        %v4979 = vunpack.c.l.b16 %v1411
        %v4980 = vunpack.c.h.b16 %v1411
        %v4981 = vunpack.c.l.b16 %v1412
        %v4982 = vunpack.c.h.b16 %v1412
        %v4983 = vunpack.c.l.b16 %v1413
        %v4984 = vunpack.c.h.b16 %v1413
        %v4985 = vunpack.c.l.b16 %v1414
        %v4986 = vunpack.c.h.b16 %v1414
        %v4987 = vunpack.c.l.b16 %v1415
        %v4988 = vunpack.c.h.b16 %v1415
        %v4989 = vunpack.c.l.b16 %v1416
        %v4990 = vunpack.c.h.b16 %v1416
        %v4991 = vunpack.c.l.b16 %v1417
        %v4992 = vunpack.c.h.b16 %v1417
        %v4993 = vunpack.c.l.b16 %v1418
        %v4994 = vunpack.c.h.b16 %v1418
        %v4995 = vunpack.c.l.b16 %v1419
        %v4996 = vunpack.c.h.b16 %v1419
        %v4997 = vunpack.c.l.b16 %v1420
        %v4998 = vunpack.c.h.b16 %v1420
        %v4999 = vunpack.c.l.b16 %v1421
        %v5000 = vunpack.c.h.b16 %v1421
        %v5001 = vunpack.c.l.b16 %v1422
        %v5002 = vunpack.c.h.b16 %v1422
        %v5003 = vunpack.c.l.b16 %v1423
        %v5004 = vunpack.c.h.b16 %v1423
        %v5005 = vunpack.c.l.b16 %v1424
        %v5006 = vunpack.c.h.b16 %v1424
        %v5007 = vunpack.c.l.b16 %v1425
        %v5008 = vunpack.c.h.b16 %v1425
        %v5009 = vunpack.c.l.b16 %v1426
        %v5010 = vunpack.c.h.b16 %v1426
        %v5011 = vunpack.c.l.b16 %v1427
        %v5012 = vunpack.c.h.b16 %v1427
        %v5013 = vunpack.c.l.b16 %v1428
        %v5014 = vunpack.c.h.b16 %v1428
        %v5015 = vunpack.c.l.b16 %v1429
        %v5016 = vunpack.c.h.b16 %v1429
        %v5017 = vunpack.c.l.b16 %v1430
        %v5018 = vunpack.c.h.b16 %v1430
        %v5019 = vunpack.c.l.b16 %v1431
        %v5020 = vunpack.c.h.b16 %v1431
        %v5021 = vunpack.c.l.b16 %v1432
        %v5022 = vunpack.c.h.b16 %v1432
        %v5023 = vunpack.c.l.b16 %v1433
        %v5024 = vunpack.c.h.b16 %v1433
        %v5025 = vunpack.c.l.b16 %v1434
        %v5026 = vunpack.c.h.b16 %v1434
        %v5027 = vunpack.c.l.b16 %v1435
        %v5028 = vunpack.c.h.b16 %v1435
        %v5029 = vunpack.c.l.b16 %v1436
        %v5030 = vunpack.c.h.b16 %v1436
        %v5031 = vunpack.c.l.b16 %v1437
        %v5032 = vunpack.c.h.b16 %v1437
        %v5033 = vunpack.c.l.b16 %v1438
        %v5034 = vunpack.c.h.b16 %v1438
        %v5035 = vunpack.c.l.b16 %v1439
        %v5036 = vunpack.c.h.b16 %v1439
        %v5037 = vunpack.c.l.b16 %v1440
        %v5038 = vunpack.c.h.b16 %v1440
        %v5039 = vunpack.c.l.b16 %v1441
        %v5040 = vunpack.c.h.b16 %v1441
        %v5041 = vunpack.c.l.b16 %v1442
        %v5042 = vunpack.c.h.b16 %v1442
        %v5043 = vunpack.c.l.b16 %v1443
        %v5044 = vunpack.c.h.b16 %v1443
        %v5045 = vunpack.c.l.b16 %v1444
        %v5046 = vunpack.c.h.b16 %v1444
        %v5047 = vunpack.c.l.b16 %v1445
        %v5048 = vunpack.c.h.b16 %v1445
        %v5049 = vunpack.c.l.b16 %v1446
        %v5050 = vunpack.c.h.b16 %v1446
        %v5051 = vunpack.c.l.b16 %v1447
        %v5052 = vunpack.c.h.b16 %v1447
        %v5053 = vunpack.c.l.b16 %v1448
        %v5054 = vunpack.c.h.b16 %v1448
        %v5055 = vunpack.c.l.b16 %v1449
        %v5056 = vunpack.c.h.b16 %v1449
        %v5057 = vunpack.c.l.b16 %v1450
        %v5058 = vunpack.c.h.b16 %v1450
        %v5059 = vunpack.c.l.b16 %v1451
        %v5060 = vunpack.c.h.b16 %v1451
        %v5061 = vunpack.c.l.b16 %v1452
        %v5062 = vunpack.c.h.b16 %v1452
        %v5063 = vunpack.c.l.b16 %v1453
        %v5064 = vunpack.c.h.b16 %v1453
        %v5065 = vunpack.c.l.b16 %v1454
        %v5066 = vunpack.c.h.b16 %v1454
        %v5067 = vunpack.c.l.b16 %v1455
        %v5068 = vunpack.c.h.b16 %v1455
        %v5069 = vunpack.c.l.b16 %v1456
        %v5070 = vunpack.c.h.b16 %v1456
        %v5071 = vunpack.c.l.b16 %v1457
        %v5072 = vunpack.c.h.b16 %v1457
        %v5073 = vunpack.c.l.b16 %v1458
        %v5074 = vunpack.c.h.b16 %v1458
        %v5075 = vunpack.c.l.b16 %v1459
        %v5076 = vunpack.c.h.b16 %v1459
        %v5077 = vunpack.c.l.b16 %v1460
        %v5078 = vunpack.c.h.b16 %v1460
        %v5079 = vunpack.c.l.b16 %v1461
        %v5080 = vunpack.c.h.b16 %v1461
        %v5081 = vpack.c.b16 %v2845, %v2841
        %v5082 = vpack.c.b16 %v2846, %v2842
        %v5083 = vpack.c.b16 %v2847, %v2843
        %v5084 = vpack.c.b16 %v2848, %v2844
        %v5085 = vpack.c.b16 %v2853, %v2849
        %v5086 = vpack.c.b16 %v2854, %v2850
        %v5087 = vpack.c.b16 %v2855, %v2851
        %v5088 = vpack.c.b16 %v2856, %v2852
        %v5089 = vpack.c.b16 %v2861, %v2857
        %v5090 = vpack.c.b16 %v2862, %v2858
        %v5091 = vpack.c.b16 %v2863, %v2859
        %v5092 = vpack.c.b16 %v2864, %v2860
        %v5093 = vpack.c.b16 %v2869, %v2865
        %v5094 = vpack.c.b16 %v2870, %v2866
        %v5095 = vpack.c.b16 %v2871, %v2867
        %v5096 = vpack.c.b16 %v2872, %v2868
        %v5097 = vpack.c.b16 %v2877, %v2873
        %v5098 = vpack.c.b16 %v2878, %v2874
        %v5099 = vpack.c.b16 %v2879, %v2875
        %v5100 = vpack.c.b16 %v2880, %v2876
        %v5101 = vpack.c.b16 %v2885, %v2881
        %v5102 = vpack.c.b16 %v2886, %v2882
        %v5103 = vpack.c.b16 %v2887, %v2883
        %v5104 = vpack.c.b16 %v2888, %v2884
        %v5105 = vpack.c.b16 %v2893, %v2889
        %v5106 = vpack.c.b16 %v2894, %v2890
        %v5107 = vpack.c.b16 %v2895, %v2891
        %v5108 = vpack.c.b16 %v2896, %v2892
        %v5109 = vpack.c.b16 %v2901, %v2897
        %v5110 = vpack.c.b16 %v2902, %v2898
        %v5111 = vpack.c.b16 %v2903, %v2899
        %v5112 = vpack.c.b16 %v2904, %v2900
        %v5113 = vpack.c.b16 %v2909, %v2905
        %v5114 = vpack.c.b16 %v2910, %v2906
        %v5115 = vpack.c.b16 %v2911, %v2907
        %v5116 = vpack.c.b16 %v2912, %v2908
        %v5117 = vpack.c.b16 %v2917, %v2913
        %v5118 = vpack.c.b16 %v2918, %v2914
        %v5119 = vpack.c.b16 %v2919, %v2915
        %v5120 = vpack.c.b16 %v2920, %v2916
        %v5121 = vpack.c.b16 %v2925, %v2921
        %v5122 = vpack.c.b16 %v2926, %v2922
        %v5123 = vpack.c.b16 %v2927, %v2923
        %v5124 = vpack.c.b16 %v2928, %v2924
        %v5125 = vpack.c.b16 %v2933, %v2929
        %v5126 = vpack.c.b16 %v2934, %v2930
        %v5127 = vpack.c.b16 %v2935, %v2931
        %v5128 = vpack.c.b16 %v2936, %v2932
        %v5129 = vpack.c.b16 %v2941, %v2937
        %v5130 = vpack.c.b16 %v2942, %v2938
        %v5131 = vpack.c.b16 %v2943, %v2939
        %v5132 = vpack.c.b16 %v2944, %v2940
        %v5133 = vpack.c.b16 %v2949, %v2945
        %v5134 = vpack.c.b16 %v2950, %v2946
        %v5135 = vpack.c.b16 %v2951, %v2947
        %v5136 = vpack.c.b16 %v2952, %v2948
        %v5137 = vpack.c.b16 %v2957, %v2953
        %v5138 = vpack.c.b16 %v2958, %v2954
        %v5139 = vpack.c.b16 %v2959, %v2955
        %v5140 = vpack.c.b16 %v2960, %v2956
        %v5141 = vpack.c.b16 %v2965, %v2961
        %v5142 = vpack.c.b16 %v2966, %v2962
        %v5143 = vpack.c.b16 %v2967, %v2963
        %v5144 = vpack.c.b16 %v2968, %v2964
        %v5145 = vpack.c.b16 %v2973, %v2969
        %v5146 = vpack.c.b16 %v2974, %v2970
        %v5147 = vpack.c.b16 %v2975, %v2971
        %v5148 = vpack.c.b16 %v2976, %v2972
        %v5149 = vpack.c.b16 %v2981, %v2977
        %v5150 = vpack.c.b16 %v2982, %v2978
        %v5151 = vpack.c.b16 %v2983, %v2979
        %v5152 = vpack.c.b16 %v2984, %v2980
        %v5153 = vpack.c.b16 %v2989, %v2985
        %v5154 = vpack.c.b16 %v2990, %v2986
        %v5155 = vpack.c.b16 %v2991, %v2987
        %v5156 = vpack.c.b16 %v2992, %v2988
        %v5157 = vpack.c.b16 %v2997, %v2993
        %v5158 = vpack.c.b16 %v2998, %v2994
        %v5159 = vpack.c.b16 %v2999, %v2995
        %v5160 = vpack.c.b16 %v3000, %v2996
        %v5161 = vpack.c.b16 %v3005, %v3001
        %v5162 = vpack.c.b16 %v3006, %v3002
        %v5163 = vpack.c.b16 %v3007, %v3003
        %v5164 = vpack.c.b16 %v3008, %v3004
        %v5165 = vpack.c.b16 %v3013, %v3009
        %v5166 = vpack.c.b16 %v3014, %v3010
        %v5167 = vpack.c.b16 %v3015, %v3011
        %v5168 = vpack.c.b16 %v3016, %v3012
        %v5169 = vpack.c.b16 %v3021, %v3017
        %v5170 = vpack.c.b16 %v3022, %v3018
        %v5171 = vpack.c.b16 %v3023, %v3019
        %v5172 = vpack.c.b16 %v3024, %v3020
        %v5173 = vpack.c.b16 %v3029, %v3025
        %v5174 = vpack.c.b16 %v3030, %v3026
        %v5175 = vpack.c.b16 %v3031, %v3027
        %v5176 = vpack.c.b16 %v3032, %v3028
        %v5177 = vpack.c.b16 %v3037, %v3033
        %v5178 = vpack.c.b16 %v3038, %v3034
        %v5179 = vpack.c.b16 %v3039, %v3035
        %v5180 = vpack.c.b16 %v3040, %v3036
        %v5181 = vpack.c.b16 %v3045, %v3041
        %v5182 = vpack.c.b16 %v3046, %v3042
        %v5183 = vpack.c.b16 %v3047, %v3043
        %v5184 = vpack.c.b16 %v3048, %v3044
        %v5185 = vpack.c.b16 %v3053, %v3049
        %v5186 = vpack.c.b16 %v3054, %v3050
        %v5187 = vpack.c.b16 %v3055, %v3051
        %v5188 = vpack.c.b16 %v3056, %v3052
        %v5189 = vpack.c.b16 %v3061, %v3057
        %v5190 = vpack.c.b16 %v3062, %v3058
        %v5191 = vpack.c.b16 %v3063, %v3059
        %v5192 = vpack.c.b16 %v3064, %v3060
        %v5193 = vpack.c.b16 %v3069, %v3065
        %v5194 = vpack.c.b16 %v3070, %v3066
        %v5195 = vpack.c.b16 %v3071, %v3067
        %v5196 = vpack.c.b16 %v3072, %v3068
        %v5197 = vpack.c.b16 %v3077, %v3073
        %v5198 = vpack.c.b16 %v3078, %v3074
        %v5199 = vpack.c.b16 %v3079, %v3075
        %v5200 = vpack.c.b16 %v3080, %v3076
        %v5201 = vpack.c.b16 %v3085, %v3081
        %v5202 = vpack.c.b16 %v3086, %v3082
        %v5203 = vpack.c.b16 %v3087, %v3083
        %v5204 = vpack.c.b16 %v3088, %v3084
        %v5205 = vpack.c.b16 %v3093, %v3089
        %v5206 = vpack.c.b16 %v3094, %v3090
        %v5207 = vpack.c.b16 %v3095, %v3091
        %v5208 = vpack.c.b16 %v3096, %v3092
        %v5209 = vpack.c.b16 %v3101, %v3097
        %v5210 = vpack.c.b16 %v3102, %v3098
        %v5211 = vpack.c.b16 %v3103, %v3099
        %v5212 = vpack.c.b16 %v3104, %v3100
        %v5213 = vpack.c.b16 %v3109, %v3105
        %v5214 = vpack.c.b16 %v3110, %v3106
        %v5215 = vpack.c.b16 %v3111, %v3107
        %v5216 = vpack.c.b16 %v3112, %v3108
        %v5217 = vpack.c.b16 %v3117, %v3113
        %v5218 = vpack.c.b16 %v3118, %v3114
        %v5219 = vpack.c.b16 %v3119, %v3115
        %v5220 = vpack.c.b16 %v3120, %v3116
        %v5221 = vpack.c.b16 %v3125, %v3121
        %v5222 = vpack.c.b16 %v3126, %v3122
        %v5223 = vpack.c.b16 %v3127, %v3123
        %v5224 = vpack.c.b16 %v3128, %v3124
        %v5225 = vpack.c.b16 %v3133, %v3129
        %v5226 = vpack.c.b16 %v3134, %v3130
        %v5227 = vpack.c.b16 %v3135, %v3131
        %v5228 = vpack.c.b16 %v3136, %v3132
        %v5229 = vpack.c.b16 %v3141, %v3137
        %v5230 = vpack.c.b16 %v3142, %v3138
        %v5231 = vpack.c.b16 %v3143, %v3139
        %v5232 = vpack.c.b16 %v3144, %v3140
        %v5233 = vpack.c.b16 %v3149, %v3145
        %v5234 = vpack.c.b16 %v3150, %v3146
        %v5235 = vpack.c.b16 %v3151, %v3147
        %v5236 = vpack.c.b16 %v3152, %v3148
        %v5237 = vpack.c.b16 %v3157, %v3153
        %v5238 = vpack.c.b16 %v3158, %v3154
        %v5239 = vpack.c.b16 %v3159, %v3155
        %v5240 = vpack.c.b16 %v3160, %v3156
        %v5241 = vpack.c.b16 %v3165, %v3161
        %v5242 = vpack.c.b16 %v3166, %v3162
        %v5243 = vpack.c.b16 %v3167, %v3163
        %v5244 = vpack.c.b16 %v3168, %v3164
        %v5245 = vpack.c.b16 %v3173, %v3169
        %v5246 = vpack.c.b16 %v3174, %v3170
        %v5247 = vpack.c.b16 %v3175, %v3171
        %v5248 = vpack.c.b16 %v3176, %v3172
        %v5249 = vpack.c.b16 %v3181, %v3177
        %v5250 = vpack.c.b16 %v3182, %v3178
        %v5251 = vpack.c.b16 %v3183, %v3179
        %v5252 = vpack.c.b16 %v3184, %v3180
        %v5253 = vpack.c.b16 %v3189, %v3185
        %v5254 = vpack.c.b16 %v3190, %v3186
        %v5255 = vpack.c.b16 %v3191, %v3187
        %v5256 = vpack.c.b16 %v3192, %v3188
        %v5257 = vpack.c.b16 %v3197, %v3193
        %v5258 = vpack.c.b16 %v3198, %v3194
        %v5259 = vpack.c.b16 %v3199, %v3195
        %v5260 = vpack.c.b16 %v3200, %v3196
        %v5261 = vpack.c.b16 %v3205, %v3201
        %v5262 = vpack.c.b16 %v3206, %v3202
        %v5263 = vpack.c.b16 %v3207, %v3203
        %v5264 = vpack.c.b16 %v3208, %v3204
        %v5265 = vpack.c.b16 %v3213, %v3209
        %v5266 = vpack.c.b16 %v3214, %v3210
        %v5267 = vpack.c.b16 %v3215, %v3211
        %v5268 = vpack.c.b16 %v3216, %v3212
        %v5269 = vpack.c.b16 %v3221, %v3217
        %v5270 = vpack.c.b16 %v3222, %v3218
        %v5271 = vpack.c.b16 %v3223, %v3219
        %v5272 = vpack.c.b16 %v3224, %v3220
        %v5273 = vpack.c.b16 %v3229, %v3225
        %v5274 = vpack.c.b16 %v3230, %v3226
        %v5275 = vpack.c.b16 %v3231, %v3227
        %v5276 = vpack.c.b16 %v3232, %v3228
        %v5277 = vpack.c.b16 %v3237, %v3233
        %v5278 = vpack.c.b16 %v3238, %v3234
        %v5279 = vpack.c.b16 %v3239, %v3235
        %v5280 = vpack.c.b16 %v3240, %v3236
        %v5281 = vpack.c.b16 %v3245, %v3241
        %v5282 = vpack.c.b16 %v3246, %v3242
        %v5283 = vpack.c.b16 %v3247, %v3243
        %v5284 = vpack.c.b16 %v3248, %v3244
        %v5285 = vpack.c.b16 %v3253, %v3249
        %v5286 = vpack.c.b16 %v3254, %v3250
        %v5287 = vpack.c.b16 %v3255, %v3251
        %v5288 = vpack.c.b16 %v3256, %v3252
        %v5289 = vpack.c.b16 %v3261, %v3257
        %v5290 = vpack.c.b16 %v3262, %v3258
        %v5291 = vpack.c.b16 %v3263, %v3259
        %v5292 = vpack.c.b16 %v3264, %v3260
        %v5293 = vpack.c.b16 %v3269, %v3265
        %v5294 = vpack.c.b16 %v3270, %v3266
        %v5295 = vpack.c.b16 %v3271, %v3267
        %v5296 = vpack.c.b16 %v3272, %v3268
        %v5297 = vpack.c.b16 %v3277, %v3273
        %v5298 = vpack.c.b16 %v3278, %v3274
        %v5299 = vpack.c.b16 %v3279, %v3275
        %v5300 = vpack.c.b16 %v3280, %v3276
        %v5301 = vpack.c.b16 %v3285, %v3281
        %v5302 = vpack.c.b16 %v3286, %v3282
        %v5303 = vpack.c.b16 %v3287, %v3283
        %v5304 = vpack.c.b16 %v3288, %v3284
        %v5305 = vpack.c.b16 %v3293, %v3289
        %v5306 = vpack.c.b16 %v3294, %v3290
        %v5307 = vpack.c.b16 %v3295, %v3291
        %v5308 = vpack.c.b16 %v3296, %v3292
        %v5309 = vpack.c.b16 %v3301, %v3297
        %v5310 = vpack.c.b16 %v3302, %v3298
        %v5311 = vpack.c.b16 %v3303, %v3299
        %v5312 = vpack.c.b16 %v3304, %v3300
        %v5313 = vpack.c.b16 %v3309, %v3305
        %v5314 = vpack.c.b16 %v3310, %v3306
        %v5315 = vpack.c.b16 %v3311, %v3307
        %v5316 = vpack.c.b16 %v3312, %v3308
        %v5317 = vpack.c.b16 %v3317, %v3313
        %v5318 = vpack.c.b16 %v3318, %v3314
        %v5319 = vpack.c.b16 %v3319, %v3315
        %v5320 = vpack.c.b16 %v3320, %v3316
        %v5321 = vpack.c.b16 %v3325, %v3321
        %v5322 = vpack.c.b16 %v3326, %v3322
        %v5323 = vpack.c.b16 %v3327, %v3323
        %v5324 = vpack.c.b16 %v3328, %v3324
        %v5325 = vpack.c.b16 %v3333, %v3329
        %v5326 = vpack.c.b16 %v3334, %v3330
        %v5327 = vpack.c.b16 %v3335, %v3331
        %v5328 = vpack.c.b16 %v3336, %v3332
        %v5329 = vpack.c.b16 %v3341, %v3337
        %v5330 = vpack.c.b16 %v3342, %v3338
        %v5331 = vpack.c.b16 %v3343, %v3339
        %v5332 = vpack.c.b16 %v3344, %v3340
        %v5333 = vpack.c.b16 %v3349, %v3345
        %v5334 = vpack.c.b16 %v3350, %v3346
        %v5335 = vpack.c.b16 %v3351, %v3347
        %v5336 = vpack.c.b16 %v3352, %v3348
        %v5337 = vpack.c.b16 %v3357, %v3353
        %v5338 = vpack.c.b16 %v3358, %v3354
        %v5339 = vpack.c.b16 %v3359, %v3355
        %v5340 = vpack.c.b16 %v3360, %v3356
        %v5341 = vpack.c.b16 %v3365, %v3361
        %v5342 = vpack.c.b16 %v3366, %v3362
        %v5343 = vpack.c.b16 %v3367, %v3363
        %v5344 = vpack.c.b16 %v3368, %v3364
        %v5345 = vpack.c.b16 %v3373, %v3369
        %v5346 = vpack.c.b16 %v3374, %v3370
        %v5347 = vpack.c.b16 %v3375, %v3371
        %v5348 = vpack.c.b16 %v3376, %v3372
        %v5349 = vpack.c.b16 %v3381, %v3377
        %v5350 = vpack.c.b16 %v3382, %v3378
        %v5351 = vpack.c.b16 %v3383, %v3379
        %v5352 = vpack.c.b16 %v3384, %v3380
        %v5353 = vpack.c.b16 %v3389, %v3385
        %v5354 = vpack.c.b16 %v3390, %v3386
        %v5355 = vpack.c.b16 %v3391, %v3387
        %v5356 = vpack.c.b16 %v3392, %v3388
        %v5357 = vpack.c.b16 %v3397, %v3393
        %v5358 = vpack.c.b16 %v3398, %v3394
        %v5359 = vpack.c.b16 %v3399, %v3395
        %v5360 = vpack.c.b16 %v3400, %v3396
        %v5361 = vpack.c.b16 %v3405, %v3401
        %v5362 = vpack.c.b16 %v3406, %v3402
        %v5363 = vpack.c.b16 %v3407, %v3403
        %v5364 = vpack.c.b16 %v3408, %v3404
        %v5365 = vpack.c.b16 %v3413, %v3409
        %v5366 = vpack.c.b16 %v3414, %v3410
        %v5367 = vpack.c.b16 %v3415, %v3411
        %v5368 = vpack.c.b16 %v3416, %v3412
        %v5369 = vpack.c.b16 %v3421, %v3417
        %v5370 = vpack.c.b16 %v3422, %v3418
        %v5371 = vpack.c.b16 %v3423, %v3419
        %v5372 = vpack.c.b16 %v3424, %v3420
        %v5373 = vpack.c.b16 %v3429, %v3425
        %v5374 = vpack.c.b16 %v3430, %v3426
        %v5375 = vpack.c.b16 %v3431, %v3427
        %v5376 = vpack.c.b16 %v3432, %v3428
        %v5377 = vpack.c.b16 %v3437, %v3433
        %v5378 = vpack.c.b16 %v3438, %v3434
        %v5379 = vpack.c.b16 %v3439, %v3435
        %v5380 = vpack.c.b16 %v3440, %v3436
        %v5381 = vpack.c.b16 %v3445, %v3441
        %v5382 = vpack.c.b16 %v3446, %v3442
        %v5383 = vpack.c.b16 %v3447, %v3443
        %v5384 = vpack.c.b16 %v3448, %v3444
        %v5385 = vpack.c.b16 %v3453, %v3449
        %v5386 = vpack.c.b16 %v3454, %v3450
        %v5387 = vpack.c.b16 %v3455, %v3451
        %v5388 = vpack.c.b16 %v3456, %v3452
        %v5389 = vpack.c.b16 %v3461, %v3457
        %v5390 = vpack.c.b16 %v3462, %v3458
        %v5391 = vpack.c.b16 %v3463, %v3459
        %v5392 = vpack.c.b16 %v3464, %v3460
        %v5393 = vpack.c.b16 %v3469, %v3465
        %v5394 = vpack.c.b16 %v3470, %v3466
        %v5395 = vpack.c.b16 %v3471, %v3467
        %v5396 = vpack.c.b16 %v3472, %v3468
        %v5397 = vpack.c.b16 %v3477, %v3473
        %v5398 = vpack.c.b16 %v3478, %v3474
        %v5399 = vpack.c.b16 %v3479, %v3475
        %v5400 = vpack.c.b16 %v3480, %v3476
        %v5401 = vpack.c.b16 %v3485, %v3481
        %v5402 = vpack.c.b16 %v3486, %v3482
        %v5403 = vpack.c.b16 %v3487, %v3483
        %v5404 = vpack.c.b16 %v3488, %v3484
        %v5405 = vpack.c.b16 %v3493, %v3489
        %v5406 = vpack.c.b16 %v3494, %v3490
        %v5407 = vpack.c.b16 %v3495, %v3491
        %v5408 = vpack.c.b16 %v3496, %v3492
        %v5409 = vpack.c.b16 %v3501, %v3497
        %v5410 = vpack.c.b16 %v3502, %v3498
        %v5411 = vpack.c.b16 %v3503, %v3499
        %v5412 = vpack.c.b16 %v3504, %v3500
        %v5413 = vpack.c.b16 %v3509, %v3505
        %v5414 = vpack.c.b16 %v3510, %v3506
        %v5415 = vpack.c.b16 %v3511, %v3507
        %v5416 = vpack.c.b16 %v3512, %v3508
        %v5417 = vpack.c.b16 %v3517, %v3513
        %v5418 = vpack.c.b16 %v3518, %v3514
        %v5419 = vpack.c.b16 %v3519, %v3515
        %v5420 = vpack.c.b16 %v3520, %v3516
        %v5421 = vpack.c.b16 %v3525, %v3521
        %v5422 = vpack.c.b16 %v3526, %v3522
        %v5423 = vpack.c.b16 %v3527, %v3523
        %v5424 = vpack.c.b16 %v3528, %v3524
        %v5425 = vpack.c.b16 %v3533, %v3529
        %v5426 = vpack.c.b16 %v3534, %v3530
        %v5427 = vpack.c.b16 %v3535, %v3531
        %v5428 = vpack.c.b16 %v3536, %v3532
        %v5429 = vpack.c.b16 %v3541, %v3537
        %v5430 = vpack.c.b16 %v3542, %v3538
        %v5431 = vpack.c.b16 %v3543, %v3539
        %v5432 = vpack.c.b16 %v3544, %v3540
        %v5433 = vpack.c.b16 %v3549, %v3545
        %v5434 = vpack.c.b16 %v3550, %v3546
        %v5435 = vpack.c.b16 %v3551, %v3547
        %v5436 = vpack.c.b16 %v3552, %v3548
        %v5437 = vpack.c.b16 %v3557, %v3553
        %v5438 = vpack.c.b16 %v3558, %v3554
        %v5439 = vpack.c.b16 %v3559, %v3555
        %v5440 = vpack.c.b16 %v3560, %v3556
        %v5441 = vpack.c.b16 %v3565, %v3561
        %v5442 = vpack.c.b16 %v3566, %v3562
        %v5443 = vpack.c.b16 %v3567, %v3563
        %v5444 = vpack.c.b16 %v3568, %v3564
        %v5445 = vpack.c.b16 %v3573, %v3569
        %v5446 = vpack.c.b16 %v3574, %v3570
        %v5447 = vpack.c.b16 %v3575, %v3571
        %v5448 = vpack.c.b16 %v3576, %v3572
        %v5449 = vpack.c.b16 %v3581, %v3577
        %v5450 = vpack.c.b16 %v3582, %v3578
        %v5451 = vpack.c.b16 %v3583, %v3579
        %v5452 = vpack.c.b16 %v3584, %v3580
        %v5453 = vpack.c.b16 %v3589, %v3585
        %v5454 = vpack.c.b16 %v3590, %v3586
        %v5455 = vpack.c.b16 %v3591, %v3587
        %v5456 = vpack.c.b16 %v3592, %v3588
        %v5457 = vpack.c.b16 %v3597, %v3593
        %v5458 = vpack.c.b16 %v3598, %v3594
        %v5459 = vpack.c.b16 %v3599, %v3595
        %v5460 = vpack.c.b16 %v3600, %v3596
        %v5461 = vpack.c.b16 %v3605, %v3601
        %v5462 = vpack.c.b16 %v3606, %v3602
        %v5463 = vpack.c.b16 %v3607, %v3603
        %v5464 = vpack.c.b16 %v3608, %v3604
        %v5465 = vpack.c.b16 %v3613, %v3609
        %v5466 = vpack.c.b16 %v3614, %v3610
        %v5467 = vpack.c.b16 %v3615, %v3611
        %v5468 = vpack.c.b16 %v3616, %v3612
        %v5469 = vpack.c.b16 %v3621, %v3617
        %v5470 = vpack.c.b16 %v3622, %v3618
        %v5471 = vpack.c.b16 %v3623, %v3619
        %v5472 = vpack.c.b16 %v3624, %v3620
        %v5473 = vpack.c.b16 %v3629, %v3625
        %v5474 = vpack.c.b16 %v3630, %v3626
        %v5475 = vpack.c.b16 %v3631, %v3627
        %v5476 = vpack.c.b16 %v3632, %v3628
        %v5477 = vpack.c.b16 %v3637, %v3633
        %v5478 = vpack.c.b16 %v3638, %v3634
        %v5479 = vpack.c.b16 %v3639, %v3635
        %v5480 = vpack.c.b16 %v3640, %v3636
        %v5481 = vpack.c.b16 %v3645, %v3641
        %v5482 = vpack.c.b16 %v3646, %v3642
        %v5483 = vpack.c.b16 %v3647, %v3643
        %v5484 = vpack.c.b16 %v3648, %v3644
        %v5485 = vpack.c.b16 %v3653, %v3649
        %v5486 = vpack.c.b16 %v3654, %v3650
        %v5487 = vpack.c.b16 %v3655, %v3651
        %v5488 = vpack.c.b16 %v3656, %v3652
        %v5489 = vpack.c.b16 %v3661, %v3657
        %v5490 = vpack.c.b16 %v3662, %v3658
        %v5491 = vpack.c.b16 %v3663, %v3659
        %v5492 = vpack.c.b16 %v3664, %v3660
        %v5493 = vpack.c.b16 %v3669, %v3665
        %v5494 = vpack.c.b16 %v3670, %v3666
        %v5495 = vpack.c.b16 %v3671, %v3667
        %v5496 = vpack.c.b16 %v3672, %v3668
        %v5497 = vpack.c.b16 %v3677, %v3673
        %v5498 = vpack.c.b16 %v3678, %v3674
        %v5499 = vpack.c.b16 %v3679, %v3675
        %v5500 = vpack.c.b16 %v3680, %v3676
        %v5501 = vpack.c.b16 %v3685, %v3681
        %v5502 = vpack.c.b16 %v3686, %v3682
        %v5503 = vpack.c.b16 %v3687, %v3683
        %v5504 = vpack.c.b16 %v3688, %v3684
        %v5505 = vpack.c.b16 %v3693, %v3689
        %v5506 = vpack.c.b16 %v3694, %v3690
        %v5507 = vpack.c.b16 %v3695, %v3691
        %v5508 = vpack.c.b16 %v3696, %v3692
        %v5509 = vpack.c.b16 %v3701, %v3697
        %v5510 = vpack.c.b16 %v3702, %v3698
        %v5511 = vpack.c.b16 %v3703, %v3699
        %v5512 = vpack.c.b16 %v3704, %v3700
        %v5513 = vpack.c.b16 %v3709, %v3705
        %v5514 = vpack.c.b16 %v3710, %v3706
        %v5515 = vpack.c.b16 %v3711, %v3707
        %v5516 = vpack.c.b16 %v3712, %v3708
        %v5517 = vpack.c.b16 %v3717, %v3713
        %v5518 = vpack.c.b16 %v3718, %v3714
        %v5519 = vpack.c.b16 %v3719, %v3715
        %v5520 = vpack.c.b16 %v3720, %v3716
        %v5521 = vpack.c.b16 %v3725, %v3721
        %v5522 = vpack.c.b16 %v3726, %v3722
        %v5523 = vpack.c.b16 %v3727, %v3723
        %v5524 = vpack.c.b16 %v3728, %v3724
        %v5525 = vpack.c.b16 %v3733, %v3729
        %v5526 = vpack.c.b16 %v3734, %v3730
        %v5527 = vpack.c.b16 %v3735, %v3731
        %v5528 = vpack.c.b16 %v3736, %v3732
        %v5529 = vpack.c.b16 %v3741, %v3737
        %v5530 = vpack.c.b16 %v3742, %v3738
        %v5531 = vpack.c.b16 %v3743, %v3739
        %v5532 = vpack.c.b16 %v3744, %v3740
        %v5533 = vpack.c.b16 %v3749, %v3745
        %v5534 = vpack.c.b16 %v3750, %v3746
        %v5535 = vpack.c.b16 %v3751, %v3747
        %v5536 = vpack.c.b16 %v3752, %v3748
        %v5537 = vpack.c.b16 %v3757, %v3753
        %v5538 = vpack.c.b16 %v3758, %v3754
        %v5539 = vpack.c.b16 %v3759, %v3755
        %v5540 = vpack.c.b16 %v3760, %v3756
        %v5541 = vpack.c.b16 %v3765, %v3761
        %v5542 = vpack.c.b16 %v3766, %v3762
        %v5543 = vpack.c.b16 %v3767, %v3763
        %v5544 = vpack.c.b16 %v3768, %v3764
        %v5545 = vpack.c.b16 %v3773, %v3769
        %v5546 = vpack.c.b16 %v3774, %v3770
        %v5547 = vpack.c.b16 %v3775, %v3771
        %v5548 = vpack.c.b16 %v3776, %v3772
        %v5549 = vpack.c.b16 %v3781, %v3777
        %v5550 = vpack.c.b16 %v3782, %v3778
        %v5551 = vpack.c.b16 %v3783, %v3779
        %v5552 = vpack.c.b16 %v3784, %v3780
        %v5553 = vpack.c.b16 %v3789, %v3785
        %v5554 = vpack.c.b16 %v3790, %v3786
        %v5555 = vpack.c.b16 %v3791, %v3787
        %v5556 = vpack.c.b16 %v3792, %v3788
        %v5557 = vpack.c.b16 %v3797, %v3793
        %v5558 = vpack.c.b16 %v3798, %v3794
        %v5559 = vpack.c.b16 %v3799, %v3795
        %v5560 = vpack.c.b16 %v3800, %v3796
        %v5561 = vpack.c.b16 %v3805, %v3801
        %v5562 = vpack.c.b16 %v3806, %v3802
        %v5563 = vpack.c.b16 %v3807, %v3803
        %v5564 = vpack.c.b16 %v3808, %v3804
        %v5565 = vpack.c.b16 %v3813, %v3809
        %v5566 = vpack.c.b16 %v3814, %v3810
        %v5567 = vpack.c.b16 %v3815, %v3811
        %v5568 = vpack.c.b16 %v3816, %v3812
        %v5569 = vpack.c.b16 %v3821, %v3817
        %v5570 = vpack.c.b16 %v3822, %v3818
        %v5571 = vpack.c.b16 %v3823, %v3819
        %v5572 = vpack.c.b16 %v3824, %v3820
        %v5573 = vpack.c.b16 %v3829, %v3825
        %v5574 = vpack.c.b16 %v3830, %v3826
        %v5575 = vpack.c.b16 %v3831, %v3827
        %v5576 = vpack.c.b16 %v3832, %v3828
        %v5577 = vpack.c.b16 %v3837, %v3833
        %v5578 = vpack.c.b16 %v3838, %v3834
        %v5579 = vpack.c.b16 %v3839, %v3835
        %v5580 = vpack.c.b16 %v3840, %v3836
        %v5581 = vpack.c.b16 %v3845, %v3841
        %v5582 = vpack.c.b16 %v3846, %v3842
        %v5583 = vpack.c.b16 %v3847, %v3843
        %v5584 = vpack.c.b16 %v3848, %v3844
        %v5585 = vpack.c.b16 %v3853, %v3849
        %v5586 = vpack.c.b16 %v3854, %v3850
        %v5587 = vpack.c.b16 %v3855, %v3851
        %v5588 = vpack.c.b16 %v3856, %v3852
        %v5589 = vpack.c.b16 %v3861, %v3857
        %v5590 = vpack.c.b16 %v3862, %v3858
        %v5591 = vpack.c.b16 %v3863, %v3859
        %v5592 = vpack.c.b16 %v3864, %v3860
        %v5593 = vpack.c.b16 %v3869, %v3865
        %v5594 = vpack.c.b16 %v3870, %v3866
        %v5595 = vpack.c.b16 %v3871, %v3867
        %v5596 = vpack.c.b16 %v3872, %v3868
        %v5597 = vpack.c.b16 %v3877, %v3873
        %v5598 = vpack.c.b16 %v3878, %v3874
        %v5599 = vpack.c.b16 %v3879, %v3875
        %v5600 = vpack.c.b16 %v3880, %v3876
        %v5601 = vpack.c.b16 %v3885, %v3881
        %v5602 = vpack.c.b16 %v3886, %v3882
        %v5603 = vpack.c.b16 %v3887, %v3883
        %v5604 = vpack.c.b16 %v3888, %v3884
        %v5605 = vpack.c.b16 %v3893, %v3889
        %v5606 = vpack.c.b16 %v3894, %v3890
        %v5607 = vpack.c.b16 %v3895, %v3891
        %v5608 = vpack.c.b16 %v3896, %v3892
        %v5609 = vpack.c.b16 %v3901, %v3897
        %v5610 = vpack.c.b16 %v3902, %v3898
        %v5611 = vpack.c.b16 %v3903, %v3899
        %v5612 = vpack.c.b16 %v3904, %v3900
        %v5613 = vpack.c.b16 %v3909, %v3905
        %v5614 = vpack.c.b16 %v3910, %v3906
        %v5615 = vpack.c.b16 %v3911, %v3907
        %v5616 = vpack.c.b16 %v3912, %v3908
        %v5617 = vpack.c.b16 %v3917, %v3913
        %v5618 = vpack.c.b16 %v3918, %v3914
        %v5619 = vpack.c.b16 %v3919, %v3915
        %v5620 = vpack.c.b16 %v3920, %v3916
        %v5621 = vpack.c.b16 %v3925, %v3921
        %v5622 = vpack.c.b16 %v3926, %v3922
        %v5623 = vpack.c.b16 %v3927, %v3923
        %v5624 = vpack.c.b16 %v3928, %v3924
        %v5625 = vpack.c.b16 %v3933, %v3929
        %v5626 = vpack.c.b16 %v3934, %v3930
        %v5627 = vpack.c.b16 %v3935, %v3931
        %v5628 = vpack.c.b16 %v3936, %v3932
        %v5629 = vpack.c.b16 %v3941, %v3937
        %v5630 = vpack.c.b16 %v3942, %v3938
        %v5631 = vpack.c.b16 %v3943, %v3939
        %v5632 = vpack.c.b16 %v3944, %v3940
        %v5633 = vpack.c.b16 %v3949, %v3945
        %v5634 = vpack.c.b16 %v3950, %v3946
        %v5635 = vpack.c.b16 %v3951, %v3947
        %v5636 = vpack.c.b16 %v3952, %v3948
        %v5637 = vpack.c.b16 %v3957, %v3953
        %v5638 = vpack.c.b16 %v3958, %v3954
        %v5639 = vpack.c.b16 %v3959, %v3955
        %v5640 = vpack.c.b16 %v3960, %v3956
        %v5641 = vpack.c.b16 %v3965, %v3961
        %v5642 = vpack.c.b16 %v3966, %v3962
        %v5643 = vpack.c.b16 %v3967, %v3963
        %v5644 = vpack.c.b16 %v3968, %v3964
        %v5645 = vpack.c.b16 %v3973, %v3969
        %v5646 = vpack.c.b16 %v3974, %v3970
        %v5647 = vpack.c.b16 %v3975, %v3971
        %v5648 = vpack.c.b16 %v3976, %v3972
        %v5649 = vpack.c.b16 %v3981, %v3977
        %v5650 = vpack.c.b16 %v3982, %v3978
        %v5651 = vpack.c.b16 %v3983, %v3979
        %v5652 = vpack.c.b16 %v3984, %v3980
        %v5653 = vpack.c.b16 %v3989, %v3985
        %v5654 = vpack.c.b16 %v3990, %v3986
        %v5655 = vpack.c.b16 %v3991, %v3987
        %v5656 = vpack.c.b16 %v3992, %v3988
        %v5657 = vpack.c.b16 %v3997, %v3993
        %v5658 = vpack.c.b16 %v3998, %v3994
        %v5659 = vpack.c.b16 %v3999, %v3995
        %v5660 = vpack.c.b16 %v4000, %v3996
        %v5661 = vpack.c.b16 %v4005, %v4001
        %v5662 = vpack.c.b16 %v4006, %v4002
        %v5663 = vpack.c.b16 %v4007, %v4003
        %v5664 = vpack.c.b16 %v4008, %v4004
        %v5665 = vpack.c.b16 %v4013, %v4009
        %v5666 = vpack.c.b16 %v4014, %v4010
        %v5667 = vpack.c.b16 %v4015, %v4011
        %v5668 = vpack.c.b16 %v4016, %v4012
        %v5669 = vpack.c.b16 %v4021, %v4017
        %v5670 = vpack.c.b16 %v4022, %v4018
        %v5671 = vpack.c.b16 %v4023, %v4019
        %v5672 = vpack.c.b16 %v4024, %v4020
        %v5673 = vpack.c.b16 %v4029, %v4025
        %v5674 = vpack.c.b16 %v4030, %v4026
        %v5675 = vpack.c.b16 %v4031, %v4027
        %v5676 = vpack.c.b16 %v4032, %v4028
        %v5677 = vpack.c.b16 %v4037, %v4033
        %v5678 = vpack.c.b16 %v4038, %v4034
        %v5679 = vpack.c.b16 %v4039, %v4035
        %v5680 = vpack.c.b16 %v4040, %v4036
        %v5681 = vpack.c.b16 %v4045, %v4041
        %v5682 = vpack.c.b16 %v4046, %v4042
        %v5683 = vpack.c.b16 %v4047, %v4043
        %v5684 = vpack.c.b16 %v4048, %v4044
        %v5685 = vpack.c.b16 %v4053, %v4049
        %v5686 = vpack.c.b16 %v4054, %v4050
        %v5687 = vpack.c.b16 %v4055, %v4051
        %v5688 = vpack.c.b16 %v4056, %v4052
        %v5689 = vpack.c.b16 %v4061, %v4057
        %v5690 = vpack.c.b16 %v4062, %v4058
        %v5691 = vpack.c.b16 %v4063, %v4059
        %v5692 = vpack.c.b16 %v4064, %v4060
        %v5693 = vpack.c.b16 %v4069, %v4065
        %v5694 = vpack.c.b16 %v4070, %v4066
        %v5695 = vpack.c.b16 %v4071, %v4067
        %v5696 = vpack.c.b16 %v4072, %v4068
        %v5697 = vpack.c.b16 %v4077, %v4073
        %v5698 = vpack.c.b16 %v4078, %v4074
        %v5699 = vpack.c.b16 %v4079, %v4075
        %v5700 = vpack.c.b16 %v4080, %v4076
        %v5701 = vpack.c.b16 %v4085, %v4081
        %v5702 = vpack.c.b16 %v4086, %v4082
        %v5703 = vpack.c.b16 %v4087, %v4083
        %v5704 = vpack.c.b16 %v4088, %v4084
        %v5705 = vpack.c.b16 %v4093, %v4089
        %v5706 = vpack.c.b16 %v4094, %v4090
        %v5707 = vpack.c.b16 %v4095, %v4091
        %v5708 = vpack.c.b16 %v4096, %v4092
        %v5709 = vpack.c.b16 %v4101, %v4097
        %v5710 = vpack.c.b16 %v4102, %v4098
        %v5711 = vpack.c.b16 %v4103, %v4099
        %v5712 = vpack.c.b16 %v4104, %v4100
        %v5713 = vpack.c.b16 %v4109, %v4105
        %v5714 = vpack.c.b16 %v4110, %v4106
        %v5715 = vpack.c.b16 %v4111, %v4107
        %v5716 = vpack.c.b16 %v4112, %v4108
        %v5717 = vpack.c.b16 %v4117, %v4113
        %v5718 = vpack.c.b16 %v4118, %v4114
        %v5719 = vpack.c.b16 %v4119, %v4115
        %v5720 = vpack.c.b16 %v4120, %v4116
        %v5721 = vpack.c.b16 %v4125, %v4121
        %v5722 = vpack.c.b16 %v4126, %v4122
        %v5723 = vpack.c.b16 %v4127, %v4123
        %v5724 = vpack.c.b16 %v4128, %v4124
        %v5725 = vpack.c.b16 %v4133, %v4129
        %v5726 = vpack.c.b16 %v4134, %v4130
        %v5727 = vpack.c.b16 %v4135, %v4131
        %v5728 = vpack.c.b16 %v4136, %v4132
        %v5729 = vpack.c.b16 %v4141, %v4137
        %v5730 = vpack.c.b16 %v4142, %v4138
        %v5731 = vpack.c.b16 %v4143, %v4139
        %v5732 = vpack.c.b16 %v4144, %v4140
        %v5733 = vpack.c.b16 %v4149, %v4145
        %v5734 = vpack.c.b16 %v4150, %v4146
        %v5735 = vpack.c.b16 %v4151, %v4147
        %v5736 = vpack.c.b16 %v4152, %v4148
        %v5737 = vpack.c.b16 %v4157, %v4153
        %v5738 = vpack.c.b16 %v4158, %v4154
        %v5739 = vpack.c.b16 %v4159, %v4155
        %v5740 = vpack.c.b16 %v4160, %v4156
        %v5741 = vpack.c.b16 %v4165, %v4161
        %v5742 = vpack.c.b16 %v4166, %v4162
        %v5743 = vpack.c.b16 %v4167, %v4163
        %v5744 = vpack.c.b16 %v4168, %v4164
        %v5745 = vpack.c.b16 %v4173, %v4169
        %v5746 = vpack.c.b16 %v4174, %v4170
        %v5747 = vpack.c.b16 %v4175, %v4171
        %v5748 = vpack.c.b16 %v4176, %v4172
        %v5749 = vpack.c.b16 %v4181, %v4177
        %v5750 = vpack.c.b16 %v4182, %v4178
        %v5751 = vpack.c.b16 %v4183, %v4179
        %v5752 = vpack.c.b16 %v4184, %v4180
        %v5753 = vpack.c.b16 %v4189, %v4185
        %v5754 = vpack.c.b16 %v4190, %v4186
        %v5755 = vpack.c.b16 %v4191, %v4187
        %v5756 = vpack.c.b16 %v4192, %v4188
        %v5757 = vpack.c.b16 %v4197, %v4193
        %v5758 = vpack.c.b16 %v4198, %v4194
        %v5759 = vpack.c.b16 %v4199, %v4195
        %v5760 = vpack.c.b16 %v4200, %v4196
        %v5761 = vpack.c.b16 %v4205, %v4201
        %v5762 = vpack.c.b16 %v4206, %v4202
        %v5763 = vpack.c.b16 %v4207, %v4203
        %v5764 = vpack.c.b16 %v4208, %v4204
        %v5765 = vpack.c.b16 %v4213, %v4209
        %v5766 = vpack.c.b16 %v4214, %v4210
        %v5767 = vpack.c.b16 %v4215, %v4211
        %v5768 = vpack.c.b16 %v4216, %v4212
        %v5769 = vpack.c.b16 %v4221, %v4217
        %v5770 = vpack.c.b16 %v4222, %v4218
        %v5771 = vpack.c.b16 %v4223, %v4219
        %v5772 = vpack.c.b16 %v4224, %v4220
        %v5773 = vpack.c.b16 %v4229, %v4225
        %v5774 = vpack.c.b16 %v4230, %v4226
        %v5775 = vpack.c.b16 %v4231, %v4227
        %v5776 = vpack.c.b16 %v4232, %v4228
        %v5777 = vpack.c.b16 %v4237, %v4233
        %v5778 = vpack.c.b16 %v4238, %v4234
        %v5779 = vpack.c.b16 %v4239, %v4235
        %v5780 = vpack.c.b16 %v4240, %v4236
        %v5781 = vpack.c.b16 %v4245, %v4241
        %v5782 = vpack.c.b16 %v4246, %v4242
        %v5783 = vpack.c.b16 %v4247, %v4243
        %v5784 = vpack.c.b16 %v4248, %v4244
        %v5785 = vpack.c.b16 %v4253, %v4249
        %v5786 = vpack.c.b16 %v4254, %v4250
        %v5787 = vpack.c.b16 %v4255, %v4251
        %v5788 = vpack.c.b16 %v4256, %v4252
        %v5789 = vpack.c.b16 %v4261, %v4257
        %v5790 = vpack.c.b16 %v4262, %v4258
        %v5791 = vpack.c.b16 %v4263, %v4259
        %v5792 = vpack.c.b16 %v4264, %v4260
        %v5793 = vpack.c.b16 %v4269, %v4265
        %v5794 = vpack.c.b16 %v4270, %v4266
        %v5795 = vpack.c.b16 %v4271, %v4267
        %v5796 = vpack.c.b16 %v4272, %v4268
        %v5797 = vpack.c.b16 %v4277, %v4273
        %v5798 = vpack.c.b16 %v4278, %v4274
        %v5799 = vpack.c.b16 %v4279, %v4275
        %v5800 = vpack.c.b16 %v4280, %v4276
        %v5801 = vpack.c.b16 %v4285, %v4281
        %v5802 = vpack.c.b16 %v4286, %v4282
        %v5803 = vpack.c.b16 %v4287, %v4283
        %v5804 = vpack.c.b16 %v4288, %v4284
        %v5805 = vpack.c.b16 %v4293, %v4289
        %v5806 = vpack.c.b16 %v4294, %v4290
        %v5807 = vpack.c.b16 %v4295, %v4291
        %v5808 = vpack.c.b16 %v4296, %v4292
        %v5809 = vpack.c.b16 %v4301, %v4297
        %v5810 = vpack.c.b16 %v4302, %v4298
        %v5811 = vpack.c.b16 %v4303, %v4299
        %v5812 = vpack.c.b16 %v4304, %v4300
        %v5813 = vpack.c.b16 %v4309, %v4305
        %v5814 = vpack.c.b16 %v4310, %v4306
        %v5815 = vpack.c.b16 %v4311, %v4307
        %v5816 = vpack.c.b16 %v4312, %v4308
        %v5817 = vpack.c.b16 %v4317, %v4313
        %v5818 = vpack.c.b16 %v4318, %v4314
        %v5819 = vpack.c.b16 %v4319, %v4315
        %v5820 = vpack.c.b16 %v4320, %v4316
        %v5821 = vpack.c.b16 %v4325, %v4321
        %v5822 = vpack.c.b16 %v4326, %v4322
        %v5823 = vpack.c.b16 %v4327, %v4323
        %v5824 = vpack.c.b16 %v4328, %v4324
        %v5825 = vpack.c.b16 %v4333, %v4329
        %v5826 = vpack.c.b16 %v4334, %v4330
        %v5827 = vpack.c.b16 %v4335, %v4331
        %v5828 = vpack.c.b16 %v4336, %v4332
        %v5829 = vpack.c.b16 %v4341, %v4337
        %v5830 = vpack.c.b16 %v4342, %v4338
        %v5831 = vpack.c.b16 %v4343, %v4339
        %v5832 = vpack.c.b16 %v4344, %v4340
        %v5833 = vpack.c.b16 %v4349, %v4345
        %v5834 = vpack.c.b16 %v4350, %v4346
        %v5835 = vpack.c.b16 %v4351, %v4347
        %v5836 = vpack.c.b16 %v4352, %v4348
        %v5837 = vpack.c.b16 %v4357, %v4353
        %v5838 = vpack.c.b16 %v4358, %v4354
        %v5839 = vpack.c.b16 %v4359, %v4355
        %v5840 = vpack.c.b16 %v4360, %v4356
        %v5841 = vpack.c.b16 %v4365, %v4361
        %v5842 = vpack.c.b16 %v4366, %v4362
        %v5843 = vpack.c.b16 %v4367, %v4363
        %v5844 = vpack.c.b16 %v4368, %v4364
        %v5845 = vpack.c.b16 %v4373, %v4369
        %v5846 = vpack.c.b16 %v4374, %v4370
        %v5847 = vpack.c.b16 %v4375, %v4371
        %v5848 = vpack.c.b16 %v4376, %v4372
        %v5849 = vpack.c.b16 %v4381, %v4377
        %v5850 = vpack.c.b16 %v4382, %v4378
        %v5851 = vpack.c.b16 %v4383, %v4379
        %v5852 = vpack.c.b16 %v4384, %v4380
        %v5853 = vpack.c.b16 %v4389, %v4385
        %v5854 = vpack.c.b16 %v4390, %v4386
        %v5855 = vpack.c.b16 %v4391, %v4387
        %v5856 = vpack.c.b16 %v4392, %v4388
        %v5857 = vpack.c.b16 %v4397, %v4393
        %v5858 = vpack.c.b16 %v4398, %v4394
        %v5859 = vpack.c.b16 %v4399, %v4395
        %v5860 = vpack.c.b16 %v4400, %v4396
        %v5861 = vpack.c.b16 %v4405, %v4401
        %v5862 = vpack.c.b16 %v4406, %v4402
        %v5863 = vpack.c.b16 %v4407, %v4403
        %v5864 = vpack.c.b16 %v4408, %v4404
        %v5865 = vpack.c.b16 %v4413, %v4409
        %v5866 = vpack.c.b16 %v4414, %v4410
        %v5867 = vpack.c.b16 %v4415, %v4411
        %v5868 = vpack.c.b16 %v4416, %v4412
        %v5869 = vpack.c.b16 %v4421, %v4417
        %v5870 = vpack.c.b16 %v4422, %v4418
        %v5871 = vpack.c.b16 %v4423, %v4419
        %v5872 = vpack.c.b16 %v4424, %v4420
        %v5873 = vpack.c.b16 %v4429, %v4425
        %v5874 = vpack.c.b16 %v4430, %v4426
        %v5875 = vpack.c.b16 %v4431, %v4427
        %v5876 = vpack.c.b16 %v4432, %v4428
        %v5877 = vpack.c.b16 %v4437, %v4433
        %v5878 = vpack.c.b16 %v4438, %v4434
        %v5879 = vpack.c.b16 %v4439, %v4435
        %v5880 = vpack.c.b16 %v4440, %v4436
        %v5881 = vpack.c.b16 %v4445, %v4441
        %v5882 = vpack.c.b16 %v4446, %v4442
        %v5883 = vpack.c.b16 %v4447, %v4443
        %v5884 = vpack.c.b16 %v4448, %v4444
        %v5885 = vpack.c.b16 %v4453, %v4449
        %v5886 = vpack.c.b16 %v4454, %v4450
        %v5887 = vpack.c.b16 %v4455, %v4451
        %v5888 = vpack.c.b16 %v4456, %v4452
        %v5889 = vpack.c.b16 %v4461, %v4457
        %v5890 = vpack.c.b16 %v4462, %v4458
        %v5891 = vpack.c.b16 %v4463, %v4459
        %v5892 = vpack.c.b16 %v4464, %v4460
        %v5893 = vpack.c.b16 %v4469, %v4465
        %v5894 = vpack.c.b16 %v4470, %v4466
        %v5895 = vpack.c.b16 %v4471, %v4467
        %v5896 = vpack.c.b16 %v4472, %v4468
        %v5897 = vpack.c.b16 %v4477, %v4473
        %v5898 = vpack.c.b16 %v4478, %v4474
        %v5899 = vpack.c.b16 %v4479, %v4475
        %v5900 = vpack.c.b16 %v4480, %v4476
        %v5901 = vpack.c.b16 %v4485, %v4481
        %v5902 = vpack.c.b16 %v4486, %v4482
        %v5903 = vpack.c.b16 %v4487, %v4483
        %v5904 = vpack.c.b16 %v4488, %v4484
        %v5905 = vpack.c.b16 %v4493, %v4489
        %v5906 = vpack.c.b16 %v4494, %v4490
        %v5907 = vpack.c.b16 %v4495, %v4491
        %v5908 = vpack.c.b16 %v4496, %v4492
        %v5909 = vpack.c.b16 %v4501, %v4497
        %v5910 = vpack.c.b16 %v4502, %v4498
        %v5911 = vpack.c.b16 %v4503, %v4499
        %v5912 = vpack.c.b16 %v4504, %v4500
        %v5913 = vpack.c.b16 %v4509, %v4505
        %v5914 = vpack.c.b16 %v4510, %v4506
        %v5915 = vpack.c.b16 %v4511, %v4507
        %v5916 = vpack.c.b16 %v4512, %v4508
        %v5917 = vpack.c.b16 %v4517, %v4513
        %v5918 = vpack.c.b16 %v4518, %v4514
        %v5919 = vpack.c.b16 %v4519, %v4515
        %v5920 = vpack.c.b16 %v4520, %v4516
        %v5921 = vpack.c.b16 %v4525, %v4521
        %v5922 = vpack.c.b16 %v4526, %v4522
        %v5923 = vpack.c.b16 %v4527, %v4523
        %v5924 = vpack.c.b16 %v4528, %v4524
        %v5925 = vpack.c.b16 %v4533, %v4529
        %v5926 = vpack.c.b16 %v4534, %v4530
        %v5927 = vpack.c.b16 %v4535, %v4531
        %v5928 = vpack.c.b16 %v4536, %v4532
        %v5929 = vpack.c.b16 %v4541, %v4537
        %v5930 = vpack.c.b16 %v4542, %v4538
        %v5931 = vpack.c.b16 %v4543, %v4539
        %v5932 = vpack.c.b16 %v4544, %v4540
        %v5933 = vpack.c.b16 %v4549, %v4545
        %v5934 = vpack.c.b16 %v4550, %v4546
        %v5935 = vpack.c.b16 %v4551, %v4547
        %v5936 = vpack.c.b16 %v4552, %v4548
        %v5937 = vpack.c.b16 %v4557, %v4553
        %v5938 = vpack.c.b16 %v4558, %v4554
        %v5939 = vpack.c.b16 %v4559, %v4555
        %v5940 = vpack.c.b16 %v4560, %v4556
        %v5941 = vpack.c.b16 %v4565, %v4561
        %v5942 = vpack.c.b16 %v4566, %v4562
        %v5943 = vpack.c.b16 %v4567, %v4563
        %v5944 = vpack.c.b16 %v4568, %v4564
        %v5945 = vpack.c.b16 %v4573, %v4569
        %v5946 = vpack.c.b16 %v4574, %v4570
        %v5947 = vpack.c.b16 %v4575, %v4571
        %v5948 = vpack.c.b16 %v4576, %v4572
        %v5949 = vpack.c.b16 %v4581, %v4577
        %v5950 = vpack.c.b16 %v4582, %v4578
        %v5951 = vpack.c.b16 %v4583, %v4579
        %v5952 = vpack.c.b16 %v4584, %v4580
        %v5953 = vpack.c.b16 %v4589, %v4585
        %v5954 = vpack.c.b16 %v4590, %v4586
        %v5955 = vpack.c.b16 %v4591, %v4587
        %v5956 = vpack.c.b16 %v4592, %v4588
        %v5957 = vpack.c.b16 %v4597, %v4593
        %v5958 = vpack.c.b16 %v4598, %v4594
        %v5959 = vpack.c.b16 %v4599, %v4595
        %v5960 = vpack.c.b16 %v4600, %v4596
        %v5961 = vpack.c.b16 %v4605, %v4601
        %v5962 = vpack.c.b16 %v4606, %v4602
        %v5963 = vpack.c.b16 %v4607, %v4603
        %v5964 = vpack.c.b16 %v4608, %v4604
        %v5965 = vpack.c.b16 %v4613, %v4609
        %v5966 = vpack.c.b16 %v4614, %v4610
        %v5967 = vpack.c.b16 %v4615, %v4611
        %v5968 = vpack.c.b16 %v4616, %v4612
        %v5969 = vpack.c.b16 %v4621, %v4617
        %v5970 = vpack.c.b16 %v4622, %v4618
        %v5971 = vpack.c.b16 %v4623, %v4619
        %v5972 = vpack.c.b16 %v4624, %v4620
        %v5973 = vpack.c.b16 %v4629, %v4625
        %v5974 = vpack.c.b16 %v4630, %v4626
        %v5975 = vpack.c.b16 %v4631, %v4627
        %v5976 = vpack.c.b16 %v4632, %v4628
        %v5977 = vpack.c.b16 %v4637, %v4633
        %v5978 = vpack.c.b16 %v4638, %v4634
        %v5979 = vpack.c.b16 %v4639, %v4635
        %v5980 = vpack.c.b16 %v4640, %v4636
        %v5981 = vpack.c.b16 %v4645, %v4641
        %v5982 = vpack.c.b16 %v4646, %v4642
        %v5983 = vpack.c.b16 %v4647, %v4643
        %v5984 = vpack.c.b16 %v4648, %v4644
        %v5985 = vpack.c.b16 %v4653, %v4649
        %v5986 = vpack.c.b16 %v4654, %v4650
        %v5987 = vpack.c.b16 %v4655, %v4651
        %v5988 = vpack.c.b16 %v4656, %v4652
        %v5989 = vpack.c.b16 %v4661, %v4657
        %v5990 = vpack.c.b16 %v4662, %v4658
        %v5991 = vpack.c.b16 %v4663, %v4659
        %v5992 = vpack.c.b16 %v4664, %v4660
        %v5993 = vpack.c.b16 %v4669, %v4665
        %v5994 = vpack.c.b16 %v4670, %v4666
        %v5995 = vpack.c.b16 %v4671, %v4667
        %v5996 = vpack.c.b16 %v4672, %v4668
        %v5997 = vpack.c.b16 %v4677, %v4673
        %v5998 = vpack.c.b16 %v4678, %v4674
        %v5999 = vpack.c.b16 %v4679, %v4675
        %v6000 = vpack.c.b16 %v4680, %v4676
        %v6001 = vpack.c.b16 %v4685, %v4681
        %v6002 = vpack.c.b16 %v4686, %v4682
        %v6003 = vpack.c.b16 %v4687, %v4683
        %v6004 = vpack.c.b16 %v4688, %v4684
        %v6005 = vpack.c.b16 %v4693, %v4689
        %v6006 = vpack.c.b16 %v4694, %v4690
        %v6007 = vpack.c.b16 %v4695, %v4691
        %v6008 = vpack.c.b16 %v4696, %v4692
        %v6009 = vpack.c.b16 %v4701, %v4697
        %v6010 = vpack.c.b16 %v4702, %v4698
        %v6011 = vpack.c.b16 %v4703, %v4699
        %v6012 = vpack.c.b16 %v4704, %v4700
        %v6013 = vpack.c.b16 %v4709, %v4705
        %v6014 = vpack.c.b16 %v4710, %v4706
        %v6015 = vpack.c.b16 %v4711, %v4707
        %v6016 = vpack.c.b16 %v4712, %v4708
        %v6017 = vpack.c.b16 %v4717, %v4713
        %v6018 = vpack.c.b16 %v4718, %v4714
        %v6019 = vpack.c.b16 %v4719, %v4715
        %v6020 = vpack.c.b16 %v4720, %v4716
        %v6021 = vpack.c.b16 %v4725, %v4721
        %v6022 = vpack.c.b16 %v4726, %v4722
        %v6023 = vpack.c.b16 %v4727, %v4723
        %v6024 = vpack.c.b16 %v4728, %v4724
        %v6025 = vpack.c.b16 %v4733, %v4729
        %v6026 = vpack.c.b16 %v4734, %v4730
        %v6027 = vpack.c.b16 %v4735, %v4731
        %v6028 = vpack.c.b16 %v4736, %v4732
        %v6029 = vpack.c.b16 %v4741, %v4737
        %v6030 = vpack.c.b16 %v4742, %v4738
        %v6031 = vpack.c.b16 %v4743, %v4739
        %v6032 = vpack.c.b16 %v4744, %v4740
        %v6033 = vpack.c.b16 %v4749, %v4745
        %v6034 = vpack.c.b16 %v4750, %v4746
        %v6035 = vpack.c.b16 %v4751, %v4747
        %v6036 = vpack.c.b16 %v4752, %v4748
        %v6037 = vpack.c.b16 %v4757, %v4753
        %v6038 = vpack.c.b16 %v4758, %v4754
        %v6039 = vpack.c.b16 %v4759, %v4755
        %v6040 = vpack.c.b16 %v4760, %v4756
        %v6041 = vpack.c.b16 %v4765, %v4761
        %v6042 = vpack.c.b16 %v4766, %v4762
        %v6043 = vpack.c.b16 %v4767, %v4763
        %v6044 = vpack.c.b16 %v4768, %v4764
        %v6045 = vpack.c.b16 %v4773, %v4769
        %v6046 = vpack.c.b16 %v4774, %v4770
        %v6047 = vpack.c.b16 %v4775, %v4771
        %v6048 = vpack.c.b16 %v4776, %v4772
        %v6049 = vpack.c.b16 %v4781, %v4777
        %v6050 = vpack.c.b16 %v4782, %v4778
        %v6051 = vpack.c.b16 %v4783, %v4779
        %v6052 = vpack.c.b16 %v4784, %v4780
        %v6053 = vpack.c.b16 %v4789, %v4785
        %v6054 = vpack.c.b16 %v4790, %v4786
        %v6055 = vpack.c.b16 %v4791, %v4787
        %v6056 = vpack.c.b16 %v4792, %v4788
        %v6057 = vpack.c.b16 %v4797, %v4793
        %v6058 = vpack.c.b16 %v4798, %v4794
        %v6059 = vpack.c.b16 %v4799, %v4795
        %v6060 = vpack.c.b16 %v4800, %v4796
        %v6061 = vpack.c.b16 %v4805, %v4801
        %v6062 = vpack.c.b16 %v4806, %v4802
        %v6063 = vpack.c.b16 %v4807, %v4803
        %v6064 = vpack.c.b16 %v4808, %v4804
        %v6065 = vpack.c.b16 %v4813, %v4809
        %v6066 = vpack.c.b16 %v4814, %v4810
        %v6067 = vpack.c.b16 %v4815, %v4811
        %v6068 = vpack.c.b16 %v4816, %v4812
        %v6069 = vpack.c.b16 %v4821, %v4817
        %v6070 = vpack.c.b16 %v4822, %v4818
        %v6071 = vpack.c.b16 %v4823, %v4819
        %v6072 = vpack.c.b16 %v4824, %v4820
        %v6073 = vpack.c.b16 %v4829, %v4825
        %v6074 = vpack.c.b16 %v4830, %v4826
        %v6075 = vpack.c.b16 %v4831, %v4827
        %v6076 = vpack.c.b16 %v4832, %v4828
        %v6077 = vpack.c.b16 %v4837, %v4833
        %v6078 = vpack.c.b16 %v4838, %v4834
        %v6079 = vpack.c.b16 %v4839, %v4835
        %v6080 = vpack.c.b16 %v4840, %v4836
        %v6081 = vpack.c.b16 %v4845, %v4841
        %v6082 = vpack.c.b16 %v4846, %v4842
        %v6083 = vpack.c.b16 %v4847, %v4843
        %v6084 = vpack.c.b16 %v4848, %v4844
        %v6085 = vpack.c.b16 %v4853, %v4849
        %v6086 = vpack.c.b16 %v4854, %v4850
        %v6087 = vpack.c.b16 %v4855, %v4851
        %v6088 = vpack.c.b16 %v4856, %v4852
        %v6089 = vpack.c.b16 %v4861, %v4857
        %v6090 = vpack.c.b16 %v4862, %v4858
        %v6091 = vpack.c.b16 %v4863, %v4859
        %v6092 = vpack.c.b16 %v4864, %v4860
        %v6093 = vpack.c.b16 %v4869, %v4865
        %v6094 = vpack.c.b16 %v4870, %v4866
        %v6095 = vpack.c.b16 %v4871, %v4867
        %v6096 = vpack.c.b16 %v4872, %v4868
        %v6097 = vpack.c.b16 %v4877, %v4873
        %v6098 = vpack.c.b16 %v4878, %v4874
        %v6099 = vpack.c.b16 %v4879, %v4875
        %v6100 = vpack.c.b16 %v4880, %v4876
        %v6101 = vpack.c.b16 %v4885, %v4881
        %v6102 = vpack.c.b16 %v4886, %v4882
        %v6103 = vpack.c.b16 %v4887, %v4883
        %v6104 = vpack.c.b16 %v4888, %v4884
        %v6105 = vpack.c.b16 %v4893, %v4889
        %v6106 = vpack.c.b16 %v4894, %v4890
        %v6107 = vpack.c.b16 %v4895, %v4891
        %v6108 = vpack.c.b16 %v4896, %v4892
        %v6109 = vpack.c.b16 %v4901, %v4897
        %v6110 = vpack.c.b16 %v4902, %v4898
        %v6111 = vpack.c.b16 %v4903, %v4899
        %v6112 = vpack.c.b16 %v4904, %v4900
        %v6113 = vpack.c.b16 %v4909, %v4905
        %v6114 = vpack.c.b16 %v4910, %v4906
        %v6115 = vpack.c.b16 %v4911, %v4907
        %v6116 = vpack.c.b16 %v4912, %v4908
        %v6117 = vpack.c.b16 %v4917, %v4913
        %v6118 = vpack.c.b16 %v4918, %v4914
        %v6119 = vpack.c.b16 %v4919, %v4915
        %v6120 = vpack.c.b16 %v4920, %v4916
        %v6121 = vpack.c.b16 %v4925, %v4921
        %v6122 = vpack.c.b16 %v4926, %v4922
        %v6123 = vpack.c.b16 %v4927, %v4923
        %v6124 = vpack.c.b16 %v4928, %v4924
        %v6125 = vpack.c.b16 %v4933, %v4929
        %v6126 = vpack.c.b16 %v4934, %v4930
        %v6127 = vpack.c.b16 %v4935, %v4931
        %v6128 = vpack.c.b16 %v4936, %v4932
        %v6129 = vpack.c.b16 %v4941, %v4937
        %v6130 = vpack.c.b16 %v4942, %v4938
        %v6131 = vpack.c.b16 %v4943, %v4939
        %v6132 = vpack.c.b16 %v4944, %v4940
        %v6133 = vpack.c.b16 %v4949, %v4945
        %v6134 = vpack.c.b16 %v4950, %v4946
        %v6135 = vpack.c.b16 %v4951, %v4947
        %v6136 = vpack.c.b16 %v4952, %v4948
        %v6137 = vpack.c.b16 %v4957, %v4953
        %v6138 = vpack.c.b16 %v4958, %v4954
        %v6139 = vpack.c.b16 %v4959, %v4955
        %v6140 = vpack.c.b16 %v4960, %v4956
        %v6141 = vpack.c.b16 %v4965, %v4961
        %v6142 = vpack.c.b16 %v4966, %v4962
        %v6143 = vpack.c.b16 %v4967, %v4963
        %v6144 = vpack.c.b16 %v4968, %v4964
        %v6145 = vpack.c.b16 %v4973, %v4969
        %v6146 = vpack.c.b16 %v4974, %v4970
        %v6147 = vpack.c.b16 %v4975, %v4971
        %v6148 = vpack.c.b16 %v4976, %v4972
        %v6149 = vpack.c.b16 %v4981, %v4977
        %v6150 = vpack.c.b16 %v4982, %v4978
        %v6151 = vpack.c.b16 %v4983, %v4979
        %v6152 = vpack.c.b16 %v4984, %v4980
        %v6153 = vpack.c.b16 %v4989, %v4985
        %v6154 = vpack.c.b16 %v4990, %v4986
        %v6155 = vpack.c.b16 %v4991, %v4987
        %v6156 = vpack.c.b16 %v4992, %v4988
        %v6157 = vpack.c.b16 %v4997, %v4993
        %v6158 = vpack.c.b16 %v4998, %v4994
        %v6159 = vpack.c.b16 %v4999, %v4995
        %v6160 = vpack.c.b16 %v5000, %v4996
        %v6161 = vpack.c.b16 %v5005, %v5001
        %v6162 = vpack.c.b16 %v5006, %v5002
        %v6163 = vpack.c.b16 %v5007, %v5003
        %v6164 = vpack.c.b16 %v5008, %v5004
        %v6165 = vpack.c.b16 %v5013, %v5009
        %v6166 = vpack.c.b16 %v5014, %v5010
        %v6167 = vpack.c.b16 %v5015, %v5011
        %v6168 = vpack.c.b16 %v5016, %v5012
        %v6169 = vpack.c.b16 %v5021, %v5017
        %v6170 = vpack.c.b16 %v5022, %v5018
        %v6171 = vpack.c.b16 %v5023, %v5019
        %v6172 = vpack.c.b16 %v5024, %v5020
        %v6173 = vpack.c.b16 %v5029, %v5025
        %v6174 = vpack.c.b16 %v5030, %v5026
        %v6175 = vpack.c.b16 %v5031, %v5027
        %v6176 = vpack.c.b16 %v5032, %v5028
        %v6177 = vpack.c.b16 %v5037, %v5033
        %v6178 = vpack.c.b16 %v5038, %v5034
        %v6179 = vpack.c.b16 %v5039, %v5035
        %v6180 = vpack.c.b16 %v5040, %v5036
        %v6181 = vpack.c.b16 %v5045, %v5041
        %v6182 = vpack.c.b16 %v5046, %v5042
        %v6183 = vpack.c.b16 %v5047, %v5043
        %v6184 = vpack.c.b16 %v5048, %v5044
        %v6185 = vpack.c.b16 %v5053, %v5049
        %v6186 = vpack.c.b16 %v5054, %v5050
        %v6187 = vpack.c.b16 %v5055, %v5051
        %v6188 = vpack.c.b16 %v5056, %v5052
        %v6189 = vpack.c.b16 %v5061, %v5057
        %v6190 = vpack.c.b16 %v5062, %v5058
        %v6191 = vpack.c.b16 %v5063, %v5059
        %v6192 = vpack.c.b16 %v5064, %v5060
        %v6193 = vpack.c.b16 %v5069, %v5065
        %v6194 = vpack.c.b16 %v5070, %v5066
        %v6195 = vpack.c.b16 %v5071, %v5067
        %v6196 = vpack.c.b16 %v5072, %v5068
        %v6197 = vpack.c.b16 %v5077, %v5073
        %v6198 = vpack.c.b16 %v5078, %v5074
        %v6199 = vpack.c.b16 %v5079, %v5075
        %v6200 = vpack.c.b16 %v5080, %v5076
        %7321 = vmatprep.subr.bf16.mxu0 %v5110
        %7322 = vmatpush1.bf16.msra.mxu0 %v5109
        %7323 = vmatprep.subr.bf16.mxu0 %v5106
        %7324 = vmatpush1.bf16.msra.mxu0 %v5105
        %7325 = vmatprep.subr.bf16.mxu0 %v5102
        %7326 = vmatpush1.bf16.msra.mxu0 %v5101
        %7327 = vmatprep.subr.bf16.mxu0 %v5098
        %7328 = vmatpush1.bf16.msra.mxu0 %v5097
        %7329 = vmatprep.subr.bf16.mxu0 %v5094
        %7330 = vmatpush1.bf16.msra.mxu0 %v5093
        %7331 = vmatprep.subr.bf16.mxu0 %v5090
        %7332 = vmatpush1.bf16.msra.mxu0 %v5089
        %7333 = vmatprep.subr.bf16.mxu0 %v5086
        %7334 = vmatpush1.bf16.msra.mxu0 %v5085
        %7335 = vmatprep.subr.bf16.mxu0 %v5082
        %7336 = vmatpush1.bf16.msra.mxu0 %v5081
        %7337 = vmatprep.subr.bf16.mxu0 %v5142
        %7338 = vmatpush2.bf16.msra.mxu0 %v5141
        %7339 = vmatprep.subr.bf16.mxu0 %v5138
        %7340 = vmatpush2.bf16.msra.mxu0 %v5137
        %7341 = vmatprep.subr.bf16.mxu0 %v5134
        %7342 = vmatpush2.bf16.msra.mxu0 %v5133
        %7343 = vmatprep.subr.bf16.mxu0 %v5130
        %7344 = vmatpush2.bf16.msra.mxu0 %v5129
        %7345 = vmatprep.subr.bf16.mxu0 %v5126
        %7346 = vmatpush2.bf16.msra.mxu0 %v5125
        %7347 = vmatprep.subr.bf16.mxu0 %v5122
        %7348 = vmatpush2.bf16.msra.mxu0 %v5121
        %7349 = vmatprep.subr.bf16.mxu0 %v5118
        %7350 = vmatpush2.bf16.msra.mxu0 %v5117
        %7351 = vmatprep.subr.bf16.mxu0 %v5114
        %7352 = vmatpush2.bf16.msra.mxu0 %v5113
        %7353 = vmatprep.mubr.bf16.mxu0 %v1504
        %7354 = vmatmul.mubr.bf16.gmra.mxu0 %v1490
        %v7355 = vpop.f32.mrf.mxu0
        %v7356 = vadd.f32 0.0, %v7355
        %v7357 = vpop.f32.mrf.mxu0
        %v7358 = vadd.f32 0.0, %v7357
        %v7359 = vpop.f32.mrf.mxu0
        %v7360 = vpop.f32.mrf.mxu0
        %7361 = vdwg.mxu0
        %7362 = vmatprep.subr.bf16.mxu0 %v5174
        %7363 = vmatpush1.bf16.msra.mxu0 %v5173
        %7364 = vmatprep.subr.bf16.mxu0 %v5170
        %7365 = vmatpush1.bf16.msra.mxu0 %v5169
        %7366 = vmatprep.subr.bf16.mxu0 %v5166
        %7367 = vmatpush1.bf16.msra.mxu0 %v5165
        %7368 = vmatprep.subr.bf16.mxu0 %v5162
        %7369 = vmatpush1.bf16.msra.mxu0 %v5161
        %7370 = vmatprep.subr.bf16.mxu0 %v5158
        %7371 = vmatpush1.bf16.msra.mxu0 %v5157
        %7372 = vmatprep.subr.bf16.mxu0 %v5154
        %7373 = vmatpush1.bf16.msra.mxu0 %v5153
        %7374 = vmatprep.subr.bf16.mxu0 %v5150
        %7375 = vmatpush1.bf16.msra.mxu0 %v5149
        %7376 = vmatprep.subr.bf16.mxu0 %v5146
        %7377 = vmatpush1.bf16.msra.mxu0 %v5145
        %7378 = vmatprep.subr.bf16.mxu0 %v5206
        %7379 = vmatpush2.bf16.msra.mxu0 %v5205
        %7380 = vmatprep.subr.bf16.mxu0 %v5202
        %7381 = vmatpush2.bf16.msra.mxu0 %v5201
        %7382 = vmatprep.subr.bf16.mxu0 %v5198
        %7383 = vmatpush2.bf16.msra.mxu0 %v5197
        %7384 = vmatprep.subr.bf16.mxu0 %v5194
        %7385 = vmatpush2.bf16.msra.mxu0 %v5193
        %7386 = vmatprep.subr.bf16.mxu0 %v5190
        %7387 = vmatpush2.bf16.msra.mxu0 %v5189
        %7388 = vmatprep.subr.bf16.mxu0 %v5186
        %7389 = vmatpush2.bf16.msra.mxu0 %v5185
        %7390 = vmatprep.subr.bf16.mxu0 %v5182
        %7391 = vmatpush2.bf16.msra.mxu0 %v5181
        %7392 = vmatprep.subr.bf16.mxu0 %v5178
        %7393 = vmatpush2.bf16.msra.mxu0 %v5177
        %7394 = vmatprep.mubr.bf16.mxu0 %v1514
        %7395 = vmatmul.mubr.bf16.gmra.mxu0 %v1512
        %v7396 = vpop.f32.mrf.mxu0
        %v7397 = vadd.f32 %v7356, %v7396
        %v7398 = vpop.f32.mrf.mxu0
        %v7399 = vadd.f32 %v7358, %v7398
        %v7400 = vpop.f32.mrf.mxu0
        %v7401 = vpop.f32.mrf.mxu0
        %7402 = vdwg.mxu0
        %7403 = vmatprep.subr.bf16.mxu0 %v5238
        %7404 = vmatpush1.bf16.msra.mxu0 %v5237
        %7405 = vmatprep.subr.bf16.mxu0 %v5234
        %7406 = vmatpush1.bf16.msra.mxu0 %v5233
        %7407 = vmatprep.subr.bf16.mxu0 %v5230
        %7408 = vmatpush1.bf16.msra.mxu0 %v5229
        %7409 = vmatprep.subr.bf16.mxu0 %v5226
        %7410 = vmatpush1.bf16.msra.mxu0 %v5225
        %7411 = vmatprep.subr.bf16.mxu0 %v5222
        %7412 = vmatpush1.bf16.msra.mxu0 %v5221
        %7413 = vmatprep.subr.bf16.mxu0 %v5218
        %7414 = vmatpush1.bf16.msra.mxu0 %v5217
        %7415 = vmatprep.subr.bf16.mxu0 %v5214
        %7416 = vmatpush1.bf16.msra.mxu0 %v5213
        %7417 = vmatprep.subr.bf16.mxu0 %v5210
        %7418 = vmatpush1.bf16.msra.mxu0 %v5209
        %7419 = vmatprep.subr.bf16.mxu0 %v5270
        %7420 = vmatpush2.bf16.msra.mxu0 %v5269
        %7421 = vmatprep.subr.bf16.mxu0 %v5266
        %7422 = vmatpush2.bf16.msra.mxu0 %v5265
        %7423 = vmatprep.subr.bf16.mxu0 %v5262
        %7424 = vmatpush2.bf16.msra.mxu0 %v5261
        %7425 = vmatprep.subr.bf16.mxu0 %v5258
        %7426 = vmatpush2.bf16.msra.mxu0 %v5257
        %7427 = vmatprep.subr.bf16.mxu0 %v5254
        %7428 = vmatpush2.bf16.msra.mxu0 %v5253
        %7429 = vmatprep.subr.bf16.mxu0 %v5250
        %7430 = vmatpush2.bf16.msra.mxu0 %v5249
        %7431 = vmatprep.subr.bf16.mxu0 %v5246
        %7432 = vmatpush2.bf16.msra.mxu0 %v5245
        %7433 = vmatprep.subr.bf16.mxu0 %v5242
        %7434 = vmatpush2.bf16.msra.mxu0 %v5241
        %7435 = vmatprep.mubr.bf16.mxu0 %v1511
        %7436 = vmatmul.mubr.bf16.gmra.mxu0 %v1497
        %v7437 = vpop.f32.mrf.mxu0
        %v7438 = vadd.f32 %v7397, %v7437
        %v7439 = vpop.f32.mrf.mxu0
        %v7440 = vadd.f32 %v7399, %v7439
        %v7441 = vpop.f32.mrf.mxu0
        %v7442 = vpop.f32.mrf.mxu0
        %7443 = vdwg.mxu0
        %7444 = vmatprep.subr.bf16.mxu0 %v5302
        %7445 = vmatpush1.bf16.msra.mxu0 %v5301
        %7446 = vmatprep.subr.bf16.mxu0 %v5298
        %7447 = vmatpush1.bf16.msra.mxu0 %v5297
        %7448 = vmatprep.subr.bf16.mxu0 %v5294
        %7449 = vmatpush1.bf16.msra.mxu0 %v5293
        %7450 = vmatprep.subr.bf16.mxu0 %v5290
        %7451 = vmatpush1.bf16.msra.mxu0 %v5289
        %7452 = vmatprep.subr.bf16.mxu0 %v5286
        %7453 = vmatpush1.bf16.msra.mxu0 %v5285
        %7454 = vmatprep.subr.bf16.mxu0 %v5282
        %7455 = vmatpush1.bf16.msra.mxu0 %v5281
        %7456 = vmatprep.subr.bf16.mxu0 %v5278
        %7457 = vmatpush1.bf16.msra.mxu0 %v5277
        %7458 = vmatprep.subr.bf16.mxu0 %v5274
        %7459 = vmatpush1.bf16.msra.mxu0 %v5273
        %7460 = vmatprep.subr.bf16.mxu0 %v5334
        %7461 = vmatpush2.bf16.msra.mxu0 %v5333
        %7462 = vmatprep.subr.bf16.mxu0 %v5330
        %7463 = vmatpush2.bf16.msra.mxu0 %v5329
        %7464 = vmatprep.subr.bf16.mxu0 %v5326
        %7465 = vmatpush2.bf16.msra.mxu0 %v5325
        %7466 = vmatprep.subr.bf16.mxu0 %v5322
        %7467 = vmatpush2.bf16.msra.mxu0 %v5321
        %7468 = vmatprep.subr.bf16.mxu0 %v5318
        %7469 = vmatpush2.bf16.msra.mxu0 %v5317
        %7470 = vmatprep.subr.bf16.mxu0 %v5314
        %7471 = vmatpush2.bf16.msra.mxu0 %v5313
        %7472 = vmatprep.subr.bf16.mxu0 %v5310
        %7473 = vmatpush2.bf16.msra.mxu0 %v5309
        %7474 = vmatprep.subr.bf16.mxu0 %v5306
        %7475 = vmatpush2.bf16.msra.mxu0 %v5305
        %7476 = vmatprep.mubr.bf16.mxu0 %v1515
        %7477 = vmatmul.mubr.bf16.gmra.mxu0 %v1513
        %v7478 = vpop.f32.mrf.mxu0
        %v7479 = vadd.f32 %v7438, %v7478
        %v7480 = vpop.f32.mrf.mxu0
        %v7481 = vadd.f32 %v7440, %v7480
        %v7482 = vpop.f32.mrf.mxu0
        %v7483 = vpop.f32.mrf.mxu0
        %7484 = vdwg.mxu0
        %7485 = vmatprep.subr.bf16.mxu0 %v5366
        %7486 = vmatpush1.bf16.msra.mxu0 %v5365
        %7487 = vmatprep.subr.bf16.mxu0 %v5362
        %7488 = vmatpush1.bf16.msra.mxu0 %v5361
        %7489 = vmatprep.subr.bf16.mxu0 %v5358
        %7490 = vmatpush1.bf16.msra.mxu0 %v5357
        %7491 = vmatprep.subr.bf16.mxu0 %v5354
        %7492 = vmatpush1.bf16.msra.mxu0 %v5353
        %7493 = vmatprep.subr.bf16.mxu0 %v5350
        %7494 = vmatpush1.bf16.msra.mxu0 %v5349
        %7495 = vmatprep.subr.bf16.mxu0 %v5346
        %7496 = vmatpush1.bf16.msra.mxu0 %v5345
        %7497 = vmatprep.subr.bf16.mxu0 %v5342
        %7498 = vmatpush1.bf16.msra.mxu0 %v5341
        %7499 = vmatprep.subr.bf16.mxu0 %v5338
        %7500 = vmatpush1.bf16.msra.mxu0 %v5337
        %7501 = vmatprep.subr.bf16.mxu0 %v5398
        %7502 = vmatpush2.bf16.msra.mxu0 %v5397
        %7503 = vmatprep.subr.bf16.mxu0 %v5394
        %7504 = vmatpush2.bf16.msra.mxu0 %v5393
        %7505 = vmatprep.subr.bf16.mxu0 %v5390
        %7506 = vmatpush2.bf16.msra.mxu0 %v5389
        %7507 = vmatprep.subr.bf16.mxu0 %v5386
        %7508 = vmatpush2.bf16.msra.mxu0 %v5385
        %7509 = vmatprep.subr.bf16.mxu0 %v5382
        %7510 = vmatpush2.bf16.msra.mxu0 %v5381
        %7511 = vmatprep.subr.bf16.mxu0 %v5378
        %7512 = vmatpush2.bf16.msra.mxu0 %v5377
        %7513 = vmatprep.subr.bf16.mxu0 %v5374
        %7514 = vmatpush2.bf16.msra.mxu0 %v5373
        %7515 = vmatprep.subr.bf16.mxu0 %v5370
        %7516 = vmatpush2.bf16.msra.mxu0 %v5369
        %7517 = vmatprep.mubr.bf16.mxu0 %v1553
        %7518 = vmatmul.mubr.bf16.gmra.mxu0 %v1539
        %v7519 = vpop.f32.mrf.mxu0
        %v7520 = vadd.f32 %v7479, %v7519
        %v7521 = vpop.f32.mrf.mxu0
        %v7522 = vadd.f32 %v7481, %v7521
        %v7523 = vpop.f32.mrf.mxu0
        %v7524 = vpop.f32.mrf.mxu0
        %7525 = vdwg.mxu0
        %7526 = vmatprep.subr.bf16.mxu0 %v5430
        %7527 = vmatpush1.bf16.msra.mxu0 %v5429
        %7528 = vmatprep.subr.bf16.mxu0 %v5426
        %7529 = vmatpush1.bf16.msra.mxu0 %v5425
        %7530 = vmatprep.subr.bf16.mxu0 %v5422
        %7531 = vmatpush1.bf16.msra.mxu0 %v5421
        %7532 = vmatprep.subr.bf16.mxu0 %v5418
        %7533 = vmatpush1.bf16.msra.mxu0 %v5417
        %7534 = vmatprep.subr.bf16.mxu0 %v5414
        %7535 = vmatpush1.bf16.msra.mxu0 %v5413
        %7536 = vmatprep.subr.bf16.mxu0 %v5410
        %7537 = vmatpush1.bf16.msra.mxu0 %v5409
        %7538 = vmatprep.subr.bf16.mxu0 %v5406
        %7539 = vmatpush1.bf16.msra.mxu0 %v5405
        %7540 = vmatprep.subr.bf16.mxu0 %v5402
        %7541 = vmatpush1.bf16.msra.mxu0 %v5401
        %7542 = vmatprep.subr.bf16.mxu0 %v5462
        %7543 = vmatpush2.bf16.msra.mxu0 %v5461
        %7544 = vmatprep.subr.bf16.mxu0 %v5458
        %7545 = vmatpush2.bf16.msra.mxu0 %v5457
        %7546 = vmatprep.subr.bf16.mxu0 %v5454
        %7547 = vmatpush2.bf16.msra.mxu0 %v5453
        %7548 = vmatprep.subr.bf16.mxu0 %v5450
        %7549 = vmatpush2.bf16.msra.mxu0 %v5449
        %7550 = vmatprep.subr.bf16.mxu0 %v5446
        %7551 = vmatpush2.bf16.msra.mxu0 %v5445
        %7552 = vmatprep.subr.bf16.mxu0 %v5442
        %7553 = vmatpush2.bf16.msra.mxu0 %v5441
        %7554 = vmatprep.subr.bf16.mxu0 %v5438
        %7555 = vmatpush2.bf16.msra.mxu0 %v5437
        %7556 = vmatprep.subr.bf16.mxu0 %v5434
        %7557 = vmatpush2.bf16.msra.mxu0 %v5433
        %7558 = vmatprep.mubr.bf16.mxu0 %v1563
        %7559 = vmatmul.mubr.bf16.gmra.mxu0 %v1561
        %v7560 = vpop.f32.mrf.mxu0
        %v7561 = vadd.f32 %v7520, %v7560
        %v7562 = vpop.f32.mrf.mxu0
        %v7563 = vadd.f32 %v7522, %v7562
        %v7564 = vpop.f32.mrf.mxu0
        %v7565 = vpop.f32.mrf.mxu0
        %7566 = vdwg.mxu0
        %7567 = vmatprep.subr.bf16.mxu0 %v5494
        %7568 = vmatpush1.bf16.msra.mxu0 %v5493
        %7569 = vmatprep.subr.bf16.mxu0 %v5490
        %7570 = vmatpush1.bf16.msra.mxu0 %v5489
        %7571 = vmatprep.subr.bf16.mxu0 %v5486
        %7572 = vmatpush1.bf16.msra.mxu0 %v5485
        %7573 = vmatprep.subr.bf16.mxu0 %v5482
        %7574 = vmatpush1.bf16.msra.mxu0 %v5481
        %7575 = vmatprep.subr.bf16.mxu0 %v5478
        %7576 = vmatpush1.bf16.msra.mxu0 %v5477
        %7577 = vmatprep.subr.bf16.mxu0 %v5474
        %7578 = vmatpush1.bf16.msra.mxu0 %v5473
        %7579 = vmatprep.subr.bf16.mxu0 %v5470
        %7580 = vmatpush1.bf16.msra.mxu0 %v5469
        %7581 = vmatprep.subr.bf16.mxu0 %v5466
        %7582 = vmatpush1.bf16.msra.mxu0 %v5465
        %7583 = vmatprep.subr.bf16.mxu0 %v5526
        %7584 = vmatpush2.bf16.msra.mxu0 %v5525
        %7585 = vmatprep.subr.bf16.mxu0 %v5522
        %7586 = vmatpush2.bf16.msra.mxu0 %v5521
        %7587 = vmatprep.subr.bf16.mxu0 %v5518
        %7588 = vmatpush2.bf16.msra.mxu0 %v5517
        %7589 = vmatprep.subr.bf16.mxu0 %v5514
        %7590 = vmatpush2.bf16.msra.mxu0 %v5513
        %7591 = vmatprep.subr.bf16.mxu0 %v5510
        %7592 = vmatpush2.bf16.msra.mxu0 %v5509
        %7593 = vmatprep.subr.bf16.mxu0 %v5506
        %7594 = vmatpush2.bf16.msra.mxu0 %v5505
        %7595 = vmatprep.subr.bf16.mxu0 %v5502
        %7596 = vmatpush2.bf16.msra.mxu0 %v5501
        %7597 = vmatprep.subr.bf16.mxu0 %v5498
        %7598 = vmatpush2.bf16.msra.mxu0 %v5497
        %7599 = vmatprep.mubr.bf16.mxu0 %v1560
        %7600 = vmatmul.mubr.bf16.gmra.mxu0 %v1546
        %v7601 = vpop.f32.mrf.mxu0
        %v7602 = vadd.f32 %v7561, %v7601
        %v7603 = vpop.f32.mrf.mxu0
        %v7604 = vadd.f32 %v7563, %v7603
        %v7605 = vpop.f32.mrf.mxu0
        %v7606 = vpop.f32.mrf.mxu0
        %7607 = vdwg.mxu0
        %7608 = vmatprep.subr.bf16.mxu0 %v5558
        %7609 = vmatpush1.bf16.msra.mxu0 %v5557
        %7610 = vmatprep.subr.bf16.mxu0 %v5554
        %7611 = vmatpush1.bf16.msra.mxu0 %v5553
        %7612 = vmatprep.subr.bf16.mxu0 %v5550
        %7613 = vmatpush1.bf16.msra.mxu0 %v5549
        %7614 = vmatprep.subr.bf16.mxu0 %v5546
        %7615 = vmatpush1.bf16.msra.mxu0 %v5545
        %7616 = vmatprep.subr.bf16.mxu0 %v5542
        %7617 = vmatpush1.bf16.msra.mxu0 %v5541
        %7618 = vmatprep.subr.bf16.mxu0 %v5538
        %7619 = vmatpush1.bf16.msra.mxu0 %v5537
        %7620 = vmatprep.subr.bf16.mxu0 %v5534
        %7621 = vmatpush1.bf16.msra.mxu0 %v5533
        %7622 = vmatprep.subr.bf16.mxu0 %v5530
        %7623 = vmatpush1.bf16.msra.mxu0 %v5529
        %7624 = vmatprep.subr.bf16.mxu0 %v5590
        %7625 = vmatpush2.bf16.msra.mxu0 %v5589
        %7626 = vmatprep.subr.bf16.mxu0 %v5586
        %7627 = vmatpush2.bf16.msra.mxu0 %v5585
        %7628 = vmatprep.subr.bf16.mxu0 %v5582
        %7629 = vmatpush2.bf16.msra.mxu0 %v5581
        %7630 = vmatprep.subr.bf16.mxu0 %v5578
        %7631 = vmatpush2.bf16.msra.mxu0 %v5577
        %7632 = vmatprep.subr.bf16.mxu0 %v5574
        %7633 = vmatpush2.bf16.msra.mxu0 %v5573
        %7634 = vmatprep.subr.bf16.mxu0 %v5570
        %7635 = vmatpush2.bf16.msra.mxu0 %v5569
        %7636 = vmatprep.subr.bf16.mxu0 %v5566
        %7637 = vmatpush2.bf16.msra.mxu0 %v5565
        %7638 = vmatprep.subr.bf16.mxu0 %v5562
        %7639 = vmatpush2.bf16.msra.mxu0 %v5561
        %7640 = vmatprep.mubr.bf16.mxu0 %v1564
        %7641 = vmatmul.mubr.bf16.gmra.mxu0 %v1562
        %v7642 = vpop.f32.mrf.mxu0
        %v7643 = vadd.f32 %v7602, %v7642
        %v7644 = vpop.f32.mrf.mxu0
        %v7645 = vadd.f32 %v7604, %v7644
        %v7646 = vpop.f32.mrf.mxu0
        %v7647 = vpop.f32.mrf.mxu0
        %7648 = vdwg.mxu0
        %7649 = vmatprep.subr.bf16.mxu0 %v5622
        %7650 = vmatpush1.bf16.msra.mxu0 %v5621
        %7651 = vmatprep.subr.bf16.mxu0 %v5618
        %7652 = vmatpush1.bf16.msra.mxu0 %v5617
        %7653 = vmatprep.subr.bf16.mxu0 %v5614
        %7654 = vmatpush1.bf16.msra.mxu0 %v5613
        %7655 = vmatprep.subr.bf16.mxu0 %v5610
        %7656 = vmatpush1.bf16.msra.mxu0 %v5609
        %7657 = vmatprep.subr.bf16.mxu0 %v5606
        %7658 = vmatpush1.bf16.msra.mxu0 %v5605
        %7659 = vmatprep.subr.bf16.mxu0 %v5602
        %7660 = vmatpush1.bf16.msra.mxu0 %v5601
        %7661 = vmatprep.subr.bf16.mxu0 %v5598
        %7662 = vmatpush1.bf16.msra.mxu0 %v5597
        %7663 = vmatprep.subr.bf16.mxu0 %v5594
        %7664 = vmatpush1.bf16.msra.mxu0 %v5593
        %7665 = vmatprep.subr.bf16.mxu0 %v5654
        %7666 = vmatpush2.bf16.msra.mxu0 %v5653
        %7667 = vmatprep.subr.bf16.mxu0 %v5650
        %7668 = vmatpush2.bf16.msra.mxu0 %v5649
        %7669 = vmatprep.subr.bf16.mxu0 %v5646
        %7670 = vmatpush2.bf16.msra.mxu0 %v5645
        %7671 = vmatprep.subr.bf16.mxu0 %v5642
        %7672 = vmatpush2.bf16.msra.mxu0 %v5641
        %7673 = vmatprep.subr.bf16.mxu0 %v5638
        %7674 = vmatpush2.bf16.msra.mxu0 %v5637
        %7675 = vmatprep.subr.bf16.mxu0 %v5634
        %7676 = vmatpush2.bf16.msra.mxu0 %v5633
        %7677 = vmatprep.subr.bf16.mxu0 %v5630
        %7678 = vmatpush2.bf16.msra.mxu0 %v5629
        %7679 = vmatprep.subr.bf16.mxu0 %v5626
        %7680 = vmatpush2.bf16.msra.mxu0 %v5625
        %7681 = vmatprep.mubr.bf16.mxu0 %v1602
        %7682 = vmatmul.mubr.bf16.gmra.mxu0 %v1588
        %v7683 = vpop.f32.mrf.mxu0
        %v7684 = vadd.f32 %v7643, %v7683
        %v7685 = vpop.f32.mrf.mxu0
        %v7686 = vadd.f32 %v7645, %v7685
        %v7687 = vpop.f32.mrf.mxu0
        %v7688 = vpop.f32.mrf.mxu0
        %7689 = vdwg.mxu0
        %7690 = vmatprep.subr.bf16.mxu0 %v5686
        %7691 = vmatpush1.bf16.msra.mxu0 %v5685
        %7692 = vmatprep.subr.bf16.mxu0 %v5682
        %7693 = vmatpush1.bf16.msra.mxu0 %v5681
        %7694 = vmatprep.subr.bf16.mxu0 %v5678
        %7695 = vmatpush1.bf16.msra.mxu0 %v5677
        %7696 = vmatprep.subr.bf16.mxu0 %v5674
        %7697 = vmatpush1.bf16.msra.mxu0 %v5673
        %7698 = vmatprep.subr.bf16.mxu0 %v5670
        %7699 = vmatpush1.bf16.msra.mxu0 %v5669
        %7700 = vmatprep.subr.bf16.mxu0 %v5666
        %7701 = vmatpush1.bf16.msra.mxu0 %v5665
        %7702 = vmatprep.subr.bf16.mxu0 %v5662
        %7703 = vmatpush1.bf16.msra.mxu0 %v5661
        %7704 = vmatprep.subr.bf16.mxu0 %v5658
        %7705 = vmatpush1.bf16.msra.mxu0 %v5657
        %7706 = vmatprep.subr.bf16.mxu0 %v5718
        %7707 = vmatpush2.bf16.msra.mxu0 %v5717
        %7708 = vmatprep.subr.bf16.mxu0 %v5714
        %7709 = vmatpush2.bf16.msra.mxu0 %v5713
        %7710 = vmatprep.subr.bf16.mxu0 %v5710
        %7711 = vmatpush2.bf16.msra.mxu0 %v5709
        %7712 = vmatprep.subr.bf16.mxu0 %v5706
        %7713 = vmatpush2.bf16.msra.mxu0 %v5705
        %7714 = vmatprep.subr.bf16.mxu0 %v5702
        %7715 = vmatpush2.bf16.msra.mxu0 %v5701
        %7716 = vmatprep.subr.bf16.mxu0 %v5698
        %7717 = vmatpush2.bf16.msra.mxu0 %v5697
        %7718 = vmatprep.subr.bf16.mxu0 %v5694
        %7719 = vmatpush2.bf16.msra.mxu0 %v5693
        %7720 = vmatprep.subr.bf16.mxu0 %v5690
        %7721 = vmatpush2.bf16.msra.mxu0 %v5689
        %7722 = vmatprep.mubr.bf16.mxu0 %v1612
        %7723 = vmatmul.mubr.bf16.gmra.mxu0 %v1610
        %v7724 = vpop.f32.mrf.mxu0
        %v7725 = vadd.f32 %v7684, %v7724
        %v7726 = vpop.f32.mrf.mxu0
        %v7727 = vadd.f32 %v7686, %v7726
        %v7728 = vpop.f32.mrf.mxu0
        %v7729 = vpop.f32.mrf.mxu0
        %7730 = vdwg.mxu0
        %7731 = vmatprep.subr.bf16.mxu0 %v5750
        %7732 = vmatpush1.bf16.msra.mxu0 %v5749
        %7733 = vmatprep.subr.bf16.mxu0 %v5746
        %7734 = vmatpush1.bf16.msra.mxu0 %v5745
        %7735 = vmatprep.subr.bf16.mxu0 %v5742
        %7736 = vmatpush1.bf16.msra.mxu0 %v5741
        %7737 = vmatprep.subr.bf16.mxu0 %v5738
        %7738 = vmatpush1.bf16.msra.mxu0 %v5737
        %7739 = vmatprep.subr.bf16.mxu0 %v5734
        %7740 = vmatpush1.bf16.msra.mxu0 %v5733
        %7741 = vmatprep.subr.bf16.mxu0 %v5730
        %7742 = vmatpush1.bf16.msra.mxu0 %v5729
        %7743 = vmatprep.subr.bf16.mxu0 %v5726
        %7744 = vmatpush1.bf16.msra.mxu0 %v5725
        %7745 = vmatprep.subr.bf16.mxu0 %v5722
        %7746 = vmatpush1.bf16.msra.mxu0 %v5721
        %7747 = vmatprep.subr.bf16.mxu0 %v5782
        %7748 = vmatpush2.bf16.msra.mxu0 %v5781
        %7749 = vmatprep.subr.bf16.mxu0 %v5778
        %7750 = vmatpush2.bf16.msra.mxu0 %v5777
        %7751 = vmatprep.subr.bf16.mxu0 %v5774
        %7752 = vmatpush2.bf16.msra.mxu0 %v5773
        %7753 = vmatprep.subr.bf16.mxu0 %v5770
        %7754 = vmatpush2.bf16.msra.mxu0 %v5769
        %7755 = vmatprep.subr.bf16.mxu0 %v5766
        %7756 = vmatpush2.bf16.msra.mxu0 %v5765
        %7757 = vmatprep.subr.bf16.mxu0 %v5762
        %7758 = vmatpush2.bf16.msra.mxu0 %v5761
        %7759 = vmatprep.subr.bf16.mxu0 %v5758
        %7760 = vmatpush2.bf16.msra.mxu0 %v5757
        %7761 = vmatprep.subr.bf16.mxu0 %v5754
        %7762 = vmatpush2.bf16.msra.mxu0 %v5753
        %7763 = vmatprep.mubr.bf16.mxu0 %v1609
        %7764 = vmatmul.mubr.bf16.gmra.mxu0 %v1595
        %v7765 = vpop.f32.mrf.mxu0
        %v7766 = vadd.f32 %v7725, %v7765
        %v7767 = vpop.f32.mrf.mxu0
        %v7768 = vadd.f32 %v7727, %v7767
        %v7769 = vpop.f32.mrf.mxu0
        %v7770 = vpop.f32.mrf.mxu0
        %7771 = vdwg.mxu0
        %7772 = vmatprep.subr.bf16.mxu0 %v5814
        %7773 = vmatpush1.bf16.msra.mxu0 %v5813
        %7774 = vmatprep.subr.bf16.mxu0 %v5810
        %7775 = vmatpush1.bf16.msra.mxu0 %v5809
        %7776 = vmatprep.subr.bf16.mxu0 %v5806
        %7777 = vmatpush1.bf16.msra.mxu0 %v5805
        %7778 = vmatprep.subr.bf16.mxu0 %v5802
        %7779 = vmatpush1.bf16.msra.mxu0 %v5801
        %7780 = vmatprep.subr.bf16.mxu0 %v5798
        %7781 = vmatpush1.bf16.msra.mxu0 %v5797
        %7782 = vmatprep.subr.bf16.mxu0 %v5794
        %7783 = vmatpush1.bf16.msra.mxu0 %v5793
        %7784 = vmatprep.subr.bf16.mxu0 %v5790
        %7785 = vmatpush1.bf16.msra.mxu0 %v5789
        %7786 = vmatprep.subr.bf16.mxu0 %v5786
        %7787 = vmatpush1.bf16.msra.mxu0 %v5785
        %7788 = vmatprep.subr.bf16.mxu0 %v5846
        %7789 = vmatpush2.bf16.msra.mxu0 %v5845
        %7790 = vmatprep.subr.bf16.mxu0 %v5842
        %7791 = vmatpush2.bf16.msra.mxu0 %v5841
        %7792 = vmatprep.subr.bf16.mxu0 %v5838
        %7793 = vmatpush2.bf16.msra.mxu0 %v5837
        %7794 = vmatprep.subr.bf16.mxu0 %v5834
        %7795 = vmatpush2.bf16.msra.mxu0 %v5833
        %7796 = vmatprep.subr.bf16.mxu0 %v5830
        %7797 = vmatpush2.bf16.msra.mxu0 %v5829
        %7798 = vmatprep.subr.bf16.mxu0 %v5826
        %7799 = vmatpush2.bf16.msra.mxu0 %v5825
        %7800 = vmatprep.subr.bf16.mxu0 %v5822
        %7801 = vmatpush2.bf16.msra.mxu0 %v5821
        %7802 = vmatprep.subr.bf16.mxu0 %v5818
        %7803 = vmatpush2.bf16.msra.mxu0 %v5817
        %7804 = vmatprep.mubr.bf16.mxu0 %v1613
        %7805 = vmatmul.mubr.bf16.gmra.mxu0 %v1611
        %v7806 = vpop.f32.mrf.mxu0
        %v7807 = vadd.f32 %v7766, %v7806
        %v7808 = vpop.f32.mrf.mxu0
        %v7809 = vadd.f32 %v7768, %v7808
        %v7810 = vpop.f32.mrf.mxu0
        %v7811 = vpop.f32.mrf.mxu0
        %7812 = vdwg.mxu0
        %7813 = vmatprep.subr.bf16.mxu0 %v5878
        %7814 = vmatpush1.bf16.msra.mxu0 %v5877
        %7815 = vmatprep.subr.bf16.mxu0 %v5874
        %7816 = vmatpush1.bf16.msra.mxu0 %v5873
        %7817 = vmatprep.subr.bf16.mxu0 %v5870
        %7818 = vmatpush1.bf16.msra.mxu0 %v5869
        %7819 = vmatprep.subr.bf16.mxu0 %v5866
        %7820 = vmatpush1.bf16.msra.mxu0 %v5865
        %7821 = vmatprep.subr.bf16.mxu0 %v5862
        %7822 = vmatpush1.bf16.msra.mxu0 %v5861
        %7823 = vmatprep.subr.bf16.mxu0 %v5858
        %7824 = vmatpush1.bf16.msra.mxu0 %v5857
        %7825 = vmatprep.subr.bf16.mxu0 %v5854
        %7826 = vmatpush1.bf16.msra.mxu0 %v5853
        %7827 = vmatprep.subr.bf16.mxu0 %v5850
        %7828 = vmatpush1.bf16.msra.mxu0 %v5849
        %7829 = vmatprep.subr.bf16.mxu0 %v5910
        %7830 = vmatpush2.bf16.msra.mxu0 %v5909
        %7831 = vmatprep.subr.bf16.mxu0 %v5906
        %7832 = vmatpush2.bf16.msra.mxu0 %v5905
        %7833 = vmatprep.subr.bf16.mxu0 %v5902
        %7834 = vmatpush2.bf16.msra.mxu0 %v5901
        %7835 = vmatprep.subr.bf16.mxu0 %v5898
        %7836 = vmatpush2.bf16.msra.mxu0 %v5897
        %7837 = vmatprep.subr.bf16.mxu0 %v5894
        %7838 = vmatpush2.bf16.msra.mxu0 %v5893
        %7839 = vmatprep.subr.bf16.mxu0 %v5890
        %7840 = vmatpush2.bf16.msra.mxu0 %v5889
        %7841 = vmatprep.subr.bf16.mxu0 %v5886
        %7842 = vmatpush2.bf16.msra.mxu0 %v5885
        %7843 = vmatprep.subr.bf16.mxu0 %v5882
        %7844 = vmatpush2.bf16.msra.mxu0 %v5881
        %7845 = vmatprep.mubr.bf16.mxu0 %v1651
        %7846 = vmatmul.mubr.bf16.gmra.mxu0 %v1637
        %v7847 = vpop.f32.mrf.mxu0
        %v7848 = vadd.f32 %v7807, %v7847
        %v7849 = vpop.f32.mrf.mxu0
        %v7850 = vadd.f32 %v7809, %v7849
        %v7851 = vpop.f32.mrf.mxu0
        %v7852 = vpop.f32.mrf.mxu0
        %7853 = vdwg.mxu0
        %7854 = vmatprep.subr.bf16.mxu0 %v5942
        %7855 = vmatpush1.bf16.msra.mxu0 %v5941
        %7856 = vmatprep.subr.bf16.mxu0 %v5938
        %7857 = vmatpush1.bf16.msra.mxu0 %v5937
        %7858 = vmatprep.subr.bf16.mxu0 %v5934
        %7859 = vmatpush1.bf16.msra.mxu0 %v5933
        %7860 = vmatprep.subr.bf16.mxu0 %v5930
        %7861 = vmatpush1.bf16.msra.mxu0 %v5929
        %7862 = vmatprep.subr.bf16.mxu0 %v5926
        %7863 = vmatpush1.bf16.msra.mxu0 %v5925
        %7864 = vmatprep.subr.bf16.mxu0 %v5922
        %7865 = vmatpush1.bf16.msra.mxu0 %v5921
        %7866 = vmatprep.subr.bf16.mxu0 %v5918
        %7867 = vmatpush1.bf16.msra.mxu0 %v5917
        %7868 = vmatprep.subr.bf16.mxu0 %v5914
        %7869 = vmatpush1.bf16.msra.mxu0 %v5913
        %7870 = vmatprep.subr.bf16.mxu0 %v5974
        %7871 = vmatpush2.bf16.msra.mxu0 %v5973
        %7872 = vmatprep.subr.bf16.mxu0 %v5970
        %7873 = vmatpush2.bf16.msra.mxu0 %v5969
        %7874 = vmatprep.subr.bf16.mxu0 %v5966
        %7875 = vmatpush2.bf16.msra.mxu0 %v5965
        %7876 = vmatprep.subr.bf16.mxu0 %v5962
        %7877 = vmatpush2.bf16.msra.mxu0 %v5961
        %7878 = vmatprep.subr.bf16.mxu0 %v5958
        %7879 = vmatpush2.bf16.msra.mxu0 %v5957
        %7880 = vmatprep.subr.bf16.mxu0 %v5954
        %7881 = vmatpush2.bf16.msra.mxu0 %v5953
        %7882 = vmatprep.subr.bf16.mxu0 %v5950
        %7883 = vmatpush2.bf16.msra.mxu0 %v5949
        %7884 = vmatprep.subr.bf16.mxu0 %v5946
        %7885 = vmatpush2.bf16.msra.mxu0 %v5945
        %7886 = vmatprep.mubr.bf16.mxu0 %v1661
        %7887 = vmatmul.mubr.bf16.gmra.mxu0 %v1659
        %v7888 = vpop.f32.mrf.mxu0
        %v7889 = vadd.f32 %v7848, %v7888
        %v7890 = vpop.f32.mrf.mxu0
        %v7891 = vadd.f32 %v7850, %v7890
        %v7892 = vpop.f32.mrf.mxu0
        %v7893 = vpop.f32.mrf.mxu0
        %7894 = vdwg.mxu0
        %7895 = vmatprep.subr.bf16.mxu0 %v6006
        %7896 = vmatpush1.bf16.msra.mxu0 %v6005
        %7897 = vmatprep.subr.bf16.mxu0 %v6002
        %7898 = vmatpush1.bf16.msra.mxu0 %v6001
        %7899 = vmatprep.subr.bf16.mxu0 %v5998
        %7900 = vmatpush1.bf16.msra.mxu0 %v5997
        %7901 = vmatprep.subr.bf16.mxu0 %v5994
        %7902 = vmatpush1.bf16.msra.mxu0 %v5993
        %7903 = vmatprep.subr.bf16.mxu0 %v5990
        %7904 = vmatpush1.bf16.msra.mxu0 %v5989
        %7905 = vmatprep.subr.bf16.mxu0 %v5986
        %7906 = vmatpush1.bf16.msra.mxu0 %v5985
        %7907 = vmatprep.subr.bf16.mxu0 %v5982
        %7908 = vmatpush1.bf16.msra.mxu0 %v5981
        %7909 = vmatprep.subr.bf16.mxu0 %v5978
        %7910 = vmatpush1.bf16.msra.mxu0 %v5977
        %7911 = vmatprep.subr.bf16.mxu0 %v6038
        %7912 = vmatpush2.bf16.msra.mxu0 %v6037
        %7913 = vmatprep.subr.bf16.mxu0 %v6034
        %7914 = vmatpush2.bf16.msra.mxu0 %v6033
        %7915 = vmatprep.subr.bf16.mxu0 %v6030
        %7916 = vmatpush2.bf16.msra.mxu0 %v6029
        %7917 = vmatprep.subr.bf16.mxu0 %v6026
        %7918 = vmatpush2.bf16.msra.mxu0 %v6025
        %7919 = vmatprep.subr.bf16.mxu0 %v6022
        %7920 = vmatpush2.bf16.msra.mxu0 %v6021
        %7921 = vmatprep.subr.bf16.mxu0 %v6018
        %7922 = vmatpush2.bf16.msra.mxu0 %v6017
        %7923 = vmatprep.subr.bf16.mxu0 %v6014
        %7924 = vmatpush2.bf16.msra.mxu0 %v6013
        %7925 = vmatprep.subr.bf16.mxu0 %v6010
        %7926 = vmatpush2.bf16.msra.mxu0 %v6009
        %7927 = vmatprep.mubr.bf16.mxu0 %v1658
        %7928 = vmatmul.mubr.bf16.gmra.mxu0 %v1644
        %v7929 = vpop.f32.mrf.mxu0
        %v7930 = vadd.f32 %v7889, %v7929
        %v7931 = vpop.f32.mrf.mxu0
        %v7932 = vadd.f32 %v7891, %v7931
        %v7933 = vpop.f32.mrf.mxu0
        %v7934 = vpop.f32.mrf.mxu0
        %7935 = vdwg.mxu0
        %7936 = vmatprep.subr.bf16.mxu0 %v6070
        %7937 = vmatpush1.bf16.msra.mxu0 %v6069
        %7938 = vmatprep.subr.bf16.mxu0 %v6066
        %7939 = vmatpush1.bf16.msra.mxu0 %v6065
        %7940 = vmatprep.subr.bf16.mxu0 %v6062
        %7941 = vmatpush1.bf16.msra.mxu0 %v6061
        %7942 = vmatprep.subr.bf16.mxu0 %v6058
        %7943 = vmatpush1.bf16.msra.mxu0 %v6057
        %7944 = vmatprep.subr.bf16.mxu0 %v6054
        %7945 = vmatpush1.bf16.msra.mxu0 %v6053
        %7946 = vmatprep.subr.bf16.mxu0 %v6050
        %7947 = vmatpush1.bf16.msra.mxu0 %v6049
        %7948 = vmatprep.subr.bf16.mxu0 %v6046
        %7949 = vmatpush1.bf16.msra.mxu0 %v6045
        %7950 = vmatprep.subr.bf16.mxu0 %v6042
        %7951 = vmatpush1.bf16.msra.mxu0 %v6041
        %7952 = vmatprep.subr.bf16.mxu0 %v6102
        %7953 = vmatpush2.bf16.msra.mxu0 %v6101
        %7954 = vmatprep.subr.bf16.mxu0 %v6098
        %7955 = vmatpush2.bf16.msra.mxu0 %v6097
        %7956 = vmatprep.subr.bf16.mxu0 %v6094
        %7957 = vmatpush2.bf16.msra.mxu0 %v6093
        %7958 = vmatprep.subr.bf16.mxu0 %v6090
        %7959 = vmatpush2.bf16.msra.mxu0 %v6089
        %7960 = vmatprep.subr.bf16.mxu0 %v6086
        %7961 = vmatpush2.bf16.msra.mxu0 %v6085
        %7962 = vmatprep.subr.bf16.mxu0 %v6082
        %7963 = vmatpush2.bf16.msra.mxu0 %v6081
        %7964 = vmatprep.subr.bf16.mxu0 %v6078
        %7965 = vmatpush2.bf16.msra.mxu0 %v6077
        %7966 = vmatprep.subr.bf16.mxu0 %v6074
        %7967 = vmatpush2.bf16.msra.mxu0 %v6073
        %7968 = vmatprep.mubr.bf16.mxu0 %v1662
        %7969 = vmatmul.mubr.bf16.gmra.mxu0 %v1660
        %v7970 = vpop.f32.mrf.mxu0
        %v7971 = vadd.f32 %v7930, %v7970
        %v7972 = vpop.f32.mrf.mxu0
        %v7973 = vadd.f32 %v7932, %v7972
        %v7974 = vpop.f32.mrf.mxu0
        %v7975 = vpop.f32.mrf.mxu0
        %7976 = vdwg.mxu0
        %7977 = vmatprep.subr.bf16.mxu0 %v6134
        %7978 = vmatpush1.bf16.msra.mxu0 %v6133
        %7979 = vmatprep.subr.bf16.mxu0 %v6130
        %7980 = vmatpush1.bf16.msra.mxu0 %v6129
        %7981 = vmatprep.subr.bf16.mxu0 %v6126
        %7982 = vmatpush1.bf16.msra.mxu0 %v6125
        %7983 = vmatprep.subr.bf16.mxu0 %v6122
        %7984 = vmatpush1.bf16.msra.mxu0 %v6121
        %7985 = vmatprep.subr.bf16.mxu0 %v6118
        %7986 = vmatpush1.bf16.msra.mxu0 %v6117
        %7987 = vmatprep.subr.bf16.mxu0 %v6114
        %7988 = vmatpush1.bf16.msra.mxu0 %v6113
        %7989 = vmatprep.subr.bf16.mxu0 %v6110
        %7990 = vmatpush1.bf16.msra.mxu0 %v6109
        %7991 = vmatprep.subr.bf16.mxu0 %v6106
        %7992 = vmatpush1.bf16.msra.mxu0 %v6105
        %7993 = vmatprep.subr.bf16.mxu0 %v6166
        %7994 = vmatpush2.bf16.msra.mxu0 %v6165
        %7995 = vmatprep.subr.bf16.mxu0 %v6162
        %7996 = vmatpush2.bf16.msra.mxu0 %v6161
        %7997 = vmatprep.subr.bf16.mxu0 %v6158
        %7998 = vmatpush2.bf16.msra.mxu0 %v6157
        %7999 = vmatprep.subr.bf16.mxu0 %v6154
        %8000 = vmatpush2.bf16.msra.mxu0 %v6153
        %8001 = vmatprep.subr.bf16.mxu0 %v6150
        %8002 = vmatpush2.bf16.msra.mxu0 %v6149
        %8003 = vmatprep.subr.bf16.mxu0 %v6146
        %8004 = vmatpush2.bf16.msra.mxu0 %v6145
        %8005 = vmatprep.subr.bf16.mxu0 %v6142
        %8006 = vmatpush2.bf16.msra.mxu0 %v6141
        %8007 = vmatprep.subr.bf16.mxu0 %v6138
        %8008 = vmatpush2.bf16.msra.mxu0 %v6137
        %8009 = vmatprep.mubr.bf16.mxu0 %v1684
        %8010 = vmatmul.mubr.bf16.gmra.mxu0 %v1677
        %v8011 = vpop.f32.mrf.mxu0
        %v8012 = vadd.f32 %v7971, %v8011
        %v8013 = vpop.f32.mrf.mxu0
        %v8014 = vadd.f32 %v7973, %v8013
        %v8015 = vpop.f32.mrf.mxu0
        %v8016 = vpop.f32.mrf.mxu0
        %8017 = vdwg.mxu0
        %8018 = vmatprep.subr.bf16.mxu0 %v6198
        %8019 = vmatpush1.bf16.msra.mxu0 %v6197
        %8020 = vmatprep.subr.bf16.mxu0 %v6194
        %8021 = vmatpush1.bf16.msra.mxu0 %v6193
        %8022 = vmatprep.subr.bf16.mxu0 %v6190
        %8023 = vmatpush1.bf16.msra.mxu0 %v6189
        %8024 = vmatprep.subr.bf16.mxu0 %v6186
        %8025 = vmatpush1.bf16.msra.mxu0 %v6185
        %8026 = vmatprep.subr.bf16.mxu0 %v6182
        %8027 = vmatpush1.bf16.msra.mxu0 %v6181
        %8028 = vmatprep.subr.bf16.mxu0 %v6178
        %8029 = vmatpush1.bf16.msra.mxu0 %v6177
        %8030 = vmatprep.subr.bf16.mxu0 %v6174
        %8031 = vmatpush1.bf16.msra.mxu0 %v6173
        %8032 = vmatprep.subr.bf16.mxu0 %v6170
        %8033 = vmatpush1.bf16.msra.mxu0 %v6169
        %8034 = vmatprep.subr.bf16.mxu0 0
        %8035 = vmatpush2.bf16.msra.mxu0 0
        %8036 = vmatprep.subr.bf16.mxu0 0
        %8037 = vmatpush2.bf16.msra.mxu0 0
        %8038 = vmatprep.subr.bf16.mxu0 0
        %8039 = vmatpush2.bf16.msra.mxu0 0
        %8040 = vmatprep.subr.bf16.mxu0 0
        %8041 = vmatpush2.bf16.msra.mxu0 0
        %8042 = vmatprep.subr.bf16.mxu0 0
        %8043 = vmatpush2.bf16.msra.mxu0 0
        %8044 = vmatprep.subr.bf16.mxu0 0
        %8045 = vmatpush2.bf16.msra.mxu0 0
        %8046 = vmatprep.subr.bf16.mxu0 0
        %8047 = vmatpush2.bf16.msra.mxu0 0
        %8048 = vmatprep.subr.bf16.mxu0 0
        %8049 = vmatpush2.bf16.msra.mxu0 0
        %8050 = vmatprep.mubr.bf16.mxu0 0
        %8051 = vmatmul.mubr.bf16.gmra.mxu0 %v1685
        %v8052 = vpop.f32.mrf.mxu0
        %v8053 = vadd.f32 %v8012, %v8052
        %v8054 = vpop.f32.mrf.mxu0
        %v8055 = vadd.f32 %v8014, %v8054
        %v8056 = vpop.f32.mrf.mxu0
        %v8057 = vpop.f32.mrf.mxu0
        %8058 = vdwg.mxu0
        %8059 = vmatprep.subr.bf16.mxu0 %v5112
        %8060 = vmatpush1.bf16.msra.mxu0 %v5111
        %8061 = vmatprep.subr.bf16.mxu0 %v5108
        %8062 = vmatpush1.bf16.msra.mxu0 %v5107
        %8063 = vmatprep.subr.bf16.mxu0 %v5104
        %8064 = vmatpush1.bf16.msra.mxu0 %v5103
        %8065 = vmatprep.subr.bf16.mxu0 %v5100
        %8066 = vmatpush1.bf16.msra.mxu0 %v5099
        %8067 = vmatprep.subr.bf16.mxu0 %v5096
        %8068 = vmatpush1.bf16.msra.mxu0 %v5095
        %8069 = vmatprep.subr.bf16.mxu0 %v5092
        %8070 = vmatpush1.bf16.msra.mxu0 %v5091
        %8071 = vmatprep.subr.bf16.mxu0 %v5088
        %8072 = vmatpush1.bf16.msra.mxu0 %v5087
        %8073 = vmatprep.subr.bf16.mxu0 %v5084
        %8074 = vmatpush1.bf16.msra.mxu0 %v5083
        %8075 = vmatprep.subr.bf16.mxu0 %v5144
        %8076 = vmatpush2.bf16.msra.mxu0 %v5143
        %8077 = vmatprep.subr.bf16.mxu0 %v5140
        %8078 = vmatpush2.bf16.msra.mxu0 %v5139
        %8079 = vmatprep.subr.bf16.mxu0 %v5136
        %8080 = vmatpush2.bf16.msra.mxu0 %v5135
        %8081 = vmatprep.subr.bf16.mxu0 %v5132
        %8082 = vmatpush2.bf16.msra.mxu0 %v5131
        %8083 = vmatprep.subr.bf16.mxu0 %v5128
        %8084 = vmatpush2.bf16.msra.mxu0 %v5127
        %8085 = vmatprep.subr.bf16.mxu0 %v5124
        %8086 = vmatpush2.bf16.msra.mxu0 %v5123
        %8087 = vmatprep.subr.bf16.mxu0 %v5120
        %8088 = vmatpush2.bf16.msra.mxu0 %v5119
        %8089 = vmatprep.subr.bf16.mxu0 %v5116
        %8090 = vmatpush2.bf16.msra.mxu0 %v5115
        %8091 = vmatprep.mubr.bf16.mxu0 %v1504
        %8092 = vmatmul.mubr.bf16.gmra.mxu0 %v1490
        %v8093 = vpop.f32.mrf.mxu0
        %v8094 = vadd.f32 0.0, %v8093
        %v8095 = vpop.f32.mrf.mxu0
        %v8096 = vadd.f32 0.0, %v8095
        %v8097 = vpop.f32.mrf.mxu0
        %v8098 = vpop.f32.mrf.mxu0
        %8099 = vdwg.mxu0
        %8100 = vmatprep.subr.bf16.mxu0 %v5176
        %8101 = vmatpush1.bf16.msra.mxu0 %v5175
        %8102 = vmatprep.subr.bf16.mxu0 %v5172
        %8103 = vmatpush1.bf16.msra.mxu0 %v5171
        %8104 = vmatprep.subr.bf16.mxu0 %v5168
        %8105 = vmatpush1.bf16.msra.mxu0 %v5167
        %8106 = vmatprep.subr.bf16.mxu0 %v5164
        %8107 = vmatpush1.bf16.msra.mxu0 %v5163
        %8108 = vmatprep.subr.bf16.mxu0 %v5160
        %8109 = vmatpush1.bf16.msra.mxu0 %v5159
        %8110 = vmatprep.subr.bf16.mxu0 %v5156
        %8111 = vmatpush1.bf16.msra.mxu0 %v5155
        %8112 = vmatprep.subr.bf16.mxu0 %v5152
        %8113 = vmatpush1.bf16.msra.mxu0 %v5151
        %8114 = vmatprep.subr.bf16.mxu0 %v5148
        %8115 = vmatpush1.bf16.msra.mxu0 %v5147
        %8116 = vmatprep.subr.bf16.mxu0 %v5208
        %8117 = vmatpush2.bf16.msra.mxu0 %v5207
        %8118 = vmatprep.subr.bf16.mxu0 %v5204
        %8119 = vmatpush2.bf16.msra.mxu0 %v5203
        %8120 = vmatprep.subr.bf16.mxu0 %v5200
        %8121 = vmatpush2.bf16.msra.mxu0 %v5199
        %8122 = vmatprep.subr.bf16.mxu0 %v5196
        %8123 = vmatpush2.bf16.msra.mxu0 %v5195
        %8124 = vmatprep.subr.bf16.mxu0 %v5192
        %8125 = vmatpush2.bf16.msra.mxu0 %v5191
        %8126 = vmatprep.subr.bf16.mxu0 %v5188
        %8127 = vmatpush2.bf16.msra.mxu0 %v5187
        %8128 = vmatprep.subr.bf16.mxu0 %v5184
        %8129 = vmatpush2.bf16.msra.mxu0 %v5183
        %8130 = vmatprep.subr.bf16.mxu0 %v5180
        %8131 = vmatpush2.bf16.msra.mxu0 %v5179
        %8132 = vmatprep.mubr.bf16.mxu0 %v1514
        %8133 = vmatmul.mubr.bf16.gmra.mxu0 %v1512
        %v8134 = vpop.f32.mrf.mxu0
        %v8135 = vadd.f32 %v8094, %v8134
        %v8136 = vpop.f32.mrf.mxu0
        %v8137 = vadd.f32 %v8096, %v8136
        %v8138 = vpop.f32.mrf.mxu0
        %v8139 = vpop.f32.mrf.mxu0
        %8140 = vdwg.mxu0
        %8141 = vmatprep.subr.bf16.mxu0 %v5240
        %8142 = vmatpush1.bf16.msra.mxu0 %v5239
        %8143 = vmatprep.subr.bf16.mxu0 %v5236
        %8144 = vmatpush1.bf16.msra.mxu0 %v5235
        %8145 = vmatprep.subr.bf16.mxu0 %v5232
        %8146 = vmatpush1.bf16.msra.mxu0 %v5231
        %8147 = vmatprep.subr.bf16.mxu0 %v5228
        %8148 = vmatpush1.bf16.msra.mxu0 %v5227
        %8149 = vmatprep.subr.bf16.mxu0 %v5224
        %8150 = vmatpush1.bf16.msra.mxu0 %v5223
        %8151 = vmatprep.subr.bf16.mxu0 %v5220
        %8152 = vmatpush1.bf16.msra.mxu0 %v5219
        %8153 = vmatprep.subr.bf16.mxu0 %v5216
        %8154 = vmatpush1.bf16.msra.mxu0 %v5215
        %8155 = vmatprep.subr.bf16.mxu0 %v5212
        %8156 = vmatpush1.bf16.msra.mxu0 %v5211
        %8157 = vmatprep.subr.bf16.mxu0 %v5272
        %8158 = vmatpush2.bf16.msra.mxu0 %v5271
        %8159 = vmatprep.subr.bf16.mxu0 %v5268
        %8160 = vmatpush2.bf16.msra.mxu0 %v5267
        %8161 = vmatprep.subr.bf16.mxu0 %v5264
        %8162 = vmatpush2.bf16.msra.mxu0 %v5263
        %8163 = vmatprep.subr.bf16.mxu0 %v5260
        %8164 = vmatpush2.bf16.msra.mxu0 %v5259
        %8165 = vmatprep.subr.bf16.mxu0 %v5256
        %8166 = vmatpush2.bf16.msra.mxu0 %v5255
        %8167 = vmatprep.subr.bf16.mxu0 %v5252
        %8168 = vmatpush2.bf16.msra.mxu0 %v5251
        %8169 = vmatprep.subr.bf16.mxu0 %v5248
        %8170 = vmatpush2.bf16.msra.mxu0 %v5247
        %8171 = vmatprep.subr.bf16.mxu0 %v5244
        %8172 = vmatpush2.bf16.msra.mxu0 %v5243
        %8173 = vmatprep.mubr.bf16.mxu0 %v1511
        %8174 = vmatmul.mubr.bf16.gmra.mxu0 %v1497
        %v8175 = vpop.f32.mrf.mxu0
        %v8176 = vadd.f32 %v8135, %v8175
        %v8177 = vpop.f32.mrf.mxu0
        %v8178 = vadd.f32 %v8137, %v8177
        %v8179 = vpop.f32.mrf.mxu0
        %v8180 = vpop.f32.mrf.mxu0
        %8181 = vdwg.mxu0
        %8182 = vmatprep.subr.bf16.mxu0 %v5304
        %8183 = vmatpush1.bf16.msra.mxu0 %v5303
        %8184 = vmatprep.subr.bf16.mxu0 %v5300
        %8185 = vmatpush1.bf16.msra.mxu0 %v5299
        %8186 = vmatprep.subr.bf16.mxu0 %v5296
        %8187 = vmatpush1.bf16.msra.mxu0 %v5295
        %8188 = vmatprep.subr.bf16.mxu0 %v5292
        %8189 = vmatpush1.bf16.msra.mxu0 %v5291
        %8190 = vmatprep.subr.bf16.mxu0 %v5288
        %8191 = vmatpush1.bf16.msra.mxu0 %v5287
        %8192 = vmatprep.subr.bf16.mxu0 %v5284
        %8193 = vmatpush1.bf16.msra.mxu0 %v5283
        %8194 = vmatprep.subr.bf16.mxu0 %v5280
        %8195 = vmatpush1.bf16.msra.mxu0 %v5279
        %8196 = vmatprep.subr.bf16.mxu0 %v5276
        %8197 = vmatpush1.bf16.msra.mxu0 %v5275
        %8198 = vmatprep.subr.bf16.mxu0 %v5336
        %8199 = vmatpush2.bf16.msra.mxu0 %v5335
        %8200 = vmatprep.subr.bf16.mxu0 %v5332
        %8201 = vmatpush2.bf16.msra.mxu0 %v5331
        %8202 = vmatprep.subr.bf16.mxu0 %v5328
        %8203 = vmatpush2.bf16.msra.mxu0 %v5327
        %8204 = vmatprep.subr.bf16.mxu0 %v5324
        %8205 = vmatpush2.bf16.msra.mxu0 %v5323
        %8206 = vmatprep.subr.bf16.mxu0 %v5320
        %8207 = vmatpush2.bf16.msra.mxu0 %v5319
        %8208 = vmatprep.subr.bf16.mxu0 %v5316
        %8209 = vmatpush2.bf16.msra.mxu0 %v5315
        %8210 = vmatprep.subr.bf16.mxu0 %v5312
        %8211 = vmatpush2.bf16.msra.mxu0 %v5311
        %8212 = vmatprep.subr.bf16.mxu0 %v5308
        %8213 = vmatpush2.bf16.msra.mxu0 %v5307
        %8214 = vmatprep.mubr.bf16.mxu0 %v1515
        %8215 = vmatmul.mubr.bf16.gmra.mxu0 %v1513
        %v8216 = vpop.f32.mrf.mxu0
        %v8217 = vadd.f32 %v8176, %v8216
        %v8218 = vpop.f32.mrf.mxu0
        %v8219 = vadd.f32 %v8178, %v8218
        %v8220 = vpop.f32.mrf.mxu0
        %v8221 = vpop.f32.mrf.mxu0
        %8222 = vdwg.mxu0
        %8223 = vmatprep.subr.bf16.mxu0 %v5368
        %8224 = vmatpush1.bf16.msra.mxu0 %v5367
        %8225 = vmatprep.subr.bf16.mxu0 %v5364
        %8226 = vmatpush1.bf16.msra.mxu0 %v5363
        %8227 = vmatprep.subr.bf16.mxu0 %v5360
        %8228 = vmatpush1.bf16.msra.mxu0 %v5359
        %8229 = vmatprep.subr.bf16.mxu0 %v5356
        %8230 = vmatpush1.bf16.msra.mxu0 %v5355
        %8231 = vmatprep.subr.bf16.mxu0 %v5352
        %8232 = vmatpush1.bf16.msra.mxu0 %v5351
        %8233 = vmatprep.subr.bf16.mxu0 %v5348
        %8234 = vmatpush1.bf16.msra.mxu0 %v5347
        %8235 = vmatprep.subr.bf16.mxu0 %v5344
        %8236 = vmatpush1.bf16.msra.mxu0 %v5343
        %8237 = vmatprep.subr.bf16.mxu0 %v5340
        %8238 = vmatpush1.bf16.msra.mxu0 %v5339
        %8239 = vmatprep.subr.bf16.mxu0 %v5400
        %8240 = vmatpush2.bf16.msra.mxu0 %v5399
        %8241 = vmatprep.subr.bf16.mxu0 %v5396
        %8242 = vmatpush2.bf16.msra.mxu0 %v5395
        %8243 = vmatprep.subr.bf16.mxu0 %v5392
        %8244 = vmatpush2.bf16.msra.mxu0 %v5391
        %8245 = vmatprep.subr.bf16.mxu0 %v5388
        %8246 = vmatpush2.bf16.msra.mxu0 %v5387
        %8247 = vmatprep.subr.bf16.mxu0 %v5384
        %8248 = vmatpush2.bf16.msra.mxu0 %v5383
        %8249 = vmatprep.subr.bf16.mxu0 %v5380
        %8250 = vmatpush2.bf16.msra.mxu0 %v5379
        %8251 = vmatprep.subr.bf16.mxu0 %v5376
        %8252 = vmatpush2.bf16.msra.mxu0 %v5375
        %8253 = vmatprep.subr.bf16.mxu0 %v5372
        %8254 = vmatpush2.bf16.msra.mxu0 %v5371
        %8255 = vmatprep.mubr.bf16.mxu0 %v1553
        %8256 = vmatmul.mubr.bf16.gmra.mxu0 %v1539
        %v8257 = vpop.f32.mrf.mxu0
        %v8258 = vadd.f32 %v8217, %v8257
        %v8259 = vpop.f32.mrf.mxu0
        %v8260 = vadd.f32 %v8219, %v8259
        %v8261 = vpop.f32.mrf.mxu0
        %v8262 = vpop.f32.mrf.mxu0
        %8263 = vdwg.mxu0
        %8264 = vmatprep.subr.bf16.mxu0 %v5432
        %8265 = vmatpush1.bf16.msra.mxu0 %v5431
        %8266 = vmatprep.subr.bf16.mxu0 %v5428
        %8267 = vmatpush1.bf16.msra.mxu0 %v5427
        %8268 = vmatprep.subr.bf16.mxu0 %v5424
        %8269 = vmatpush1.bf16.msra.mxu0 %v5423
        %8270 = vmatprep.subr.bf16.mxu0 %v5420
        %8271 = vmatpush1.bf16.msra.mxu0 %v5419
        %8272 = vmatprep.subr.bf16.mxu0 %v5416
        %8273 = vmatpush1.bf16.msra.mxu0 %v5415
        %8274 = vmatprep.subr.bf16.mxu0 %v5412
        %8275 = vmatpush1.bf16.msra.mxu0 %v5411
        %8276 = vmatprep.subr.bf16.mxu0 %v5408
        %8277 = vmatpush1.bf16.msra.mxu0 %v5407
        %8278 = vmatprep.subr.bf16.mxu0 %v5404
        %8279 = vmatpush1.bf16.msra.mxu0 %v5403
        %8280 = vmatprep.subr.bf16.mxu0 %v5464
        %8281 = vmatpush2.bf16.msra.mxu0 %v5463
        %8282 = vmatprep.subr.bf16.mxu0 %v5460
        %8283 = vmatpush2.bf16.msra.mxu0 %v5459
        %8284 = vmatprep.subr.bf16.mxu0 %v5456
        %8285 = vmatpush2.bf16.msra.mxu0 %v5455
        %8286 = vmatprep.subr.bf16.mxu0 %v5452
        %8287 = vmatpush2.bf16.msra.mxu0 %v5451
        %8288 = vmatprep.subr.bf16.mxu0 %v5448
        %8289 = vmatpush2.bf16.msra.mxu0 %v5447
        %8290 = vmatprep.subr.bf16.mxu0 %v5444
        %8291 = vmatpush2.bf16.msra.mxu0 %v5443
        %8292 = vmatprep.subr.bf16.mxu0 %v5440
        %8293 = vmatpush2.bf16.msra.mxu0 %v5439
        %8294 = vmatprep.subr.bf16.mxu0 %v5436
        %8295 = vmatpush2.bf16.msra.mxu0 %v5435
        %8296 = vmatprep.mubr.bf16.mxu0 %v1563
        %8297 = vmatmul.mubr.bf16.gmra.mxu0 %v1561
        %v8298 = vpop.f32.mrf.mxu0
        %v8299 = vadd.f32 %v8258, %v8298
        %v8300 = vpop.f32.mrf.mxu0
        %v8301 = vadd.f32 %v8260, %v8300
        %v8302 = vpop.f32.mrf.mxu0
        %v8303 = vpop.f32.mrf.mxu0
        %8304 = vdwg.mxu0
        %8305 = vmatprep.subr.bf16.mxu0 %v5496
        %8306 = vmatpush1.bf16.msra.mxu0 %v5495
        %8307 = vmatprep.subr.bf16.mxu0 %v5492
        %8308 = vmatpush1.bf16.msra.mxu0 %v5491
        %8309 = vmatprep.subr.bf16.mxu0 %v5488
        %8310 = vmatpush1.bf16.msra.mxu0 %v5487
        %8311 = vmatprep.subr.bf16.mxu0 %v5484
        %8312 = vmatpush1.bf16.msra.mxu0 %v5483
        %8313 = vmatprep.subr.bf16.mxu0 %v5480
        %8314 = vmatpush1.bf16.msra.mxu0 %v5479
        %8315 = vmatprep.subr.bf16.mxu0 %v5476
        %8316 = vmatpush1.bf16.msra.mxu0 %v5475
        %8317 = vmatprep.subr.bf16.mxu0 %v5472
        %8318 = vmatpush1.bf16.msra.mxu0 %v5471
        %8319 = vmatprep.subr.bf16.mxu0 %v5468
        %8320 = vmatpush1.bf16.msra.mxu0 %v5467
        %8321 = vmatprep.subr.bf16.mxu0 %v5528
        %8322 = vmatpush2.bf16.msra.mxu0 %v5527
        %8323 = vmatprep.subr.bf16.mxu0 %v5524
        %8324 = vmatpush2.bf16.msra.mxu0 %v5523
        %8325 = vmatprep.subr.bf16.mxu0 %v5520
        %8326 = vmatpush2.bf16.msra.mxu0 %v5519
        %8327 = vmatprep.subr.bf16.mxu0 %v5516
        %8328 = vmatpush2.bf16.msra.mxu0 %v5515
        %8329 = vmatprep.subr.bf16.mxu0 %v5512
        %8330 = vmatpush2.bf16.msra.mxu0 %v5511
        %8331 = vmatprep.subr.bf16.mxu0 %v5508
        %8332 = vmatpush2.bf16.msra.mxu0 %v5507
        %8333 = vmatprep.subr.bf16.mxu0 %v5504
        %8334 = vmatpush2.bf16.msra.mxu0 %v5503
        %8335 = vmatprep.subr.bf16.mxu0 %v5500
        %8336 = vmatpush2.bf16.msra.mxu0 %v5499
        %8337 = vmatprep.mubr.bf16.mxu0 %v1560
        %8338 = vmatmul.mubr.bf16.gmra.mxu0 %v1546
        %v8339 = vpop.f32.mrf.mxu0
        %v8340 = vadd.f32 %v8299, %v8339
        %v8341 = vpop.f32.mrf.mxu0
        %v8342 = vadd.f32 %v8301, %v8341
        %v8343 = vpop.f32.mrf.mxu0
        %v8344 = vpop.f32.mrf.mxu0
        %8345 = vdwg.mxu0
        %8346 = vmatprep.subr.bf16.mxu0 %v5560
        %8347 = vmatpush1.bf16.msra.mxu0 %v5559
        %8348 = vmatprep.subr.bf16.mxu0 %v5556
        %8349 = vmatpush1.bf16.msra.mxu0 %v5555
        %8350 = vmatprep.subr.bf16.mxu0 %v5552
        %8351 = vmatpush1.bf16.msra.mxu0 %v5551
        %8352 = vmatprep.subr.bf16.mxu0 %v5548
        %8353 = vmatpush1.bf16.msra.mxu0 %v5547
        %8354 = vmatprep.subr.bf16.mxu0 %v5544
        %8355 = vmatpush1.bf16.msra.mxu0 %v5543
        %8356 = vmatprep.subr.bf16.mxu0 %v5540
        %8357 = vmatpush1.bf16.msra.mxu0 %v5539
        %8358 = vmatprep.subr.bf16.mxu0 %v5536
        %8359 = vmatpush1.bf16.msra.mxu0 %v5535
        %8360 = vmatprep.subr.bf16.mxu0 %v5532
        %8361 = vmatpush1.bf16.msra.mxu0 %v5531
        %8362 = vmatprep.subr.bf16.mxu0 %v5592
        %8363 = vmatpush2.bf16.msra.mxu0 %v5591
        %8364 = vmatprep.subr.bf16.mxu0 %v5588
        %8365 = vmatpush2.bf16.msra.mxu0 %v5587
        %8366 = vmatprep.subr.bf16.mxu0 %v5584
        %8367 = vmatpush2.bf16.msra.mxu0 %v5583
        %8368 = vmatprep.subr.bf16.mxu0 %v5580
        %8369 = vmatpush2.bf16.msra.mxu0 %v5579
        %8370 = vmatprep.subr.bf16.mxu0 %v5576
        %8371 = vmatpush2.bf16.msra.mxu0 %v5575
        %8372 = vmatprep.subr.bf16.mxu0 %v5572
        %8373 = vmatpush2.bf16.msra.mxu0 %v5571
        %8374 = vmatprep.subr.bf16.mxu0 %v5568
        %8375 = vmatpush2.bf16.msra.mxu0 %v5567
        %8376 = vmatprep.subr.bf16.mxu0 %v5564
        %8377 = vmatpush2.bf16.msra.mxu0 %v5563
        %8378 = vmatprep.mubr.bf16.mxu0 %v1564
        %8379 = vmatmul.mubr.bf16.gmra.mxu0 %v1562
        %v8380 = vpop.f32.mrf.mxu0
        %v8381 = vadd.f32 %v8340, %v8380
        %v8382 = vpop.f32.mrf.mxu0
        %v8383 = vadd.f32 %v8342, %v8382
        %v8384 = vpop.f32.mrf.mxu0
        %v8385 = vpop.f32.mrf.mxu0
        %8386 = vdwg.mxu0
        %8387 = vmatprep.subr.bf16.mxu0 %v5624
        %8388 = vmatpush1.bf16.msra.mxu0 %v5623
        %8389 = vmatprep.subr.bf16.mxu0 %v5620
        %8390 = vmatpush1.bf16.msra.mxu0 %v5619
        %8391 = vmatprep.subr.bf16.mxu0 %v5616
        %8392 = vmatpush1.bf16.msra.mxu0 %v5615
        %8393 = vmatprep.subr.bf16.mxu0 %v5612
        %8394 = vmatpush1.bf16.msra.mxu0 %v5611
        %8395 = vmatprep.subr.bf16.mxu0 %v5608
        %8396 = vmatpush1.bf16.msra.mxu0 %v5607
        %8397 = vmatprep.subr.bf16.mxu0 %v5604
        %8398 = vmatpush1.bf16.msra.mxu0 %v5603
        %8399 = vmatprep.subr.bf16.mxu0 %v5600
        %8400 = vmatpush1.bf16.msra.mxu0 %v5599
        %8401 = vmatprep.subr.bf16.mxu0 %v5596
        %8402 = vmatpush1.bf16.msra.mxu0 %v5595
        %8403 = vmatprep.subr.bf16.mxu0 %v5656
        %8404 = vmatpush2.bf16.msra.mxu0 %v5655
        %8405 = vmatprep.subr.bf16.mxu0 %v5652
        %8406 = vmatpush2.bf16.msra.mxu0 %v5651
        %8407 = vmatprep.subr.bf16.mxu0 %v5648
        %8408 = vmatpush2.bf16.msra.mxu0 %v5647
        %8409 = vmatprep.subr.bf16.mxu0 %v5644
        %8410 = vmatpush2.bf16.msra.mxu0 %v5643
        %8411 = vmatprep.subr.bf16.mxu0 %v5640
        %8412 = vmatpush2.bf16.msra.mxu0 %v5639
        %8413 = vmatprep.subr.bf16.mxu0 %v5636
        %8414 = vmatpush2.bf16.msra.mxu0 %v5635
        %8415 = vmatprep.subr.bf16.mxu0 %v5632
        %8416 = vmatpush2.bf16.msra.mxu0 %v5631
        %8417 = vmatprep.subr.bf16.mxu0 %v5628
        %8418 = vmatpush2.bf16.msra.mxu0 %v5627
        %8419 = vmatprep.mubr.bf16.mxu0 %v1602
        %8420 = vmatmul.mubr.bf16.gmra.mxu0 %v1588
        %v8421 = vpop.f32.mrf.mxu0
        %v8422 = vadd.f32 %v8381, %v8421
        %v8423 = vpop.f32.mrf.mxu0
        %v8424 = vadd.f32 %v8383, %v8423
        %v8425 = vpop.f32.mrf.mxu0
        %v8426 = vpop.f32.mrf.mxu0
        %8427 = vdwg.mxu0
        %8428 = vmatprep.subr.bf16.mxu0 %v5688
        %8429 = vmatpush1.bf16.msra.mxu0 %v5687
        %8430 = vmatprep.subr.bf16.mxu0 %v5684
        %8431 = vmatpush1.bf16.msra.mxu0 %v5683
        %8432 = vmatprep.subr.bf16.mxu0 %v5680
        %8433 = vmatpush1.bf16.msra.mxu0 %v5679
        %8434 = vmatprep.subr.bf16.mxu0 %v5676
        %8435 = vmatpush1.bf16.msra.mxu0 %v5675
        %8436 = vmatprep.subr.bf16.mxu0 %v5672
        %8437 = vmatpush1.bf16.msra.mxu0 %v5671
        %8438 = vmatprep.subr.bf16.mxu0 %v5668
        %8439 = vmatpush1.bf16.msra.mxu0 %v5667
        %8440 = vmatprep.subr.bf16.mxu0 %v5664
        %8441 = vmatpush1.bf16.msra.mxu0 %v5663
        %8442 = vmatprep.subr.bf16.mxu0 %v5660
        %8443 = vmatpush1.bf16.msra.mxu0 %v5659
        %8444 = vmatprep.subr.bf16.mxu0 %v5720
        %8445 = vmatpush2.bf16.msra.mxu0 %v5719
        %8446 = vmatprep.subr.bf16.mxu0 %v5716
        %8447 = vmatpush2.bf16.msra.mxu0 %v5715
        %8448 = vmatprep.subr.bf16.mxu0 %v5712
        %8449 = vmatpush2.bf16.msra.mxu0 %v5711
        %8450 = vmatprep.subr.bf16.mxu0 %v5708
        %8451 = vmatpush2.bf16.msra.mxu0 %v5707
        %8452 = vmatprep.subr.bf16.mxu0 %v5704
        %8453 = vmatpush2.bf16.msra.mxu0 %v5703
        %8454 = vmatprep.subr.bf16.mxu0 %v5700
        %8455 = vmatpush2.bf16.msra.mxu0 %v5699
        %8456 = vmatprep.subr.bf16.mxu0 %v5696
        %8457 = vmatpush2.bf16.msra.mxu0 %v5695
        %8458 = vmatprep.subr.bf16.mxu0 %v5692
        %8459 = vmatpush2.bf16.msra.mxu0 %v5691
        %8460 = vmatprep.mubr.bf16.mxu0 %v1612
        %8461 = vmatmul.mubr.bf16.gmra.mxu0 %v1610
        %v8462 = vpop.f32.mrf.mxu0
        %v8463 = vadd.f32 %v8422, %v8462
        %v8464 = vpop.f32.mrf.mxu0
        %v8465 = vadd.f32 %v8424, %v8464
        %v8466 = vpop.f32.mrf.mxu0
        %v8467 = vpop.f32.mrf.mxu0
        %8468 = vdwg.mxu0
        %8469 = vmatprep.subr.bf16.mxu0 %v5752
        %8470 = vmatpush1.bf16.msra.mxu0 %v5751
        %8471 = vmatprep.subr.bf16.mxu0 %v5748
        %8472 = vmatpush1.bf16.msra.mxu0 %v5747
        %8473 = vmatprep.subr.bf16.mxu0 %v5744
        %8474 = vmatpush1.bf16.msra.mxu0 %v5743
        %8475 = vmatprep.subr.bf16.mxu0 %v5740
        %8476 = vmatpush1.bf16.msra.mxu0 %v5739
        %8477 = vmatprep.subr.bf16.mxu0 %v5736
        %8478 = vmatpush1.bf16.msra.mxu0 %v5735
        %8479 = vmatprep.subr.bf16.mxu0 %v5732
        %8480 = vmatpush1.bf16.msra.mxu0 %v5731
        %8481 = vmatprep.subr.bf16.mxu0 %v5728
        %8482 = vmatpush1.bf16.msra.mxu0 %v5727
        %8483 = vmatprep.subr.bf16.mxu0 %v5724
        %8484 = vmatpush1.bf16.msra.mxu0 %v5723
        %8485 = vmatprep.subr.bf16.mxu0 %v5784
        %8486 = vmatpush2.bf16.msra.mxu0 %v5783
        %8487 = vmatprep.subr.bf16.mxu0 %v5780
        %8488 = vmatpush2.bf16.msra.mxu0 %v5779
        %8489 = vmatprep.subr.bf16.mxu0 %v5776
        %8490 = vmatpush2.bf16.msra.mxu0 %v5775
        %8491 = vmatprep.subr.bf16.mxu0 %v5772
        %8492 = vmatpush2.bf16.msra.mxu0 %v5771
        %8493 = vmatprep.subr.bf16.mxu0 %v5768
        %8494 = vmatpush2.bf16.msra.mxu0 %v5767
        %8495 = vmatprep.subr.bf16.mxu0 %v5764
        %8496 = vmatpush2.bf16.msra.mxu0 %v5763
        %8497 = vmatprep.subr.bf16.mxu0 %v5760
        %8498 = vmatpush2.bf16.msra.mxu0 %v5759
        %8499 = vmatprep.subr.bf16.mxu0 %v5756
        %8500 = vmatpush2.bf16.msra.mxu0 %v5755
        %8501 = vmatprep.mubr.bf16.mxu0 %v1609
        %8502 = vmatmul.mubr.bf16.gmra.mxu0 %v1595
        %v8503 = vpop.f32.mrf.mxu0
        %v8504 = vadd.f32 %v8463, %v8503
        %v8505 = vpop.f32.mrf.mxu0
        %v8506 = vadd.f32 %v8465, %v8505
        %v8507 = vpop.f32.mrf.mxu0
        %v8508 = vpop.f32.mrf.mxu0
        %8509 = vdwg.mxu0
        %8510 = vmatprep.subr.bf16.mxu0 %v5816
        %8511 = vmatpush1.bf16.msra.mxu0 %v5815
        %8512 = vmatprep.subr.bf16.mxu0 %v5812
        %8513 = vmatpush1.bf16.msra.mxu0 %v5811
        %8514 = vmatprep.subr.bf16.mxu0 %v5808
        %8515 = vmatpush1.bf16.msra.mxu0 %v5807
        %8516 = vmatprep.subr.bf16.mxu0 %v5804
        %8517 = vmatpush1.bf16.msra.mxu0 %v5803
        %8518 = vmatprep.subr.bf16.mxu0 %v5800
        %8519 = vmatpush1.bf16.msra.mxu0 %v5799
        %8520 = vmatprep.subr.bf16.mxu0 %v5796
        %8521 = vmatpush1.bf16.msra.mxu0 %v5795
        %8522 = vmatprep.subr.bf16.mxu0 %v5792
        %8523 = vmatpush1.bf16.msra.mxu0 %v5791
        %8524 = vmatprep.subr.bf16.mxu0 %v5788
        %8525 = vmatpush1.bf16.msra.mxu0 %v5787
        %8526 = vmatprep.subr.bf16.mxu0 %v5848
        %8527 = vmatpush2.bf16.msra.mxu0 %v5847
        %8528 = vmatprep.subr.bf16.mxu0 %v5844
        %8529 = vmatpush2.bf16.msra.mxu0 %v5843
        %8530 = vmatprep.subr.bf16.mxu0 %v5840
        %8531 = vmatpush2.bf16.msra.mxu0 %v5839
        %8532 = vmatprep.subr.bf16.mxu0 %v5836
        %8533 = vmatpush2.bf16.msra.mxu0 %v5835
        %8534 = vmatprep.subr.bf16.mxu0 %v5832
        %8535 = vmatpush2.bf16.msra.mxu0 %v5831
        %8536 = vmatprep.subr.bf16.mxu0 %v5828
        %8537 = vmatpush2.bf16.msra.mxu0 %v5827
        %8538 = vmatprep.subr.bf16.mxu0 %v5824
        %8539 = vmatpush2.bf16.msra.mxu0 %v5823
        %8540 = vmatprep.subr.bf16.mxu0 %v5820
        %8541 = vmatpush2.bf16.msra.mxu0 %v5819
        %8542 = vmatprep.mubr.bf16.mxu0 %v1613
        %8543 = vmatmul.mubr.bf16.gmra.mxu0 %v1611
        %v8544 = vpop.f32.mrf.mxu0
        %v8545 = vadd.f32 %v8504, %v8544
        %v8546 = vpop.f32.mrf.mxu0
        %v8547 = vadd.f32 %v8506, %v8546
        %v8548 = vpop.f32.mrf.mxu0
        %v8549 = vpop.f32.mrf.mxu0
        %8550 = vdwg.mxu0
        %8551 = vmatprep.subr.bf16.mxu0 %v5880
        %8552 = vmatpush1.bf16.msra.mxu0 %v5879
        %8553 = vmatprep.subr.bf16.mxu0 %v5876
        %8554 = vmatpush1.bf16.msra.mxu0 %v5875
        %8555 = vmatprep.subr.bf16.mxu0 %v5872
        %8556 = vmatpush1.bf16.msra.mxu0 %v5871
        %8557 = vmatprep.subr.bf16.mxu0 %v5868
        %8558 = vmatpush1.bf16.msra.mxu0 %v5867
        %8559 = vmatprep.subr.bf16.mxu0 %v5864
        %8560 = vmatpush1.bf16.msra.mxu0 %v5863
        %8561 = vmatprep.subr.bf16.mxu0 %v5860
        %8562 = vmatpush1.bf16.msra.mxu0 %v5859
        %8563 = vmatprep.subr.bf16.mxu0 %v5856
        %8564 = vmatpush1.bf16.msra.mxu0 %v5855
        %8565 = vmatprep.subr.bf16.mxu0 %v5852
        %8566 = vmatpush1.bf16.msra.mxu0 %v5851
        %8567 = vmatprep.subr.bf16.mxu0 %v5912
        %8568 = vmatpush2.bf16.msra.mxu0 %v5911
        %8569 = vmatprep.subr.bf16.mxu0 %v5908
        %8570 = vmatpush2.bf16.msra.mxu0 %v5907
        %8571 = vmatprep.subr.bf16.mxu0 %v5904
        %8572 = vmatpush2.bf16.msra.mxu0 %v5903
        %8573 = vmatprep.subr.bf16.mxu0 %v5900
        %8574 = vmatpush2.bf16.msra.mxu0 %v5899
        %8575 = vmatprep.subr.bf16.mxu0 %v5896
        %8576 = vmatpush2.bf16.msra.mxu0 %v5895
        %8577 = vmatprep.subr.bf16.mxu0 %v5892
        %8578 = vmatpush2.bf16.msra.mxu0 %v5891
        %8579 = vmatprep.subr.bf16.mxu0 %v5888
        %8580 = vmatpush2.bf16.msra.mxu0 %v5887
        %8581 = vmatprep.subr.bf16.mxu0 %v5884
        %8582 = vmatpush2.bf16.msra.mxu0 %v5883
        %8583 = vmatprep.mubr.bf16.mxu0 %v1651
        %8584 = vmatmul.mubr.bf16.gmra.mxu0 %v1637
        %v8585 = vpop.f32.mrf.mxu0
        %v8586 = vadd.f32 %v8545, %v8585
        %v8587 = vpop.f32.mrf.mxu0
        %v8588 = vadd.f32 %v8547, %v8587
        %v8589 = vpop.f32.mrf.mxu0
        %v8590 = vpop.f32.mrf.mxu0
        %8591 = vdwg.mxu0
        %8592 = vmatprep.subr.bf16.mxu0 %v5944
        %8593 = vmatpush1.bf16.msra.mxu0 %v5943
        %8594 = vmatprep.subr.bf16.mxu0 %v5940
        %8595 = vmatpush1.bf16.msra.mxu0 %v5939
        %8596 = vmatprep.subr.bf16.mxu0 %v5936
        %8597 = vmatpush1.bf16.msra.mxu0 %v5935
        %8598 = vmatprep.subr.bf16.mxu0 %v5932
        %8599 = vmatpush1.bf16.msra.mxu0 %v5931
        %8600 = vmatprep.subr.bf16.mxu0 %v5928
        %8601 = vmatpush1.bf16.msra.mxu0 %v5927
        %8602 = vmatprep.subr.bf16.mxu0 %v5924
        %8603 = vmatpush1.bf16.msra.mxu0 %v5923
        %8604 = vmatprep.subr.bf16.mxu0 %v5920
        %8605 = vmatpush1.bf16.msra.mxu0 %v5919
        %8606 = vmatprep.subr.bf16.mxu0 %v5916
        %8607 = vmatpush1.bf16.msra.mxu0 %v5915
        %8608 = vmatprep.subr.bf16.mxu0 %v5976
        %8609 = vmatpush2.bf16.msra.mxu0 %v5975
        %8610 = vmatprep.subr.bf16.mxu0 %v5972
        %8611 = vmatpush2.bf16.msra.mxu0 %v5971
        %8612 = vmatprep.subr.bf16.mxu0 %v5968
        %8613 = vmatpush2.bf16.msra.mxu0 %v5967
        %8614 = vmatprep.subr.bf16.mxu0 %v5964
        %8615 = vmatpush2.bf16.msra.mxu0 %v5963
        %8616 = vmatprep.subr.bf16.mxu0 %v5960
        %8617 = vmatpush2.bf16.msra.mxu0 %v5959
        %8618 = vmatprep.subr.bf16.mxu0 %v5956
        %8619 = vmatpush2.bf16.msra.mxu0 %v5955
        %8620 = vmatprep.subr.bf16.mxu0 %v5952
        %8621 = vmatpush2.bf16.msra.mxu0 %v5951
        %8622 = vmatprep.subr.bf16.mxu0 %v5948
        %8623 = vmatpush2.bf16.msra.mxu0 %v5947
        %8624 = vmatprep.mubr.bf16.mxu0 %v1661
        %8625 = vmatmul.mubr.bf16.gmra.mxu0 %v1659
        %v8626 = vpop.f32.mrf.mxu0
        %v8627 = vadd.f32 %v8586, %v8626
        %v8628 = vpop.f32.mrf.mxu0
        %v8629 = vadd.f32 %v8588, %v8628
        %v8630 = vpop.f32.mrf.mxu0
        %v8631 = vpop.f32.mrf.mxu0
        %8632 = vdwg.mxu0
        %8633 = vmatprep.subr.bf16.mxu0 %v6008
        %8634 = vmatpush1.bf16.msra.mxu0 %v6007
        %8635 = vmatprep.subr.bf16.mxu0 %v6004
        %8636 = vmatpush1.bf16.msra.mxu0 %v6003
        %8637 = vmatprep.subr.bf16.mxu0 %v6000
        %8638 = vmatpush1.bf16.msra.mxu0 %v5999
        %8639 = vmatprep.subr.bf16.mxu0 %v5996
        %8640 = vmatpush1.bf16.msra.mxu0 %v5995
        %8641 = vmatprep.subr.bf16.mxu0 %v5992
        %8642 = vmatpush1.bf16.msra.mxu0 %v5991
        %8643 = vmatprep.subr.bf16.mxu0 %v5988
        %8644 = vmatpush1.bf16.msra.mxu0 %v5987
        %8645 = vmatprep.subr.bf16.mxu0 %v5984
        %8646 = vmatpush1.bf16.msra.mxu0 %v5983
        %8647 = vmatprep.subr.bf16.mxu0 %v5980
        %8648 = vmatpush1.bf16.msra.mxu0 %v5979
        %8649 = vmatprep.subr.bf16.mxu0 %v6040
        %8650 = vmatpush2.bf16.msra.mxu0 %v6039
        %8651 = vmatprep.subr.bf16.mxu0 %v6036
        %8652 = vmatpush2.bf16.msra.mxu0 %v6035
        %8653 = vmatprep.subr.bf16.mxu0 %v6032
        %8654 = vmatpush2.bf16.msra.mxu0 %v6031
        %8655 = vmatprep.subr.bf16.mxu0 %v6028
        %8656 = vmatpush2.bf16.msra.mxu0 %v6027
        %8657 = vmatprep.subr.bf16.mxu0 %v6024
        %8658 = vmatpush2.bf16.msra.mxu0 %v6023
        %8659 = vmatprep.subr.bf16.mxu0 %v6020
        %8660 = vmatpush2.bf16.msra.mxu0 %v6019
        %8661 = vmatprep.subr.bf16.mxu0 %v6016
        %8662 = vmatpush2.bf16.msra.mxu0 %v6015
        %8663 = vmatprep.subr.bf16.mxu0 %v6012
        %8664 = vmatpush2.bf16.msra.mxu0 %v6011
        %8665 = vmatprep.mubr.bf16.mxu0 %v1658
        %8666 = vmatmul.mubr.bf16.gmra.mxu0 %v1644
        %v8667 = vpop.f32.mrf.mxu0
        %v8668 = vadd.f32 %v8627, %v8667
        %v8669 = vpop.f32.mrf.mxu0
        %v8670 = vadd.f32 %v8629, %v8669
        %v8671 = vpop.f32.mrf.mxu0
        %v8672 = vpop.f32.mrf.mxu0
        %8673 = vdwg.mxu0
        %8674 = vmatprep.subr.bf16.mxu0 %v6072
        %8675 = vmatpush1.bf16.msra.mxu0 %v6071
        %8676 = vmatprep.subr.bf16.mxu0 %v6068
        %8677 = vmatpush1.bf16.msra.mxu0 %v6067
        %8678 = vmatprep.subr.bf16.mxu0 %v6064
        %8679 = vmatpush1.bf16.msra.mxu0 %v6063
        %8680 = vmatprep.subr.bf16.mxu0 %v6060
        %8681 = vmatpush1.bf16.msra.mxu0 %v6059
        %8682 = vmatprep.subr.bf16.mxu0 %v6056
        %8683 = vmatpush1.bf16.msra.mxu0 %v6055
        %8684 = vmatprep.subr.bf16.mxu0 %v6052
        %8685 = vmatpush1.bf16.msra.mxu0 %v6051
        %8686 = vmatprep.subr.bf16.mxu0 %v6048
        %8687 = vmatpush1.bf16.msra.mxu0 %v6047
        %8688 = vmatprep.subr.bf16.mxu0 %v6044
        %8689 = vmatpush1.bf16.msra.mxu0 %v6043
        %8690 = vmatprep.subr.bf16.mxu0 %v6104
        %8691 = vmatpush2.bf16.msra.mxu0 %v6103
        %8692 = vmatprep.subr.bf16.mxu0 %v6100
        %8693 = vmatpush2.bf16.msra.mxu0 %v6099
        %8694 = vmatprep.subr.bf16.mxu0 %v6096
        %8695 = vmatpush2.bf16.msra.mxu0 %v6095
        %8696 = vmatprep.subr.bf16.mxu0 %v6092
        %8697 = vmatpush2.bf16.msra.mxu0 %v6091
        %8698 = vmatprep.subr.bf16.mxu0 %v6088
        %8699 = vmatpush2.bf16.msra.mxu0 %v6087
        %8700 = vmatprep.subr.bf16.mxu0 %v6084
        %8701 = vmatpush2.bf16.msra.mxu0 %v6083
        %8702 = vmatprep.subr.bf16.mxu0 %v6080
        %8703 = vmatpush2.bf16.msra.mxu0 %v6079
        %8704 = vmatprep.subr.bf16.mxu0 %v6076
        %8705 = vmatpush2.bf16.msra.mxu0 %v6075
        %8706 = vmatprep.mubr.bf16.mxu0 %v1662
        %8707 = vmatmul.mubr.bf16.gmra.mxu0 %v1660
        %v8708 = vpop.f32.mrf.mxu0
        %v8709 = vadd.f32 %v8668, %v8708
        %v8710 = vpop.f32.mrf.mxu0
        %v8711 = vadd.f32 %v8670, %v8710
        %v8712 = vpop.f32.mrf.mxu0
        %v8713 = vpop.f32.mrf.mxu0
        %8714 = vdwg.mxu0
        %8715 = vmatprep.subr.bf16.mxu0 %v6136
        %8716 = vmatpush1.bf16.msra.mxu0 %v6135
        %8717 = vmatprep.subr.bf16.mxu0 %v6132
        %8718 = vmatpush1.bf16.msra.mxu0 %v6131
        %8719 = vmatprep.subr.bf16.mxu0 %v6128
        %8720 = vmatpush1.bf16.msra.mxu0 %v6127
        %8721 = vmatprep.subr.bf16.mxu0 %v6124
        %8722 = vmatpush1.bf16.msra.mxu0 %v6123
        %8723 = vmatprep.subr.bf16.mxu0 %v6120
        %8724 = vmatpush1.bf16.msra.mxu0 %v6119
        %8725 = vmatprep.subr.bf16.mxu0 %v6116
        %8726 = vmatpush1.bf16.msra.mxu0 %v6115
        %8727 = vmatprep.subr.bf16.mxu0 %v6112
        %8728 = vmatpush1.bf16.msra.mxu0 %v6111
        %8729 = vmatprep.subr.bf16.mxu0 %v6108
        %8730 = vmatpush1.bf16.msra.mxu0 %v6107
        %8731 = vmatprep.subr.bf16.mxu0 %v6168
        %8732 = vmatpush2.bf16.msra.mxu0 %v6167
        %8733 = vmatprep.subr.bf16.mxu0 %v6164
        %8734 = vmatpush2.bf16.msra.mxu0 %v6163
        %8735 = vmatprep.subr.bf16.mxu0 %v6160
        %8736 = vmatpush2.bf16.msra.mxu0 %v6159
        %8737 = vmatprep.subr.bf16.mxu0 %v6156
        %8738 = vmatpush2.bf16.msra.mxu0 %v6155
        %8739 = vmatprep.subr.bf16.mxu0 %v6152
        %8740 = vmatpush2.bf16.msra.mxu0 %v6151
        %8741 = vmatprep.subr.bf16.mxu0 %v6148
        %8742 = vmatpush2.bf16.msra.mxu0 %v6147
        %8743 = vmatprep.subr.bf16.mxu0 %v6144
        %8744 = vmatpush2.bf16.msra.mxu0 %v6143
        %8745 = vmatprep.subr.bf16.mxu0 %v6140
        %8746 = vmatpush2.bf16.msra.mxu0 %v6139
        %8747 = vmatprep.mubr.bf16.mxu0 %v1684
        %8748 = vmatmul.mubr.bf16.gmra.mxu0 %v1677
        %v8749 = vpop.f32.mrf.mxu0
        %v8750 = vadd.f32 %v8709, %v8749
        %v8751 = vpop.f32.mrf.mxu0
        %v8752 = vadd.f32 %v8711, %v8751
        %v8753 = vpop.f32.mrf.mxu0
        %v8754 = vpop.f32.mrf.mxu0
        %8755 = vdwg.mxu0
        %8756 = vmatprep.subr.bf16.mxu0 %v6200
        %8757 = vmatpush1.bf16.msra.mxu0 %v6199
        %8758 = vmatprep.subr.bf16.mxu0 %v6196
        %8759 = vmatpush1.bf16.msra.mxu0 %v6195
        %8760 = vmatprep.subr.bf16.mxu0 %v6192
        %8761 = vmatpush1.bf16.msra.mxu0 %v6191
        %8762 = vmatprep.subr.bf16.mxu0 %v6188
        %8763 = vmatpush1.bf16.msra.mxu0 %v6187
        %8764 = vmatprep.subr.bf16.mxu0 %v6184
        %8765 = vmatpush1.bf16.msra.mxu0 %v6183
        %8766 = vmatprep.subr.bf16.mxu0 %v6180
        %8767 = vmatpush1.bf16.msra.mxu0 %v6179
        %8768 = vmatprep.subr.bf16.mxu0 %v6176
        %8769 = vmatpush1.bf16.msra.mxu0 %v6175
        %8770 = vmatprep.subr.bf16.mxu0 %v6172
        %8771 = vmatpush1.bf16.msra.mxu0 %v6171
        %8772 = vmatprep.subr.bf16.mxu0 0
        %8773 = vmatpush2.bf16.msra.mxu0 0
        %8774 = vmatprep.subr.bf16.mxu0 0
        %8775 = vmatpush2.bf16.msra.mxu0 0
        %8776 = vmatprep.subr.bf16.mxu0 0
        %8777 = vmatpush2.bf16.msra.mxu0 0
        %8778 = vmatprep.subr.bf16.mxu0 0
        %8779 = vmatpush2.bf16.msra.mxu0 0
        %8780 = vmatprep.subr.bf16.mxu0 0
        %8781 = vmatpush2.bf16.msra.mxu0 0
        %8782 = vmatprep.subr.bf16.mxu0 0
        %8783 = vmatpush2.bf16.msra.mxu0 0
        %8784 = vmatprep.subr.bf16.mxu0 0
        %8785 = vmatpush2.bf16.msra.mxu0 0
        %8786 = vmatprep.subr.bf16.mxu0 0
        %8787 = vmatpush2.bf16.msra.mxu0 0
        %8788 = vmatprep.mubr.bf16.mxu0 0
        %8789 = vmatmul.mubr.bf16.gmra.mxu0 %v1685
        %v8790 = vpop.f32.mrf.mxu0
        %v8791 = vadd.f32 %v8750, %v8790
        %v8792 = vpop.f32.mrf.mxu0
        %v8793 = vadd.f32 %v8752, %v8792
        %v8794 = vpop.f32.mrf.mxu0
        %v8795 = vpop.f32.mrf.mxu0
        %8796 = vdwg.mxu0
        %v8801 = vcombine.low %v8053, %v8055
        %v8802 = vcombine.low %v8791, %v8793
        %v8804 = vunpack.c.l.s4 1983009808
        %v8805 = vunpack.c.0.s8 %v8804
        %v8806 = vlaneseq
        %v8807 = vshrl.u32 %v8806, 7
        %v8808 = vsub.s32 %v8805, %v8807
        %v8809 = vrot.slane %v8801, %v8808
        %v8811 = vunpack.c.l.s4 1983009808
        %v8812 = vunpack.c.0.s8 %v8811
        %v8813 = vlaneseq
        %v8814 = vshrl.u32 %v8813, 7
        %v8815 = vsub.s32 %v8812, %v8814
        %v8816 = vrot.slane %v8802, %v8815
        %v8817 = vcombine.low %v8809, %v8816
        %v8819 = vadd.f32 %v336, %v8817
        %8820 = vst [vmem:[#allocation2] sm:$0xff] %v8819
        %p8821 = scmp.eq.s32.totalorder %s26, 1
        // Predicated region
        $region53: #{squeeze_head.1} parent=35 // pred_check
          %p8822 = pneg %p8821
        $region54: #{squeeze_head.1} parent=35 // pred_check_branch
          %8824 = sbr.rel (%p8822) target = $region56
        $region55: #{squeeze_head.1} parent=35 // pred_region
          %v8825 = vld [vmem:[#allocation2] sm:$0xff]
          %v8826 = vld [vmem:[%s271] sm:$0xf]
          %v8828 = vlaneseq
          %v8829 = vshrl.u32 %v8828, 7
          %v8830 = vsub.s32 0, %v8829
          %v8831 = vrot.slane %v8826, %v8830
          %v8832 = vlaneseq
          %v8833 = vshrl.u32 %v8832, 7
          %v8834 = vsub.s32 1, %v8833
          %v8835 = vrot.slane %v8826, %v8834
          %v8836 = vlaneseq
          %v8837 = vshrl.u32 %v8836, 7
          %v8838 = vsub.s32 2, %v8837
          %v8839 = vrot.slane %v8826, %v8838
          %v8840 = vlaneseq
          %v8841 = vshrl.u32 %v8840, 7
          %v8842 = vsub.s32 3, %v8841
          %v8843 = vrot.slane %v8826, %v8842
          %v8844 = vcombine.low %v8831, %v8835
          %v8845 = vcombine.low %v8839, %v8843
          %v8847 = vunpack.c.l.s4 1983009808
          %v8848 = vunpack.c.0.s8 %v8847
          %v8849 = vlaneseq
          %v8850 = vshrl.u32 %v8849, 7
          %v8851 = vsub.s32 %v8848, %v8850
          %v8852 = vrot.slane %v8844, %v8851
          %v8854 = vunpack.c.l.s4 1983009808
          %v8855 = vunpack.c.0.s8 %v8854
          %v8856 = vlaneseq
          %v8857 = vshrl.u32 %v8856, 7
          %v8858 = vsub.s32 %v8855, %v8857
          %v8859 = vrot.slane %v8845, %v8858
          %v8860 = vcombine.low %v8852, %v8859
          %v8862 = vadd.f32 %v8825, %v8860
          %v8863 = vmax.f32 %v8862, 0.0
          %v8865 = vcombine.high %v8863, %v8863
          %v8867 = vunpack.c.l.s4 1983009808
          %v8868 = vunpack.c.0.s8 %v8867
          %v8869 = vlaneseq
          %v8870 = vshrl.u32 %v8869, 7
          %v8871 = vsub.s32 %v8868, %v8870
          %v8872 = vrot.slane %v8863, %v8871
          %v8874 = vunpack.c.l.s4 1983009808
          %v8875 = vunpack.c.0.s8 %v8874
          %v8876 = vlaneseq
          %v8877 = vshrl.u32 %v8876, 7
          %v8878 = vsub.s32 %v8875, %v8877
          %v8879 = vrot.slane %v8865, %v8878
          %v8880 = vcombine.high %v8872, %v8872
          %v8881 = vcombine.high %v8879, %v8879
          %v8886 = vpack.c.bf16 %v8872, %v8872
          %v8887 = vpack.c.bf16 %v8880, %v8880
          %v8888 = vpack.c.bf16 %v8879, %v8879
          %v8889 = vpack.c.bf16 %v8881, %v8881
          %v8890 = vld [vmem:[%s280] sm:$0xff]
          %v8891 = vld [vmem:[%s280 + $0x8] sm:$0xff]
          %v8892 = vld [vmem:[%s280 + $0x10] sm:$0xff]
          %v8893 = vld [vmem:[%s280 + $0x18] sm:$0xff]
          %v8894 = vld [vmem:[%s280 + $0x20] sm:$0xff]
          %v8895 = vld [vmem:[%s280 + $0x28] sm:$0xff]
          %v8896 = vld [vmem:[%s280 + $0x30] sm:$0xff]
          %v8897 = vld [vmem:[%s280 + $0x38] sm:$0xff]
          %v8898 = vld [vmem:[%s280 + $0x40] sm:$0xff]
          %v8899 = vld [vmem:[%s280 + $0x48] sm:$0xff]
          %v8900 = vld [vmem:[%s280 + $0x50] sm:$0xff]
          %v8901 = vld [vmem:[%s280 + $0x58] sm:$0xff]
          %v8902 = vld [vmem:[%s280 + $0x60] sm:$0xff]
          %v8903 = vld [vmem:[%s280 + $0x68] sm:$0xff]
          %v8904 = vld [vmem:[%s280 + $0x70] sm:$0xff]
          %v8905 = vld [vmem:[%s280 + $0x78] sm:$0xff]
          %v8906 = vld [vmem:[%s280 + $0x80] sm:$0xff]
          %v8907 = vld [vmem:[%s280 + $0x88] sm:$0xff]
          %v8908 = vld [vmem:[%s280 + $0x90] sm:$0xff]
          %v8909 = vld [vmem:[%s280 + $0x98] sm:$0xff]
          %v8910 = vld [vmem:[%s280 + $0xa0] sm:$0xff]
          %v8911 = vld [vmem:[%s280 + $0xa8] sm:$0xff]
          %v8912 = vld [vmem:[%s280 + $0xb0] sm:$0xff]
          %v8913 = vld [vmem:[%s280 + $0xb8] sm:$0xff]
          %v8914 = vld [vmem:[%s280 + $0xc0] sm:$0xff]
          %v8915 = vld [vmem:[%s280 + $0xc8] sm:$0xff]
          %v8916 = vld [vmem:[%s280 + $0xd0] sm:$0xff]
          %v8917 = vld [vmem:[%s280 + $0xd8] sm:$0xff]
          %v8918 = vld [vmem:[%s280 + $0xe0] sm:$0xff]
          %v8919 = vld [vmem:[%s280 + $0xe8] sm:$0xff]
          %v8920 = vld [vmem:[%s280 + $0xf0] sm:$0xff]
          %v8921 = vld [vmem:[%s280 + $0xf8] sm:$0xff]
          %v8922 = vld [vmem:[%s280 + $0x100] sm:$0xff]
          %v8923 = vld [vmem:[%s280 + $0x108] sm:$0xff]
          %v8924 = vld [vmem:[%s280 + $0x110] sm:$0xff]
          %v8925 = vld [vmem:[%s280 + $0x118] sm:$0xff]
          %v8926 = vld [vmem:[%s280 + $0x120] sm:$0xff]
          %v8927 = vld [vmem:[%s280 + $0x128] sm:$0xff]
          %v8928 = vld [vmem:[%s280 + $0x130] sm:$0xff]
          %v8929 = vld [vmem:[%s280 + $0x138] sm:$0xff]
          %v8930 = vld [vmem:[%s280 + $0x140] sm:$0xff]
          %v8931 = vld [vmem:[%s280 + $0x148] sm:$0xff]
          %v8932 = vld [vmem:[%s280 + $0x150] sm:$0xff]
          %v8933 = vld [vmem:[%s280 + $0x158] sm:$0xff]
          %v8934 = vld [vmem:[%s280 + $0x160] sm:$0xff]
          %v8935 = vld [vmem:[%s280 + $0x168] sm:$0xff]
          %v8936 = vld [vmem:[%s280 + $0x170] sm:$0xff]
          %v8937 = vld [vmem:[%s280 + $0x178] sm:$0xff]
          %v8938 = vld [vmem:[%s280 + $0x180] sm:$0xff]
          %v8939 = vld [vmem:[%s280 + $0x188] sm:$0xff]
          %v8940 = vld [vmem:[%s280 + $0x190] sm:$0xff]
          %v8941 = vld [vmem:[%s280 + $0x198] sm:$0xff]
          %v8942 = vld [vmem:[%s280 + $0x1a0] sm:$0xff]
          %v8943 = vld [vmem:[%s280 + $0x1a8] sm:$0xff]
          %v8944 = vld [vmem:[%s280 + $0x1b0] sm:$0xff]
          %v8945 = vld [vmem:[%s280 + $0x1b8] sm:$0xff]
          %v8946 = vld [vmem:[%s280 + $0x1c0] sm:$0xff]
          %v8947 = vld [vmem:[%s280 + $0x1c8] sm:$0xff]
          %v8948 = vld [vmem:[%s280 + $0x1d0] sm:$0xff]
          %v8949 = vld [vmem:[%s280 + $0x1d8] sm:$0xff]
          %v8950 = vld [vmem:[%s280 + $0x1e0] sm:$0xff]
          %v8951 = vld [vmem:[%s280 + $0x1e8] sm:$0xff]
          %v8952 = vld [vmem:[%s280 + $0x1f0] sm:$0xff]
          %v8953 = vld [vmem:[%s280 + $0x1f8] sm:$0xff]
          %v8954 = vld [vmem:[%s280 + $0x200] sm:$0xff]
          %v8955 = vld [vmem:[%s280 + $0x208] sm:$0xff]
          %v8956 = vld [vmem:[%s280 + $0x210] sm:$0xff]
          %v8957 = vld [vmem:[%s280 + $0x218] sm:$0xff]
          %v8958 = vld [vmem:[%s280 + $0x220] sm:$0xff]
          %v8959 = vld [vmem:[%s280 + $0x228] sm:$0xff]
          %v8960 = vld [vmem:[%s280 + $0x230] sm:$0xff]
          %v8961 = vld [vmem:[%s280 + $0x238] sm:$0xff]
          %v8962 = vld [vmem:[%s280 + $0x240] sm:$0xff]
          %v8963 = vld [vmem:[%s280 + $0x248] sm:$0xff]
          %v8964 = vld [vmem:[%s280 + $0x250] sm:$0xff]
          %v8965 = vld [vmem:[%s280 + $0x258] sm:$0xff]
          %v8966 = vld [vmem:[%s280 + $0x260] sm:$0xff]
          %v8967 = vld [vmem:[%s280 + $0x268] sm:$0xff]
          %v8968 = vld [vmem:[%s280 + $0x270] sm:$0xff]
          %v8969 = vld [vmem:[%s280 + $0x278] sm:$0xff]
          %v8970 = vld [vmem:[%s280 + $0x280] sm:$0xff]
          %v8971 = vld [vmem:[%s280 + $0x288] sm:$0xff]
          %v8972 = vld [vmem:[%s280 + $0x290] sm:$0xff]
          %v8973 = vld [vmem:[%s280 + $0x298] sm:$0xff]
          %v8974 = vld [vmem:[%s280 + $0x2a0] sm:$0xff]
          %v8975 = vld [vmem:[%s280 + $0x2a8] sm:$0xff]
          %v8976 = vld [vmem:[%s280 + $0x2b0] sm:$0xff]
          %v8977 = vld [vmem:[%s280 + $0x2b8] sm:$0xff]
          %v8978 = vld [vmem:[%s280 + $0x2c0] sm:$0xff]
          %v8979 = vld [vmem:[%s280 + $0x2c8] sm:$0xff]
          %v8980 = vld [vmem:[%s280 + $0x2d0] sm:$0xff]
          %v8981 = vld [vmem:[%s280 + $0x2d8] sm:$0xff]
          %v8982 = vld [vmem:[%s280 + $0x2e0] sm:$0xff]
          %v8983 = vld [vmem:[%s280 + $0x2e8] sm:$0xff]
          %v8984 = vld [vmem:[%s280 + $0x2f0] sm:$0xff]
          %v8985 = vld [vmem:[%s280 + $0x2f8] sm:$0xff]
          %v8986 = vld [vmem:[%s280 + $0x300] sm:$0xff]
          %v8987 = vld [vmem:[%s280 + $0x308] sm:$0xff]
          %v8988 = vld [vmem:[%s280 + $0x310] sm:$0xff]
          %v8989 = vld [vmem:[%s280 + $0x318] sm:$0xff]
          %v8990 = vld [vmem:[%s280 + $0x320] sm:$0xff]
          %v8991 = vld [vmem:[%s280 + $0x328] sm:$0xff]
          %v8992 = vld [vmem:[%s280 + $0x330] sm:$0xff]
          %v8993 = vld [vmem:[%s280 + $0x338] sm:$0xff]
          %v8994 = vld [vmem:[%s280 + $0x340] sm:$0xff]
          %v8995 = vld [vmem:[%s280 + $0x348] sm:$0xff]
          %v8996 = vld [vmem:[%s280 + $0x350] sm:$0xff]
          %v8997 = vld [vmem:[%s280 + $0x358] sm:$0xff]
          %v8998 = vld [vmem:[%s280 + $0x360] sm:$0xff]
          %v8999 = vld [vmem:[%s280 + $0x368] sm:$0xff]
          %v9000 = vld [vmem:[%s280 + $0x370] sm:$0xff]
          %v9001 = vld [vmem:[%s280 + $0x378] sm:$0xff]
          %v9002 = vld [vmem:[%s280 + $0x380] sm:$0xff]
          %v9003 = vld [vmem:[%s280 + $0x388] sm:$0xff]
          %v9004 = vld [vmem:[%s280 + $0x390] sm:$0xff]
          %v9005 = vld [vmem:[%s280 + $0x398] sm:$0xff]
          %v9006 = vld [vmem:[%s280 + $0x3a0] sm:$0xff]
          %v9007 = vld [vmem:[%s280 + $0x3a8] sm:$0xff]
          %v9008 = vld [vmem:[%s280 + $0x3b0] sm:$0xff]
          %v9009 = vld [vmem:[%s280 + $0x3b8] sm:$0xff]
          %v9010 = vld [vmem:[%s280 + $0x3c0] sm:$0xff]
          %v9011 = vld [vmem:[%s280 + $0x3c8] sm:$0xff]
          %v9012 = vld [vmem:[%s280 + $0x3d0] sm:$0xff]
          %v9013 = vld [vmem:[%s280 + $0x3d8] sm:$0xff]
          %v9014 = vld [vmem:[%s280 + $0x3e0] sm:$0xff]
          %v9015 = vld [vmem:[%s280 + $0x3e8] sm:$0xff]
          %v9016 = vld [vmem:[%s280 + $0x3f0] sm:$0xff]
          %v9017 = vld [vmem:[%s280 + $0x3f8] sm:$0xff]
          %v9146 = vunpack.c.l.b16 %v8890
          %v9147 = vunpack.c.h.b16 %v8890
          %v9148 = vunpack.c.l.b16 %v8891
          %v9149 = vunpack.c.h.b16 %v8891
          %v9150 = vunpack.c.l.b16 %v8892
          %v9151 = vunpack.c.h.b16 %v8892
          %v9152 = vunpack.c.l.b16 %v8893
          %v9153 = vunpack.c.h.b16 %v8893
          %v9154 = vunpack.c.l.b16 %v8894
          %v9155 = vunpack.c.h.b16 %v8894
          %v9156 = vunpack.c.l.b16 %v8895
          %v9157 = vunpack.c.h.b16 %v8895
          %v9158 = vunpack.c.l.b16 %v8896
          %v9159 = vunpack.c.h.b16 %v8896
          %v9160 = vunpack.c.l.b16 %v8897
          %v9161 = vunpack.c.h.b16 %v8897
          %v9162 = vunpack.c.l.b16 %v8898
          %v9163 = vunpack.c.h.b16 %v8898
          %v9164 = vunpack.c.l.b16 %v8899
          %v9165 = vunpack.c.h.b16 %v8899
          %v9166 = vunpack.c.l.b16 %v8900
          %v9167 = vunpack.c.h.b16 %v8900
          %v9168 = vunpack.c.l.b16 %v8901
          %v9169 = vunpack.c.h.b16 %v8901
          %v9170 = vunpack.c.l.b16 %v8902
          %v9171 = vunpack.c.h.b16 %v8902
          %v9172 = vunpack.c.l.b16 %v8903
          %v9173 = vunpack.c.h.b16 %v8903
          %v9174 = vunpack.c.l.b16 %v8904
          %v9175 = vunpack.c.h.b16 %v8904
          %v9176 = vunpack.c.l.b16 %v8905
          %v9177 = vunpack.c.h.b16 %v8905
          %v9178 = vunpack.c.l.b16 %v8906
          %v9179 = vunpack.c.h.b16 %v8906
          %v9180 = vunpack.c.l.b16 %v8907
          %v9181 = vunpack.c.h.b16 %v8907
          %v9182 = vunpack.c.l.b16 %v8908
          %v9183 = vunpack.c.h.b16 %v8908
          %v9184 = vunpack.c.l.b16 %v8909
          %v9185 = vunpack.c.h.b16 %v8909
          %v9186 = vunpack.c.l.b16 %v8910
          %v9187 = vunpack.c.h.b16 %v8910
          %v9188 = vunpack.c.l.b16 %v8911
          %v9189 = vunpack.c.h.b16 %v8911
          %v9190 = vunpack.c.l.b16 %v8912
          %v9191 = vunpack.c.h.b16 %v8912
          %v9192 = vunpack.c.l.b16 %v8913
          %v9193 = vunpack.c.h.b16 %v8913
          %v9194 = vunpack.c.l.b16 %v8914
          %v9195 = vunpack.c.h.b16 %v8914
          %v9196 = vunpack.c.l.b16 %v8915
          %v9197 = vunpack.c.h.b16 %v8915
          %v9198 = vunpack.c.l.b16 %v8916
          %v9199 = vunpack.c.h.b16 %v8916
          %v9200 = vunpack.c.l.b16 %v8917
          %v9201 = vunpack.c.h.b16 %v8917
          %v9202 = vunpack.c.l.b16 %v8918
          %v9203 = vunpack.c.h.b16 %v8918
          %v9204 = vunpack.c.l.b16 %v8919
          %v9205 = vunpack.c.h.b16 %v8919
          %v9206 = vunpack.c.l.b16 %v8920
          %v9207 = vunpack.c.h.b16 %v8920
          %v9208 = vunpack.c.l.b16 %v8921
          %v9209 = vunpack.c.h.b16 %v8921
          %v9210 = vunpack.c.l.b16 %v8922
          %v9211 = vunpack.c.h.b16 %v8922
          %v9212 = vunpack.c.l.b16 %v8923
          %v9213 = vunpack.c.h.b16 %v8923
          %v9214 = vunpack.c.l.b16 %v8924
          %v9215 = vunpack.c.h.b16 %v8924
          %v9216 = vunpack.c.l.b16 %v8925
          %v9217 = vunpack.c.h.b16 %v8925
          %v9218 = vunpack.c.l.b16 %v8926
          %v9219 = vunpack.c.h.b16 %v8926
          %v9220 = vunpack.c.l.b16 %v8927
          %v9221 = vunpack.c.h.b16 %v8927
          %v9222 = vunpack.c.l.b16 %v8928
          %v9223 = vunpack.c.h.b16 %v8928
          %v9224 = vunpack.c.l.b16 %v8929
          %v9225 = vunpack.c.h.b16 %v8929
          %v9226 = vunpack.c.l.b16 %v8930
          %v9227 = vunpack.c.h.b16 %v8930
          %v9228 = vunpack.c.l.b16 %v8931
          %v9229 = vunpack.c.h.b16 %v8931
          %v9230 = vunpack.c.l.b16 %v8932
          %v9231 = vunpack.c.h.b16 %v8932
          %v9232 = vunpack.c.l.b16 %v8933
          %v9233 = vunpack.c.h.b16 %v8933
          %v9234 = vunpack.c.l.b16 %v8934
          %v9235 = vunpack.c.h.b16 %v8934
          %v9236 = vunpack.c.l.b16 %v8935
          %v9237 = vunpack.c.h.b16 %v8935
          %v9238 = vunpack.c.l.b16 %v8936
          %v9239 = vunpack.c.h.b16 %v8936
          %v9240 = vunpack.c.l.b16 %v8937
          %v9241 = vunpack.c.h.b16 %v8937
          %v9242 = vunpack.c.l.b16 %v8938
          %v9243 = vunpack.c.h.b16 %v8938
          %v9244 = vunpack.c.l.b16 %v8939
          %v9245 = vunpack.c.h.b16 %v8939
          %v9246 = vunpack.c.l.b16 %v8940
          %v9247 = vunpack.c.h.b16 %v8940
          %v9248 = vunpack.c.l.b16 %v8941
          %v9249 = vunpack.c.h.b16 %v8941
          %v9250 = vunpack.c.l.b16 %v8942
          %v9251 = vunpack.c.h.b16 %v8942
          %v9252 = vunpack.c.l.b16 %v8943
          %v9253 = vunpack.c.h.b16 %v8943
          %v9254 = vunpack.c.l.b16 %v8944
          %v9255 = vunpack.c.h.b16 %v8944
          %v9256 = vunpack.c.l.b16 %v8945
          %v9257 = vunpack.c.h.b16 %v8945
          %v9258 = vunpack.c.l.b16 %v8946
          %v9259 = vunpack.c.h.b16 %v8946
          %v9260 = vunpack.c.l.b16 %v8947
          %v9261 = vunpack.c.h.b16 %v8947
          %v9262 = vunpack.c.l.b16 %v8948
          %v9263 = vunpack.c.h.b16 %v8948
          %v9264 = vunpack.c.l.b16 %v8949
          %v9265 = vunpack.c.h.b16 %v8949
          %v9266 = vunpack.c.l.b16 %v8950
          %v9267 = vunpack.c.h.b16 %v8950
          %v9268 = vunpack.c.l.b16 %v8951
          %v9269 = vunpack.c.h.b16 %v8951
          %v9270 = vunpack.c.l.b16 %v8952
          %v9271 = vunpack.c.h.b16 %v8952
          %v9272 = vunpack.c.l.b16 %v8953
          %v9273 = vunpack.c.h.b16 %v8953
          %v9274 = vunpack.c.l.b16 %v8954
          %v9275 = vunpack.c.h.b16 %v8954
          %v9276 = vunpack.c.l.b16 %v8955
          %v9277 = vunpack.c.h.b16 %v8955
          %v9278 = vunpack.c.l.b16 %v8956
          %v9279 = vunpack.c.h.b16 %v8956
          %v9280 = vunpack.c.l.b16 %v8957
          %v9281 = vunpack.c.h.b16 %v8957
          %v9282 = vunpack.c.l.b16 %v8958
          %v9283 = vunpack.c.h.b16 %v8958
          %v9284 = vunpack.c.l.b16 %v8959
          %v9285 = vunpack.c.h.b16 %v8959
          %v9286 = vunpack.c.l.b16 %v8960
          %v9287 = vunpack.c.h.b16 %v8960
          %v9288 = vunpack.c.l.b16 %v8961
          %v9289 = vunpack.c.h.b16 %v8961
          %v9290 = vunpack.c.l.b16 %v8962
          %v9291 = vunpack.c.h.b16 %v8962
          %v9292 = vunpack.c.l.b16 %v8963
          %v9293 = vunpack.c.h.b16 %v8963
          %v9294 = vunpack.c.l.b16 %v8964
          %v9295 = vunpack.c.h.b16 %v8964
          %v9296 = vunpack.c.l.b16 %v8965
          %v9297 = vunpack.c.h.b16 %v8965
          %v9298 = vunpack.c.l.b16 %v8966
          %v9299 = vunpack.c.h.b16 %v8966
          %v9300 = vunpack.c.l.b16 %v8967
          %v9301 = vunpack.c.h.b16 %v8967
          %v9302 = vunpack.c.l.b16 %v8968
          %v9303 = vunpack.c.h.b16 %v8968
          %v9304 = vunpack.c.l.b16 %v8969
          %v9305 = vunpack.c.h.b16 %v8969
          %v9306 = vunpack.c.l.b16 %v8970
          %v9307 = vunpack.c.h.b16 %v8970
          %v9308 = vunpack.c.l.b16 %v8971
          %v9309 = vunpack.c.h.b16 %v8971
          %v9310 = vunpack.c.l.b16 %v8972
          %v9311 = vunpack.c.h.b16 %v8972
          %v9312 = vunpack.c.l.b16 %v8973
          %v9313 = vunpack.c.h.b16 %v8973
          %v9314 = vunpack.c.l.b16 %v8974
          %v9315 = vunpack.c.h.b16 %v8974
          %v9316 = vunpack.c.l.b16 %v8975
          %v9317 = vunpack.c.h.b16 %v8975
          %v9318 = vunpack.c.l.b16 %v8976
          %v9319 = vunpack.c.h.b16 %v8976
          %v9320 = vunpack.c.l.b16 %v8977
          %v9321 = vunpack.c.h.b16 %v8977
          %v9322 = vunpack.c.l.b16 %v8978
          %v9323 = vunpack.c.h.b16 %v8978
          %v9324 = vunpack.c.l.b16 %v8979
          %v9325 = vunpack.c.h.b16 %v8979
          %v9326 = vunpack.c.l.b16 %v8980
          %v9327 = vunpack.c.h.b16 %v8980
          %v9328 = vunpack.c.l.b16 %v8981
          %v9329 = vunpack.c.h.b16 %v8981
          %v9330 = vunpack.c.l.b16 %v8982
          %v9331 = vunpack.c.h.b16 %v8982
          %v9332 = vunpack.c.l.b16 %v8983
          %v9333 = vunpack.c.h.b16 %v8983
          %v9334 = vunpack.c.l.b16 %v8984
          %v9335 = vunpack.c.h.b16 %v8984
          %v9336 = vunpack.c.l.b16 %v8985
          %v9337 = vunpack.c.h.b16 %v8985
          %v9338 = vunpack.c.l.b16 %v8986
          %v9339 = vunpack.c.h.b16 %v8986
          %v9340 = vunpack.c.l.b16 %v8987
          %v9341 = vunpack.c.h.b16 %v8987
          %v9342 = vunpack.c.l.b16 %v8988
          %v9343 = vunpack.c.h.b16 %v8988
          %v9344 = vunpack.c.l.b16 %v8989
          %v9345 = vunpack.c.h.b16 %v8989
          %v9346 = vunpack.c.l.b16 %v8990
          %v9347 = vunpack.c.h.b16 %v8990
          %v9348 = vunpack.c.l.b16 %v8991
          %v9349 = vunpack.c.h.b16 %v8991
          %v9350 = vunpack.c.l.b16 %v8992
          %v9351 = vunpack.c.h.b16 %v8992
          %v9352 = vunpack.c.l.b16 %v8993
          %v9353 = vunpack.c.h.b16 %v8993
          %v9354 = vunpack.c.l.b16 %v8994
          %v9355 = vunpack.c.h.b16 %v8994
          %v9356 = vunpack.c.l.b16 %v8995
          %v9357 = vunpack.c.h.b16 %v8995
          %v9358 = vunpack.c.l.b16 %v8996
          %v9359 = vunpack.c.h.b16 %v8996
          %v9360 = vunpack.c.l.b16 %v8997
          %v9361 = vunpack.c.h.b16 %v8997
          %v9362 = vunpack.c.l.b16 %v8998
          %v9363 = vunpack.c.h.b16 %v8998
          %v9364 = vunpack.c.l.b16 %v8999
          %v9365 = vunpack.c.h.b16 %v8999
          %v9366 = vunpack.c.l.b16 %v9000
          %v9367 = vunpack.c.h.b16 %v9000
          %v9368 = vunpack.c.l.b16 %v9001
          %v9369 = vunpack.c.h.b16 %v9001
          %v9370 = vunpack.c.l.b16 %v9002
          %v9371 = vunpack.c.h.b16 %v9002
          %v9372 = vunpack.c.l.b16 %v9003
          %v9373 = vunpack.c.h.b16 %v9003
          %v9374 = vunpack.c.l.b16 %v9004
          %v9375 = vunpack.c.h.b16 %v9004
          %v9376 = vunpack.c.l.b16 %v9005
          %v9377 = vunpack.c.h.b16 %v9005
          %v9378 = vunpack.c.l.b16 %v9006
          %v9379 = vunpack.c.h.b16 %v9006
          %v9380 = vunpack.c.l.b16 %v9007
          %v9381 = vunpack.c.h.b16 %v9007
          %v9382 = vunpack.c.l.b16 %v9008
          %v9383 = vunpack.c.h.b16 %v9008
          %v9384 = vunpack.c.l.b16 %v9009
          %v9385 = vunpack.c.h.b16 %v9009
          %v9386 = vunpack.c.l.b16 %v9010
          %v9387 = vunpack.c.h.b16 %v9010
          %v9388 = vunpack.c.l.b16 %v9011
          %v9389 = vunpack.c.h.b16 %v9011
          %v9390 = vunpack.c.l.b16 %v9012
          %v9391 = vunpack.c.h.b16 %v9012
          %v9392 = vunpack.c.l.b16 %v9013
          %v9393 = vunpack.c.h.b16 %v9013
          %v9394 = vunpack.c.l.b16 %v9014
          %v9395 = vunpack.c.h.b16 %v9014
          %v9396 = vunpack.c.l.b16 %v9015
          %v9397 = vunpack.c.h.b16 %v9015
          %v9398 = vunpack.c.l.b16 %v9016
          %v9399 = vunpack.c.h.b16 %v9016
          %v9400 = vunpack.c.l.b16 %v9017
          %v9401 = vunpack.c.h.b16 %v9017
          %v9402 = vpack.c.b16 %v9150, %v9146
          %v9403 = vpack.c.b16 %v9151, %v9147
          %v9404 = vpack.c.b16 %v9152, %v9148
          %v9405 = vpack.c.b16 %v9153, %v9149
          %v9406 = vpack.c.b16 %v9158, %v9154
          %v9407 = vpack.c.b16 %v9159, %v9155
          %v9408 = vpack.c.b16 %v9160, %v9156
          %v9409 = vpack.c.b16 %v9161, %v9157
          %v9410 = vpack.c.b16 %v9166, %v9162
          %v9411 = vpack.c.b16 %v9167, %v9163
          %v9412 = vpack.c.b16 %v9168, %v9164
          %v9413 = vpack.c.b16 %v9169, %v9165
          %v9414 = vpack.c.b16 %v9174, %v9170
          %v9415 = vpack.c.b16 %v9175, %v9171
          %v9416 = vpack.c.b16 %v9176, %v9172
          %v9417 = vpack.c.b16 %v9177, %v9173
          %v9418 = vpack.c.b16 %v9182, %v9178
          %v9419 = vpack.c.b16 %v9183, %v9179
          %v9420 = vpack.c.b16 %v9184, %v9180
          %v9421 = vpack.c.b16 %v9185, %v9181
          %v9422 = vpack.c.b16 %v9190, %v9186
          %v9423 = vpack.c.b16 %v9191, %v9187
          %v9424 = vpack.c.b16 %v9192, %v9188
          %v9425 = vpack.c.b16 %v9193, %v9189
          %v9426 = vpack.c.b16 %v9198, %v9194
          %v9427 = vpack.c.b16 %v9199, %v9195
          %v9428 = vpack.c.b16 %v9200, %v9196
          %v9429 = vpack.c.b16 %v9201, %v9197
          %v9430 = vpack.c.b16 %v9206, %v9202
          %v9431 = vpack.c.b16 %v9207, %v9203
          %v9432 = vpack.c.b16 %v9208, %v9204
          %v9433 = vpack.c.b16 %v9209, %v9205
          %v9434 = vpack.c.b16 %v9214, %v9210
          %v9435 = vpack.c.b16 %v9215, %v9211
          %v9436 = vpack.c.b16 %v9216, %v9212
          %v9437 = vpack.c.b16 %v9217, %v9213
          %v9438 = vpack.c.b16 %v9222, %v9218
          %v9439 = vpack.c.b16 %v9223, %v9219
          %v9440 = vpack.c.b16 %v9224, %v9220
          %v9441 = vpack.c.b16 %v9225, %v9221
          %v9442 = vpack.c.b16 %v9230, %v9226
          %v9443 = vpack.c.b16 %v9231, %v9227
          %v9444 = vpack.c.b16 %v9232, %v9228
          %v9445 = vpack.c.b16 %v9233, %v9229
          %v9446 = vpack.c.b16 %v9238, %v9234
          %v9447 = vpack.c.b16 %v9239, %v9235
          %v9448 = vpack.c.b16 %v9240, %v9236
          %v9449 = vpack.c.b16 %v9241, %v9237
          %v9450 = vpack.c.b16 %v9246, %v9242
          %v9451 = vpack.c.b16 %v9247, %v9243
          %v9452 = vpack.c.b16 %v9248, %v9244
          %v9453 = vpack.c.b16 %v9249, %v9245
          %v9454 = vpack.c.b16 %v9254, %v9250
          %v9455 = vpack.c.b16 %v9255, %v9251
          %v9456 = vpack.c.b16 %v9256, %v9252
          %v9457 = vpack.c.b16 %v9257, %v9253
          %v9458 = vpack.c.b16 %v9262, %v9258
          %v9459 = vpack.c.b16 %v9263, %v9259
          %v9460 = vpack.c.b16 %v9264, %v9260
          %v9461 = vpack.c.b16 %v9265, %v9261
          %v9462 = vpack.c.b16 %v9270, %v9266
          %v9463 = vpack.c.b16 %v9271, %v9267
          %v9464 = vpack.c.b16 %v9272, %v9268
          %v9465 = vpack.c.b16 %v9273, %v9269
          %v9466 = vpack.c.b16 %v9278, %v9274
          %v9467 = vpack.c.b16 %v9279, %v9275
          %v9468 = vpack.c.b16 %v9280, %v9276
          %v9469 = vpack.c.b16 %v9281, %v9277
          %v9470 = vpack.c.b16 %v9286, %v9282
          %v9471 = vpack.c.b16 %v9287, %v9283
          %v9472 = vpack.c.b16 %v9288, %v9284
          %v9473 = vpack.c.b16 %v9289, %v9285
          %v9474 = vpack.c.b16 %v9294, %v9290
          %v9475 = vpack.c.b16 %v9295, %v9291
          %v9476 = vpack.c.b16 %v9296, %v9292
          %v9477 = vpack.c.b16 %v9297, %v9293
          %v9478 = vpack.c.b16 %v9302, %v9298
          %v9479 = vpack.c.b16 %v9303, %v9299
          %v9480 = vpack.c.b16 %v9304, %v9300
          %v9481 = vpack.c.b16 %v9305, %v9301
          %v9482 = vpack.c.b16 %v9310, %v9306
          %v9483 = vpack.c.b16 %v9311, %v9307
          %v9484 = vpack.c.b16 %v9312, %v9308
          %v9485 = vpack.c.b16 %v9313, %v9309
          %v9486 = vpack.c.b16 %v9318, %v9314
          %v9487 = vpack.c.b16 %v9319, %v9315
          %v9488 = vpack.c.b16 %v9320, %v9316
          %v9489 = vpack.c.b16 %v9321, %v9317
          %v9490 = vpack.c.b16 %v9326, %v9322
          %v9491 = vpack.c.b16 %v9327, %v9323
          %v9492 = vpack.c.b16 %v9328, %v9324
          %v9493 = vpack.c.b16 %v9329, %v9325
          %v9494 = vpack.c.b16 %v9334, %v9330
          %v9495 = vpack.c.b16 %v9335, %v9331
          %v9496 = vpack.c.b16 %v9336, %v9332
          %v9497 = vpack.c.b16 %v9337, %v9333
          %v9498 = vpack.c.b16 %v9342, %v9338
          %v9499 = vpack.c.b16 %v9343, %v9339
          %v9500 = vpack.c.b16 %v9344, %v9340
          %v9501 = vpack.c.b16 %v9345, %v9341
          %v9502 = vpack.c.b16 %v9350, %v9346
          %v9503 = vpack.c.b16 %v9351, %v9347
          %v9504 = vpack.c.b16 %v9352, %v9348
          %v9505 = vpack.c.b16 %v9353, %v9349
          %v9506 = vpack.c.b16 %v9358, %v9354
          %v9507 = vpack.c.b16 %v9359, %v9355
          %v9508 = vpack.c.b16 %v9360, %v9356
          %v9509 = vpack.c.b16 %v9361, %v9357
          %v9510 = vpack.c.b16 %v9366, %v9362
          %v9511 = vpack.c.b16 %v9367, %v9363
          %v9512 = vpack.c.b16 %v9368, %v9364
          %v9513 = vpack.c.b16 %v9369, %v9365
          %v9514 = vpack.c.b16 %v9374, %v9370
          %v9515 = vpack.c.b16 %v9375, %v9371
          %v9516 = vpack.c.b16 %v9376, %v9372
          %v9517 = vpack.c.b16 %v9377, %v9373
          %v9518 = vpack.c.b16 %v9382, %v9378
          %v9519 = vpack.c.b16 %v9383, %v9379
          %v9520 = vpack.c.b16 %v9384, %v9380
          %v9521 = vpack.c.b16 %v9385, %v9381
          %v9522 = vpack.c.b16 %v9390, %v9386
          %v9523 = vpack.c.b16 %v9391, %v9387
          %v9524 = vpack.c.b16 %v9392, %v9388
          %v9525 = vpack.c.b16 %v9393, %v9389
          %v9526 = vpack.c.b16 %v9398, %v9394
          %v9527 = vpack.c.b16 %v9399, %v9395
          %v9528 = vpack.c.b16 %v9400, %v9396
          %v9529 = vpack.c.b16 %v9401, %v9397
          %9658 = vmatprep.subr.bf16.mxu0 %v9431
          %9659 = vmatpush1.bf16.msra.mxu0 %v9430
          %9660 = vmatprep.subr.bf16.mxu0 %v9427
          %9661 = vmatpush1.bf16.msra.mxu0 %v9426
          %9662 = vmatprep.subr.bf16.mxu0 %v9423
          %9663 = vmatpush1.bf16.msra.mxu0 %v9422
          %9664 = vmatprep.subr.bf16.mxu0 %v9419
          %9665 = vmatpush1.bf16.msra.mxu0 %v9418
          %9666 = vmatprep.subr.bf16.mxu0 %v9415
          %9667 = vmatpush1.bf16.msra.mxu0 %v9414
          %9668 = vmatprep.subr.bf16.mxu0 %v9411
          %9669 = vmatpush1.bf16.msra.mxu0 %v9410
          %9670 = vmatprep.subr.bf16.mxu0 %v9407
          %9671 = vmatpush1.bf16.msra.mxu0 %v9406
          %9672 = vmatprep.subr.bf16.mxu0 %v9403
          %9673 = vmatpush1.bf16.msra.mxu0 %v9402
          %9674 = vmatprep.subr.bf16.mxu0 %v9463
          %9675 = vmatpush2.bf16.msra.mxu0 %v9462
          %9676 = vmatprep.subr.bf16.mxu0 %v9459
          %9677 = vmatpush2.bf16.msra.mxu0 %v9458
          %9678 = vmatprep.subr.bf16.mxu0 %v9455
          %9679 = vmatpush2.bf16.msra.mxu0 %v9454
          %9680 = vmatprep.subr.bf16.mxu0 %v9451
          %9681 = vmatpush2.bf16.msra.mxu0 %v9450
          %9682 = vmatprep.subr.bf16.mxu0 %v9447
          %9683 = vmatpush2.bf16.msra.mxu0 %v9446
          %9684 = vmatprep.subr.bf16.mxu0 %v9443
          %9685 = vmatpush2.bf16.msra.mxu0 %v9442
          %9686 = vmatprep.subr.bf16.mxu0 %v9439
          %9687 = vmatpush2.bf16.msra.mxu0 %v9438
          %9688 = vmatprep.subr.bf16.mxu0 %v9435
          %9689 = vmatpush2.bf16.msra.mxu0 %v9434
          %9690 = vmatprep.mubr.bf16.mxu0 %v8887
          %9691 = vmatmul.mubr.bf16.gmra.mxu0 %v8886
          %v9692 = vpop.f32.mrf.mxu0
          %v9693 = vadd.f32 0.0, %v9692
          %v9694 = vpop.f32.mrf.mxu0
          %v9695 = vadd.f32 0.0, %v9694
          %v9696 = vpop.f32.mrf.mxu0
          %v9697 = vpop.f32.mrf.mxu0
          %9698 = vdwg.mxu0
          %9699 = vmatprep.subr.bf16.mxu0 %v9495
          %9700 = vmatpush1.bf16.msra.mxu0 %v9494
          %9701 = vmatprep.subr.bf16.mxu0 %v9491
          %9702 = vmatpush1.bf16.msra.mxu0 %v9490
          %9703 = vmatprep.subr.bf16.mxu0 %v9487
          %9704 = vmatpush1.bf16.msra.mxu0 %v9486
          %9705 = vmatprep.subr.bf16.mxu0 %v9483
          %9706 = vmatpush1.bf16.msra.mxu0 %v9482
          %9707 = vmatprep.subr.bf16.mxu0 %v9479
          %9708 = vmatpush1.bf16.msra.mxu0 %v9478
          %9709 = vmatprep.subr.bf16.mxu0 %v9475
          %9710 = vmatpush1.bf16.msra.mxu0 %v9474
          %9711 = vmatprep.subr.bf16.mxu0 %v9471
          %9712 = vmatpush1.bf16.msra.mxu0 %v9470
          %9713 = vmatprep.subr.bf16.mxu0 %v9467
          %9714 = vmatpush1.bf16.msra.mxu0 %v9466
          %9715 = vmatprep.subr.bf16.mxu0 %v9527
          %9716 = vmatpush2.bf16.msra.mxu0 %v9526
          %9717 = vmatprep.subr.bf16.mxu0 %v9523
          %9718 = vmatpush2.bf16.msra.mxu0 %v9522
          %9719 = vmatprep.subr.bf16.mxu0 %v9519
          %9720 = vmatpush2.bf16.msra.mxu0 %v9518
          %9721 = vmatprep.subr.bf16.mxu0 %v9515
          %9722 = vmatpush2.bf16.msra.mxu0 %v9514
          %9723 = vmatprep.subr.bf16.mxu0 %v9511
          %9724 = vmatpush2.bf16.msra.mxu0 %v9510
          %9725 = vmatprep.subr.bf16.mxu0 %v9507
          %9726 = vmatpush2.bf16.msra.mxu0 %v9506
          %9727 = vmatprep.subr.bf16.mxu0 %v9503
          %9728 = vmatpush2.bf16.msra.mxu0 %v9502
          %9729 = vmatprep.subr.bf16.mxu0 %v9499
          %9730 = vmatpush2.bf16.msra.mxu0 %v9498
          %9731 = vmatprep.mubr.bf16.mxu0 %v8889
          %9732 = vmatmul.mubr.bf16.gmra.mxu0 %v8888
          %v9733 = vpop.f32.mrf.mxu0
          %v9734 = vadd.f32 %v9693, %v9733
          %v9735 = vpop.f32.mrf.mxu0
          %v9736 = vadd.f32 %v9695, %v9735
          %v9737 = vpop.f32.mrf.mxu0
          %v9738 = vpop.f32.mrf.mxu0
          %9739 = vdwg.mxu0
          %9740 = vmatprep.subr.bf16.mxu0 %v9433
          %9741 = vmatpush1.bf16.msra.mxu0 %v9432
          %9742 = vmatprep.subr.bf16.mxu0 %v9429
          %9743 = vmatpush1.bf16.msra.mxu0 %v9428
          %9744 = vmatprep.subr.bf16.mxu0 %v9425
          %9745 = vmatpush1.bf16.msra.mxu0 %v9424
          %9746 = vmatprep.subr.bf16.mxu0 %v9421
          %9747 = vmatpush1.bf16.msra.mxu0 %v9420
          %9748 = vmatprep.subr.bf16.mxu0 %v9417
          %9749 = vmatpush1.bf16.msra.mxu0 %v9416
          %9750 = vmatprep.subr.bf16.mxu0 %v9413
          %9751 = vmatpush1.bf16.msra.mxu0 %v9412
          %9752 = vmatprep.subr.bf16.mxu0 %v9409
          %9753 = vmatpush1.bf16.msra.mxu0 %v9408
          %9754 = vmatprep.subr.bf16.mxu0 %v9405
          %9755 = vmatpush1.bf16.msra.mxu0 %v9404
          %9756 = vmatprep.subr.bf16.mxu0 %v9465
          %9757 = vmatpush2.bf16.msra.mxu0 %v9464
          %9758 = vmatprep.subr.bf16.mxu0 %v9461
          %9759 = vmatpush2.bf16.msra.mxu0 %v9460
          %9760 = vmatprep.subr.bf16.mxu0 %v9457
          %9761 = vmatpush2.bf16.msra.mxu0 %v9456
          %9762 = vmatprep.subr.bf16.mxu0 %v9453
          %9763 = vmatpush2.bf16.msra.mxu0 %v9452
          %9764 = vmatprep.subr.bf16.mxu0 %v9449
          %9765 = vmatpush2.bf16.msra.mxu0 %v9448
          %9766 = vmatprep.subr.bf16.mxu0 %v9445
          %9767 = vmatpush2.bf16.msra.mxu0 %v9444
          %9768 = vmatprep.subr.bf16.mxu0 %v9441
          %9769 = vmatpush2.bf16.msra.mxu0 %v9440
          %9770 = vmatprep.subr.bf16.mxu0 %v9437
          %9771 = vmatpush2.bf16.msra.mxu0 %v9436
          %9772 = vmatprep.mubr.bf16.mxu0 %v8887
          %9773 = vmatmul.mubr.bf16.gmra.mxu0 %v8886
          %v9774 = vpop.f32.mrf.mxu0
          %v9775 = vadd.f32 0.0, %v9774
          %v9776 = vpop.f32.mrf.mxu0
          %v9777 = vadd.f32 0.0, %v9776
          %v9778 = vpop.f32.mrf.mxu0
          %v9779 = vpop.f32.mrf.mxu0
          %9780 = vdwg.mxu0
          %9781 = vmatprep.subr.bf16.mxu0 %v9497
          %9782 = vmatpush1.bf16.msra.mxu0 %v9496
          %9783 = vmatprep.subr.bf16.mxu0 %v9493
          %9784 = vmatpush1.bf16.msra.mxu0 %v9492
          %9785 = vmatprep.subr.bf16.mxu0 %v9489
          %9786 = vmatpush1.bf16.msra.mxu0 %v9488
          %9787 = vmatprep.subr.bf16.mxu0 %v9485
          %9788 = vmatpush1.bf16.msra.mxu0 %v9484
          %9789 = vmatprep.subr.bf16.mxu0 %v9481
          %9790 = vmatpush1.bf16.msra.mxu0 %v9480
          %9791 = vmatprep.subr.bf16.mxu0 %v9477
          %9792 = vmatpush1.bf16.msra.mxu0 %v9476
          %9793 = vmatprep.subr.bf16.mxu0 %v9473
          %9794 = vmatpush1.bf16.msra.mxu0 %v9472
          %9795 = vmatprep.subr.bf16.mxu0 %v9469
          %9796 = vmatpush1.bf16.msra.mxu0 %v9468
          %9797 = vmatprep.subr.bf16.mxu0 %v9529
          %9798 = vmatpush2.bf16.msra.mxu0 %v9528
          %9799 = vmatprep.subr.bf16.mxu0 %v9525
          %9800 = vmatpush2.bf16.msra.mxu0 %v9524
          %9801 = vmatprep.subr.bf16.mxu0 %v9521
          %9802 = vmatpush2.bf16.msra.mxu0 %v9520
          %9803 = vmatprep.subr.bf16.mxu0 %v9517
          %9804 = vmatpush2.bf16.msra.mxu0 %v9516
          %9805 = vmatprep.subr.bf16.mxu0 %v9513
          %9806 = vmatpush2.bf16.msra.mxu0 %v9512
          %9807 = vmatprep.subr.bf16.mxu0 %v9509
          %9808 = vmatpush2.bf16.msra.mxu0 %v9508
          %9809 = vmatprep.subr.bf16.mxu0 %v9505
          %9810 = vmatpush2.bf16.msra.mxu0 %v9504
          %9811 = vmatprep.subr.bf16.mxu0 %v9501
          %9812 = vmatpush2.bf16.msra.mxu0 %v9500
          %9813 = vmatprep.mubr.bf16.mxu0 %v8889
          %9814 = vmatmul.mubr.bf16.gmra.mxu0 %v8888
          %v9815 = vpop.f32.mrf.mxu0
          %v9816 = vadd.f32 %v9775, %v9815
          %v9817 = vpop.f32.mrf.mxu0
          %v9818 = vadd.f32 %v9777, %v9817
          %v9819 = vpop.f32.mrf.mxu0
          %v9820 = vpop.f32.mrf.mxu0
          %9821 = vdwg.mxu0
          %v9826 = vcombine.low %v9734, %v9736
          %v9827 = vcombine.low %v9816, %v9818
          %v9829 = vunpack.c.l.s4 1983009808
          %v9830 = vunpack.c.0.s8 %v9829
          %v9831 = vlaneseq
          %v9832 = vshrl.u32 %v9831, 7
          %v9833 = vsub.s32 %v9830, %v9832
          %v9834 = vrot.slane %v9826, %v9833
          %v9836 = vunpack.c.l.s4 1983009808
          %v9837 = vunpack.c.0.s8 %v9836
          %v9838 = vlaneseq
          %v9839 = vshrl.u32 %v9838, 7
          %v9840 = vsub.s32 %v9837, %v9839
          %v9841 = vrot.slane %v9827, %v9840
          %v9842 = vcombine.low %v9834, %v9841
          %9844 = vst [vmem:[%s329] sm:$0xff] %v9842
        $region56: #{squeeze_head.1} parent=35 // pred_fallthru
          _
        %p9845 = scmp.lt.s32.totalorder %s25, 1
        %s9846 = scalar_select %p9845, %s25, 1
        %s9847 = smul.addr %s9846, 4
        %s9848 = smul.addr %s9847, 2
        %s9849 = scalar_lea.vmem %s4, %s9848
        // Predicated region
        $region57: #{squeeze_head.1} parent=35 // pred_check
          %p9850 = pneg %p157
        $region58: #{squeeze_head.1} parent=35 // pred_check_branch
          %9852 = sbr.rel (%p9850) target = $region60
        $region59: #{squeeze_head.1} parent=35 // pred_region
          _
        $region60: #{squeeze_head.1} parent=35 // pred_fallthru
          _
      $region36: #{squeeze_head.1} parent=5 // pred_fallthru
        _
      %p9853 = scmp.le.s32.totalorder 2, %s16
      // Predicated region
      $region61: #{squeeze_head.1} parent=5 // pred_check
        %p9854 = pneg %p9853
      $region62: #{squeeze_head.1} parent=5 // pred_check_branch
        %9856 = sbr.rel (%p9854) target = $region64
      $region63: #{squeeze_head.1} parent=5 // pred_region
        %s9857 = ssub.s32 %s16, 2
        // Predicated region
        $region65: #{squeeze_head.1} parent=63 // pred_check
          %p9858 = pneg %p163
        $region66: #{squeeze_head.1} parent=63 // pred_check_branch
          %9860 = sbr.rel (%p9858) target = $region68
        $region67: #{squeeze_head.1} parent=63 // pred_region
          %p9861 = scmp.lt.s32.totalorder %s27, 1
          %s9862 = scalar_select %p9861, %s27, 1
          %s9863 = smul.addr %s9862, 4
          %s9864 = smul.addr %s9863, 2
          %s9865 = scalar_lea.vmem %s4, %s9864
        $region68: #{squeeze_head.1} parent=63 // pred_fallthru
          _
      $region64: #{squeeze_head.1} parent=5 // pred_fallthru
        _
    $region6: #{squeeze_head.1} parent=1 // loop_footer
      %s20 = sadd.s32 1, %s16
    $region7: #{squeeze_head.1} parent=1 // loop_footer_branch
      %15 = sbr.rel target = $region3
    $region8: #{squeeze_head.1} parent=1 // loop_exit
      _
    %9866 = vsyncpa [#allocation4], 1
    %s9867 = scalar_lea.sflag [#allocation4], 1
    %9868 = vsyncpa %s9867, 1
    %9869 = vsyncpa [#allocation6], 1
    %s9870 = scalar_lea.sflag [#allocation6], 1
    %9871 = vsyncpa %s9870, 1

</llo_original>
